<compile_context>
chip_gen: v6e
topology: v6e:2x2x1
jax: 0.10.0
libtpu: 0.0.40
codegen_flags: <defaults>
</compile_context>

<pallas_src>
import functools

import jax
import jax.numpy as jnp
from jax.experimental import pallas as pl
from jax.experimental.pallas import tpu as pltpu

EPS = 1e-5


# ---------------------------------------------------------------------------
# Hardware-aware sizing
# ---------------------------------------------------------------------------
def _round_up(v, m):
    return ((v + m - 1) // m) * m


def _vmem_limit_bytes():
    """Generation-aware VMEM limit (v7x: 64 MiB physical, v5e/v6e: 128 MiB)."""
    try:
        cap = int(pltpu.get_tpu_info().vmem_capacity_bytes)
    except Exception:
        cap = 128 * 1024 * 1024
    return min(96 * 1024 * 1024, int(cap * 0.72))


def _tile_vmem_bytes(tr, W, C):
    """Per-grid-step VMEM working set of the conv pass (with (8,128) padding)."""
    lane = _round_up(C, 128)
    sub_w = _round_up(W, 8)
    main_in = 2 * tr * sub_w * lane * 4                 # double-buffered f32 input block
    halos = 2 * 2 * sub_w * lane * 4                    # two 1-row halo blocks
    y_out = 2 * tr * sub_w * lane * 2                   # double-buffered bf16 output block
    win = (tr + 2) * _round_up(W + 2, 8) * lane * 2     # zero-ringed window scratch
    col = _round_up(tr * W, 8) * _round_up(9 * C, 128) * 2  # im2col scratch
    return main_in + halos + y_out + win + col


def _pick_row_tile(H, W, C, budget_bytes):
    """Largest row tile that divides H, is a multiple of 8 (or == H, required by
    the lane-packed elementwise pass), and fits the VMEM budget."""
    cands = sorted({t for t in range(8, H + 1, 8) if H % t == 0} | {H})
    best = cands[0]
    for t in cands:
        if t <= 1024 and _tile_vmem_bytes(t, W, C) <= budget_bytes:
            best = max(best, t)
    return best


# ---------------------------------------------------------------------------
# Kernel bodies
# ---------------------------------------------------------------------------
def _conv_bn_stats_kernel(xm_ref, xt_ref, xb_ref, sc_ref, sh_ref, w9_ref,
                          y_ref, stats_ref, win_ref, col_ref, *,
                          tr, W, C, apply_act):
    """One row tile of: [optional folded-BN+ReLU] -> conv3x3 -> (bf16 out, BN partials).

    xm_ref : (1, tr, W, C)   main rows of the source feature map
    xt_ref : (1, 1, W, C)    clamped halo row above (zero-masked when r == 0)
    xb_ref : (1, 1, W, C)    clamped halo row below (zero-masked when r == last)
    sc_ref, sh_ref : (1, C)  folded BN scale/shift for the *input* (pass 2 only)
    w9_ref : (9*C, C)        conv weights reshaped (dy, dx, ci) x co, bf16
    y_ref  : (1, tr, W, C)   conv output (pre-BN), bf16
    stats_ref : (1, 2, C)    running (mean, M2) for this batch element (f32)
    win_ref : (tr+2, W+2, C) bf16 window scratch with a zero ring
    col_ref : (tr*W, 9*C)    bf16 im2col patch scratch
    """
    r = pl.program_id(1)
    nr = pl.num_programs(1)

    # Only the left/right zero ring must be (re)initialised; interior and the
    # top/bottom halo rows are fully rewritten every step.  r is the inner
    # ("arbitrary", never core-sharded) axis, so r == 0 runs first for every
    # batch element on every core.
    @pl.when(r == 0)
    def _zero_ring():
        win_ref[...] = jnp.zeros_like(win_ref)

    def prep(v):                                   # (rows, W, C) float32
        if apply_act:                              # folded BN of the input + ReLU
            v = jnp.maximum(v * sc_ref[0] + sh_ref[0], 0.0)
        return v.astype(win_ref.dtype)             # bf16 MXU operand

    win_ref[1:tr + 1, 1:W + 1, :] = prep(xm_ref[0].astype(jnp.float32))
    top = prep(xt_ref[0].astype(jnp.float32))
    bot = prep(xb_ref[0].astype(jnp.float32))
    zrow = jnp.zeros_like(top)
    win_ref[0:1, 1:W + 1, :] = jnp.where(r > 0, top, zrow)
    win_ref[tr + 1:tr + 2, 1:W + 1, :] = jnp.where(r + 1 < nr, bot, zrow)

    # im2col: one (tr*W, 9C) patch matrix; tap order (dy, dx, ci) matches w9.
    for dy in range(3):
        for dx in range(3):
            t = dy * 3 + dx
            col_ref[:, t * C:(t + 1) * C] = (
                win_ref[dy:dy + tr, dx:dx + W, :].reshape(tr * W, C))

    # Single MXU matmul with K = 9C and f32 accumulation.
    acc = jnp.dot(col_ref[...], w9_ref[...], preferred_element_type=jnp.float32)
    y_ref[0] = acc.reshape(tr, W, C).astype(y_ref.dtype)

    # BatchNorm partials: per-tile centred mean / M2, Chan-combined across r.
    cnt = float(tr * W)
    m_t = jnp.sum(acc, axis=0, keepdims=True) * (1.0 / cnt)      # (1, C)
    d = acc - m_t
    m2_t = jnp.sum(d * d, axis=0, keepdims=True)                 # (1, C)

    @pl.when(r == 0)
    def _init_stats():
        stats_ref[0, 0:1, :] = m_t
        stats_ref[0, 1:2, :] = m2_t

    @pl.when(r > 0)
    def _merge_stats():
        mean_a = stats_ref[0, 0:1, :]
        m2_a = stats_ref[0, 1:2, :]
        n_a = (r * (tr * W)).astype(jnp.float32)
        n_ab = n_a + cnt
        delta = m_t - mean_a
        stats_ref[0, 0:1, :] = mean_a + delta * (cnt / n_ab)
        stats_ref[0, 1:2, :] = m2_a + m2_t + delta * delta * (n_a * cnt / n_ab)


def _bn_res_relu_kernel(y2_ref, x_ref, sc_ref, sh_ref, o_ref):
    """Folded BN2 + residual + ReLU on the lane-packed (tr, W*C) layout."""
    o_ref[0] = jnp.maximum(
        y2_ref[0].astype(jnp.float32) * sc_ref[...] + sh_ref[...] + x_ref[0], 0.0)


# ---------------------------------------------------------------------------
# pallas_call wrappers
# ---------------------------------------------------------------------------
def _conv_bn_stats_call(src, w9, scale_c, shift_c, *, apply_act, tr, vmem_limit):
    N, H, W, C = src.shape
    nr = H // tr
    kernel = functools.partial(_conv_bn_stats_kernel, tr=tr, W=W, C=C,
                               apply_act=apply_act)

    main_spec = pl.BlockSpec((1, tr, W, C), lambda n, r: (n, r, 0, 0))
    top_spec = pl.BlockSpec(
        (1, 1, W, C), lambda n, r: (n, jnp.maximum(r * tr - 1, 0), 0, 0))
    bot_spec = pl.BlockSpec(
        (1, 1, W, C), lambda n, r: (n, jnp.minimum((r + 1) * tr, H - 1), 0, 0))
    vec_spec = pl.BlockSpec((1, C), lambda n, r: (0, 0))
    w_spec = pl.BlockSpec((9 * C, C), lambda n, r: (0, 0))

    y, stats = pl.pallas_call(
        kernel,
        out_shape=(
            jax.ShapeDtypeStruct((N, H, W, C), jnp.bfloat16),   # bf16 intermediate
            jax.ShapeDtypeStruct((N, 2, C), jnp.float32),       # (mean, M2) per n
        ),
        grid_spec=pltpu.PrefetchScalarGridSpec(
            num_scalar_prefetch=0,
            grid=(N, nr),
            in_specs=[main_spec, top_spec, bot_spec, vec_spec, vec_spec, w_spec],
            out_specs=(
                pl.BlockSpec((1, tr, W, C), lambda n, r: (n, r, 0, 0)),
                pl.BlockSpec((1, 2, C), lambda n, r: (n, 0, 0)),
            ),
            scratch_shapes=[
                pltpu.VMEM((tr + 2, W + 2, C), jnp.bfloat16),
                pltpu.VMEM((tr * W, 9 * C), jnp.bfloat16),
            ],
        ),
        compiler_params=pltpu.CompilerParams(
            dimension_semantics=("parallel", "arbitrary"),
            vmem_limit_bytes=vmem_limit),
    )(src, src, src, scale_c, shift_c, w9)
    return y, stats


def _bn_residual_relu_call(y2p, xp, scale_p, shift_p, *, tr, vmem_limit):
    N, H, WC = xp.shape
    nr = H // tr
    blk = pl.BlockSpec((1, tr, WC), lambda n, r: (n, r, 0))
    vec = pl.BlockSpec((1, WC), lambda n, r: (0, 0))
    return pl.pallas_call(
        _bn_res_relu_kernel,
        out_shape=jax.ShapeDtypeStruct((N, H, WC), jnp.float32),
        grid_spec=pltpu.PrefetchScalarGridSpec(
            num_scalar_prefetch=0,
            grid=(N, nr),
            in_specs=[blk, blk, vec, vec],
            out_specs=blk,
        ),
        compiler_params=pltpu.CompilerParams(
            dimension_semantics=("parallel", "parallel"),
            vmem_limit_bytes=vmem_limit),
    )(y2p, xp, scale_p, shift_p)


def _fold_bn(stats, gamma, beta, n_per, total):
    """Combine per-batch-element (mean, M2) into folded BN (scale, shift)."""
    m_n = stats[:, 0, :]                                       # (N, C)
    m2_n = stats[:, 1, :]                                      # (N, C)
    mean = jnp.mean(m_n, axis=0)                               # equal counts per n
    m2 = jnp.sum(m2_n, axis=0) + n_per * jnp.sum((m_n - mean) ** 2, axis=0)
    var = jnp.maximum(m2 / total, 0.0)                         # biased (training BN)
    scale = gamma.reshape(-1) * jax.lax.rsqrt(var + EPS)
    shift = beta.reshape(-1) - mean * scale
    return scale.reshape(1, -1), shift.reshape(1, -1)


def resblock_forward(x_nchw, params):
    """ResBlock forward: conv3x3 -> BN -> ReLU -> conv3x3 -> BN, + residual, ReLU."""
    x4 = jnp.transpose(x_nchw, (0, 2, 3, 1)).astype(jnp.float32)   # NCHW -> NHWC
    N, H, W, C = x4.shape
    vmem_limit = _vmem_limit_bytes()
    tr = _pick_row_tile(H, W, C, int(vmem_limit * 0.6))
    n_per = H * W
    total = N * H * W

    # Conv biases cancel exactly under the training-mode BN mean subtraction that
    # follows each conv; they are not passed to the kernels.
    w1 = params["w1"].astype(jnp.bfloat16).reshape(9 * C, C)   # (dy, dx, ci) x co
    w2 = params["w2"].astype(jnp.bfloat16).reshape(9 * C, C)
    ones_c = jnp.ones((1, C), jnp.float32)
    zeros_c = jnp.zeros((1, C), jnp.float32)

    # Pass 1: conv1 + BN1 partial statistics.
    y1, st1 = _conv_bn_stats_call(x4, w1, ones_c, zeros_c,
                                  apply_act=False, tr=tr, vmem_limit=vmem_limit)
    sc1, sh1 = _fold_bn(st1, params["g1"], params["be1"], n_per, total)

    # Pass 2: (folded BN1 + ReLU) -> conv2 + BN2 partial statistics.
    y2, st2 = _conv_bn_stats_call(y1, w2, sc1, sh1,
                                  apply_act=True, tr=tr, vmem_limit=vmem_limit)
    sc2, sh2 = _fold_bn(st2, params["g2"], params["be2"], n_per, total)

    # Pass 3: folded BN2 + residual + ReLU on the lane-packed (N, H, W*C) layout
    # (reshapes are free row-major merges in HBM).
    out_p = _bn_residual_relu_call(
        y2.reshape(N, H, W * C), x4.reshape(N, H, W * C),
        jnp.tile(sc2, (1, W)), jnp.tile(sh2, (1, W)),
        tr=tr, vmem_limit=vmem_limit)
    out = out_p.reshape(N, H, W, C)
    return jnp.transpose(out, (0, 3, 1, 2))                        # NHWC -> NCHW


# ---------------------------------------------------------------------------
# Pure-JAX reference (bf16 conv operands, f32 BN / elementwise math)
# ---------------------------------------------------------------------------
def ref_resblock(x_nchw, p):
    x = jnp.transpose(x_nchw, (0, 2, 3, 1)).astype(jnp.float32)

    def conv(t, w, b):
        y = jax.lax.conv_general_dilated(
            t.astype(jnp.bfloat16), w.astype(jnp.bfloat16),
            window_strides=(1, 1), padding=((1, 1), (1, 1)),
            dimension_numbers=("NHWC", "HWIO", "NHWC"),
            preferred_element_type=jnp.float32)
        return y + b.reshape(1, 1, 1, -1)

    def bn(t, g, be):
        m = jnp.mean(t, axis=(0, 1, 2), keepdims=True)
        v = jnp.mean((t - m) ** 2, axis=(0, 1, 2), keepdims=True)
        return ((t - m) * jax.lax.rsqrt(v + EPS) * g.reshape(1, 1, 1, -1)
                + be.reshape(1, 1, 1, -1))

    y = jnp.maximum(bn(conv(x, p["w1"], p["b1"]), p["g1"], p["be1"]), 0.0)
    y = bn(conv(y, p["w2"], p["b2"]), p["g2"], p["be2"]) + x
    y = jnp.maximum(y, 0.0)
    return jnp.transpose(y, (0, 3, 1, 2))


if __name__ == "__main__":
    key = jax.random.PRNGKey(0)
    ks = jax.random.split(key, 9)

    N, C, H, W = 2, 4, 16, 16   # channel_num = 4
    x = jax.random.normal(ks[0], (N, C, H, W), jnp.float32)

    # Deterministic synthetic parameters (conv weights in HWIO layout).
    params = dict(
        w1=0.2 * jax.random.normal(ks[1], (3, 3, C, C), jnp.float32),
        b1=0.1 * jax.random.normal(ks[2], (1, C), jnp.float32),
        g1=1.0 + 0.1 * jax.random.normal(ks[3], (1, C), jnp.float32),
        be1=0.1 * jax.random.normal(ks[4], (1, C), jnp.float32),
        w2=0.2 * jax.random.normal(ks[5], (3, 3, C, C), jnp.float32),
        b2=0.1 * jax.random.normal(ks[6], (1, C), jnp.float32),
        g2=1.0 + 0.1 * jax.random.normal(ks[7], (1, C), jnp.float32),
        be2=0.1 * jax.random.normal(ks[8], (1, C), jnp.float32),
    )

    fwd = jax.jit(resblock_forward)
    out = jax.block_until_ready(fwd(x, params))
    ref = jax.block_until_ready(ref_resblock(x, params))

    assert out.shape == (N, C, H, W), out.shape
    max_err = float(jnp.max(jnp.abs(out - ref)))
    # bf16 HBM intermediates (y1/y2) bound the abs error at ~2e-2 for O(1)
    # activations; structural bugs would show up as O(0.1..1) deviations.
    assert bool(jnp.allclose(out, ref, atol=3e-2, rtol=2e-2)), f"max abs err {max_err}"
    print("KERNEL_OK")
</pallas_src>

<mosaic_0001>
module attributes {stable_mosaic.version = 11 : i64} {
  func.func @_conv_bn_stats_kernel(%arg0: i32, %arg1: i32, %arg2: memref<1x16x16x4xf32, #tpu.memory_space<vmem>>, %arg3: memref<1x1x16x4xf32, #tpu.memory_space<vmem>>, %arg4: memref<1x1x16x4xf32, #tpu.memory_space<vmem>>, %arg5: memref<1x4xf32, #tpu.memory_space<vmem>>, %arg6: memref<1x4xf32, #tpu.memory_space<vmem>>, %arg7: memref<36x4xbf16, #tpu.memory_space<vmem>>, %arg8: memref<1x16x16x4xbf16, #tpu.memory_space<vmem>>, %arg9: memref<1x2x4xf32, #tpu.memory_space<vmem>>, %arg10: memref<18x18x4xbf16, #tpu.memory_space<vmem>>, %arg11: memref<256x36xbf16, #tpu.memory_space<vmem>>) attributes {dimension_semantics = [#tpu.dimension_semantics<parallel>, #tpu.dimension_semantics<arbitrary>], iteration_bounds = array<i64: 2, 1>, scalar_prefetch = 0 : i64, scratch_operands = 2 : i64, tpu.core_type = #tpu.core_type<tc>, window_params = [{transform_indices = @transform_0, window_bounds = array<i64: 1, 16, 16, 4>}, {transform_indices = @transform_1, window_bounds = array<i64: 1, 1, 16, 4>}, {transform_indices = @transform_2, window_bounds = array<i64: 1, 1, 16, 4>}, {pipeline_mode = #tpu.pipeline_mode<synchronous>, transform_indices = @transform_3, window_bounds = array<i64: 1, 4>}, {pipeline_mode = #tpu.pipeline_mode<synchronous>, transform_indices = @transform_4, window_bounds = array<i64: 1, 4>}, {pipeline_mode = #tpu.pipeline_mode<synchronous>, transform_indices = @transform_5, window_bounds = array<i64: 36, 4>}, {transform_indices = @transform_6, window_bounds = array<i64: 1, 16, 16, 4>}, {transform_indices = @transform_7, window_bounds = array<i64: 1, 2, 4>}]} {
    %c0_i32 = arith.constant 0 : i32
    %0 = arith.cmpi eq, %arg1, %c0_i32 : i32
    %1 = arith.extui %0 : i1 to i32
    %c0_i32_0 = arith.constant 0 : i32
    %2 = arith.cmpi ne, %1, %c0_i32_0 : i32
    scf.if %2 {
      %cst_73 = arith.constant 0.000000e+00 : bf16
      %71 = vector.broadcast %cst_73 : bf16 to vector<18x18x4xbf16>
      %c0_74 = arith.constant 0 : index
      %c0_75 = arith.constant 0 : index
      %c0_76 = arith.constant 0 : index
      %72 = vector.load %arg10[%c0_74, %c0_75, %c0_76] : memref<18x18x4xbf16, #tpu.memory_space<vmem>>, vector<18x18x4xbf16>
      tpu.vector_store %arg10[%c0_74, %c0_75, %c0_76], %71 {strides = array<i32>} : memref<18x18x4xbf16, #tpu.memory_space<vmem>>, vector<18x18x4xbf16>,
    } else {
    }
    %c0 = arith.constant 0 : index
    %c0_1 = arith.constant 0 : index
    %c0_2 = arith.constant 0 : index
    %c0_3 = arith.constant 0 : index
    %3 = vector.load %arg2[%c0, %c0_1, %c0_2, %c0_3] : memref<1x16x16x4xf32, #tpu.memory_space<vmem>>, vector<1x16x16x4xf32>
    %4 = vector.shape_cast %3 : vector<1x16x16x4xf32> to vector<16x16x4xf32>
    %5 = arith.truncf %4 : vector<16x16x4xf32> to vector<16x16x4xbf16>
    %c1 = arith.constant 1 : index
    %c1_4 = arith.constant 1 : index
    %c0_5 = arith.constant 0 : index
    %6 = vector.load %arg10[%c1, %c1_4, %c0_5] : memref<18x18x4xbf16, #tpu.memory_space<vmem>>, vector<16x16x4xbf16>
    tpu.vector_store %arg10[%c1, %c1_4, %c0_5], %5 {strides = array<i32>} : memref<18x18x4xbf16, #tpu.memory_space<vmem>>, vector<16x16x4xbf16>,
    %c0_6 = arith.constant 0 : index
    %c0_7 = arith.constant 0 : index
    %c0_8 = arith.constant 0 : index
    %c0_9 = arith.constant 0 : index
    %7 = vector.load %arg3[%c0_6, %c0_7, %c0_8, %c0_9] : memref<1x1x16x4xf32, #tpu.memory_space<vmem>>, vector<1x1x16x4xf32>
    %8 = vector.shape_cast %7 : vector<1x1x16x4xf32> to vector<1x16x4xf32>
    %9 = arith.truncf %8 : vector<1x16x4xf32> to vector<1x16x4xbf16>
    %c0_10 = arith.constant 0 : index
    %c0_11 = arith.constant 0 : index
    %c0_12 = arith.constant 0 : index
    %c0_13 = arith.constant 0 : index
    %10 = vector.load %arg4[%c0_10, %c0_11, %c0_12, %c0_13] : memref<1x1x16x4xf32, #tpu.memory_space<vmem>>, vector<1x1x16x4xf32>
    %11 = vector.shape_cast %10 : vector<1x1x16x4xf32> to vector<1x16x4xf32>
    %12 = arith.truncf %11 : vector<1x16x4xf32> to vector<1x16x4xbf16>
    %cst = arith.constant 0.000000e+00 : bf16
    %13 = vector.broadcast %cst : bf16 to vector<1x16x4xbf16>
    %c0_i32_14 = arith.constant 0 : i32
    %14 = arith.cmpi sgt, %arg1, %c0_i32_14 : i32
    %15 = arith.select %14, %9, %13 : vector<1x16x4xbf16>
    %c0_15 = arith.constant 0 : index
    %c1_16 = arith.constant 1 : index
    %c0_17 = arith.constant 0 : index
    %16 = vector.load %arg10[%c0_15, %c1_16, %c0_17] : memref<18x18x4xbf16, #tpu.memory_space<vmem>>, vector<1x16x4xbf16>
    tpu.vector_store %arg10[%c0_15, %c1_16, %c0_17], %15 {strides = array<i32>} : memref<18x18x4xbf16, #tpu.memory_space<vmem>>, vector<1x16x4xbf16>,
    %c1_i32 = arith.constant 1 : i32
    %17 = arith.addi %arg1, %c1_i32 : i32
    %c1_i32_18 = arith.constant 1 : i32
    %18 = arith.cmpi slt, %17, %c1_i32_18 : i32
    %19 = arith.select %18, %12, %13 : vector<1x16x4xbf16>
    %c17 = arith.constant 17 : index
    %c1_19 = arith.constant 1 : index
    %c0_20 = arith.constant 0 : index
    %20 = vector.load %arg10[%c17, %c1_19, %c0_20] : memref<18x18x4xbf16, #tpu.memory_space<vmem>>, vector<1x16x4xbf16>
    tpu.vector_store %arg10[%c17, %c1_19, %c0_20], %19 {strides = array<i32>} : memref<18x18x4xbf16, #tpu.memory_space<vmem>>, vector<1x16x4xbf16>,
    %c0_21 = arith.constant 0 : index
    %c0_22 = arith.constant 0 : index
    %c0_23 = arith.constant 0 : index
    %21 = vector.load %arg10[%c0_21, %c0_22, %c0_23] : memref<18x18x4xbf16, #tpu.memory_space<vmem>>, vector<16x16x4xbf16>
    %22 = vector.shape_cast %21 : vector<16x16x4xbf16> to vector<256x4xbf16>
    %c0_24 = arith.constant 0 : index
    %c0_25 = arith.constant 0 : index
    %23 = vector.load %arg11[%c0_24, %c0_25] : memref<256x36xbf16, #tpu.memory_space<vmem>>, vector<256x4xbf16>
    tpu.vector_store %arg11[%c0_24, %c0_25], %22 {strides = array<i32>} : memref<256x36xbf16, #tpu.memory_space<vmem>>, vector<256x4xbf16>,
    %c0_26 = arith.constant 0 : index
    %c1_27 = arith.constant 1 : index
    %c0_28 = arith.constant 0 : index
    %24 = vector.load %arg10[%c0_26, %c1_27, %c0_28] : memref<18x18x4xbf16, #tpu.memory_space<vmem>>, vector<16x16x4xbf16>
    %25 = vector.shape_cast %24 : vector<16x16x4xbf16> to vector<256x4xbf16>
    %c0_29 = arith.constant 0 : index
    %c4 = arith.constant 4 : index
    %26 = vector.load %arg11[%c0_29, %c4] : memref<256x36xbf16, #tpu.memory_space<vmem>>, vector<256x4xbf16>
    tpu.vector_store %arg11[%c0_29, %c4], %25 {strides = array<i32>} : memref<256x36xbf16, #tpu.memory_space<vmem>>, vector<256x4xbf16>,
    %c0_30 = arith.constant 0 : index
    %c2 = arith.constant 2 : index
    %c0_31 = arith.constant 0 : index
    %27 = vector.load %arg10[%c0_30, %c2, %c0_31] : memref<18x18x4xbf16, #tpu.memory_space<vmem>>, vector<16x16x4xbf16>
    %28 = vector.shape_cast %27 : vector<16x16x4xbf16> to vector<256x4xbf16>
    %c0_32 = arith.constant 0 : index
    %c8 = arith.constant 8 : index
    %29 = vector.load %arg11[%c0_32, %c8] : memref<256x36xbf16, #tpu.memory_space<vmem>>, vector<256x4xbf16>
    tpu.vector_store %arg11[%c0_32, %c8], %28 {strides = array<i32>} : memref<256x36xbf16, #tpu.memory_space<vmem>>, vector<256x4xbf16>,
    %c1_33 = arith.constant 1 : index
    %c0_34 = arith.constant 0 : index
    %c0_35 = arith.constant 0 : index
    %30 = vector.load %arg10[%c1_33, %c0_34, %c0_35] : memref<18x18x4xbf16, #tpu.memory_space<vmem>>, vector<16x16x4xbf16>
    %31 = vector.shape_cast %30 : vector<16x16x4xbf16> to vector<256x4xbf16>
    %c0_36 = arith.constant 0 : index
    %c12 = arith.constant 12 : index
    %32 = vector.load %arg11[%c0_36, %c12] : memref<256x36xbf16, #tpu.memory_space<vmem>>, vector<256x4xbf16>
    tpu.vector_store %arg11[%c0_36, %c12], %31 {strides = array<i32>} : memref<256x36xbf16, #tpu.memory_space<vmem>>, vector<256x4xbf16>,
    %c1_37 = arith.constant 1 : index
    %c1_38 = arith.constant 1 : index
    %c0_39 = arith.constant 0 : index
    %33 = vector.load %arg10[%c1_37, %c1_38, %c0_39] : memref<18x18x4xbf16, #tpu.memory_space<vmem>>, vector<16x16x4xbf16>
    %34 = vector.shape_cast %33 : vector<16x16x4xbf16> to vector<256x4xbf16>
    %c0_40 = arith.constant 0 : index
    %c16 = arith.constant 16 : index
    %35 = vector.load %arg11[%c0_40, %c16] : memref<256x36xbf16, #tpu.memory_space<vmem>>, vector<256x4xbf16>
    tpu.vector_store %arg11[%c0_40, %c16], %34 {strides = array<i32>} : memref<256x36xbf16, #tpu.memory_space<vmem>>, vector<256x4xbf16>,
    %c1_41 = arith.constant 1 : index
    %c2_42 = arith.constant 2 : index
    %c0_43 = arith.constant 0 : index
    %36 = vector.load %arg10[%c1_41, %c2_42, %c0_43] : memref<18x18x4xbf16, #tpu.memory_space<vmem>>, vector<16x16x4xbf16>
    %37 = vector.shape_cast %36 : vector<16x16x4xbf16> to vector<256x4xbf16>
    %c0_44 = arith.constant 0 : index
    %c20 = arith.constant 20 : index
    %38 = vector.load %arg11[%c0_44, %c20] : memref<256x36xbf16, #tpu.memory_space<vmem>>, vector<256x4xbf16>
    tpu.vector_store %arg11[%c0_44, %c20], %37 {strides = array<i32>} : memref<256x36xbf16, #tpu.memory_space<vmem>>, vector<256x4xbf16>,
    %c2_45 = arith.constant 2 : index
    %c0_46 = arith.constant 0 : index
    %c0_47 = arith.constant 0 : index
    %39 = vector.load %arg10[%c2_45, %c0_46, %c0_47] : memref<18x18x4xbf16, #tpu.memory_space<vmem>>, vector<16x16x4xbf16>
    %40 = vector.shape_cast %39 : vector<16x16x4xbf16> to vector<256x4xbf16>
    %c0_48 = arith.constant 0 : index
    %c24 = arith.constant 24 : index
    %41 = vector.load %arg11[%c0_48, %c24] : memref<256x36xbf16, #tpu.memory_space<vmem>>, vector<256x4xbf16>
    tpu.vector_store %arg11[%c0_48, %c24], %40 {strides = array<i32>} : memref<256x36xbf16, #tpu.memory_space<vmem>>, vector<256x4xbf16>,
    %c2_49 = arith.constant 2 : index
    %c1_50 = arith.constant 1 : index
    %c0_51 = arith.constant 0 : index
    %42 = vector.load %arg10[%c2_49, %c1_50, %c0_51] : memref<18x18x4xbf16, #tpu.memory_space<vmem>>, vector<16x16x4xbf16>
    %43 = vector.shape_cast %42 : vector<16x16x4xbf16> to vector<256x4xbf16>
    %c0_52 = arith.constant 0 : index
    %c28 = arith.constant 28 : index
    %44 = vector.load %arg11[%c0_52, %c28] : memref<256x36xbf16, #tpu.memory_space<vmem>>, vector<256x4xbf16>
    tpu.vector_store %arg11[%c0_52, %c28], %43 {strides = array<i32>} : memref<256x36xbf16, #tpu.memory_space<vmem>>, vector<256x4xbf16>,
    %c2_53 = arith.constant 2 : index
    %c2_54 = arith.constant 2 : index
    %c0_55 = arith.constant 0 : index
    %45 = vector.load %arg10[%c2_53, %c2_54, %c0_55] : memref<18x18x4xbf16, #tpu.memory_space<vmem>>, vector<16x16x4xbf16>
    %46 = vector.shape_cast %45 : vector<16x16x4xbf16> to vector<256x4xbf16>
    %c0_56 = arith.constant 0 : index
    %c32 = arith.constant 32 : index
    %47 = vector.load %arg11[%c0_56, %c32] : memref<256x36xbf16, #tpu.memory_space<vmem>>, vector<256x4xbf16>
    tpu.vector_store %arg11[%c0_56, %c32], %46 {strides = array<i32>} : memref<256x36xbf16, #tpu.memory_space<vmem>>, vector<256x4xbf16>,
    %c0_57 = arith.constant 0 : index
    %c0_58 = arith.constant 0 : index
    %48 = vector.load %arg11[%c0_57, %c0_58] : memref<256x36xbf16, #tpu.memory_space<vmem>>, vector<256x36xbf16>
    %c0_59 = arith.constant 0 : index
    %c0_60 = arith.constant 0 : index
    %49 = vector.load %arg7[%c0_59, %c0_60] : memref<36x4xbf16, #tpu.memory_space<vmem>>, vector<36x4xbf16>
    %cst_61 = arith.constant dense<0.000000e+00> : vector<256x4xf32>
    %50 = tpu.matmul %48, %49, %cst_61 {dimension_numbers = #tpu.dot_dimension_numbers<[1], [0], [0], [1], [0, 0, 1, 1], [], []>} : vector<256x36xbf16>, vector<36x4xbf16>, vector<256x4xf32> -> vector<256x4xf32>
    %51 = vector.shape_cast %50 : vector<256x4xf32> to vector<16x16x4xf32>
    %52 = arith.truncf %51 : vector<16x16x4xf32> to vector<16x16x4xbf16>
    %c0_62 = arith.constant 0 : index
    %c0_63 = arith.constant 0 : index
    %c0_64 = arith.constant 0 : index
    %c0_65 = arith.constant 0 : index
    %53 = vector.load %arg8[%c0_62, %c0_63, %c0_64, %c0_65] : memref<1x16x16x4xbf16, #tpu.memory_space<vmem>>, vector<1x16x16x4xbf16>
    %54 = vector.shape_cast %53 : vector<1x16x16x4xbf16> to vector<16x16x4xbf16>
    %55 = vector.shape_cast %52 : vector<16x16x4xbf16> to vector<1x16x16x4xbf16>
    tpu.vector_store %arg8[%c0_62, %c0_63, %c0_64, %c0_65], %55 {strides = array<i32>} : memref<1x16x16x4xbf16, #tpu.memory_space<vmem>>, vector<1x16x16x4xbf16>,
    %cst_66 = arith.constant dense<0.000000e+00> : vector<4xf32>
    %56 = vector.multi_reduction <add>, %50, %cst_66 [0] : vector<256x4xf32> to vector<4xf32>
    %57 = vector.shape_cast %56 : vector<4xf32> to vector<1x4xf32>
    %cst_67 = arith.constant 3.906250e-03 : f32
    %58 = vector.broadcast %cst_67 : f32 to vector<1x4xf32>
    %59 = arith.mulf %57, %58 : vector<1x4xf32>
    %60 = vector.broadcast %59 : vector<1x4xf32> to vector<256x4xf32>
    %61 = arith.subf %50, %60 : vector<256x4xf32>
    %62 = arith.mulf %61, %61 : vector<256x4xf32>
    %cst_68 = arith.constant dense<0.000000e+00> : vector<4xf32>
    %63 = vector.multi_reduction <add>, %62, %cst_68 [0] : vector<256x4xf32> to vector<4xf32>
    %64 = vector.shape_cast %63 : vector<4xf32> to vector<1x4xf32>
    %c0_i32_69 = arith.constant 0 : i32
    %65 = arith.cmpi eq, %arg1, %c0_i32_69 : i32
    %66 = arith.extui %65 : i1 to i32
    %c0_i32_70 = arith.constant 0 : i32
    %67 = arith.cmpi ne, %66, %c0_i32_70 : i32
    scf.if %67 {
      %c0_73 = arith.constant 0 : index
      %c0_74 = arith.constant 0 : index
      %c0_75 = arith.constant 0 : index
      %71 = vector.load %arg9[%c0_73, %c0_74, %c0_75] : memref<1x2x4xf32, #tpu.memory_space<vmem>>, vector<1x1x4xf32>
      %72 = vector.shape_cast %71 : vector<1x1x4xf32> to vector<1x4xf32>
      %73 = vector.shape_cast %59 : vector<1x4xf32> to vector<1x1x4xf32>
      tpu.vector_store %arg9[%c0_73, %c0_74, %c0_75], %73 {strides = array<i32>} : memref<1x2x4xf32, #tpu.memory_space<vmem>>, vector<1x1x4xf32>,
      %c0_76 = arith.constant 0 : index
      %c1_77 = arith.constant 1 : index
      %c0_78 = arith.constant 0 : index
      %74 = vector.load %arg9[%c0_76, %c1_77, %c0_78] : memref<1x2x4xf32, #tpu.memory_space<vmem>>, vector<1x1x4xf32>
      %75 = vector.shape_cast %74 : vector<1x1x4xf32> to vector<1x4xf32>
      %76 = vector.shape_cast %64 : vector<1x4xf32> to vector<1x1x4xf32>
      tpu.vector_store %arg9[%c0_76, %c1_77, %c0_78], %76 {strides = array<i32>} : memref<1x2x4xf32, #tpu.memory_space<vmem>>, vector<1x1x4xf32>,
    } else {
    }
    %c0_i32_71 = arith.constant 0 : i32
    %68 = arith.cmpi sgt, %arg1, %c0_i32_71 : i32
    %69 = arith.extui %68 : i1 to i32
    %c0_i32_72 = arith.constant 0 : i32
    %70 = arith.cmpi ne, %69, %c0_i32_72 : i32
    scf.if %70 {
      %c0_73 = arith.constant 0 : index
      %c0_74 = arith.constant 0 : index
      %c0_75 = arith.constant 0 : index
      %71 = vector.load %arg9[%c0_73, %c0_74, %c0_75] : memref<1x2x4xf32, #tpu.memory_space<vmem>>, vector<1x1x4xf32>
      %72 = vector.shape_cast %71 : vector<1x1x4xf32> to vector<1x4xf32>
      %c0_76 = arith.constant 0 : index
      %c1_77 = arith.constant 1 : index
      %c0_78 = arith.constant 0 : index
      %73 = vector.load %arg9[%c0_76, %c1_77, %c0_78] : memref<1x2x4xf32, #tpu.memory_space<vmem>>, vector<1x1x4xf32>
      %74 = vector.shape_cast %73 : vector<1x1x4xf32> to vector<1x4xf32>
      %c256_i32 = arith.constant 256 : i32
      %75 = arith.muli %arg1, %c256_i32 : i32
      %76 = arith.sitofp %75 : i32 to f32
      %cst_79 = arith.constant 2.560000e+02 : f32
      %77 = arith.addf %76, %cst_79 : f32
      %78 = arith.subf %59, %72 : vector<1x4xf32>
      %cst_80 = arith.constant 2.560000e+02 : f32
      %79 = arith.divf %cst_80, %77 : f32
      %80 = vector.broadcast %79 : f32 to vector<1x4xf32>
      %81 = arith.mulf %78, %80 : vector<1x4xf32>
      %82 = arith.addf %72, %81 : vector<1x4xf32>
      %c0_81 = arith.constant 0 : index
      %c0_82 = arith.constant 0 : index
      %c0_83 = arith.constant 0 : index
      %83 = vector.load %arg9[%c0_81, %c0_82, %c0_83] : memref<1x2x4xf32, #tpu.memory_space<vmem>>, vector<1x1x4xf32>
      %84 = vector.shape_cast %83 : vector<1x1x4xf32> to vector<1x4xf32>
      %85 = vector.shape_cast %82 : vector<1x4xf32> to vector<1x1x4xf32>
      tpu.vector_store %arg9[%c0_81, %c0_82, %c0_83], %85 {strides = array<i32>} : memref<1x2x4xf32, #tpu.memory_space<vmem>>, vector<1x1x4xf32>,
      %86 = arith.addf %74, %64 : vector<1x4xf32>
      %87 = arith.mulf %78, %78 : vector<1x4xf32>
      %cst_84 = arith.constant 2.560000e+02 : f32
      %88 = arith.mulf %76, %cst_84 : f32
      %89 = arith.divf %88, %77 : f32
      %90 = vector.broadcast %89 : f32 to vector<1x4xf32>
      %91 = arith.mulf %87, %90 : vector<1x4xf32>
      %92 = arith.addf %86, %91 : vector<1x4xf32>
      %c0_85 = arith.constant 0 : index
      %c1_86 = arith.constant 1 : index
      %c0_87 = arith.constant 0 : index
      %93 = vector.load %arg9[%c0_85, %c1_86, %c0_87] : memref<1x2x4xf32, #tpu.memory_space<vmem>>, vector<1x1x4xf32>
      %94 = vector.shape_cast %93 : vector<1x1x4xf32> to vector<1x4xf32>
      %95 = vector.shape_cast %92 : vector<1x4xf32> to vector<1x1x4xf32>
      tpu.vector_store %arg9[%c0_85, %c1_86, %c0_87], %95 {strides = array<i32>} : memref<1x2x4xf32, #tpu.memory_space<vmem>>, vector<1x1x4xf32>,
    } else {
    }
    return
  }
  func.func @transform_0(%arg0: i32, %arg1: i32) -> (i32, i32, i32, i32) {
    %c0_i32 = arith.constant 0 : i32
    %c0_i32_0 = arith.constant 0 : i32
    %c0_i32_1 = arith.constant 0 : i32
    return %arg0, %arg1, %c0_i32, %c0_i32_0 : i32, i32, i32, i32
  }
  func.func @transform_1(%arg0: i32, %arg1: i32) -> (i32, i32, i32, i32) {
    %c16_i32 = arith.constant 16 : i32
    %0 = arith.muli %arg1, %c16_i32 : i32
    %c1_i32 = arith.constant 1 : i32
    %1 = arith.subi %0, %c1_i32 : i32
    %c0_i32 = arith.constant 0 : i32
    %2 = arith.maxsi %1, %c0_i32 : i32
    %c0_i32_0 = arith.constant 0 : i32
    %c0_i32_1 = arith.constant 0 : i32
    %c0_i32_2 = arith.constant 0 : i32
    return %arg0, %2, %c0_i32_0, %c0_i32_1 : i32, i32, i32, i32
  }
  func.func @transform_2(%arg0: i32, %arg1: i32) -> (i32, i32, i32, i32) {
    %c1_i32 = arith.constant 1 : i32
    %0 = arith.addi %arg1, %c1_i32 : i32
    %c16_i32 = arith.constant 16 : i32
    %1 = arith.muli %0, %c16_i32 : i32
    %c15_i32 = arith.constant 15 : i32
    %2 = arith.minsi %1, %c15_i32 : i32
    %c0_i32 = arith.constant 0 : i32
    %c0_i32_0 = arith.constant 0 : i32
    %c0_i32_1 = arith.constant 0 : i32
    return %arg0, %2, %c0_i32, %c0_i32_0 : i32, i32, i32, i32
  }
  func.func @transform_3(%arg0: i32, %arg1: i32) -> (i32, i32) {
    %c0_i32 = arith.constant 0 : i32
    %c0_i32_0 = arith.constant 0 : i32
    %c0_i32_1 = arith.constant 0 : i32
    return %c0_i32, %c0_i32_0 : i32, i32
  }
  func.func @transform_4(%arg0: i32, %arg1: i32) -> (i32, i32) {
    %c0_i32 = arith.constant 0 : i32
    %c0_i32_0 = arith.constant 0 : i32
    %c0_i32_1 = arith.constant 0 : i32
    return %c0_i32, %c0_i32_0 : i32, i32
  }
  func.func @transform_5(%arg0: i32, %arg1: i32) -> (i32, i32) {
    %c0_i32 = arith.constant 0 : i32
    %c0_i32_0 = arith.constant 0 : i32
    %c0_i32_1 = arith.constant 0 : i32
    return %c0_i32, %c0_i32_0 : i32, i32
  }
  func.func @transform_6(%arg0: i32, %arg1: i32) -> (i32, i32, i32, i32) {
    %c0_i32 = arith.constant 0 : i32
    %c0_i32_0 = arith.constant 0 : i32
    %c0_i32_1 = arith.constant 0 : i32
    return %arg0, %arg1, %c0_i32, %c0_i32_0 : i32, i32, i32, i32
  }
  func.func @transform_7(%arg0: i32, %arg1: i32) -> (i32, i32, i32) {
    %c0_i32 = arith.constant 0 : i32
    %c0_i32_0 = arith.constant 0 : i32
    %c0_i32_1 = arith.constant 0 : i32
    return %arg0, %c0_i32, %c0_i32_0 : i32, i32, i32
  }
}

module attributes {stable_mosaic.version = 11 : i64} {
  func.func @_conv_bn_stats_kernel(%arg0: i32, %arg1: i32, %arg2: memref<1x16x16x4xbf16, #tpu.memory_space<vmem>>, %arg3: memref<1x1x16x4xbf16, #tpu.memory_space<vmem>>, %arg4: memref<1x1x16x4xbf16, #tpu.memory_space<vmem>>, %arg5: memref<1x4xf32, #tpu.memory_space<vmem>>, %arg6: memref<1x4xf32, #tpu.memory_space<vmem>>, %arg7: memref<36x4xbf16, #tpu.memory_space<vmem>>, %arg8: memref<1x16x16x4xbf16, #tpu.memory_space<vmem>>, %arg9: memref<1x2x4xf32, #tpu.memory_space<vmem>>, %arg10: memref<18x18x4xbf16, #tpu.memory_space<vmem>>, %arg11: memref<256x36xbf16, #tpu.memory_space<vmem>>) attributes {dimension_semantics = [#tpu.dimension_semantics<parallel>, #tpu.dimension_semantics<arbitrary>], iteration_bounds = array<i64: 2, 1>, scalar_prefetch = 0 : i64, scratch_operands = 2 : i64, tpu.core_type = #tpu.core_type<tc>, window_params = [{transform_indices = @transform_0, window_bounds = array<i64: 1, 16, 16, 4>}, {transform_indices = @transform_1, window_bounds = array<i64: 1, 1, 16, 4>}, {transform_indices = @transform_2, window_bounds = array<i64: 1, 1, 16, 4>}, {pipeline_mode = #tpu.pipeline_mode<synchronous>, transform_indices = @transform_3, window_bounds = array<i64: 1, 4>}, {pipeline_mode = #tpu.pipeline_mode<synchronous>, transform_indices = @transform_4, window_bounds = array<i64: 1, 4>}, {pipeline_mode = #tpu.pipeline_mode<synchronous>, transform_indices = @transform_5, window_bounds = array<i64: 36, 4>}, {transform_indices = @transform_6, window_bounds = array<i64: 1, 16, 16, 4>}, {transform_indices = @transform_7, window_bounds = array<i64: 1, 2, 4>}]} {
    %c0_i32 = arith.constant 0 : i32
    %0 = arith.cmpi eq, %arg1, %c0_i32 : i32
    %1 = arith.extui %0 : i1 to i32
    %c0_i32_0 = arith.constant 0 : i32
    %2 = arith.cmpi ne, %1, %c0_i32_0 : i32
    scf.if %2 {
      %cst_88 = arith.constant 0.000000e+00 : bf16
      %110 = vector.broadcast %cst_88 : bf16 to vector<18x18x4xbf16>
      %c0_89 = arith.constant 0 : index
      %c0_90 = arith.constant 0 : index
      %c0_91 = arith.constant 0 : index
      %111 = vector.load %arg10[%c0_89, %c0_90, %c0_91] : memref<18x18x4xbf16, #tpu.memory_space<vmem>>, vector<18x18x4xbf16>
      tpu.vector_store %arg10[%c0_89, %c0_90, %c0_91], %110 {strides = array<i32>} : memref<18x18x4xbf16, #tpu.memory_space<vmem>>, vector<18x18x4xbf16>,
    } else {
    }
    %c0 = arith.constant 0 : index
    %c0_1 = arith.constant 0 : index
    %c0_2 = arith.constant 0 : index
    %c0_3 = arith.constant 0 : index
    %3 = vector.load %arg2[%c0, %c0_1, %c0_2, %c0_3] : memref<1x16x16x4xbf16, #tpu.memory_space<vmem>>, vector<1x16x16x4xbf16>
    %4 = vector.shape_cast %3 : vector<1x16x16x4xbf16> to vector<16x16x4xbf16>
    %5 = arith.extf %4 : vector<16x16x4xbf16> to vector<16x16x4xf32>
    %c0_4 = arith.constant 0 : index
    %c0_5 = arith.constant 0 : index
    %6 = vector.load %arg5[%c0_4, %c0_5] : memref<1x4xf32, #tpu.memory_space<vmem>>, vector<1x4xf32>
    %7 = vector.shape_cast %6 : vector<1x4xf32> to vector<4xf32>
    %8 = vector.shape_cast %7 : vector<4xf32> to vector<1x1x4xf32>
    %9 = vector.broadcast %8 : vector<1x1x4xf32> to vector<16x16x4xf32>
    %10 = arith.mulf %5, %9 : vector<16x16x4xf32>
    %c0_6 = arith.constant 0 : index
    %c0_7 = arith.constant 0 : index
    %11 = vector.load %arg6[%c0_6, %c0_7] : memref<1x4xf32, #tpu.memory_space<vmem>>, vector<1x4xf32>
    %12 = vector.shape_cast %11 : vector<1x4xf32> to vector<4xf32>
    %13 = vector.shape_cast %12 : vector<4xf32> to vector<1x1x4xf32>
    %14 = vector.broadcast %13 : vector<1x1x4xf32> to vector<16x16x4xf32>
    %15 = arith.addf %10, %14 : vector<16x16x4xf32>
    %cst = arith.constant 0.000000e+00 : f32
    %16 = vector.broadcast %cst : f32 to vector<16x16x4xf32>
    %17 = arith.maximumf %15, %16 : vector<16x16x4xf32>
    %18 = arith.truncf %17 : vector<16x16x4xf32> to vector<16x16x4xbf16>
    %c1 = arith.constant 1 : index
    %c1_8 = arith.constant 1 : index
    %c0_9 = arith.constant 0 : index
    %19 = vector.load %arg10[%c1, %c1_8, %c0_9] : memref<18x18x4xbf16, #tpu.memory_space<vmem>>, vector<16x16x4xbf16>
    tpu.vector_store %arg10[%c1, %c1_8, %c0_9], %18 {strides = array<i32>} : memref<18x18x4xbf16, #tpu.memory_space<vmem>>, vector<16x16x4xbf16>,
    %c0_10 = arith.constant 0 : index
    %c0_11 = arith.constant 0 : index
    %c0_12 = arith.constant 0 : index
    %c0_13 = arith.constant 0 : index
    %20 = vector.load %arg3[%c0_10, %c0_11, %c0_12, %c0_13] : memref<1x1x16x4xbf16, #tpu.memory_space<vmem>>, vector<1x1x16x4xbf16>
    %21 = vector.shape_cast %20 : vector<1x1x16x4xbf16> to vector<1x16x4xbf16>
    %22 = arith.extf %21 : vector<1x16x4xbf16> to vector<1x16x4xf32>
    %c0_14 = arith.constant 0 : index
    %c0_15 = arith.constant 0 : index
    %23 = vector.load %arg5[%c0_14, %c0_15] : memref<1x4xf32, #tpu.memory_space<vmem>>, vector<1x4xf32>
    %24 = vector.shape_cast %23 : vector<1x4xf32> to vector<4xf32>
    %25 = vector.shape_cast %24 : vector<4xf32> to vector<1x1x4xf32>
    %26 = vector.broadcast %25 : vector<1x1x4xf32> to vector<1x16x4xf32>
    %27 = arith.mulf %22, %26 : vector<1x16x4xf32>
    %c0_16 = arith.constant 0 : index
    %c0_17 = arith.constant 0 : index
    %28 = vector.load %arg6[%c0_16, %c0_17] : memref<1x4xf32, #tpu.memory_space<vmem>>, vector<1x4xf32>
    %29 = vector.shape_cast %28 : vector<1x4xf32> to vector<4xf32>
    %30 = vector.shape_cast %29 : vector<4xf32> to vector<1x1x4xf32>
    %31 = vector.broadcast %30 : vector<1x1x4xf32> to vector<1x16x4xf32>
    %32 = arith.addf %27, %31 : vector<1x16x4xf32>
    %cst_18 = arith.constant 0.000000e+00 : f32
    %33 = vector.broadcast %cst_18 : f32 to vector<1x16x4xf32>
    %34 = arith.maximumf %32, %33 : vector<1x16x4xf32>
    %35 = arith.truncf %34 : vector<1x16x4xf32> to vector<1x16x4xbf16>
    %c0_19 = arith.constant 0 : index
    %c0_20 = arith.constant 0 : index
    %c0_21 = arith.constant 0 : index
    %c0_22 = arith.constant 0 : index
    %36 = vector.load %arg4[%c0_19, %c0_20, %c0_21, %c0_22] : memref<1x1x16x4xbf16, #tpu.memory_space<vmem>>, vector<1x1x16x4xbf16>
    %37 = vector.shape_cast %36 : vector<1x1x16x4xbf16> to vector<1x16x4xbf16>
    %38 = arith.extf %37 : vector<1x16x4xbf16> to vector<1x16x4xf32>
    %c0_23 = arith.constant 0 : index
    %c0_24 = arith.constant 0 : index
    %39 = vector.load %arg5[%c0_23, %c0_24] : memref<1x4xf32, #tpu.memory_space<vmem>>, vector<1x4xf32>
    %40 = vector.shape_cast %39 : vector<1x4xf32> to vector<4xf32>
    %41 = vector.shape_cast %40 : vector<4xf32> to vector<1x1x4xf32>
    %42 = vector.broadcast %41 : vector<1x1x4xf32> to vector<1x16x4xf32>
    %43 = arith.mulf %38, %42 : vector<1x16x4xf32>
    %c0_25 = arith.constant 0 : index
    %c0_26 = arith.constant 0 : index
    %44 = vector.load %arg6[%c0_25, %c0_26] : memref<1x4xf32, #tpu.memory_space<vmem>>, vector<1x4xf32>
    %45 = vector.shape_cast %44 : vector<1x4xf32> to vector<4xf32>
    %46 = vector.shape_cast %45 : vector<4xf32> to vector<1x1x4xf32>
    %47 = vector.broadcast %46 : vector<1x1x4xf32> to vector<1x16x4xf32>
    %48 = arith.addf %43, %47 : vector<1x16x4xf32>
    %cst_27 = arith.constant 0.000000e+00 : f32
    %49 = vector.broadcast %cst_27 : f32 to vector<1x16x4xf32>
    %50 = arith.maximumf %48, %49 : vector<1x16x4xf32>
    %51 = arith.truncf %50 : vector<1x16x4xf32> to vector<1x16x4xbf16>
    %cst_28 = arith.constant 0.000000e+00 : bf16
    %52 = vector.broadcast %cst_28 : bf16 to vector<1x16x4xbf16>
    %c0_i32_29 = arith.constant 0 : i32
    %53 = arith.cmpi sgt, %arg1, %c0_i32_29 : i32
    %54 = arith.select %53, %35, %52 : vector<1x16x4xbf16>
    %c0_30 = arith.constant 0 : index
    %c1_31 = arith.constant 1 : index
    %c0_32 = arith.constant 0 : index
    %55 = vector.load %arg10[%c0_30, %c1_31, %c0_32] : memref<18x18x4xbf16, #tpu.memory_space<vmem>>, vector<1x16x4xbf16>
    tpu.vector_store %arg10[%c0_30, %c1_31, %c0_32], %54 {strides = array<i32>} : memref<18x18x4xbf16, #tpu.memory_space<vmem>>, vector<1x16x4xbf16>,
    %c1_i32 = arith.constant 1 : i32
    %56 = arith.addi %arg1, %c1_i32 : i32
    %c1_i32_33 = arith.constant 1 : i32
    %57 = arith.cmpi slt, %56, %c1_i32_33 : i32
    %58 = arith.select %57, %51, %52 : vector<1x16x4xbf16>
    %c17 = arith.constant 17 : index
    %c1_34 = arith.constant 1 : index
    %c0_35 = arith.constant 0 : index
    %59 = vector.load %arg10[%c17, %c1_34, %c0_35] : memref<18x18x4xbf16, #tpu.memory_space<vmem>>, vector<1x16x4xbf16>
    tpu.vector_store %arg10[%c17, %c1_34, %c0_35], %58 {strides = array<i32>} : memref<18x18x4xbf16, #tpu.memory_space<vmem>>, vector<1x16x4xbf16>,
    %c0_36 = arith.constant 0 : index
    %c0_37 = arith.constant 0 : index
    %c0_38 = arith.constant 0 : index
    %60 = vector.load %arg10[%c0_36, %c0_37, %c0_38] : memref<18x18x4xbf16, #tpu.memory_space<vmem>>, vector<16x16x4xbf16>
    %61 = vector.shape_cast %60 : vector<16x16x4xbf16> to vector<256x4xbf16>
    %c0_39 = arith.constant 0 : index
    %c0_40 = arith.constant 0 : index
    %62 = vector.load %arg11[%c0_39, %c0_40] : memref<256x36xbf16, #tpu.memory_space<vmem>>, vector<256x4xbf16>
    tpu.vector_store %arg11[%c0_39, %c0_40], %61 {strides = array<i32>} : memref<256x36xbf16, #tpu.memory_space<vmem>>, vector<256x4xbf16>,
    %c0_41 = arith.constant 0 : index
    %c1_42 = arith.constant 1 : index
    %c0_43 = arith.constant 0 : index
    %63 = vector.load %arg10[%c0_41, %c1_42, %c0_43] : memref<18x18x4xbf16, #tpu.memory_space<vmem>>, vector<16x16x4xbf16>
    %64 = vector.shape_cast %63 : vector<16x16x4xbf16> to vector<256x4xbf16>
    %c0_44 = arith.constant 0 : index
    %c4 = arith.constant 4 : index
    %65 = vector.load %arg11[%c0_44, %c4] : memref<256x36xbf16, #tpu.memory_space<vmem>>, vector<256x4xbf16>
    tpu.vector_store %arg11[%c0_44, %c4], %64 {strides = array<i32>} : memref<256x36xbf16, #tpu.memory_space<vmem>>, vector<256x4xbf16>,
    %c0_45 = arith.constant 0 : index
    %c2 = arith.constant 2 : index
    %c0_46 = arith.constant 0 : index
    %66 = vector.load %arg10[%c0_45, %c2, %c0_46] : memref<18x18x4xbf16, #tpu.memory_space<vmem>>, vector<16x16x4xbf16>
    %67 = vector.shape_cast %66 : vector<16x16x4xbf16> to vector<256x4xbf16>
    %c0_47 = arith.constant 0 : index
    %c8 = arith.constant 8 : index
    %68 = vector.load %arg11[%c0_47, %c8] : memref<256x36xbf16, #tpu.memory_space<vmem>>, vector<256x4xbf16>
    tpu.vector_store %arg11[%c0_47, %c8], %67 {strides = array<i32>} : memref<256x36xbf16, #tpu.memory_space<vmem>>, vector<256x4xbf16>,
    %c1_48 = arith.constant 1 : index
    %c0_49 = arith.constant 0 : index
    %c0_50 = arith.constant 0 : index
    %69 = vector.load %arg10[%c1_48, %c0_49, %c0_50] : memref<18x18x4xbf16, #tpu.memory_space<vmem>>, vector<16x16x4xbf16>
    %70 = vector.shape_cast %69 : vector<16x16x4xbf16> to vector<256x4xbf16>
    %c0_51 = arith.constant 0 : index
    %c12 = arith.constant 12 : index
    %71 = vector.load %arg11[%c0_51, %c12] : memref<256x36xbf16, #tpu.memory_space<vmem>>, vector<256x4xbf16>
    tpu.vector_store %arg11[%c0_51, %c12], %70 {strides = array<i32>} : memref<256x36xbf16, #tpu.memory_space<vmem>>, vector<256x4xbf16>,
    %c1_52 = arith.constant 1 : index
    %c1_53 = arith.constant 1 : index
    %c0_54 = arith.constant 0 : index
    %72 = vector.load %arg10[%c1_52, %c1_53, %c0_54] : memref<18x18x4xbf16, #tpu.memory_space<vmem>>, vector<16x16x4xbf16>
    %73 = vector.shape_cast %72 : vector<16x16x4xbf16> to vector<256x4xbf16>
    %c0_55 = arith.constant 0 : index
    %c16 = arith.constant 16 : index
    %74 = vector.load %arg11[%c0_55, %c16] : memref<256x36xbf16, #tpu.memory_space<vmem>>, vector<256x4xbf16>
    tpu.vector_store %arg11[%c0_55, %c16], %73 {strides = array<i32>} : memref<256x36xbf16, #tpu.memory_space<vmem>>, vector<256x4xbf16>,
    %c1_56 = arith.constant 1 : index
    %c2_57 = arith.constant 2 : index
    %c0_58 = arith.constant 0 : index
    %75 = vector.load %arg10[%c1_56, %c2_57, %c0_58] : memref<18x18x4xbf16, #tpu.memory_space<vmem>>, vector<16x16x4xbf16>
    %76 = vector.shape_cast %75 : vector<16x16x4xbf16> to vector<256x4xbf16>
    %c0_59 = arith.constant 0 : index
    %c20 = arith.constant 20 : index
    %77 = vector.load %arg11[%c0_59, %c20] : memref<256x36xbf16, #tpu.memory_space<vmem>>, vector<256x4xbf16>
    tpu.vector_store %arg11[%c0_59, %c20], %76 {strides = array<i32>} : memref<256x36xbf16, #tpu.memory_space<vmem>>, vector<256x4xbf16>,
    %c2_60 = arith.constant 2 : index
    %c0_61 = arith.constant 0 : index
    %c0_62 = arith.constant 0 : index
    %78 = vector.load %arg10[%c2_60, %c0_61, %c0_62] : memref<18x18x4xbf16, #tpu.memory_space<vmem>>, vector<16x16x4xbf16>
    %79 = vector.shape_cast %78 : vector<16x16x4xbf16> to vector<256x4xbf16>
    %c0_63 = arith.constant 0 : index
    %c24 = arith.constant 24 : index
    %80 = vector.load %arg11[%c0_63, %c24] : memref<256x36xbf16, #tpu.memory_space<vmem>>, vector<256x4xbf16>
    tpu.vector_store %arg11[%c0_63, %c24], %79 {strides = array<i32>} : memref<256x36xbf16, #tpu.memory_space<vmem>>, vector<256x4xbf16>,
    %c2_64 = arith.constant 2 : index
    %c1_65 = arith.constant 1 : index
    %c0_66 = arith.constant 0 : index
    %81 = vector.load %arg10[%c2_64, %c1_65, %c0_66] : memref<18x18x4xbf16, #tpu.memory_space<vmem>>, vector<16x16x4xbf16>
    %82 = vector.shape_cast %81 : vector<16x16x4xbf16> to vector<256x4xbf16>
    %c0_67 = arith.constant 0 : index
    %c28 = arith.constant 28 : index
    %83 = vector.load %arg11[%c0_67, %c28] : memref<256x36xbf16, #tpu.memory_space<vmem>>, vector<256x4xbf16>
    tpu.vector_store %arg11[%c0_67, %c28], %82 {strides = array<i32>} : memref<256x36xbf16, #tpu.memory_space<vmem>>, vector<256x4xbf16>,
    %c2_68 = arith.constant 2 : index
    %c2_69 = arith.constant 2 : index
    %c0_70 = arith.constant 0 : index
    %84 = vector.load %arg10[%c2_68, %c2_69, %c0_70] : memref<18x18x4xbf16, #tpu.memory_space<vmem>>, vector<16x16x4xbf16>
    %85 = vector.shape_cast %84 : vector<16x16x4xbf16> to vector<256x4xbf16>
    %c0_71 = arith.constant 0 : index
    %c32 = arith.constant 32 : index
    %86 = vector.load %arg11[%c0_71, %c32] : memref<256x36xbf16, #tpu.memory_space<vmem>>, vector<256x4xbf16>
    tpu.vector_store %arg11[%c0_71, %c32], %85 {strides = array<i32>} : memref<256x36xbf16, #tpu.memory_space<vmem>>, vector<256x4xbf16>,
    %c0_72 = arith.constant 0 : index
    %c0_73 = arith.constant 0 : index
    %87 = vector.load %arg11[%c0_72, %c0_73] : memref<256x36xbf16, #tpu.memory_space<vmem>>, vector<256x36xbf16>
    %c0_74 = arith.constant 0 : index
    %c0_75 = arith.constant 0 : index
    %88 = vector.load %arg7[%c0_74, %c0_75] : memref<36x4xbf16, #tpu.memory_space<vmem>>, vector<36x4xbf16>
    %cst_76 = arith.constant dense<0.000000e+00> : vector<256x4xf32>
    %89 = tpu.matmul %87, %88, %cst_76 {dimension_numbers = #tpu.dot_dimension_numbers<[1], [0], [0], [1], [0, 0, 1, 1], [], []>} : vector<256x36xbf16>, vector<36x4xbf16>, vector<256x4xf32> -> vector<256x4xf32>
    %90 = vector.shape_cast %89 : vector<256x4xf32> to vector<16x16x4xf32>
    %91 = arith.truncf %90 : vector<16x16x4xf32> to vector<16x16x4xbf16>
    %c0_77 = arith.constant 0 : index
    %c0_78 = arith.constant 0 : index
    %c0_79 = arith.constant 0 : index
    %c0_80 = arith.constant 0 : index
    %92 = vector.load %arg8[%c0_77, %c0_78, %c0_79, %c0_80] : memref<1x16x16x4xbf16, #tpu.memory_space<vmem>>, vector<1x16x16x4xbf16>
    %93 = vector.shape_cast %92 : vector<1x16x16x4xbf16> to vector<16x16x4xbf16>
    %94 = vector.shape_cast %91 : vector<16x16x4xbf16> to vector<1x16x16x4xbf16>
    tpu.vector_store %arg8[%c0_77, %c0_78, %c0_79, %c0_80], %94 {strides = array<i32>} : memref<1x16x16x4xbf16, #tpu.memory_space<vmem>>, vector<1x16x16x4xbf16>,
    %cst_81 = arith.constant dense<0.000000e+00> : vector<4xf32>
    %95 = vector.multi_reduction <add>, %89, %cst_81 [0] : vector<256x4xf32> to vector<4xf32>
    %96 = vector.shape_cast %95 : vector<4xf32> to vector<1x4xf32>
    %cst_82 = arith.constant 3.906250e-03 : f32
    %97 = vector.broadcast %cst_82 : f32 to vector<1x4xf32>
    %98 = arith.mulf %96, %97 : vector<1x4xf32>
    %99 = vector.broadcast %98 : vector<1x4xf32> to vector<256x4xf32>
    %100 = arith.subf %89, %99 : vector<256x4xf32>
    %101 = arith.mulf %100, %100 : vector<256x4xf32>
    %cst_83 = arith.constant dense<0.000000e+00> : vector<4xf32>
    %102 = vector.multi_reduction <add>, %101, %cst_83 [0] : vector<256x4xf32> to vector<4xf32>
    %103 = vector.shape_cast %102 : vector<4xf32> to vector<1x4xf32>
    %c0_i32_84 = arith.constant 0 : i32
    %104 = arith.cmpi eq, %arg1, %c0_i32_84 : i32
    %105 = arith.extui %104 : i1 to i32
    %c0_i32_85 = arith.constant 0 : i32
    %106 = arith.cmpi ne, %105, %c0_i32_85 : i32
    scf.if %106 {
      %c0_88 = arith.constant 0 : index
      %c0_89 = arith.constant 0 : index
      %c0_90 = arith.constant 0 : index
      %110 = vector.load %arg9[%c0_88, %c0_89, %c0_90] : memref<1x2x4xf32, #tpu.memory_space<vmem>>, vector<1x1x4xf32>
      %111 = vector.shape_cast %110 : vector<1x1x4xf32> to vector<1x4xf32>
      %112 = vector.shape_cast %98 : vector<1x4xf32> to vector<1x1x4xf32>
      tpu.vector_store %arg9[%c0_88, %c0_89, %c0_90], %112 {strides = array<i32>} : memref<1x2x4xf32, #tpu.memory_space<vmem>>, vector<1x1x4xf32>,
      %c0_91 = arith.constant 0 : index
      %c1_92 = arith.constant 1 : index
      %c0_93 = arith.constant 0 : index
      %113 = vector.load %arg9[%c0_91, %c1_92, %c0_93] : memref<1x2x4xf32, #tpu.memory_space<vmem>>, vector<1x1x4xf32>
      %114 = vector.shape_cast %113 : vector<1x1x4xf32> to vector<1x4xf32>
      %115 = vector.shape_cast %103 : vector<1x4xf32> to vector<1x1x4xf32>
      tpu.vector_store %arg9[%c0_91, %c1_92, %c0_93], %115 {strides = array<i32>} : memref<1x2x4xf32, #tpu.memory_space<vmem>>, vector<1x1x4xf32>,
    } else {
    }
    %c0_i32_86 = arith.constant 0 : i32
    %107 = arith.cmpi sgt, %arg1, %c0_i32_86 : i32
    %108 = arith.extui %107 : i1 to i32
    %c0_i32_87 = arith.constant 0 : i32
    %109 = arith.cmpi ne, %108, %c0_i32_87 : i32
    scf.if %109 {
      %c0_88 = arith.constant 0 : index
      %c0_89 = arith.constant 0 : index
      %c0_90 = arith.constant 0 : index
      %110 = vector.load %arg9[%c0_88, %c0_89, %c0_90] : memref<1x2x4xf32, #tpu.memory_space<vmem>>, vector<1x1x4xf32>
      %111 = vector.shape_cast %110 : vector<1x1x4xf32> to vector<1x4xf32>
      %c0_91 = arith.constant 0 : index
      %c1_92 = arith.constant 1 : index
      %c0_93 = arith.constant 0 : index
      %112 = vector.load %arg9[%c0_91, %c1_92, %c0_93] : memref<1x2x4xf32, #tpu.memory_space<vmem>>, vector<1x1x4xf32>
      %113 = vector.shape_cast %112 : vector<1x1x4xf32> to vector<1x4xf32>
      %c256_i32 = arith.constant 256 : i32
      %114 = arith.muli %arg1, %c256_i32 : i32
      %115 = arith.sitofp %114 : i32 to f32
      %cst_94 = arith.constant 2.560000e+02 : f32
      %116 = arith.addf %115, %cst_94 : f32
      %117 = arith.subf %98, %111 : vector<1x4xf32>
      %cst_95 = arith.constant 2.560000e+02 : f32
      %118 = arith.divf %cst_95, %116 : f32
      %119 = vector.broadcast %118 : f32 to vector<1x4xf32>
      %120 = arith.mulf %117, %119 : vector<1x4xf32>
      %121 = arith.addf %111, %120 : vector<1x4xf32>
      %c0_96 = arith.constant 0 : index
      %c0_97 = arith.constant 0 : index
      %c0_98 = arith.constant 0 : index
      %122 = vector.load %arg9[%c0_96, %c0_97, %c0_98] : memref<1x2x4xf32, #tpu.memory_space<vmem>>, vector<1x1x4xf32>
      %123 = vector.shape_cast %122 : vector<1x1x4xf32> to vector<1x4xf32>
      %124 = vector.shape_cast %121 : vector<1x4xf32> to vector<1x1x4xf32>
      tpu.vector_store %arg9[%c0_96, %c0_97, %c0_98], %124 {strides = array<i32>} : memref<1x2x4xf32, #tpu.memory_space<vmem>>, vector<1x1x4xf32>,
      %125 = arith.addf %113, %103 : vector<1x4xf32>
      %126 = arith.mulf %117, %117 : vector<1x4xf32>
      %cst_99 = arith.constant 2.560000e+02 : f32
      %127 = arith.mulf %115, %cst_99 : f32
      %128 = arith.divf %127, %116 : f32
      %129 = vector.broadcast %128 : f32 to vector<1x4xf32>
      %130 = arith.mulf %126, %129 : vector<1x4xf32>
      %131 = arith.addf %125, %130 : vector<1x4xf32>
      %c0_100 = arith.constant 0 : index
      %c1_101 = arith.constant 1 : index
      %c0_102 = arith.constant 0 : index
      %132 = vector.load %arg9[%c0_100, %c1_101, %c0_102] : memref<1x2x4xf32, #tpu.memory_space<vmem>>, vector<1x1x4xf32>
      %133 = vector.shape_cast %132 : vector<1x1x4xf32> to vector<1x4xf32>
      %134 = vector.shape_cast %131 : vector<1x4xf32> to vector<1x1x4xf32>
      tpu.vector_store %arg9[%c0_100, %c1_101, %c0_102], %134 {strides = array<i32>} : memref<1x2x4xf32, #tpu.memory_space<vmem>>, vector<1x1x4xf32>,
    } else {
    }
    return
  }
  func.func @transform_0(%arg0: i32, %arg1: i32) -> (i32, i32, i32, i32) {
    %c0_i32 = arith.constant 0 : i32
    %c0_i32_0 = arith.constant 0 : i32
    %c0_i32_1 = arith.constant 0 : i32
    return %arg0, %arg1, %c0_i32, %c0_i32_0 : i32, i32, i32, i32
  }
  func.func @transform_1(%arg0: i32, %arg1: i32) -> (i32, i32, i32, i32) {
    %c16_i32 = arith.constant 16 : i32
    %0 = arith.muli %arg1, %c16_i32 : i32
    %c1_i32 = arith.constant 1 : i32
    %1 = arith.subi %0, %c1_i32 : i32
    %c0_i32 = arith.constant 0 : i32
    %2 = arith.maxsi %1, %c0_i32 : i32
    %c0_i32_0 = arith.constant 0 : i32
    %c0_i32_1 = arith.constant 0 : i32
    %c0_i32_2 = arith.constant 0 : i32
    return %arg0, %2, %c0_i32_0, %c0_i32_1 : i32, i32, i32, i32
  }
  func.func @transform_2(%arg0: i32, %arg1: i32) -> (i32, i32, i32, i32) {
    %c1_i32 = arith.constant 1 : i32
    %0 = arith.addi %arg1, %c1_i32 : i32
    %c16_i32 = arith.constant 16 : i32
    %1 = arith.muli %0, %c16_i32 : i32
    %c15_i32 = arith.constant 15 : i32
    %2 = arith.minsi %1, %c15_i32 : i32
    %c0_i32 = arith.constant 0 : i32
    %c0_i32_0 = arith.constant 0 : i32
    %c0_i32_1 = arith.constant 0 : i32
    return %arg0, %2, %c0_i32, %c0_i32_0 : i32, i32, i32, i32
  }
  func.func @transform_3(%arg0: i32, %arg1: i32) -> (i32, i32) {
    %c0_i32 = arith.constant 0 : i32
    %c0_i32_0 = arith.constant 0 : i32
    %c0_i32_1 = arith.constant 0 : i32
    return %c0_i32, %c0_i32_0 : i32, i32
  }
  func.func @transform_4(%arg0: i32, %arg1: i32) -> (i32, i32) {
    %c0_i32 = arith.constant 0 : i32
    %c0_i32_0 = arith.constant 0 : i32
    %c0_i32_1 = arith.constant 0 : i32
    return %c0_i32, %c0_i32_0 : i32, i32
  }
  func.func @transform_5(%arg0: i32, %arg1: i32) -> (i32, i32) {
    %c0_i32 = arith.constant 0 : i32
    %c0_i32_0 = arith.constant 0 : i32
    %c0_i32_1 = arith.constant 0 : i32
    return %c0_i32, %c0_i32_0 : i32, i32
  }
  func.func @transform_6(%arg0: i32, %arg1: i32) -> (i32, i32, i32, i32) {
    %c0_i32 = arith.constant 0 : i32
    %c0_i32_0 = arith.constant 0 : i32
    %c0_i32_1 = arith.constant 0 : i32
    return %arg0, %arg1, %c0_i32, %c0_i32_0 : i32, i32, i32, i32
  }
  func.func @transform_7(%arg0: i32, %arg1: i32) -> (i32, i32, i32) {
    %c0_i32 = arith.constant 0 : i32
    %c0_i32_0 = arith.constant 0 : i32
    %c0_i32_1 = arith.constant 0 : i32
    return %arg0, %c0_i32, %c0_i32_0 : i32, i32, i32
  }
}

module attributes {stable_mosaic.version = 11 : i64} {
  func.func @_bn_res_relu_kernel(%arg0: i32, %arg1: i32, %arg2: memref<1x16x64xbf16, #tpu.memory_space<vmem>>, %arg3: memref<1x16x64xf32, #tpu.memory_space<vmem>>, %arg4: memref<1x64xf32, #tpu.memory_space<vmem>>, %arg5: memref<1x64xf32, #tpu.memory_space<vmem>>, %arg6: memref<1x16x64xf32, #tpu.memory_space<vmem>>) attributes {dimension_semantics = [#tpu.dimension_semantics<parallel>, #tpu.dimension_semantics<parallel>], iteration_bounds = array<i64: 2, 1>, scalar_prefetch = 0 : i64, scratch_operands = 0 : i64, tpu.core_type = #tpu.core_type<tc>, window_params = [{transform_indices = @transform_0, window_bounds = array<i64: 1, 16, 64>}, {transform_indices = @transform_1, window_bounds = array<i64: 1, 16, 64>}, {pipeline_mode = #tpu.pipeline_mode<synchronous>, transform_indices = @transform_2, window_bounds = array<i64: 1, 64>}, {pipeline_mode = #tpu.pipeline_mode<synchronous>, transform_indices = @transform_3, window_bounds = array<i64: 1, 64>}, {transform_indices = @transform_4, window_bounds = array<i64: 1, 16, 64>}]} {
    %c0 = arith.constant 0 : index
    %c0_0 = arith.constant 0 : index
    %c0_1 = arith.constant 0 : index
    %0 = vector.load %arg2[%c0, %c0_0, %c0_1] : memref<1x16x64xbf16, #tpu.memory_space<vmem>>, vector<1x16x64xbf16>
    %1 = vector.shape_cast %0 : vector<1x16x64xbf16> to vector<16x64xbf16>
    %2 = arith.extf %1 : vector<16x64xbf16> to vector<16x64xf32>
    %c0_2 = arith.constant 0 : index
    %c0_3 = arith.constant 0 : index
    %3 = vector.load %arg4[%c0_2, %c0_3] : memref<1x64xf32, #tpu.memory_space<vmem>>, vector<1x64xf32>
    %4 = vector.broadcast %3 : vector<1x64xf32> to vector<16x64xf32>
    %5 = arith.mulf %2, %4 : vector<16x64xf32>
    %c0_4 = arith.constant 0 : index
    %c0_5 = arith.constant 0 : index
    %6 = vector.load %arg5[%c0_4, %c0_5] : memref<1x64xf32, #tpu.memory_space<vmem>>, vector<1x64xf32>
    %7 = vector.broadcast %6 : vector<1x64xf32> to vector<16x64xf32>
    %8 = arith.addf %5, %7 : vector<16x64xf32>
    %c0_6 = arith.constant 0 : index
    %c0_7 = arith.constant 0 : index
    %c0_8 = arith.constant 0 : index
    %9 = vector.load %arg3[%c0_6, %c0_7, %c0_8] : memref<1x16x64xf32, #tpu.memory_space<vmem>>, vector<1x16x64xf32>
    %10 = vector.shape_cast %9 : vector<1x16x64xf32> to vector<16x64xf32>
    %11 = arith.addf %8, %10 : vector<16x64xf32>
    %cst = arith.constant 0.000000e+00 : f32
    %12 = vector.broadcast %cst : f32 to vector<16x64xf32>
    %13 = arith.maximumf %11, %12 : vector<16x64xf32>
    %c0_9 = arith.constant 0 : index
    %c0_10 = arith.constant 0 : index
    %c0_11 = arith.constant 0 : index
    %14 = vector.load %arg6[%c0_9, %c0_10, %c0_11] : memref<1x16x64xf32, #tpu.memory_space<vmem>>, vector<1x16x64xf32>
    %15 = vector.shape_cast %14 : vector<1x16x64xf32> to vector<16x64xf32>
    %16 = vector.shape_cast %13 : vector<16x64xf32> to vector<1x16x64xf32>
    tpu.vector_store %arg6[%c0_9, %c0_10, %c0_11], %16 {strides = array<i32>} : memref<1x16x64xf32, #tpu.memory_space<vmem>>, vector<1x16x64xf32>,
    return
  }
  func.func @transform_0(%arg0: i32, %arg1: i32) -> (i32, i32, i32) {
    %c0_i32 = arith.constant 0 : i32
    %c0_i32_0 = arith.constant 0 : i32
    return %arg0, %arg1, %c0_i32 : i32, i32, i32
  }
  func.func @transform_1(%arg0: i32, %arg1: i32) -> (i32, i32, i32) {
    %c0_i32 = arith.constant 0 : i32
    %c0_i32_0 = arith.constant 0 : i32
    return %arg0, %arg1, %c0_i32 : i32, i32, i32
  }
  func.func @transform_2(%arg0: i32, %arg1: i32) -> (i32, i32) {
    %c0_i32 = arith.constant 0 : i32
    %c0_i32_0 = arith.constant 0 : i32
    %c0_i32_1 = arith.constant 0 : i32
    return %c0_i32, %c0_i32_0 : i32, i32
  }
  func.func @transform_3(%arg0: i32, %arg1: i32) -> (i32, i32) {
    %c0_i32 = arith.constant 0 : i32
    %c0_i32_0 = arith.constant 0 : i32
    %c0_i32_1 = arith.constant 0 : i32
    return %c0_i32, %c0_i32_0 : i32, i32
  }
  func.func @transform_4(%arg0: i32, %arg1: i32) -> (i32, i32, i32) {
    %c0_i32 = arith.constant 0 : i32
    %c0_i32_0 = arith.constant 0 : i32
    return %arg0, %arg1, %c0_i32 : i32, i32, i32
  }
}

</mosaic_0001>

<llo_original>
// kernel: resblock_forward.5
$region0: #{resblock_forward.5}
  #allocation0 [shape = 'u32[]', space=smem, size = 0x4, offset = 0x4, fixed_abs, tag = 'smem constant byte address 0x4 - core index']
  #allocation1 [shape = 'u32[144,128]{1,0:T(1,128)}', space=vmem, size = 0x12000, scoped, tag = 'internal scratch']
  %s0 = inlined_call_operand.vmem [shape: bf16[2,16,64], index: 0, kind: input, shape index: {}]
  %s1 = inlined_call_operand.vmem [shape: f32[2,16,64], index: 1, kind: input, shape index: {}]
  %s2 = inlined_call_operand.vmem [shape: f32[1,64], index: 2, kind: input, shape index: {}]
  %s3 = inlined_call_operand.vmem [shape: f32[1,64], index: 3, kind: input, shape index: {}]
  %s4 = inlined_call_operand.vmem [shape: f32[2,16,64], index: 4, kind: output, shape index: {}]
  %s5 = sld [smem:[#allocation0]]
  $region49: #{resblock_forward.5} parent=0
    _
  %s7 = ssub.s32 1, %s5
  %s8 = scalar_select 0, %s7, %s5
  loop: start=0, step=1, limit=4
  $region2: #{resblock_forward.5} parent=0 // loop_pre_header
    _
  $region3: #{resblock_forward.5} parent=0 // loop_header
    %s10 = sphi 0, %s14
    %p11 = scmp.ge.s32.totalorder %s10, 4
    %s17 = sphi 0, %s29
    %s18 = sphi 0, %s25
    %s19 = sphi 0, %s17
    %s20 = sphi 0, %s18
    %s21 = sphi 0, %s19
    %s22 = sphi 0, %s20
    %s34 = sphi 0, %s36
    %s37 = sphi 0, %s34
    %s38 = sphi 0, %s37
    %s54 = sphi 0, %s38
    %s62 = sphi 0, %s64
    %s65 = sphi 0, %s62
    %s66 = sphi 0, %s65
    %s82 = sphi 0, %s66
    %s86 = sphi 0, %s86
    %s88 = sphi 0, %s86
    %s89 = sphi 0, %s88
    %s103 = sphi 0, %s89
    %s107 = sphi 0, %s107
    %s109 = sphi 0, %s107
    %s110 = sphi 0, %s109
    %s124 = sphi 0, %s110
    %s132 = sphi 0, %s134
    %s135 = sphi 0, %s132
    %s136 = sphi 0, %s135
    %s152 = sphi 0, %s136
  $region4: #{resblock_forward.5} parent=0 // loop_header_branch
    %13 = sbr.rel (%p11) target = $region8
  $region5: #{resblock_forward.5} parent=0 // loop_body
    %s15 = ssub.s32 %s10, 1
    %s16 = ssub.s32 %s10, 2
    %s23 = sadd.s32 1, %s18
    %p24 = scmp.ge.s32.totalorder %s23, 1
    %s25 = scalar_select %p24, 0, %s23
    %s26 = sadd.s32 1, %s17
    %s27 = scalar_select %p24, %s26, %s17
    %p28 = scmp.ge.s32.totalorder %s27, 2
    %s29 = scalar_select %p28, 0, %s27
    %s30 = ssub.s32 %s17, %s29
    %s31 = ssub.s32 %s18, %s25
    %s32 = sor.u32 %s30, %s31
    %p33 = scmp.eq.s32.totalorder %s32, 0
    %s35 = sadd.s32 %s34, 1
    %s36 = scalar_select %p33, %s34, %s35
    %p39 = pneg %p33
    %p40 = scmp.eq.s32.totalorder %s10, 1
    %p41 = por %p39, %p40
    %p42 = scmp.ne.s32.totalorder %s34, %s37
    %p43 = scmp.eq.s32.totalorder %s10, 0
    %p44 = por %p42, %p43
    %p45 = scmp.ne.s32.totalorder %s34, %s37
    %p46 = scmp.eq.s32.totalorder %s15, 1
    %p47 = por %p45, %p46
    %p48 = scmp.ne.s32.totalorder %s37, %s38
    %p49 = scmp.eq.s32.totalorder %s15, 0
    %p50 = por %p48, %p49
    %p51 = scmp.ne.s32.totalorder %s37, %s38
    %p52 = scmp.eq.s32.totalorder %s16, 1
    %p53 = por %p51, %p52
    %p55 = scmp.ne.s32.totalorder %s38, %s54
    %p56 = scmp.eq.s32.totalorder %s16, 0
    %p57 = por %p55, %p56
    %s58 = ssub.s32 %s17, %s29
    %s59 = ssub.s32 %s18, %s25
    %s60 = sor.u32 %s58, %s59
    %p61 = scmp.eq.s32.totalorder %s60, 0
    %s63 = sadd.s32 %s62, 1
    %s64 = scalar_select %p61, %s62, %s63
    %p67 = pneg %p61
    %p68 = scmp.eq.s32.totalorder %s10, 1
    %p69 = por %p67, %p68
    %p70 = scmp.ne.s32.totalorder %s62, %s65
    %p71 = scmp.eq.s32.totalorder %s10, 0
    %p72 = por %p70, %p71
    %p73 = scmp.ne.s32.totalorder %s62, %s65
    %p74 = scmp.eq.s32.totalorder %s15, 1
    %p75 = por %p73, %p74
    %p76 = scmp.ne.s32.totalorder %s65, %s66
    %p77 = scmp.eq.s32.totalorder %s15, 0
    %p78 = por %p76, %p77
    %p79 = scmp.ne.s32.totalorder %s65, %s66
    %p80 = scmp.eq.s32.totalorder %s16, 1
    %p81 = por %p79, %p80
    %p83 = scmp.ne.s32.totalorder %s66, %s82
    %p84 = scmp.eq.s32.totalorder %s16, 0
    %p85 = por %p83, %p84
    %s87 = sadd.s32 %s86, 1
    %p90 = scmp.eq.s32.totalorder %s10, 1
    %p91 = scmp.ne.s32.totalorder %s86, %s88
    %p92 = scmp.eq.s32.totalorder %s10, 0
    %p93 = por %p91, %p92
    %p94 = scmp.ne.s32.totalorder %s86, %s88
    %p95 = scmp.eq.s32.totalorder %s15, 1
    %p96 = por %p94, %p95
    %p97 = scmp.ne.s32.totalorder %s88, %s89
    %p98 = scmp.eq.s32.totalorder %s15, 0
    %p99 = por %p97, %p98
    %p100 = scmp.ne.s32.totalorder %s88, %s89
    %p101 = scmp.eq.s32.totalorder %s16, 1
    %p102 = por %p100, %p101
    %p104 = scmp.ne.s32.totalorder %s89, %s103
    %p105 = scmp.eq.s32.totalorder %s16, 0
    %p106 = por %p104, %p105
    %s108 = sadd.s32 %s107, 1
    %p111 = scmp.eq.s32.totalorder %s10, 1
    %p112 = scmp.ne.s32.totalorder %s107, %s109
    %p113 = scmp.eq.s32.totalorder %s10, 0
    %p114 = por %p112, %p113
    %p115 = scmp.ne.s32.totalorder %s107, %s109
    %p116 = scmp.eq.s32.totalorder %s15, 1
    %p117 = por %p115, %p116
    %p118 = scmp.ne.s32.totalorder %s109, %s110
    %p119 = scmp.eq.s32.totalorder %s15, 0
    %p120 = por %p118, %p119
    %p121 = scmp.ne.s32.totalorder %s109, %s110
    %p122 = scmp.eq.s32.totalorder %s16, 1
    %p123 = por %p121, %p122
    %p125 = scmp.ne.s32.totalorder %s110, %s124
    %p126 = scmp.eq.s32.totalorder %s16, 0
    %p127 = por %p125, %p126
    %s128 = ssub.s32 %s17, %s29
    %s129 = ssub.s32 %s18, %s25
    %s130 = sor.u32 %s128, %s129
    %p131 = scmp.eq.s32.totalorder %s130, 0
    %s133 = sadd.s32 %s132, 1
    %s134 = scalar_select %p131, %s132, %s133
    %p137 = pneg %p131
    %p138 = scmp.eq.s32.totalorder %s10, 1
    %p139 = por %p137, %p138
    %p140 = scmp.ne.s32.totalorder %s132, %s135
    %p141 = scmp.eq.s32.totalorder %s10, 0
    %p142 = por %p140, %p141
    %p143 = scmp.ne.s32.totalorder %s132, %s135
    %p144 = scmp.eq.s32.totalorder %s15, 1
    %p145 = por %p143, %p144
    %p146 = scmp.ne.s32.totalorder %s135, %s136
    %p147 = scmp.eq.s32.totalorder %s15, 0
    %p148 = por %p146, %p147
    %p149 = scmp.ne.s32.totalorder %s135, %s136
    %p150 = scmp.eq.s32.totalorder %s16, 1
    %p151 = por %p149, %p150
    %p153 = scmp.ne.s32.totalorder %s136, %s152
    %p154 = scmp.eq.s32.totalorder %s16, 0
    %p155 = por %p153, %p154
    %p156 = scmp.le.s32.totalorder 1, %s10
    %p157 = scmp.lt.s32.totalorder %s10, 3
    %p158 = pnand %p156, %p157
    %p159 = pneg %p158
    // Predicated region
    $region9: #{resblock_forward.5} parent=5 // pred_check
      _
    $region10: #{resblock_forward.5} parent=5 // pred_check_branch
      %161 = sbr.rel (%p158) target = $region12
    $region11: #{resblock_forward.5} parent=5 // pred_region
      %s162 = ssub.s32 %s10, 1
      // Predicated region
      $region13: #{resblock_forward.5} parent=11 // pred_check
        %p163 = pneg %p99
      $region14: #{resblock_forward.5} parent=11 // pred_check_branch
        %165 = sbr.rel (%p163) target = $region16
      $region15: #{resblock_forward.5} parent=11 // pred_region
        _
      $region16: #{resblock_forward.5} parent=11 // pred_fallthru
        _
      // Predicated region
      $region17: #{resblock_forward.5} parent=11 // pred_check
        %p166 = pneg %p120
      $region18: #{resblock_forward.5} parent=11 // pred_check_branch
        %168 = sbr.rel (%p166) target = $region20
      $region19: #{resblock_forward.5} parent=11 // pred_region
        _
      $region20: #{resblock_forward.5} parent=11 // pred_fallthru
        _
    $region12: #{resblock_forward.5} parent=5 // pred_fallthru
      _
    %p169 = scmp.lt.s32.totalorder %s10, 2
    // Predicated region
    $region21: #{resblock_forward.5} parent=5 // pred_check
      %p170 = pneg %p169
    $region22: #{resblock_forward.5} parent=5 // pred_check_branch
      %172 = sbr.rel (%p170) target = $region24
    $region23: #{resblock_forward.5} parent=5 // pred_region
      // Predicated region
      $region25: #{resblock_forward.5} parent=23 // pred_check
        %p173 = pneg %p44
      $region26: #{resblock_forward.5} parent=23 // pred_check_branch
        %175 = sbr.rel (%p173) target = $region28
      $region27: #{resblock_forward.5} parent=23 // pred_region
        %s176 = smul.u32 2, %s18
        %p177 = scmp.lt.s32.totalorder %s17, 1
        %s178 = scalar_select %p177, %s17, 1
        %p179 = scmp.lt.s32.totalorder %s176, 1
        %s180 = scalar_select %p179, %s176, 1
        %s181 = smul.addr %s178, 2
        %s182 = sadd.s32 %s180, %s181
        %s183 = smul.addr %s182, 4
        %s184 = scalar_lea.vmem %s0, %s183
        %s185 = smul.u32 2, %s18
      $region28: #{resblock_forward.5} parent=23 // pred_fallthru
        _
      // Predicated region
      $region29: #{resblock_forward.5} parent=23 // pred_check
        %p186 = pneg %p72
      $region30: #{resblock_forward.5} parent=23 // pred_check_branch
        %188 = sbr.rel (%p186) target = $region32
      $region31: #{resblock_forward.5} parent=23 // pred_region
        %s189 = smul.u32 2, %s18
        %p190 = scmp.lt.s32.totalorder %s17, 1
        %s191 = scalar_select %p190, %s17, 1
        %p192 = scmp.lt.s32.totalorder %s189, 1
        %s193 = scalar_select %p192, %s189, 1
        %s194 = smul.addr %s191, 2
        %s195 = sadd.s32 %s193, %s194
        %s196 = smul.addr %s195, 8
        %s197 = scalar_lea.vmem %s1, %s196
        %s198 = smul.u32 2, %s18
      $region32: #{resblock_forward.5} parent=23 // pred_fallthru
        _
    $region24: #{resblock_forward.5} parent=5 // pred_fallthru
      _
    %p199 = scmp.le.s32.totalorder 1, %s10
    %p200 = scmp.lt.s32.totalorder %s10, 3
    %p201 = pnand %p199, %p200
    %p202 = pneg %p201
    // Predicated region
    $region33: #{resblock_forward.5} parent=5 // pred_check
      _
    $region34: #{resblock_forward.5} parent=5 // pred_check_branch
      %204 = sbr.rel (%p201) target = $region36
    $region35: #{resblock_forward.5} parent=5 // pred_region
      %s205 = ssub.s32 %s10, 1
      %s206 = smul.u32 2, %s20
      %p207 = scmp.lt.s32.totalorder %s19, 1
      %s208 = scalar_select %p207, %s19, 1
      %p209 = scmp.lt.s32.totalorder %s206, 1
      %s210 = scalar_select %p209, %s206, 1
      %s211 = smul.addr %s208, 2
      %s212 = sadd.s32 %s210, %s211
      %s213 = smul.addr %s212, 4
      %s214 = scalar_lea.vmem %s0, %s213
      %p215 = pneg %p50
      %p216 = pneg %p47
      %s217 = smul.u32 2, %s20
      %p218 = scmp.lt.s32.totalorder %s19, 1
      %s219 = scalar_select %p218, %s19, 1
      %p220 = scmp.lt.s32.totalorder %s217, 1
      %s221 = scalar_select %p220, %s217, 1
      %s222 = smul.addr %s219, 2
      %s223 = sadd.s32 %s221, %s222
      %s224 = smul.addr %s223, 8
      %s225 = scalar_lea.vmem %s1, %s224
      %p226 = pneg %p78
      %p227 = pneg %p75
      %p228 = pneg %p99
      %p229 = pneg %p96
      %p230 = pneg %p120
      %p231 = pneg %p117
      %p232 = pneg %p148
      %p233 = pneg %p145
      %s234 = smul.u32 2, %s20
      %p235 = scmp.lt.s32.totalorder %s19, 1
      %s236 = scalar_select %p235, %s19, 1
      %p237 = scmp.lt.s32.totalorder %s234, 1
      %s238 = scalar_select %p237, %s234, 1
      %s239 = smul.addr %s236, 2
      %s240 = sadd.s32 %s238, %s239
      %s241 = smul.addr %s240, 8
      %s242 = scalar_lea.vmem %s4, %s241
      %s243 = smul.u32 2, %s20
      %p244 = scmp.lt.s32.totalorder %s19, 1
      %s245 = scalar_select %p244, %s19, 1
      %p246 = scmp.lt.s32.totalorder %s243, 1
      %s247 = scalar_select %p246, %s243, 1
      %s248 = smul.addr %s245, 2
      %s249 = sadd.s32 %s247, %s248
      %s250 = smul.addr %s249, 4
      %s251 = scalar_lea.vmem %s0, %s250
      %s252 = smul.u32 2, %s20
      %s253 = smul.u32 2, %s20
      %p254 = scmp.lt.s32.totalorder %s19, 1
      %s255 = scalar_select %p254, %s19, 1
      %p256 = scmp.lt.s32.totalorder %s253, 1
      %s257 = scalar_select %p256, %s253, 1
      %s258 = smul.addr %s255, 2
      %s259 = sadd.s32 %s257, %s258
      %s260 = smul.addr %s259, 8
      %s261 = scalar_lea.vmem %s1, %s260
      %s262 = smul.u32 2, %s20
      %s263 = smul.u32 2, %s20
      %p264 = scmp.lt.s32.totalorder %s19, 1
      %s265 = scalar_select %p264, %s19, 1
      %p266 = scmp.lt.s32.totalorder %s263, 1
      %s267 = scalar_select %p266, %s263, 1
      %s268 = smul.addr %s265, 2
      %s269 = sadd.s32 %s267, %s268
      %s270 = smul.addr %s269, 8
      %s271 = scalar_lea.vmem %s4, %s270
      %s272 = smul.u32 2, %s20
      %v273 = vld [vmem:[%s251] sm:$0xf]
      %v274 = vld [vmem:[%s251 + $0x4] sm:$0xf]
      %v275 = vunpack.c.l.bf16 %v273
      %v276 = vunpack.c.l.bf16 %v274
      %v277 = vld [vmem:[%s2] sm:$0x1]
      %v279 = vlaneseq
      %v280 = vshrl.u32 %v279, 7
      %v281 = vsub.s32 0, %v280
      %v282 = vrot.slane %v277, %v281
      %v284 = vmul.f32 %v275, %v282
      %v285 = vmul.f32 %v276, %v282
      %v286 = vld [vmem:[%s3] sm:$0x1]
      %v288 = vlaneseq
      %v289 = vshrl.u32 %v288, 7
      %v290 = vsub.s32 0, %v289
      %v291 = vrot.slane %v286, %v290
      %v293 = vadd.f32 %v284, %v291
      %v294 = vadd.f32 %v285, %v291
      %v295 = vld [vmem:[%s261] sm:$0xff]
      %v296 = vld [vmem:[%s261 + $0x8] sm:$0xff]
      %v297 = vadd.f32 %v293, %v295
      %v298 = vadd.f32 %v294, %v296
      %v299 = vmax.f32 %v297, 0.0
      %v300 = vmax.f32 %v298, 0.0
      %vm301 = vcmask 523264
      %302 = vst.msk [vmem:[%s271] sm:$0xff] %vm301, %v299
      %303 = vst.msk [vmem:[%s271 + $0x8] sm:$0xff] %vm301, %v300
      %s304 = smul.u32 2, %s20
      %p305 = scmp.lt.s32.totalorder %s19, 1
      %s306 = scalar_select %p305, %s19, 1
      %p307 = scmp.lt.s32.totalorder %s304, 1
      %s308 = scalar_select %p307, %s304, 1
      %s309 = smul.addr %s306, 2
      %s310 = sadd.s32 %s308, %s309
      %s311 = smul.addr %s310, 8
      %s312 = scalar_lea.vmem %s4, %s311
      // Predicated region
      $region37: #{resblock_forward.5} parent=35 // pred_check
        %p313 = pneg %p145
      $region38: #{resblock_forward.5} parent=35 // pred_check_branch
        %315 = sbr.rel (%p313) target = $region40
      $region39: #{resblock_forward.5} parent=35 // pred_region
        %s316 = smul.u32 2, %s20
      $region40: #{resblock_forward.5} parent=35 // pred_fallthru
        _
    $region36: #{resblock_forward.5} parent=5 // pred_fallthru
      _
    %p317 = scmp.le.s32.totalorder 2, %s10
    // Predicated region
    $region41: #{resblock_forward.5} parent=5 // pred_check
      %p318 = pneg %p317
    $region42: #{resblock_forward.5} parent=5 // pred_check_branch
      %320 = sbr.rel (%p318) target = $region44
    $region43: #{resblock_forward.5} parent=5 // pred_region
      %s321 = ssub.s32 %s10, 2
      // Predicated region
      $region45: #{resblock_forward.5} parent=43 // pred_check
        %p322 = pneg %p151
      $region46: #{resblock_forward.5} parent=43 // pred_check_branch
        %324 = sbr.rel (%p322) target = $region48
      $region47: #{resblock_forward.5} parent=43 // pred_region
        %s325 = smul.u32 2, %s22
        %p326 = scmp.lt.s32.totalorder %s21, 1
        %s327 = scalar_select %p326, %s21, 1
        %p328 = scmp.lt.s32.totalorder %s325, 1
        %s329 = scalar_select %p328, %s325, 1
        %s330 = smul.addr %s327, 2
        %s331 = sadd.s32 %s329, %s330
        %s332 = smul.addr %s331, 8
        %s333 = scalar_lea.vmem %s4, %s332
      $region48: #{resblock_forward.5} parent=43 // pred_fallthru
        _
    $region44: #{resblock_forward.5} parent=5 // pred_fallthru
      _
  $region6: #{resblock_forward.5} parent=0 // loop_footer
    %s14 = sadd.s32 1, %s10
  $region7: #{resblock_forward.5} parent=0 // loop_footer_branch
    %9 = sbr.rel target = $region3
  $region8: #{resblock_forward.5} parent=0 // loop_exit
    _

// kernel: resblock_forward.4
$region0: #{resblock_forward.4}
  #allocation0 [shape = 'u32[]', space=smem, size = 0x4, offset = 0x4, fixed_abs, tag = 'smem constant byte address 0x4 - core index']
  #allocation1 [shape = 'u32[144,128]{1,0:T(1,128)}', space=vmem, size = 0x12000, scoped, tag = 'internal scratch']
  #allocation2 [shape = 'bf16[18,18,4]{2,1,0:T(8,128)(2,1)}', space=vmem, size = 0x1b000, scoped, tag = 'scratch operand']
  #allocation3 [shape = 'bf16[256,36]{1,0:T(8,128)(2,1)}', space=vmem, size = 0x10000, scoped, tag = 'scratch operand']
  %s0 = inlined_call_operand.vmem [shape: bf16[2,16,16,4], index: 0, kind: input, shape index: {}, may-alias: {0,1,2}]
  %s1 = inlined_call_operand.vmem [shape: bf16[2,16,16,4], index: 1, kind: input, shape index: {}, may-alias: {0,1,2}]
  %s2 = inlined_call_operand.vmem [shape: bf16[2,16,16,4], index: 2, kind: input, shape index: {}, may-alias: {0,1,2}]
  %s3 = inlined_call_operand.vmem [shape: f32[1,4], index: 3, kind: input, shape index: {}]
  %s4 = inlined_call_operand.vmem [shape: f32[1,4], index: 4, kind: input, shape index: {}]
  %s5 = inlined_call_operand.vmem [shape: bf16[36,4], index: 5, kind: input, shape index: {}]
  %s6 = inlined_call_operand.vmem [shape: bf16[2,16,16,4], index: 6, kind: output, shape index: {0}]
  %s7 = inlined_call_operand.vmem [shape: f32[2,2,4], index: 7, kind: output, shape index: {1}]
  %8 = xla_tuple %s6, %s7
  %s9 = sld [smem:[#allocation0]]
  $region77: #{resblock_forward.4} parent=0
    _
  %s11 = ssub.s32 1, %s9
  %s12 = scalar_select 0, %s11, %s9
  loop: start=0, step=1, limit=4
  $region2: #{resblock_forward.4} parent=0 // loop_pre_header
    _
  $region3: #{resblock_forward.4} parent=0 // loop_header
    %s14 = sphi 0, %s18
    %p15 = scmp.ge.s32.totalorder %s14, 4
    %s21 = sphi 0, %s33
    %s22 = sphi 0, %s29
    %s23 = sphi 0, %s21
    %s24 = sphi 0, %s22
    %s25 = sphi 0, %s23
    %s26 = sphi 0, %s24
    %s38 = sphi 0, %s40
    %s41 = sphi 0, %s38
    %s42 = sphi 0, %s41
    %s58 = sphi 0, %s42
    %s74 = sphi 0, %s76
    %s77 = sphi 0, %s74
    %s78 = sphi 0, %s77
    %s94 = sphi 0, %s78
    %s110 = sphi 0, %s112
    %s113 = sphi 0, %s110
    %s114 = sphi 0, %s113
    %s130 = sphi 0, %s114
    %s134 = sphi 0, %s134
    %s136 = sphi 0, %s134
    %s137 = sphi 0, %s136
    %s151 = sphi 0, %s137
    %s155 = sphi 0, %s155
    %s157 = sphi 0, %s155
    %s158 = sphi 0, %s157
    %s172 = sphi 0, %s158
    %s176 = sphi 0, %s176
    %s178 = sphi 0, %s176
    %s179 = sphi 0, %s178
    %s193 = sphi 0, %s179
    %s201 = sphi 0, %s203
    %s204 = sphi 0, %s201
    %s205 = sphi 0, %s204
    %s221 = sphi 0, %s205
    %s227 = sphi 0, %s229
    %s230 = sphi 0, %s227
    %s231 = sphi 0, %s230
    %s247 = sphi 0, %s231
  $region4: #{resblock_forward.4} parent=0 // loop_header_branch
    %17 = sbr.rel (%p15) target = $region8
  $region5: #{resblock_forward.4} parent=0 // loop_body
    %s19 = ssub.s32 %s14, 1
    %s20 = ssub.s32 %s14, 2
    %s27 = sadd.s32 1, %s22
    %p28 = scmp.ge.s32.totalorder %s27, 1
    %s29 = scalar_select %p28, 0, %s27
    %s30 = sadd.s32 1, %s21
    %s31 = scalar_select %p28, %s30, %s21
    %p32 = scmp.ge.s32.totalorder %s31, 2
    %s33 = scalar_select %p32, 0, %s31
    %s34 = ssub.s32 %s21, %s33
    %s35 = ssub.s32 %s22, %s29
    %s36 = sor.u32 %s34, %s35
    %p37 = scmp.eq.s32.totalorder %s36, 0
    %s39 = sadd.s32 %s38, 1
    %s40 = scalar_select %p37, %s38, %s39
    %p43 = pneg %p37
    %p44 = scmp.eq.s32.totalorder %s14, 1
    %p45 = por %p43, %p44
    %p46 = scmp.ne.s32.totalorder %s38, %s41
    %p47 = scmp.eq.s32.totalorder %s14, 0
    %p48 = por %p46, %p47
    %p49 = scmp.ne.s32.totalorder %s38, %s41
    %p50 = scmp.eq.s32.totalorder %s19, 1
    %p51 = por %p49, %p50
    %p52 = scmp.ne.s32.totalorder %s41, %s42
    %p53 = scmp.eq.s32.totalorder %s19, 0
    %p54 = por %p52, %p53
    %p55 = scmp.ne.s32.totalorder %s41, %s42
    %p56 = scmp.eq.s32.totalorder %s20, 1
    %p57 = por %p55, %p56
    %p59 = scmp.ne.s32.totalorder %s42, %s58
    %p60 = scmp.eq.s32.totalorder %s20, 0
    %p61 = por %p59, %p60
    %s62 = smul.u32 %s22, 16
    %s63 = ssub.s32 %s62, 1
    %p64 = scmp.gt.s32.totalorder %s63, 0
    %s65 = scalar_select %p64, %s63, 0
    %s66 = smul.u32 %s29, 16
    %s67 = ssub.s32 %s66, 1
    %p68 = scmp.gt.s32.totalorder %s67, 0
    %s69 = scalar_select %p68, %s67, 0
    %s70 = ssub.s32 %s21, %s33
    %s71 = ssub.s32 %s65, %s69
    %s72 = sor.u32 %s70, %s71
    %p73 = scmp.eq.s32.totalorder %s72, 0
    %s75 = sadd.s32 %s74, 1
    %s76 = scalar_select %p73, %s74, %s75
    %p79 = pneg %p73
    %p80 = scmp.eq.s32.totalorder %s14, 1
    %p81 = por %p79, %p80
    %p82 = scmp.ne.s32.totalorder %s74, %s77
    %p83 = scmp.eq.s32.totalorder %s14, 0
    %p84 = por %p82, %p83
    %p85 = scmp.ne.s32.totalorder %s74, %s77
    %p86 = scmp.eq.s32.totalorder %s19, 1
    %p87 = por %p85, %p86
    %p88 = scmp.ne.s32.totalorder %s77, %s78
    %p89 = scmp.eq.s32.totalorder %s19, 0
    %p90 = por %p88, %p89
    %p91 = scmp.ne.s32.totalorder %s77, %s78
    %p92 = scmp.eq.s32.totalorder %s20, 1
    %p93 = por %p91, %p92
    %p95 = scmp.ne.s32.totalorder %s78, %s94
    %p96 = scmp.eq.s32.totalorder %s20, 0
    %p97 = por %p95, %p96
    %s98 = sadd.s32 %s22, 1
    %s99 = smul.u32 %s98, 16
    %p100 = scmp.lt.s32.totalorder %s99, 15
    %s101 = scalar_select %p100, %s99, 15
    %s102 = sadd.s32 %s29, 1
    %s103 = smul.u32 %s102, 16
    %p104 = scmp.lt.s32.totalorder %s103, 15
    %s105 = scalar_select %p104, %s103, 15
    %s106 = ssub.s32 %s21, %s33
    %s107 = ssub.s32 %s101, %s105
    %s108 = sor.u32 %s106, %s107
    %p109 = scmp.eq.s32.totalorder %s108, 0
    %s111 = sadd.s32 %s110, 1
    %s112 = scalar_select %p109, %s110, %s111
    %p115 = pneg %p109
    %p116 = scmp.eq.s32.totalorder %s14, 1
    %p117 = por %p115, %p116
    %p118 = scmp.ne.s32.totalorder %s110, %s113
    %p119 = scmp.eq.s32.totalorder %s14, 0
    %p120 = por %p118, %p119
    %p121 = scmp.ne.s32.totalorder %s110, %s113
    %p122 = scmp.eq.s32.totalorder %s19, 1
    %p123 = por %p121, %p122
    %p124 = scmp.ne.s32.totalorder %s113, %s114
    %p125 = scmp.eq.s32.totalorder %s19, 0
    %p126 = por %p124, %p125
    %p127 = scmp.ne.s32.totalorder %s113, %s114
    %p128 = scmp.eq.s32.totalorder %s20, 1
    %p129 = por %p127, %p128
    %p131 = scmp.ne.s32.totalorder %s114, %s130
    %p132 = scmp.eq.s32.totalorder %s20, 0
    %p133 = por %p131, %p132
    %s135 = sadd.s32 %s134, 1
    %p138 = scmp.eq.s32.totalorder %s14, 1
    %p139 = scmp.ne.s32.totalorder %s134, %s136
    %p140 = scmp.eq.s32.totalorder %s14, 0
    %p141 = por %p139, %p140
    %p142 = scmp.ne.s32.totalorder %s134, %s136
    %p143 = scmp.eq.s32.totalorder %s19, 1
    %p144 = por %p142, %p143
    %p145 = scmp.ne.s32.totalorder %s136, %s137
    %p146 = scmp.eq.s32.totalorder %s19, 0
    %p147 = por %p145, %p146
    %p148 = scmp.ne.s32.totalorder %s136, %s137
    %p149 = scmp.eq.s32.totalorder %s20, 1
    %p150 = por %p148, %p149
    %p152 = scmp.ne.s32.totalorder %s137, %s151
    %p153 = scmp.eq.s32.totalorder %s20, 0
    %p154 = por %p152, %p153
    %s156 = sadd.s32 %s155, 1
    %p159 = scmp.eq.s32.totalorder %s14, 1
    %p160 = scmp.ne.s32.totalorder %s155, %s157
    %p161 = scmp.eq.s32.totalorder %s14, 0
    %p162 = por %p160, %p161
    %p163 = scmp.ne.s32.totalorder %s155, %s157
    %p164 = scmp.eq.s32.totalorder %s19, 1
    %p165 = por %p163, %p164
    %p166 = scmp.ne.s32.totalorder %s157, %s158
    %p167 = scmp.eq.s32.totalorder %s19, 0
    %p168 = por %p166, %p167
    %p169 = scmp.ne.s32.totalorder %s157, %s158
    %p170 = scmp.eq.s32.totalorder %s20, 1
    %p171 = por %p169, %p170
    %p173 = scmp.ne.s32.totalorder %s158, %s172
    %p174 = scmp.eq.s32.totalorder %s20, 0
    %p175 = por %p173, %p174
    %s177 = sadd.s32 %s176, 1
    %p180 = scmp.eq.s32.totalorder %s14, 1
    %p181 = scmp.ne.s32.totalorder %s176, %s178
    %p182 = scmp.eq.s32.totalorder %s14, 0
    %p183 = por %p181, %p182
    %p184 = scmp.ne.s32.totalorder %s176, %s178
    %p185 = scmp.eq.s32.totalorder %s19, 1
    %p186 = por %p184, %p185
    %p187 = scmp.ne.s32.totalorder %s178, %s179
    %p188 = scmp.eq.s32.totalorder %s19, 0
    %p189 = por %p187, %p188
    %p190 = scmp.ne.s32.totalorder %s178, %s179
    %p191 = scmp.eq.s32.totalorder %s20, 1
    %p192 = por %p190, %p191
    %p194 = scmp.ne.s32.totalorder %s179, %s193
    %p195 = scmp.eq.s32.totalorder %s20, 0
    %p196 = por %p194, %p195
    %s197 = ssub.s32 %s21, %s33
    %s198 = ssub.s32 %s22, %s29
    %s199 = sor.u32 %s197, %s198
    %p200 = scmp.eq.s32.totalorder %s199, 0
    %s202 = sadd.s32 %s201, 1
    %s203 = scalar_select %p200, %s201, %s202
    %p206 = pneg %p200
    %p207 = scmp.eq.s32.totalorder %s14, 1
    %p208 = por %p206, %p207
    %p209 = scmp.ne.s32.totalorder %s201, %s204
    %p210 = scmp.eq.s32.totalorder %s14, 0
    %p211 = por %p209, %p210
    %p212 = scmp.ne.s32.totalorder %s201, %s204
    %p213 = scmp.eq.s32.totalorder %s19, 1
    %p214 = por %p212, %p213
    %p215 = scmp.ne.s32.totalorder %s204, %s205
    %p216 = scmp.eq.s32.totalorder %s19, 0
    %p217 = por %p215, %p216
    %p218 = scmp.ne.s32.totalorder %s204, %s205
    %p219 = scmp.eq.s32.totalorder %s20, 1
    %p220 = por %p218, %p219
    %p222 = scmp.ne.s32.totalorder %s205, %s221
    %p223 = scmp.eq.s32.totalorder %s20, 0
    %p224 = por %p222, %p223
    %s225 = ssub.s32 %s21, %s33
    %p226 = scmp.eq.s32.totalorder %s225, 0
    %s228 = sadd.s32 %s227, 1
    %s229 = scalar_select %p226, %s227, %s228
    %p232 = pneg %p226
    %p233 = scmp.eq.s32.totalorder %s14, 1
    %p234 = por %p232, %p233
    %p235 = scmp.ne.s32.totalorder %s227, %s230
    %p236 = scmp.eq.s32.totalorder %s14, 0
    %p237 = por %p235, %p236
    %p238 = scmp.ne.s32.totalorder %s227, %s230
    %p239 = scmp.eq.s32.totalorder %s19, 1
    %p240 = por %p238, %p239
    %p241 = scmp.ne.s32.totalorder %s230, %s231
    %p242 = scmp.eq.s32.totalorder %s19, 0
    %p243 = por %p241, %p242
    %p244 = scmp.ne.s32.totalorder %s230, %s231
    %p245 = scmp.eq.s32.totalorder %s20, 1
    %p246 = por %p244, %p245
    %p248 = scmp.ne.s32.totalorder %s231, %s247
    %p249 = scmp.eq.s32.totalorder %s20, 0
    %p250 = por %p248, %p249
    %p251 = scmp.le.s32.totalorder 1, %s14
    %p252 = scmp.lt.s32.totalorder %s14, 3
    %p253 = pnand %p251, %p252
    %p254 = pneg %p253
    // Predicated region
    $region9: #{resblock_forward.4} parent=5 // pred_check
      _
    $region10: #{resblock_forward.4} parent=5 // pred_check_branch
      %256 = sbr.rel (%p253) target = $region12
    $region11: #{resblock_forward.4} parent=5 // pred_region
      %s257 = ssub.s32 %s14, 1
      // Predicated region
      $region13: #{resblock_forward.4} parent=11 // pred_check
        %p258 = pneg %p147
      $region14: #{resblock_forward.4} parent=11 // pred_check_branch
        %260 = sbr.rel (%p258) target = $region16
      $region15: #{resblock_forward.4} parent=11 // pred_region
        _
      $region16: #{resblock_forward.4} parent=11 // pred_fallthru
        _
      // Predicated region
      $region17: #{resblock_forward.4} parent=11 // pred_check
        %p261 = pneg %p168
      $region18: #{resblock_forward.4} parent=11 // pred_check_branch
        %263 = sbr.rel (%p261) target = $region20
      $region19: #{resblock_forward.4} parent=11 // pred_region
        _
      $region20: #{resblock_forward.4} parent=11 // pred_fallthru
        _
      // Predicated region
      $region21: #{resblock_forward.4} parent=11 // pred_check
        %p264 = pneg %p189
      $region22: #{resblock_forward.4} parent=11 // pred_check_branch
        %266 = sbr.rel (%p264) target = $region24
      $region23: #{resblock_forward.4} parent=11 // pred_region
        _
      $region24: #{resblock_forward.4} parent=11 // pred_fallthru
        _
    $region12: #{resblock_forward.4} parent=5 // pred_fallthru
      _
    %p267 = scmp.lt.s32.totalorder %s14, 2
    // Predicated region
    $region25: #{resblock_forward.4} parent=5 // pred_check
      %p268 = pneg %p267
    $region26: #{resblock_forward.4} parent=5 // pred_check_branch
      %270 = sbr.rel (%p268) target = $region28
    $region27: #{resblock_forward.4} parent=5 // pred_region
      // Predicated region
      $region29: #{resblock_forward.4} parent=27 // pred_check
        %p271 = pneg %p48
      $region30: #{resblock_forward.4} parent=27 // pred_check_branch
        %273 = sbr.rel (%p271) target = $region32
      $region31: #{resblock_forward.4} parent=27 // pred_region
        %s274 = smul.u32 16, %s22
        %p275 = scmp.lt.s32.totalorder %s21, 1
        %s276 = scalar_select %p275, %s21, 1
        %p277 = scmp.lt.s32.totalorder %s274, 15
        %s278 = scalar_select %p277, %s274, 15
        %s279 = smul.addr %s278, 2
        %s280 = smul.addr %s276, 32
        %s281 = sadd.s32 %s279, %s280
        %s282 = smul.addr %s281, 4
        %s283 = scalar_lea.vmem %s0, %s282
        %s284 = smul.u32 16, %s22
      $region32: #{resblock_forward.4} parent=27 // pred_fallthru
        _
      // Predicated region
      $region33: #{resblock_forward.4} parent=27 // pred_check
        %p285 = pneg %p84
      $region34: #{resblock_forward.4} parent=27 // pred_check_branch
        %287 = sbr.rel (%p285) target = $region36
      $region35: #{resblock_forward.4} parent=27 // pred_region
        %s288 = smul.u32 %s22, 16
        %s289 = ssub.s32 %s288, 1
        %p290 = scmp.gt.s32.totalorder %s289, 0
        %s291 = scalar_select %p290, %s289, 0
        %p292 = scmp.lt.s32.totalorder %s21, 1
        %s293 = scalar_select %p292, %s21, 1
        %p294 = scmp.lt.s32.totalorder %s291, 15
        %s295 = scalar_select %p294, %s291, 15
        %s296 = smul.addr %s295, 2
        %s297 = smul.addr %s293, 32
        %s298 = sadd.s32 %s296, %s297
        %s299 = smul.addr %s298, 4
        %s300 = scalar_lea.vmem %s1, %s299
        %s301 = smul.u32 %s22, 16
        %s302 = ssub.s32 %s301, 1
        %p303 = scmp.gt.s32.totalorder %s302, 0
        %s304 = scalar_select %p303, %s302, 0
      $region36: #{resblock_forward.4} parent=27 // pred_fallthru
        _
      // Predicated region
      $region37: #{resblock_forward.4} parent=27 // pred_check
        %p305 = pneg %p120
      $region38: #{resblock_forward.4} parent=27 // pred_check_branch
        %307 = sbr.rel (%p305) target = $region40
      $region39: #{resblock_forward.4} parent=27 // pred_region
        %s308 = sadd.s32 %s22, 1
        %s309 = smul.u32 %s308, 16
        %p310 = scmp.lt.s32.totalorder %s309, 15
        %s311 = scalar_select %p310, %s309, 15
        %p312 = scmp.lt.s32.totalorder %s21, 1
        %s313 = scalar_select %p312, %s21, 1
        %p314 = scmp.lt.s32.totalorder %s311, 15
        %s315 = scalar_select %p314, %s311, 15
        %s316 = smul.addr %s315, 2
        %s317 = smul.addr %s313, 32
        %s318 = sadd.s32 %s316, %s317
        %s319 = smul.addr %s318, 4
        %s320 = scalar_lea.vmem %s2, %s319
        %s321 = sadd.s32 %s22, 1
        %s322 = smul.u32 %s321, 16
        %p323 = scmp.lt.s32.totalorder %s322, 15
        %s324 = scalar_select %p323, %s322, 15
      $region40: #{resblock_forward.4} parent=27 // pred_fallthru
        _
    $region28: #{resblock_forward.4} parent=5 // pred_fallthru
      _
    %p325 = scmp.le.s32.totalorder 1, %s14
    %p326 = scmp.lt.s32.totalorder %s14, 3
    %p327 = pnand %p325, %p326
    %p328 = pneg %p327
    // Predicated region
    $region41: #{resblock_forward.4} parent=5 // pred_check
      _
    $region42: #{resblock_forward.4} parent=5 // pred_check_branch
      %330 = sbr.rel (%p327) target = $region44
    $region43: #{resblock_forward.4} parent=5 // pred_region
      %s331 = ssub.s32 %s14, 1
      %s332 = smul.u32 16, %s24
      %p333 = scmp.lt.s32.totalorder %s23, 1
      %s334 = scalar_select %p333, %s23, 1
      %p335 = scmp.lt.s32.totalorder %s332, 15
      %s336 = scalar_select %p335, %s332, 15
      %s337 = smul.addr %s336, 2
      %s338 = smul.addr %s334, 32
      %s339 = sadd.s32 %s337, %s338
      %s340 = smul.addr %s339, 4
      %s341 = scalar_lea.vmem %s0, %s340
      %p342 = pneg %p54
      %p343 = pneg %p51
      %s344 = smul.u32 %s24, 16
      %s345 = ssub.s32 %s344, 1
      %p346 = scmp.gt.s32.totalorder %s345, 0
      %s347 = scalar_select %p346, %s345, 0
      %p348 = scmp.lt.s32.totalorder %s23, 1
      %s349 = scalar_select %p348, %s23, 1
      %p350 = scmp.lt.s32.totalorder %s347, 15
      %s351 = scalar_select %p350, %s347, 15
      %s352 = smul.addr %s351, 2
      %s353 = smul.addr %s349, 32
      %s354 = sadd.s32 %s352, %s353
      %s355 = smul.addr %s354, 4
      %s356 = scalar_lea.vmem %s1, %s355
      %p357 = pneg %p90
      %p358 = pneg %p87
      %s359 = sadd.s32 %s24, 1
      %s360 = smul.u32 %s359, 16
      %p361 = scmp.lt.s32.totalorder %s360, 15
      %s362 = scalar_select %p361, %s360, 15
      %p363 = scmp.lt.s32.totalorder %s23, 1
      %s364 = scalar_select %p363, %s23, 1
      %p365 = scmp.lt.s32.totalorder %s362, 15
      %s366 = scalar_select %p365, %s362, 15
      %s367 = smul.addr %s366, 2
      %s368 = smul.addr %s364, 32
      %s369 = sadd.s32 %s367, %s368
      %s370 = smul.addr %s369, 4
      %s371 = scalar_lea.vmem %s2, %s370
      %p372 = pneg %p126
      %p373 = pneg %p123
      %p374 = pneg %p147
      %p375 = pneg %p144
      %p376 = pneg %p168
      %p377 = pneg %p165
      %p378 = pneg %p189
      %p379 = pneg %p186
      %p380 = pneg %p217
      %p381 = pneg %p214
      %s382 = smul.u32 16, %s24
      %p383 = scmp.lt.s32.totalorder %s23, 1
      %s384 = scalar_select %p383, %s23, 1
      %p385 = scmp.lt.s32.totalorder %s382, 15
      %s386 = scalar_select %p385, %s382, 15
      %s387 = smul.addr %s386, 2
      %s388 = smul.addr %s384, 32
      %s389 = sadd.s32 %s387, %s388
      %s390 = smul.addr %s389, 4
      %s391 = scalar_lea.vmem %s6, %s390
      %p392 = pneg %p243
      %p393 = pneg %p240
      %p394 = scmp.lt.s32.totalorder %s23, 1
      %s395 = scalar_select %p394, %s23, 1
      %s396 = smul.addr %s395, 2
      %s397 = scalar_lea.vmem %s7, %s396
      %s398 = smul.u32 16, %s24
      %p399 = scmp.lt.s32.totalorder %s23, 1
      %s400 = scalar_select %p399, %s23, 1
      %p401 = scmp.lt.s32.totalorder %s398, 15
      %s402 = scalar_select %p401, %s398, 15
      %s403 = smul.addr %s402, 2
      %s404 = smul.addr %s400, 32
      %s405 = sadd.s32 %s403, %s404
      %s406 = smul.addr %s405, 4
      %s407 = scalar_lea.vmem %s0, %s406
      %s408 = smul.u32 16, %s24
      %s409 = smul.u32 %s24, 16
      %s410 = ssub.s32 %s409, 1
      %p411 = scmp.gt.s32.totalorder %s410, 0
      %s412 = scalar_select %p411, %s410, 0
      %p413 = scmp.lt.s32.totalorder %s23, 1
      %s414 = scalar_select %p413, %s23, 1
      %p415 = scmp.lt.s32.totalorder %s412, 15
      %s416 = scalar_select %p415, %s412, 15
      %s417 = smul.addr %s416, 2
      %s418 = smul.addr %s414, 32
      %s419 = sadd.s32 %s417, %s418
      %s420 = smul.addr %s419, 4
      %s421 = scalar_lea.vmem %s1, %s420
      %s422 = smul.u32 %s24, 16
      %s423 = ssub.s32 %s422, 1
      %p424 = scmp.gt.s32.totalorder %s423, 0
      %s425 = scalar_select %p424, %s423, 0
      %s426 = sadd.s32 %s24, 1
      %s427 = smul.u32 %s426, 16
      %p428 = scmp.lt.s32.totalorder %s427, 15
      %s429 = scalar_select %p428, %s427, 15
      %p430 = scmp.lt.s32.totalorder %s23, 1
      %s431 = scalar_select %p430, %s23, 1
      %p432 = scmp.lt.s32.totalorder %s429, 15
      %s433 = scalar_select %p432, %s429, 15
      %s434 = smul.addr %s433, 2
      %s435 = smul.addr %s431, 32
      %s436 = sadd.s32 %s434, %s435
      %s437 = smul.addr %s436, 4
      %s438 = scalar_lea.vmem %s2, %s437
      %s439 = sadd.s32 %s24, 1
      %s440 = smul.u32 %s439, 16
      %p441 = scmp.lt.s32.totalorder %s440, 15
      %s442 = scalar_select %p441, %s440, 15
      %s443 = smul.u32 16, %s24
      %p444 = scmp.lt.s32.totalorder %s23, 1
      %s445 = scalar_select %p444, %s23, 1
      %p446 = scmp.lt.s32.totalorder %s443, 15
      %s447 = scalar_select %p446, %s443, 15
      %s448 = smul.addr %s447, 2
      %s449 = smul.addr %s445, 32
      %s450 = sadd.s32 %s448, %s449
      %s451 = smul.addr %s450, 4
      %s452 = scalar_lea.vmem %s6, %s451
      %s453 = smul.u32 16, %s24
      %p454 = scmp.lt.s32.totalorder %s23, 1
      %s455 = scalar_select %p454, %s23, 1
      %s456 = smul.addr %s455, 2
      %s457 = scalar_lea.vmem %s7, %s456
      %p459 = scmp.eq.s32.totalorder %s24, 0
      // Predicated region
      $region45: #{resblock_forward.4} parent=43 // pred_check
        %p460 = pneg %p459
      $region46: #{resblock_forward.4} parent=43 // pred_check_branch
        %462 = sbr.rel (%p460) target = $region48
      $region47: #{resblock_forward.4} parent=43 // pred_region
        %vm463 = vcmask 27648
        %464 = vst.msk [vmem:[#allocation2] sm:$0xf] %vm463, 0
        %465 = vst.msk [vmem:[#allocation2 + $0x4] sm:$0xf] %vm463, 0
        %vm466 = vcmask 24576
        %467 = vst.msk [vmem:[#allocation2 + $0x8] sm:$0x1] %vm466, 0
        %468 = vst.msk [vmem:[#allocation2 + $0xc] sm:$0xf] %vm463, 0
        %469 = vst.msk [vmem:[#allocation2 + $0x10] sm:$0xf] %vm463, 0
        %470 = vst.msk [vmem:[#allocation2 + $0x14] sm:$0x1] %vm466, 0
        %471 = vst.msk [vmem:[#allocation2 + $0x18] sm:$0xf] %vm463, 0
        %472 = vst.msk [vmem:[#allocation2 + $0x1c] sm:$0xf] %vm463, 0
        %473 = vst.msk [vmem:[#allocation2 + $0x20] sm:$0x1] %vm466, 0
        %474 = vst.msk [vmem:[#allocation2 + $0x24] sm:$0xf] %vm463, 0
        %475 = vst.msk [vmem:[#allocation2 + $0x28] sm:$0xf] %vm463, 0
        %476 = vst.msk [vmem:[#allocation2 + $0x2c] sm:$0x1] %vm466, 0
        %477 = vst.msk [vmem:[#allocation2 + $0x30] sm:$0xf] %vm463, 0
        %478 = vst.msk [vmem:[#allocation2 + $0x34] sm:$0xf] %vm463, 0
        %479 = vst.msk [vmem:[#allocation2 + $0x38] sm:$0x1] %vm466, 0
        %480 = vst.msk [vmem:[#allocation2 + $0x3c] sm:$0xf] %vm463, 0
        %481 = vst.msk [vmem:[#allocation2 + $0x40] sm:$0xf] %vm463, 0
        %482 = vst.msk [vmem:[#allocation2 + $0x44] sm:$0x1] %vm466, 0
        %483 = vst.msk [vmem:[#allocation2 + $0x48] sm:$0xf] %vm463, 0
        %484 = vst.msk [vmem:[#allocation2 + $0x4c] sm:$0xf] %vm463, 0
        %485 = vst.msk [vmem:[#allocation2 + $0x50] sm:$0x1] %vm466, 0
        %486 = vst.msk [vmem:[#allocation2 + $0x54] sm:$0xf] %vm463, 0
        %487 = vst.msk [vmem:[#allocation2 + $0x58] sm:$0xf] %vm463, 0
        %488 = vst.msk [vmem:[#allocation2 + $0x5c] sm:$0x1] %vm466, 0
        %489 = vst.msk [vmem:[#allocation2 + $0x60] sm:$0xf] %vm463, 0
        %490 = vst.msk [vmem:[#allocation2 + $0x64] sm:$0xf] %vm463, 0
        %491 = vst.msk [vmem:[#allocation2 + $0x68] sm:$0x1] %vm466, 0
        %492 = vst.msk [vmem:[#allocation2 + $0x6c] sm:$0xf] %vm463, 0
        %493 = vst.msk [vmem:[#allocation2 + $0x70] sm:$0xf] %vm463, 0
        %494 = vst.msk [vmem:[#allocation2 + $0x74] sm:$0x1] %vm466, 0
        %495 = vst.msk [vmem:[#allocation2 + $0x78] sm:$0xf] %vm463, 0
        %496 = vst.msk [vmem:[#allocation2 + $0x7c] sm:$0xf] %vm463, 0
        %497 = vst.msk [vmem:[#allocation2 + $0x80] sm:$0x1] %vm466, 0
        %498 = vst.msk [vmem:[#allocation2 + $0x84] sm:$0xf] %vm463, 0
        %499 = vst.msk [vmem:[#allocation2 + $0x88] sm:$0xf] %vm463, 0
        %500 = vst.msk [vmem:[#allocation2 + $0x8c] sm:$0x1] %vm466, 0
        %501 = vst.msk [vmem:[#allocation2 + $0x90] sm:$0xf] %vm463, 0
        %502 = vst.msk [vmem:[#allocation2 + $0x94] sm:$0xf] %vm463, 0
        %503 = vst.msk [vmem:[#allocation2 + $0x98] sm:$0x1] %vm466, 0
        %504 = vst.msk [vmem:[#allocation2 + $0x9c] sm:$0xf] %vm463, 0
        %505 = vst.msk [vmem:[#allocation2 + $0xa0] sm:$0xf] %vm463, 0
        %506 = vst.msk [vmem:[#allocation2 + $0xa4] sm:$0x1] %vm466, 0
        %507 = vst.msk [vmem:[#allocation2 + $0xa8] sm:$0xf] %vm463, 0
        %508 = vst.msk [vmem:[#allocation2 + $0xac] sm:$0xf] %vm463, 0
        %509 = vst.msk [vmem:[#allocation2 + $0xb0] sm:$0x1] %vm466, 0
        %510 = vst.msk [vmem:[#allocation2 + $0xb4] sm:$0xf] %vm463, 0
        %511 = vst.msk [vmem:[#allocation2 + $0xb8] sm:$0xf] %vm463, 0
        %512 = vst.msk [vmem:[#allocation2 + $0xbc] sm:$0x1] %vm466, 0
        %513 = vst.msk [vmem:[#allocation2 + $0xc0] sm:$0xf] %vm463, 0
        %514 = vst.msk [vmem:[#allocation2 + $0xc4] sm:$0xf] %vm463, 0
        %515 = vst.msk [vmem:[#allocation2 + $0xc8] sm:$0x1] %vm466, 0
        %516 = vst.msk [vmem:[#allocation2 + $0xcc] sm:$0xf] %vm463, 0
        %517 = vst.msk [vmem:[#allocation2 + $0xd0] sm:$0xf] %vm463, 0
        %518 = vst.msk [vmem:[#allocation2 + $0xd4] sm:$0x1] %vm466, 0
      $region48: #{resblock_forward.4} parent=43 // pred_fallthru
        _
      %v519 = vld [vmem:[%s407] sm:$0xf]
      %v520 = vld [vmem:[%s407 + $0x4] sm:$0xf]
      %v521 = vld [vmem:[%s407 + $0x8] sm:$0xf]
      %v522 = vld [vmem:[%s407 + $0xc] sm:$0xf]
      %v523 = vld [vmem:[%s407 + $0x10] sm:$0xf]
      %v524 = vld [vmem:[%s407 + $0x14] sm:$0xf]
      %v525 = vld [vmem:[%s407 + $0x18] sm:$0xf]
      %v526 = vld [vmem:[%s407 + $0x1c] sm:$0xf]
      %v527 = vld [vmem:[%s407 + $0x20] sm:$0xf]
      %v528 = vld [vmem:[%s407 + $0x24] sm:$0xf]
      %v529 = vld [vmem:[%s407 + $0x28] sm:$0xf]
      %v530 = vld [vmem:[%s407 + $0x2c] sm:$0xf]
      %v531 = vld [vmem:[%s407 + $0x30] sm:$0xf]
      %v532 = vld [vmem:[%s407 + $0x34] sm:$0xf]
      %v533 = vld [vmem:[%s407 + $0x38] sm:$0xf]
      %v534 = vld [vmem:[%s407 + $0x3c] sm:$0xf]
      %v535 = vld [vmem:[%s407 + $0x40] sm:$0xf]
      %v536 = vld [vmem:[%s407 + $0x44] sm:$0xf]
      %v537 = vld [vmem:[%s407 + $0x48] sm:$0xf]
      %v538 = vld [vmem:[%s407 + $0x4c] sm:$0xf]
      %v539 = vld [vmem:[%s407 + $0x50] sm:$0xf]
      %v540 = vld [vmem:[%s407 + $0x54] sm:$0xf]
      %v541 = vld [vmem:[%s407 + $0x58] sm:$0xf]
      %v542 = vld [vmem:[%s407 + $0x5c] sm:$0xf]
      %v543 = vld [vmem:[%s407 + $0x60] sm:$0xf]
      %v544 = vld [vmem:[%s407 + $0x64] sm:$0xf]
      %v545 = vld [vmem:[%s407 + $0x68] sm:$0xf]
      %v546 = vld [vmem:[%s407 + $0x6c] sm:$0xf]
      %v547 = vld [vmem:[%s407 + $0x70] sm:$0xf]
      %v548 = vld [vmem:[%s407 + $0x74] sm:$0xf]
      %v549 = vld [vmem:[%s407 + $0x78] sm:$0xf]
      %v550 = vld [vmem:[%s407 + $0x7c] sm:$0xf]
      %v551 = vunpack.c.l.bf16 %v519
      %v552 = vunpack.c.l.bf16 %v520
      %v553 = vunpack.c.l.bf16 %v521
      %v554 = vunpack.c.l.bf16 %v522
      %v555 = vunpack.c.l.bf16 %v523
      %v556 = vunpack.c.l.bf16 %v524
      %v557 = vunpack.c.l.bf16 %v525
      %v558 = vunpack.c.l.bf16 %v526
      %v559 = vunpack.c.l.bf16 %v527
      %v560 = vunpack.c.l.bf16 %v528
      %v561 = vunpack.c.l.bf16 %v529
      %v562 = vunpack.c.l.bf16 %v530
      %v563 = vunpack.c.l.bf16 %v531
      %v564 = vunpack.c.l.bf16 %v532
      %v565 = vunpack.c.l.bf16 %v533
      %v566 = vunpack.c.l.bf16 %v534
      %v567 = vunpack.c.l.bf16 %v535
      %v568 = vunpack.c.l.bf16 %v536
      %v569 = vunpack.c.l.bf16 %v537
      %v570 = vunpack.c.l.bf16 %v538
      %v571 = vunpack.c.l.bf16 %v539
      %v572 = vunpack.c.l.bf16 %v540
      %v573 = vunpack.c.l.bf16 %v541
      %v574 = vunpack.c.l.bf16 %v542
      %v575 = vunpack.c.l.bf16 %v543
      %v576 = vunpack.c.l.bf16 %v544
      %v577 = vunpack.c.l.bf16 %v545
      %v578 = vunpack.c.l.bf16 %v546
      %v579 = vunpack.c.l.bf16 %v547
      %v580 = vunpack.c.l.bf16 %v548
      %v581 = vunpack.c.l.bf16 %v549
      %v582 = vunpack.c.l.bf16 %v550
      %v583 = vld [vmem:[%s3] sm:$0x1]
      %v585 = vlaneseq
      %v586 = vshrl.u32 %v585, 7
      %v587 = vsub.s32 0, %v586
      %v588 = vrot.slane %v583, %v587
      %v590 = vmul.f32 %v551, %v588
      %v591 = vmul.f32 %v552, %v588
      %v592 = vmul.f32 %v553, %v588
      %v593 = vmul.f32 %v554, %v588
      %v594 = vmul.f32 %v555, %v588
      %v595 = vmul.f32 %v556, %v588
      %v596 = vmul.f32 %v557, %v588
      %v597 = vmul.f32 %v558, %v588
      %v598 = vmul.f32 %v559, %v588
      %v599 = vmul.f32 %v560, %v588
      %v600 = vmul.f32 %v561, %v588
      %v601 = vmul.f32 %v562, %v588
      %v602 = vmul.f32 %v563, %v588
      %v603 = vmul.f32 %v564, %v588
      %v604 = vmul.f32 %v565, %v588
      %v605 = vmul.f32 %v566, %v588
      %v606 = vmul.f32 %v567, %v588
      %v607 = vmul.f32 %v568, %v588
      %v608 = vmul.f32 %v569, %v588
      %v609 = vmul.f32 %v570, %v588
      %v610 = vmul.f32 %v571, %v588
      %v611 = vmul.f32 %v572, %v588
      %v612 = vmul.f32 %v573, %v588
      %v613 = vmul.f32 %v574, %v588
      %v614 = vmul.f32 %v575, %v588
      %v615 = vmul.f32 %v576, %v588
      %v616 = vmul.f32 %v577, %v588
      %v617 = vmul.f32 %v578, %v588
      %v618 = vmul.f32 %v579, %v588
      %v619 = vmul.f32 %v580, %v588
      %v620 = vmul.f32 %v581, %v588
      %v621 = vmul.f32 %v582, %v588
      %v622 = vld [vmem:[%s4] sm:$0x1]
      %v624 = vlaneseq
      %v625 = vshrl.u32 %v624, 7
      %v626 = vsub.s32 0, %v625
      %v627 = vrot.slane %v622, %v626
      %v629 = vadd.f32 %v590, %v627
      %v630 = vadd.f32 %v591, %v627
      %v631 = vadd.f32 %v592, %v627
      %v632 = vadd.f32 %v593, %v627
      %v633 = vadd.f32 %v594, %v627
      %v634 = vadd.f32 %v595, %v627
      %v635 = vadd.f32 %v596, %v627
      %v636 = vadd.f32 %v597, %v627
      %v637 = vadd.f32 %v598, %v627
      %v638 = vadd.f32 %v599, %v627
      %v639 = vadd.f32 %v600, %v627
      %v640 = vadd.f32 %v601, %v627
      %v641 = vadd.f32 %v602, %v627
      %v642 = vadd.f32 %v603, %v627
      %v643 = vadd.f32 %v604, %v627
      %v644 = vadd.f32 %v605, %v627
      %v645 = vadd.f32 %v606, %v627
      %v646 = vadd.f32 %v607, %v627
      %v647 = vadd.f32 %v608, %v627
      %v648 = vadd.f32 %v609, %v627
      %v649 = vadd.f32 %v610, %v627
      %v650 = vadd.f32 %v611, %v627
      %v651 = vadd.f32 %v612, %v627
      %v652 = vadd.f32 %v613, %v627
      %v653 = vadd.f32 %v614, %v627
      %v654 = vadd.f32 %v615, %v627
      %v655 = vadd.f32 %v616, %v627
      %v656 = vadd.f32 %v617, %v627
      %v657 = vadd.f32 %v618, %v627
      %v658 = vadd.f32 %v619, %v627
      %v659 = vadd.f32 %v620, %v627
      %v660 = vadd.f32 %v621, %v627
      %v661 = vmax.f32 %v629, 0.0
      %v662 = vmax.f32 %v630, 0.0
      %v663 = vmax.f32 %v631, 0.0
      %v664 = vmax.f32 %v632, 0.0
      %v665 = vmax.f32 %v633, 0.0
      %v666 = vmax.f32 %v634, 0.0
      %v667 = vmax.f32 %v635, 0.0
      %v668 = vmax.f32 %v636, 0.0
      %v669 = vmax.f32 %v637, 0.0
      %v670 = vmax.f32 %v638, 0.0
      %v671 = vmax.f32 %v639, 0.0
      %v672 = vmax.f32 %v640, 0.0
      %v673 = vmax.f32 %v641, 0.0
      %v674 = vmax.f32 %v642, 0.0
      %v675 = vmax.f32 %v643, 0.0
      %v676 = vmax.f32 %v644, 0.0
      %v677 = vmax.f32 %v645, 0.0
      %v678 = vmax.f32 %v646, 0.0
      %v679 = vmax.f32 %v647, 0.0
      %v680 = vmax.f32 %v648, 0.0
      %v681 = vmax.f32 %v649, 0.0
      %v682 = vmax.f32 %v650, 0.0
      %v683 = vmax.f32 %v651, 0.0
      %v684 = vmax.f32 %v652, 0.0
      %v685 = vmax.f32 %v653, 0.0
      %v686 = vmax.f32 %v654, 0.0
      %v687 = vmax.f32 %v655, 0.0
      %v688 = vmax.f32 %v656, 0.0
      %v689 = vmax.f32 %v657, 0.0
      %v690 = vmax.f32 %v658, 0.0
      %v691 = vmax.f32 %v659, 0.0
      %v692 = vmax.f32 %v660, 0.0
      %v693 = vpack.c.bf16 %v662, %v661
      %v694 = vpack.c.bf16 %v664, %v663
      %v695 = vpack.c.bf16 %v666, %v665
      %v696 = vpack.c.bf16 %v668, %v667
      %v697 = vpack.c.bf16 %v670, %v669
      %v698 = vpack.c.bf16 %v672, %v671
      %v699 = vpack.c.bf16 %v674, %v673
      %v700 = vpack.c.bf16 %v676, %v675
      %v701 = vpack.c.bf16 %v678, %v677
      %v702 = vpack.c.bf16 %v680, %v679
      %v703 = vpack.c.bf16 %v682, %v681
      %v704 = vpack.c.bf16 %v684, %v683
      %v705 = vpack.c.bf16 %v686, %v685
      %v706 = vpack.c.bf16 %v688, %v687
      %v707 = vpack.c.bf16 %v690, %v689
      %v708 = vpack.c.bf16 %v692, %v691
      %v725 = vunpack.c.l.b16 %v693
      %v726 = vunpack.c.h.b16 %v693
      %v727 = vunpack.c.l.b16 %v694
      %v728 = vunpack.c.h.b16 %v694
      %v729 = vunpack.c.l.b16 %v695
      %v730 = vunpack.c.h.b16 %v695
      %v731 = vunpack.c.l.b16 %v696
      %v732 = vunpack.c.h.b16 %v696
      %v733 = vunpack.c.l.b16 %v697
      %v734 = vunpack.c.h.b16 %v697
      %v735 = vunpack.c.l.b16 %v698
      %v736 = vunpack.c.h.b16 %v698
      %v737 = vunpack.c.l.b16 %v699
      %v738 = vunpack.c.h.b16 %v699
      %v739 = vunpack.c.l.b16 %v700
      %v740 = vunpack.c.h.b16 %v700
      %v741 = vunpack.c.l.b16 %v701
      %v742 = vunpack.c.h.b16 %v701
      %v743 = vunpack.c.l.b16 %v702
      %v744 = vunpack.c.h.b16 %v702
      %v745 = vunpack.c.l.b16 %v703
      %v746 = vunpack.c.h.b16 %v703
      %v747 = vunpack.c.l.b16 %v704
      %v748 = vunpack.c.h.b16 %v704
      %v749 = vunpack.c.l.b16 %v705
      %v750 = vunpack.c.h.b16 %v705
      %v751 = vunpack.c.l.b16 %v706
      %v752 = vunpack.c.h.b16 %v706
      %v753 = vunpack.c.l.b16 %v707
      %v754 = vunpack.c.h.b16 %v707
      %v755 = vunpack.c.l.b16 %v708
      %v756 = vunpack.c.h.b16 %v708
      %v757 = vpack.c.b16 %v725, %v725
      %v758 = vpack.c.b16 %v726, %v726
      %v759 = vpack.c.b16 %v727, %v727
      %v760 = vpack.c.b16 %v728, %v728
      %v761 = vpack.c.b16 %v729, %v729
      %v762 = vpack.c.b16 %v730, %v730
      %v763 = vpack.c.b16 %v731, %v731
      %v764 = vpack.c.b16 %v732, %v732
      %v765 = vpack.c.b16 %v733, %v733
      %v766 = vpack.c.b16 %v734, %v734
      %v767 = vpack.c.b16 %v735, %v735
      %v768 = vpack.c.b16 %v736, %v736
      %v769 = vpack.c.b16 %v737, %v737
      %v770 = vpack.c.b16 %v738, %v738
      %v771 = vpack.c.b16 %v739, %v739
      %v772 = vpack.c.b16 %v740, %v740
      %v773 = vpack.c.b16 %v741, %v741
      %v774 = vpack.c.b16 %v742, %v742
      %v775 = vpack.c.b16 %v743, %v743
      %v776 = vpack.c.b16 %v744, %v744
      %v777 = vpack.c.b16 %v745, %v745
      %v778 = vpack.c.b16 %v746, %v746
      %v779 = vpack.c.b16 %v747, %v747
      %v780 = vpack.c.b16 %v748, %v748
      %v781 = vpack.c.b16 %v749, %v749
      %v782 = vpack.c.b16 %v750, %v750
      %v783 = vpack.c.b16 %v751, %v751
      %v784 = vpack.c.b16 %v752, %v752
      %v785 = vpack.c.b16 %v753, %v753
      %v786 = vpack.c.b16 %v754, %v754
      %v787 = vpack.c.b16 %v755, %v755
      %v788 = vpack.c.b16 %v756, %v756
      %vm789 = vsmask.f32 256
      %vm790 = vsmask.f32 4368
      %vm791 = vmor %vm789, %vm790
      %v793 = vshrl.u32 %v757, 16
      %v795 = vrot.slane %v793, 7
      %v796 = vshll.u32 %v757, 16
      %v798 = vor.u32 %v795, %v796
      %v799 = vrot.slane %v795, 4
      %v801 = vshrl.u32 %v758, 16
      %v803 = vrot.slane %v801, 7
      %v804 = vshll.u32 %v758, 16
      %v806 = vor.u32 %v803, %v804
      %v807 = vsel %vm791, %v799, %v806
      %v808 = vrot.slane %v803, 4
      %v810 = vshrl.u32 %v759, 16
      %v812 = vrot.slane %v810, 7
      %v813 = vshll.u32 %v759, 16
      %v815 = vor.u32 %v812, %v813
      %v816 = vrot.slane %v812, 4
      %v818 = vshrl.u32 %v760, 16
      %v820 = vrot.slane %v818, 7
      %v821 = vshll.u32 %v760, 16
      %v823 = vor.u32 %v820, %v821
      %v824 = vsel %vm791, %v816, %v823
      %v825 = vrot.slane %v820, 4
      %v827 = vshrl.u32 %v761, 16
      %v829 = vrot.slane %v827, 7
      %v830 = vshll.u32 %v761, 16
      %v832 = vor.u32 %v829, %v830
      %v833 = vrot.slane %v829, 4
      %v835 = vshrl.u32 %v762, 16
      %v837 = vrot.slane %v835, 7
      %v838 = vshll.u32 %v762, 16
      %v840 = vor.u32 %v837, %v838
      %v841 = vsel %vm791, %v833, %v840
      %v842 = vrot.slane %v837, 4
      %v844 = vshrl.u32 %v763, 16
      %v846 = vrot.slane %v844, 7
      %v847 = vshll.u32 %v763, 16
      %v849 = vor.u32 %v846, %v847
      %v850 = vrot.slane %v846, 4
      %v852 = vshrl.u32 %v764, 16
      %v854 = vrot.slane %v852, 7
      %v855 = vshll.u32 %v764, 16
      %v857 = vor.u32 %v854, %v855
      %v858 = vsel %vm791, %v850, %v857
      %v859 = vrot.slane %v854, 4
      %v861 = vshrl.u32 %v765, 16
      %v863 = vrot.slane %v861, 7
      %v864 = vshll.u32 %v765, 16
      %v866 = vor.u32 %v863, %v864
      %v867 = vrot.slane %v863, 4
      %v869 = vshrl.u32 %v766, 16
      %v871 = vrot.slane %v869, 7
      %v872 = vshll.u32 %v766, 16
      %v874 = vor.u32 %v871, %v872
      %v875 = vsel %vm791, %v867, %v874
      %v876 = vrot.slane %v871, 4
      %v878 = vshrl.u32 %v767, 16
      %v880 = vrot.slane %v878, 7
      %v881 = vshll.u32 %v767, 16
      %v883 = vor.u32 %v880, %v881
      %v884 = vrot.slane %v880, 4
      %v886 = vshrl.u32 %v768, 16
      %v888 = vrot.slane %v886, 7
      %v889 = vshll.u32 %v768, 16
      %v891 = vor.u32 %v888, %v889
      %v892 = vsel %vm791, %v884, %v891
      %v893 = vrot.slane %v888, 4
      %v895 = vshrl.u32 %v769, 16
      %v897 = vrot.slane %v895, 7
      %v898 = vshll.u32 %v769, 16
      %v900 = vor.u32 %v897, %v898
      %v901 = vrot.slane %v897, 4
      %v903 = vshrl.u32 %v770, 16
      %v905 = vrot.slane %v903, 7
      %v906 = vshll.u32 %v770, 16
      %v908 = vor.u32 %v905, %v906
      %v909 = vsel %vm791, %v901, %v908
      %v910 = vrot.slane %v905, 4
      %v912 = vshrl.u32 %v771, 16
      %v914 = vrot.slane %v912, 7
      %v915 = vshll.u32 %v771, 16
      %v917 = vor.u32 %v914, %v915
      %v918 = vrot.slane %v914, 4
      %v920 = vshrl.u32 %v772, 16
      %v922 = vrot.slane %v920, 7
      %v923 = vshll.u32 %v772, 16
      %v925 = vor.u32 %v922, %v923
      %v926 = vsel %vm791, %v918, %v925
      %v927 = vrot.slane %v922, 4
      %v929 = vshrl.u32 %v773, 16
      %v931 = vrot.slane %v929, 7
      %v932 = vshll.u32 %v773, 16
      %v934 = vor.u32 %v931, %v932
      %v935 = vrot.slane %v931, 4
      %v937 = vshrl.u32 %v774, 16
      %v939 = vrot.slane %v937, 7
      %v940 = vshll.u32 %v774, 16
      %v942 = vor.u32 %v939, %v940
      %v943 = vsel %vm791, %v935, %v942
      %v944 = vrot.slane %v939, 4
      %v946 = vshrl.u32 %v775, 16
      %v948 = vrot.slane %v946, 7
      %v949 = vshll.u32 %v775, 16
      %v951 = vor.u32 %v948, %v949
      %v952 = vrot.slane %v948, 4
      %v954 = vshrl.u32 %v776, 16
      %v956 = vrot.slane %v954, 7
      %v957 = vshll.u32 %v776, 16
      %v959 = vor.u32 %v956, %v957
      %v960 = vsel %vm791, %v952, %v959
      %v961 = vrot.slane %v956, 4
      %v963 = vshrl.u32 %v777, 16
      %v965 = vrot.slane %v963, 7
      %v966 = vshll.u32 %v777, 16
      %v968 = vor.u32 %v965, %v966
      %v969 = vrot.slane %v965, 4
      %v971 = vshrl.u32 %v778, 16
      %v973 = vrot.slane %v971, 7
      %v974 = vshll.u32 %v778, 16
      %v976 = vor.u32 %v973, %v974
      %v977 = vsel %vm791, %v969, %v976
      %v978 = vrot.slane %v973, 4
      %v980 = vshrl.u32 %v779, 16
      %v982 = vrot.slane %v980, 7
      %v983 = vshll.u32 %v779, 16
      %v985 = vor.u32 %v982, %v983
      %v986 = vrot.slane %v982, 4
      %v988 = vshrl.u32 %v780, 16
      %v990 = vrot.slane %v988, 7
      %v991 = vshll.u32 %v780, 16
      %v993 = vor.u32 %v990, %v991
      %v994 = vsel %vm791, %v986, %v993
      %v995 = vrot.slane %v990, 4
      %v997 = vshrl.u32 %v781, 16
      %v999 = vrot.slane %v997, 7
      %v1000 = vshll.u32 %v781, 16
      %v1002 = vor.u32 %v999, %v1000
      %v1003 = vrot.slane %v999, 4
      %v1005 = vshrl.u32 %v782, 16
      %v1007 = vrot.slane %v1005, 7
      %v1008 = vshll.u32 %v782, 16
      %v1010 = vor.u32 %v1007, %v1008
      %v1011 = vsel %vm791, %v1003, %v1010
      %v1012 = vrot.slane %v1007, 4
      %v1014 = vshrl.u32 %v783, 16
      %v1016 = vrot.slane %v1014, 7
      %v1017 = vshll.u32 %v783, 16
      %v1019 = vor.u32 %v1016, %v1017
      %v1020 = vrot.slane %v1016, 4
      %v1022 = vshrl.u32 %v784, 16
      %v1024 = vrot.slane %v1022, 7
      %v1025 = vshll.u32 %v784, 16
      %v1027 = vor.u32 %v1024, %v1025
      %v1028 = vsel %vm791, %v1020, %v1027
      %v1029 = vrot.slane %v1024, 4
      %v1031 = vshrl.u32 %v785, 16
      %v1033 = vrot.slane %v1031, 7
      %v1034 = vshll.u32 %v785, 16
      %v1036 = vor.u32 %v1033, %v1034
      %v1037 = vrot.slane %v1033, 4
      %v1039 = vshrl.u32 %v786, 16
      %v1041 = vrot.slane %v1039, 7
      %v1042 = vshll.u32 %v786, 16
      %v1044 = vor.u32 %v1041, %v1042
      %v1045 = vsel %vm791, %v1037, %v1044
      %v1046 = vrot.slane %v1041, 4
      %v1048 = vshrl.u32 %v787, 16
      %v1050 = vrot.slane %v1048, 7
      %v1051 = vshll.u32 %v787, 16
      %v1053 = vor.u32 %v1050, %v1051
      %v1054 = vrot.slane %v1050, 4
      %v1056 = vshrl.u32 %v788, 16
      %v1058 = vrot.slane %v1056, 7
      %v1059 = vshll.u32 %v788, 16
      %v1061 = vor.u32 %v1058, %v1059
      %v1062 = vsel %vm791, %v1054, %v1061
      %v1063 = vrot.slane %v1058, 4
      %s1112 = scalar_lea.vmem [#allocation2], 12
      %vm1113 = vcmask 27648
      %vm1114 = vsmask.f32 7938
      %vm1115 = vmand %vm1113, %vm1114
      %v1116 = vld [vmem:[%s1112] sm:$0xf]
      %v1117 = vsel %vm1115, %v798, %v1116
      %1118 = vst [vmem:[%s1112] sm:$0xf] %v1117
      %vm1119 = vcmask 27648
      %1120 = vst.msk [vmem:[%s1112 + $0x4] sm:$0xf] %vm1119, %v807
      %vm1121 = vcmask 24576
      %vm1122 = vmand %vm1121, %vm789
      %v1123 = vld [vmem:[%s1112 + $0x8] sm:$0x1]
      %v1124 = vsel %vm1122, %v808, %v1123
      %1125 = vst [vmem:[%s1112 + $0x8] sm:$0x1] %v1124
      %v1126 = vld [vmem:[%s1112 + $0xc] sm:$0xf]
      %v1127 = vsel %vm1115, %v815, %v1126
      %1128 = vst [vmem:[%s1112 + $0xc] sm:$0xf] %v1127
      %1129 = vst.msk [vmem:[%s1112 + $0x10] sm:$0xf] %vm1119, %v824
      %v1130 = vld [vmem:[%s1112 + $0x14] sm:$0x1]
      %v1131 = vsel %vm1122, %v825, %v1130
      %1132 = vst [vmem:[%s1112 + $0x14] sm:$0x1] %v1131
      %v1133 = vld [vmem:[%s1112 + $0x18] sm:$0xf]
      %v1134 = vsel %vm1115, %v832, %v1133
      %1135 = vst [vmem:[%s1112 + $0x18] sm:$0xf] %v1134
      %1136 = vst.msk [vmem:[%s1112 + $0x1c] sm:$0xf] %vm1119, %v841
      %v1137 = vld [vmem:[%s1112 + $0x20] sm:$0x1]
      %v1138 = vsel %vm1122, %v842, %v1137
      %1139 = vst [vmem:[%s1112 + $0x20] sm:$0x1] %v1138
      %v1140 = vld [vmem:[%s1112 + $0x24] sm:$0xf]
      %v1141 = vsel %vm1115, %v849, %v1140
      %1142 = vst [vmem:[%s1112 + $0x24] sm:$0xf] %v1141
      %1143 = vst.msk [vmem:[%s1112 + $0x28] sm:$0xf] %vm1119, %v858
      %v1144 = vld [vmem:[%s1112 + $0x2c] sm:$0x1]
      %v1145 = vsel %vm1122, %v859, %v1144
      %1146 = vst [vmem:[%s1112 + $0x2c] sm:$0x1] %v1145
      %v1147 = vld [vmem:[%s1112 + $0x30] sm:$0xf]
      %v1148 = vsel %vm1115, %v866, %v1147
      %1149 = vst [vmem:[%s1112 + $0x30] sm:$0xf] %v1148
      %1150 = vst.msk [vmem:[%s1112 + $0x34] sm:$0xf] %vm1119, %v875
      %v1151 = vld [vmem:[%s1112 + $0x38] sm:$0x1]
      %v1152 = vsel %vm1122, %v876, %v1151
      %1153 = vst [vmem:[%s1112 + $0x38] sm:$0x1] %v1152
      %v1154 = vld [vmem:[%s1112 + $0x3c] sm:$0xf]
      %v1155 = vsel %vm1115, %v883, %v1154
      %1156 = vst [vmem:[%s1112 + $0x3c] sm:$0xf] %v1155
      %1157 = vst.msk [vmem:[%s1112 + $0x40] sm:$0xf] %vm1119, %v892
      %v1158 = vld [vmem:[%s1112 + $0x44] sm:$0x1]
      %v1159 = vsel %vm1122, %v893, %v1158
      %1160 = vst [vmem:[%s1112 + $0x44] sm:$0x1] %v1159
      %v1161 = vld [vmem:[%s1112 + $0x48] sm:$0xf]
      %v1162 = vsel %vm1115, %v900, %v1161
      %1163 = vst [vmem:[%s1112 + $0x48] sm:$0xf] %v1162
      %1164 = vst.msk [vmem:[%s1112 + $0x4c] sm:$0xf] %vm1119, %v909
      %v1165 = vld [vmem:[%s1112 + $0x50] sm:$0x1]
      %v1166 = vsel %vm1122, %v910, %v1165
      %1167 = vst [vmem:[%s1112 + $0x50] sm:$0x1] %v1166
      %v1168 = vld [vmem:[%s1112 + $0x54] sm:$0xf]
      %v1169 = vsel %vm1115, %v917, %v1168
      %1170 = vst [vmem:[%s1112 + $0x54] sm:$0xf] %v1169
      %1171 = vst.msk [vmem:[%s1112 + $0x58] sm:$0xf] %vm1119, %v926
      %v1172 = vld [vmem:[%s1112 + $0x5c] sm:$0x1]
      %v1173 = vsel %vm1122, %v927, %v1172
      %1174 = vst [vmem:[%s1112 + $0x5c] sm:$0x1] %v1173
      %v1175 = vld [vmem:[%s1112 + $0x60] sm:$0xf]
      %v1176 = vsel %vm1115, %v934, %v1175
      %1177 = vst [vmem:[%s1112 + $0x60] sm:$0xf] %v1176
      %1178 = vst.msk [vmem:[%s1112 + $0x64] sm:$0xf] %vm1119, %v943
      %v1179 = vld [vmem:[%s1112 + $0x68] sm:$0x1]
      %v1180 = vsel %vm1122, %v944, %v1179
      %1181 = vst [vmem:[%s1112 + $0x68] sm:$0x1] %v1180
      %v1182 = vld [vmem:[%s1112 + $0x6c] sm:$0xf]
      %v1183 = vsel %vm1115, %v951, %v1182
      %1184 = vst [vmem:[%s1112 + $0x6c] sm:$0xf] %v1183
      %1185 = vst.msk [vmem:[%s1112 + $0x70] sm:$0xf] %vm1119, %v960
      %v1186 = vld [vmem:[%s1112 + $0x74] sm:$0x1]
      %v1187 = vsel %vm1122, %v961, %v1186
      %1188 = vst [vmem:[%s1112 + $0x74] sm:$0x1] %v1187
      %v1189 = vld [vmem:[%s1112 + $0x78] sm:$0xf]
      %v1190 = vsel %vm1115, %v968, %v1189
      %1191 = vst [vmem:[%s1112 + $0x78] sm:$0xf] %v1190
      %1192 = vst.msk [vmem:[%s1112 + $0x7c] sm:$0xf] %vm1119, %v977
      %v1193 = vld [vmem:[%s1112 + $0x80] sm:$0x1]
      %v1194 = vsel %vm1122, %v978, %v1193
      %1195 = vst [vmem:[%s1112 + $0x80] sm:$0x1] %v1194
      %v1196 = vld [vmem:[%s1112 + $0x84] sm:$0xf]
      %v1197 = vsel %vm1115, %v985, %v1196
      %1198 = vst [vmem:[%s1112 + $0x84] sm:$0xf] %v1197
      %1199 = vst.msk [vmem:[%s1112 + $0x88] sm:$0xf] %vm1119, %v994
      %v1200 = vld [vmem:[%s1112 + $0x8c] sm:$0x1]
      %v1201 = vsel %vm1122, %v995, %v1200
      %1202 = vst [vmem:[%s1112 + $0x8c] sm:$0x1] %v1201
      %v1203 = vld [vmem:[%s1112 + $0x90] sm:$0xf]
      %v1204 = vsel %vm1115, %v1002, %v1203
      %1205 = vst [vmem:[%s1112 + $0x90] sm:$0xf] %v1204
      %1206 = vst.msk [vmem:[%s1112 + $0x94] sm:$0xf] %vm1119, %v1011
      %v1207 = vld [vmem:[%s1112 + $0x98] sm:$0x1]
      %v1208 = vsel %vm1122, %v1012, %v1207
      %1209 = vst [vmem:[%s1112 + $0x98] sm:$0x1] %v1208
      %v1210 = vld [vmem:[%s1112 + $0x9c] sm:$0xf]
      %v1211 = vsel %vm1115, %v1019, %v1210
      %1212 = vst [vmem:[%s1112 + $0x9c] sm:$0xf] %v1211
      %1213 = vst.msk [vmem:[%s1112 + $0xa0] sm:$0xf] %vm1119, %v1028
      %v1214 = vld [vmem:[%s1112 + $0xa4] sm:$0x1]
      %v1215 = vsel %vm1122, %v1029, %v1214
      %1216 = vst [vmem:[%s1112 + $0xa4] sm:$0x1] %v1215
      %v1217 = vld [vmem:[%s1112 + $0xa8] sm:$0xf]
      %v1218 = vsel %vm1115, %v1036, %v1217
      %1219 = vst [vmem:[%s1112 + $0xa8] sm:$0xf] %v1218
      %1220 = vst.msk [vmem:[%s1112 + $0xac] sm:$0xf] %vm1119, %v1045
      %v1221 = vld [vmem:[%s1112 + $0xb0] sm:$0x1]
      %v1222 = vsel %vm1122, %v1046, %v1221
      %1223 = vst [vmem:[%s1112 + $0xb0] sm:$0x1] %v1222
      %v1224 = vld [vmem:[%s1112 + $0xb4] sm:$0xf]
      %v1225 = vsel %vm1115, %v1053, %v1224
      %1226 = vst [vmem:[%s1112 + $0xb4] sm:$0xf] %v1225
      %1227 = vst.msk [vmem:[%s1112 + $0xb8] sm:$0xf] %vm1119, %v1062
      %v1228 = vld [vmem:[%s1112 + $0xbc] sm:$0x1]
      %v1229 = vsel %vm1122, %v1063, %v1228
      %1230 = vst [vmem:[%s1112 + $0xbc] sm:$0x1] %v1229
      %v1231 = vld [vmem:[%s421] sm:$0xf]
      %v1232 = vld [vmem:[%s421 + $0x4] sm:$0xf]
      %v1233 = vunpack.c.l.bf16 %v1231
      %v1234 = vunpack.c.l.bf16 %v1232
      %v1235 = vld [vmem:[%s3] sm:$0x1]
      %v1237 = vlaneseq
      %v1238 = vshrl.u32 %v1237, 7
      %v1239 = vsub.s32 0, %v1238
      %v1240 = vrot.slane %v1235, %v1239
      %v1242 = vmul.f32 %v1233, %v1240
      %v1243 = vmul.f32 %v1234, %v1240
      %v1244 = vld [vmem:[%s4] sm:$0x1]
      %v1246 = vlaneseq
      %v1247 = vshrl.u32 %v1246, 7
      %v1248 = vsub.s32 0, %v1247
      %v1249 = vrot.slane %v1244, %v1248
      %v1251 = vadd.f32 %v1242, %v1249
      %v1252 = vadd.f32 %v1243, %v1249
      %v1253 = vmax.f32 %v1251, 0.0
      %v1254 = vmax.f32 %v1252, 0.0
      %v1255 = vpack.c.bf16 %v1254, %v1253
      %v1256 = vld [vmem:[%s438] sm:$0xf]
      %v1257 = vld [vmem:[%s438 + $0x4] sm:$0xf]
      %v1258 = vunpack.c.l.bf16 %v1256
      %v1259 = vunpack.c.l.bf16 %v1257
      %v1260 = vmul.f32 %v1258, %v1240
      %v1261 = vmul.f32 %v1259, %v1240
      %v1262 = vadd.f32 %v1260, %v1249
      %v1263 = vadd.f32 %v1261, %v1249
      %v1264 = vmax.f32 %v1262, 0.0
      %v1265 = vmax.f32 %v1263, 0.0
      %v1266 = vpack.c.bf16 %v1265, %v1264
      %p1267 = scmp.gt.s32.totalorder %s24, 0
      %s1268 = scalar_select %p1267, 1, 0
      %v1269 = vstv %s1268
      %vm1270 = vcmp.eq.s32.totalorder %v1269, 1
      %v1271 = vsel %vm1270, %v1255, 0
      %v1273 = vunpack.c.l.b16 %v1271
      %v1274 = vunpack.c.h.b16 %v1271
      %v1275 = vpack.c.b16 %v1273, %v1273
      %v1276 = vpack.c.b16 %v1274, %v1274
      %v1278 = vshrl.u32 %v1275, 16
      %v1280 = vrot.slane %v1278, 7
      %v1281 = vshll.u32 %v1275, 16
      %v1283 = vor.u32 %v1280, %v1281
      %v1284 = vrot.slane %v1280, 4
      %v1286 = vshrl.u32 %v1276, 16
      %v1288 = vrot.slane %v1286, 7
      %v1289 = vshll.u32 %v1276, 16
      %v1291 = vor.u32 %v1288, %v1289
      %v1292 = vsel %vm791, %v1284, %v1291
      %v1293 = vrot.slane %v1288, 4
      %v1297 = vld [vmem:[#allocation2] sm:$0xf]
      %v1298 = vsel %vm1115, %v1283, %v1297
      %1299 = vst [vmem:[#allocation2] sm:$0xf] %v1298
      %1300 = vst.msk [vmem:[#allocation2 + $0x4] sm:$0xf] %vm1119, %v1292
      %v1301 = vld [vmem:[#allocation2 + $0x8] sm:$0x1]
      %v1302 = vsel %vm1122, %v1293, %v1301
      %1303 = vst [vmem:[#allocation2 + $0x8] sm:$0x1] %v1302
      %s1304 = sadd.s32 %s24, 1
      %p1305 = scmp.lt.s32.totalorder %s1304, 1
      %s1306 = scalar_select %p1305, 1, 0
      %v1307 = vstv %s1306
      %vm1308 = vcmp.eq.s32.totalorder %v1307, 1
      %v1309 = vsel %vm1308, %v1266, 0
      %v1311 = vunpack.c.l.b16 %v1309
      %v1312 = vunpack.c.h.b16 %v1309
      %v1313 = vpack.c.b16 %v1311, %v1311
      %v1314 = vpack.c.b16 %v1312, %v1312
      %v1316 = vshrl.u32 %v1313, 16
      %v1318 = vrot.slane %v1316, 7
      %v1319 = vshll.u32 %v1313, 16
      %v1321 = vor.u32 %v1318, %v1319
      %v1322 = vrot.slane %v1318, 4
      %v1324 = vshrl.u32 %v1314, 16
      %v1326 = vrot.slane %v1324, 7
      %v1327 = vshll.u32 %v1314, 16
      %v1329 = vor.u32 %v1326, %v1327
      %v1330 = vsel %vm791, %v1322, %v1329
      %v1331 = vrot.slane %v1326, 4
      %s1335 = scalar_lea.vmem [#allocation2], 204
      %v1336 = vld [vmem:[%s1335] sm:$0xf]
      %v1337 = vsel %vm1115, %v1321, %v1336
      %1338 = vst [vmem:[%s1335] sm:$0xf] %v1337
      %1339 = vst.msk [vmem:[%s1335 + $0x4] sm:$0xf] %vm1119, %v1330
      %v1340 = vld [vmem:[%s1335 + $0x8] sm:$0x1]
      %v1341 = vsel %vm1122, %v1331, %v1340
      %1342 = vst [vmem:[%s1335 + $0x8] sm:$0x1] %v1341
      %v1343 = vld [vmem:[#allocation2] sm:$0xf]
      %v1344 = vld [vmem:[#allocation2 + $0x4] sm:$0xf]
      %v1345 = vld [vmem:[#allocation2 + $0xc] sm:$0xf]
      %v1346 = vld [vmem:[#allocation2 + $0x10] sm:$0xf]
      %v1347 = vld [vmem:[#allocation2 + $0x18] sm:$0xf]
      %v1348 = vld [vmem:[#allocation2 + $0x1c] sm:$0xf]
      %v1349 = vld [vmem:[#allocation2 + $0x24] sm:$0xf]
      %v1350 = vld [vmem:[#allocation2 + $0x28] sm:$0xf]
      %v1351 = vld [vmem:[#allocation2 + $0x30] sm:$0xf]
      %v1352 = vld [vmem:[#allocation2 + $0x34] sm:$0xf]
      %v1353 = vld [vmem:[#allocation2 + $0x3c] sm:$0xf]
      %v1354 = vld [vmem:[#allocation2 + $0x40] sm:$0xf]
      %v1355 = vld [vmem:[#allocation2 + $0x48] sm:$0xf]
      %v1356 = vld [vmem:[#allocation2 + $0x4c] sm:$0xf]
      %v1357 = vld [vmem:[#allocation2 + $0x54] sm:$0xf]
      %v1358 = vld [vmem:[#allocation2 + $0x58] sm:$0xf]
      %v1359 = vld [vmem:[#allocation2 + $0x60] sm:$0xf]
      %v1360 = vld [vmem:[#allocation2 + $0x64] sm:$0xf]
      %v1361 = vld [vmem:[#allocation2 + $0x6c] sm:$0xf]
      %v1362 = vld [vmem:[#allocation2 + $0x70] sm:$0xf]
      %v1363 = vld [vmem:[#allocation2 + $0x78] sm:$0xf]
      %v1364 = vld [vmem:[#allocation2 + $0x7c] sm:$0xf]
      %v1365 = vld [vmem:[#allocation2 + $0x84] sm:$0xf]
      %v1366 = vld [vmem:[#allocation2 + $0x88] sm:$0xf]
      %v1367 = vld [vmem:[#allocation2 + $0x90] sm:$0xf]
      %v1368 = vld [vmem:[#allocation2 + $0x94] sm:$0xf]
      %v1369 = vld [vmem:[#allocation2 + $0x9c] sm:$0xf]
      %v1370 = vld [vmem:[#allocation2 + $0xa0] sm:$0xf]
      %v1371 = vld [vmem:[#allocation2 + $0xa8] sm:$0xf]
      %v1372 = vld [vmem:[#allocation2 + $0xac] sm:$0xf]
      %v1373 = vld [vmem:[#allocation2 + $0xb4] sm:$0xf]
      %v1374 = vld [vmem:[#allocation2 + $0xb8] sm:$0xf]
      %1375 = vst.msk [vmem:[#allocation3] sm:$0xf] %vm1119, %v1343
      %1376 = vst.msk [vmem:[#allocation3 + $0x4] sm:$0xf] %vm1119, %v1344
      %1377 = vst.msk [vmem:[#allocation3 + $0x8] sm:$0xf] %vm1119, %v1345
      %1378 = vst.msk [vmem:[#allocation3 + $0xc] sm:$0xf] %vm1119, %v1346
      %1379 = vst.msk [vmem:[#allocation3 + $0x10] sm:$0xf] %vm1119, %v1347
      %1380 = vst.msk [vmem:[#allocation3 + $0x14] sm:$0xf] %vm1119, %v1348
      %1381 = vst.msk [vmem:[#allocation3 + $0x18] sm:$0xf] %vm1119, %v1349
      %1382 = vst.msk [vmem:[#allocation3 + $0x1c] sm:$0xf] %vm1119, %v1350
      %1383 = vst.msk [vmem:[#allocation3 + $0x20] sm:$0xf] %vm1119, %v1351
      %1384 = vst.msk [vmem:[#allocation3 + $0x24] sm:$0xf] %vm1119, %v1352
      %1385 = vst.msk [vmem:[#allocation3 + $0x28] sm:$0xf] %vm1119, %v1353
      %1386 = vst.msk [vmem:[#allocation3 + $0x2c] sm:$0xf] %vm1119, %v1354
      %1387 = vst.msk [vmem:[#allocation3 + $0x30] sm:$0xf] %vm1119, %v1355
      %1388 = vst.msk [vmem:[#allocation3 + $0x34] sm:$0xf] %vm1119, %v1356
      %1389 = vst.msk [vmem:[#allocation3 + $0x38] sm:$0xf] %vm1119, %v1357
      %1390 = vst.msk [vmem:[#allocation3 + $0x3c] sm:$0xf] %vm1119, %v1358
      %1391 = vst.msk [vmem:[#allocation3 + $0x40] sm:$0xf] %vm1119, %v1359
      %1392 = vst.msk [vmem:[#allocation3 + $0x44] sm:$0xf] %vm1119, %v1360
      %1393 = vst.msk [vmem:[#allocation3 + $0x48] sm:$0xf] %vm1119, %v1361
      %1394 = vst.msk [vmem:[#allocation3 + $0x4c] sm:$0xf] %vm1119, %v1362
      %1395 = vst.msk [vmem:[#allocation3 + $0x50] sm:$0xf] %vm1119, %v1363
      %1396 = vst.msk [vmem:[#allocation3 + $0x54] sm:$0xf] %vm1119, %v1364
      %1397 = vst.msk [vmem:[#allocation3 + $0x58] sm:$0xf] %vm1119, %v1365
      %1398 = vst.msk [vmem:[#allocation3 + $0x5c] sm:$0xf] %vm1119, %v1366
      %1399 = vst.msk [vmem:[#allocation3 + $0x60] sm:$0xf] %vm1119, %v1367
      %1400 = vst.msk [vmem:[#allocation3 + $0x64] sm:$0xf] %vm1119, %v1368
      %1401 = vst.msk [vmem:[#allocation3 + $0x68] sm:$0xf] %vm1119, %v1369
      %1402 = vst.msk [vmem:[#allocation3 + $0x6c] sm:$0xf] %vm1119, %v1370
      %1403 = vst.msk [vmem:[#allocation3 + $0x70] sm:$0xf] %vm1119, %v1371
      %1404 = vst.msk [vmem:[#allocation3 + $0x74] sm:$0xf] %vm1119, %v1372
      %1405 = vst.msk [vmem:[#allocation3 + $0x78] sm:$0xf] %vm1119, %v1373
      %1406 = vst.msk [vmem:[#allocation3 + $0x7c] sm:$0xf] %vm1119, %v1374
      %v1407 = vld [vmem:[#allocation2] sm:$0xf]
      %v1408 = vld [vmem:[#allocation2 + $0x4] sm:$0xf]
      %v1409 = vld [vmem:[#allocation2 + $0x8] sm:$0x1]
      %v1410 = vld [vmem:[#allocation2 + $0xc] sm:$0xf]
      %v1411 = vld [vmem:[#allocation2 + $0x10] sm:$0xf]
      %v1412 = vld [vmem:[#allocation2 + $0x14] sm:$0x1]
      %v1413 = vld [vmem:[#allocation2 + $0x18] sm:$0xf]
      %v1414 = vld [vmem:[#allocation2 + $0x1c] sm:$0xf]
      %v1415 = vld [vmem:[#allocation2 + $0x20] sm:$0x1]
      %v1416 = vld [vmem:[#allocation2 + $0x24] sm:$0xf]
      %v1417 = vld [vmem:[#allocation2 + $0x28] sm:$0xf]
      %v1418 = vld [vmem:[#allocation2 + $0x2c] sm:$0x1]
      %v1419 = vld [vmem:[#allocation2 + $0x30] sm:$0xf]
      %v1420 = vld [vmem:[#allocation2 + $0x34] sm:$0xf]
      %v1421 = vld [vmem:[#allocation2 + $0x38] sm:$0x1]
      %v1422 = vld [vmem:[#allocation2 + $0x3c] sm:$0xf]
      %v1423 = vld [vmem:[#allocation2 + $0x40] sm:$0xf]
      %v1424 = vld [vmem:[#allocation2 + $0x44] sm:$0x1]
      %v1425 = vld [vmem:[#allocation2 + $0x48] sm:$0xf]
      %v1426 = vld [vmem:[#allocation2 + $0x4c] sm:$0xf]
      %v1427 = vld [vmem:[#allocation2 + $0x50] sm:$0x1]
      %v1428 = vld [vmem:[#allocation2 + $0x54] sm:$0xf]
      %v1429 = vld [vmem:[#allocation2 + $0x58] sm:$0xf]
      %v1430 = vld [vmem:[#allocation2 + $0x5c] sm:$0x1]
      %v1431 = vld [vmem:[#allocation2 + $0x60] sm:$0xf]
      %v1432 = vld [vmem:[#allocation2 + $0x64] sm:$0xf]
      %v1433 = vld [vmem:[#allocation2 + $0x68] sm:$0x1]
      %v1434 = vld [vmem:[#allocation2 + $0x6c] sm:$0xf]
      %v1435 = vld [vmem:[#allocation2 + $0x70] sm:$0xf]
      %v1436 = vld [vmem:[#allocation2 + $0x74] sm:$0x1]
      %v1437 = vld [vmem:[#allocation2 + $0x78] sm:$0xf]
      %v1438 = vld [vmem:[#allocation2 + $0x7c] sm:$0xf]
      %v1439 = vld [vmem:[#allocation2 + $0x80] sm:$0x1]
      %v1440 = vld [vmem:[#allocation2 + $0x84] sm:$0xf]
      %v1441 = vld [vmem:[#allocation2 + $0x88] sm:$0xf]
      %v1442 = vld [vmem:[#allocation2 + $0x8c] sm:$0x1]
      %v1443 = vld [vmem:[#allocation2 + $0x90] sm:$0xf]
      %v1444 = vld [vmem:[#allocation2 + $0x94] sm:$0xf]
      %v1445 = vld [vmem:[#allocation2 + $0x98] sm:$0x1]
      %v1446 = vld [vmem:[#allocation2 + $0x9c] sm:$0xf]
      %v1447 = vld [vmem:[#allocation2 + $0xa0] sm:$0xf]
      %v1448 = vld [vmem:[#allocation2 + $0xa4] sm:$0x1]
      %v1449 = vld [vmem:[#allocation2 + $0xa8] sm:$0xf]
      %v1450 = vld [vmem:[#allocation2 + $0xac] sm:$0xf]
      %v1451 = vld [vmem:[#allocation2 + $0xb0] sm:$0x1]
      %v1452 = vld [vmem:[#allocation2 + $0xb4] sm:$0xf]
      %v1453 = vld [vmem:[#allocation2 + $0xb8] sm:$0xf]
      %v1454 = vld [vmem:[#allocation2 + $0xbc] sm:$0x1]
      %vm1455 = vsmask.f32 3328
      %vm1456 = vsmask.f32 7440
      %vm1457 = vmor %vm1455, %vm1456
      %v1459 = vshrl.u32 %v1407, 16
      %v1461 = vrot.slane %v1459, 4
      %v1462 = vshll.u32 %v1407, 16
      %v1464 = vrot.slane %v1462, 5
      %v1465 = vor.u32 %v1461, %v1464
      %v1466 = vrot.slane %v1465, 4
      %v1468 = vshll.u32 %v1408, 16
      %v1470 = vrot.slane %v1468, 5
      %v1471 = vsel %vm1457, %v1466, %v1470
      %v1472 = vshrl.u32 %v1408, 16
      %v1474 = vrot.slane %v1472, 4
      %v1475 = vor.u32 %v1474, %v1470
      %v1476 = vrot.slane %v1475, 4
      %v1478 = vshll.u32 %v1409, 16
      %v1480 = vrot.slane %v1478, 5
      %v1481 = vsel %vm1457, %v1476, %v1480
      %v1483 = vshrl.u32 %v1410, 16
      %v1485 = vrot.slane %v1483, 4
      %v1486 = vshll.u32 %v1410, 16
      %v1488 = vrot.slane %v1486, 5
      %v1489 = vor.u32 %v1485, %v1488
      %v1490 = vrot.slane %v1489, 4
      %v1492 = vshll.u32 %v1411, 16
      %v1494 = vrot.slane %v1492, 5
      %v1495 = vsel %vm1457, %v1490, %v1494
      %v1496 = vshrl.u32 %v1411, 16
      %v1498 = vrot.slane %v1496, 4
      %v1499 = vor.u32 %v1498, %v1494
      %v1500 = vrot.slane %v1499, 4
      %v1502 = vshll.u32 %v1412, 16
      %v1504 = vrot.slane %v1502, 5
      %v1505 = vsel %vm1457, %v1500, %v1504
      %v1507 = vshrl.u32 %v1413, 16
      %v1509 = vrot.slane %v1507, 4
      %v1510 = vshll.u32 %v1413, 16
      %v1512 = vrot.slane %v1510, 5
      %v1513 = vor.u32 %v1509, %v1512
      %v1514 = vrot.slane %v1513, 4
      %v1516 = vshll.u32 %v1414, 16
      %v1518 = vrot.slane %v1516, 5
      %v1519 = vsel %vm1457, %v1514, %v1518
      %v1520 = vshrl.u32 %v1414, 16
      %v1522 = vrot.slane %v1520, 4
      %v1523 = vor.u32 %v1522, %v1518
      %v1524 = vrot.slane %v1523, 4
      %v1526 = vshll.u32 %v1415, 16
      %v1528 = vrot.slane %v1526, 5
      %v1529 = vsel %vm1457, %v1524, %v1528
      %v1531 = vshrl.u32 %v1416, 16
      %v1533 = vrot.slane %v1531, 4
      %v1534 = vshll.u32 %v1416, 16
      %v1536 = vrot.slane %v1534, 5
      %v1537 = vor.u32 %v1533, %v1536
      %v1538 = vrot.slane %v1537, 4
      %v1540 = vshll.u32 %v1417, 16
      %v1542 = vrot.slane %v1540, 5
      %v1543 = vsel %vm1457, %v1538, %v1542
      %v1544 = vshrl.u32 %v1417, 16
      %v1546 = vrot.slane %v1544, 4
      %v1547 = vor.u32 %v1546, %v1542
      %v1548 = vrot.slane %v1547, 4
      %v1550 = vshll.u32 %v1418, 16
      %v1552 = vrot.slane %v1550, 5
      %v1553 = vsel %vm1457, %v1548, %v1552
      %v1555 = vshrl.u32 %v1419, 16
      %v1557 = vrot.slane %v1555, 4
      %v1558 = vshll.u32 %v1419, 16
      %v1560 = vrot.slane %v1558, 5
      %v1561 = vor.u32 %v1557, %v1560
      %v1562 = vrot.slane %v1561, 4
      %v1564 = vshll.u32 %v1420, 16
      %v1566 = vrot.slane %v1564, 5
      %v1567 = vsel %vm1457, %v1562, %v1566
      %v1568 = vshrl.u32 %v1420, 16
      %v1570 = vrot.slane %v1568, 4
      %v1571 = vor.u32 %v1570, %v1566
      %v1572 = vrot.slane %v1571, 4
      %v1574 = vshll.u32 %v1421, 16
      %v1576 = vrot.slane %v1574, 5
      %v1577 = vsel %vm1457, %v1572, %v1576
      %v1579 = vshrl.u32 %v1422, 16
      %v1581 = vrot.slane %v1579, 4
      %v1582 = vshll.u32 %v1422, 16
      %v1584 = vrot.slane %v1582, 5
      %v1585 = vor.u32 %v1581, %v1584
      %v1586 = vrot.slane %v1585, 4
      %v1588 = vshll.u32 %v1423, 16
      %v1590 = vrot.slane %v1588, 5
      %v1591 = vsel %vm1457, %v1586, %v1590
      %v1592 = vshrl.u32 %v1423, 16
      %v1594 = vrot.slane %v1592, 4
      %v1595 = vor.u32 %v1594, %v1590
      %v1596 = vrot.slane %v1595, 4
      %v1598 = vshll.u32 %v1424, 16
      %v1600 = vrot.slane %v1598, 5
      %v1601 = vsel %vm1457, %v1596, %v1600
      %v1603 = vshrl.u32 %v1425, 16
      %v1605 = vrot.slane %v1603, 4
      %v1606 = vshll.u32 %v1425, 16
      %v1608 = vrot.slane %v1606, 5
      %v1609 = vor.u32 %v1605, %v1608
      %v1610 = vrot.slane %v1609, 4
      %v1612 = vshll.u32 %v1426, 16
      %v1614 = vrot.slane %v1612, 5
      %v1615 = vsel %vm1457, %v1610, %v1614
      %v1616 = vshrl.u32 %v1426, 16
      %v1618 = vrot.slane %v1616, 4
      %v1619 = vor.u32 %v1618, %v1614
      %v1620 = vrot.slane %v1619, 4
      %v1622 = vshll.u32 %v1427, 16
      %v1624 = vrot.slane %v1622, 5
      %v1625 = vsel %vm1457, %v1620, %v1624
      %v1627 = vshrl.u32 %v1428, 16
      %v1629 = vrot.slane %v1627, 4
      %v1630 = vshll.u32 %v1428, 16
      %v1632 = vrot.slane %v1630, 5
      %v1633 = vor.u32 %v1629, %v1632
      %v1634 = vrot.slane %v1633, 4
      %v1636 = vshll.u32 %v1429, 16
      %v1638 = vrot.slane %v1636, 5
      %v1639 = vsel %vm1457, %v1634, %v1638
      %v1640 = vshrl.u32 %v1429, 16
      %v1642 = vrot.slane %v1640, 4
      %v1643 = vor.u32 %v1642, %v1638
      %v1644 = vrot.slane %v1643, 4
      %v1646 = vshll.u32 %v1430, 16
      %v1648 = vrot.slane %v1646, 5
      %v1649 = vsel %vm1457, %v1644, %v1648
      %v1651 = vshrl.u32 %v1431, 16
      %v1653 = vrot.slane %v1651, 4
      %v1654 = vshll.u32 %v1431, 16
      %v1656 = vrot.slane %v1654, 5
      %v1657 = vor.u32 %v1653, %v1656
      %v1658 = vrot.slane %v1657, 4
      %v1660 = vshll.u32 %v1432, 16
      %v1662 = vrot.slane %v1660, 5
      %v1663 = vsel %vm1457, %v1658, %v1662
      %v1664 = vshrl.u32 %v1432, 16
      %v1666 = vrot.slane %v1664, 4
      %v1667 = vor.u32 %v1666, %v1662
      %v1668 = vrot.slane %v1667, 4
      %v1670 = vshll.u32 %v1433, 16
      %v1672 = vrot.slane %v1670, 5
      %v1673 = vsel %vm1457, %v1668, %v1672
      %v1675 = vshrl.u32 %v1434, 16
      %v1677 = vrot.slane %v1675, 4
      %v1678 = vshll.u32 %v1434, 16
      %v1680 = vrot.slane %v1678, 5
      %v1681 = vor.u32 %v1677, %v1680
      %v1682 = vrot.slane %v1681, 4
      %v1684 = vshll.u32 %v1435, 16
      %v1686 = vrot.slane %v1684, 5
      %v1687 = vsel %vm1457, %v1682, %v1686
      %v1688 = vshrl.u32 %v1435, 16
      %v1690 = vrot.slane %v1688, 4
      %v1691 = vor.u32 %v1690, %v1686
      %v1692 = vrot.slane %v1691, 4
      %v1694 = vshll.u32 %v1436, 16
      %v1696 = vrot.slane %v1694, 5
      %v1697 = vsel %vm1457, %v1692, %v1696
      %v1699 = vshrl.u32 %v1437, 16
      %v1701 = vrot.slane %v1699, 4
      %v1702 = vshll.u32 %v1437, 16
      %v1704 = vrot.slane %v1702, 5
      %v1705 = vor.u32 %v1701, %v1704
      %v1706 = vrot.slane %v1705, 4
      %v1708 = vshll.u32 %v1438, 16
      %v1710 = vrot.slane %v1708, 5
      %v1711 = vsel %vm1457, %v1706, %v1710
      %v1712 = vshrl.u32 %v1438, 16
      %v1714 = vrot.slane %v1712, 4
      %v1715 = vor.u32 %v1714, %v1710
      %v1716 = vrot.slane %v1715, 4
      %v1718 = vshll.u32 %v1439, 16
      %v1720 = vrot.slane %v1718, 5
      %v1721 = vsel %vm1457, %v1716, %v1720
      %v1723 = vshrl.u32 %v1440, 16
      %v1725 = vrot.slane %v1723, 4
      %v1726 = vshll.u32 %v1440, 16
      %v1728 = vrot.slane %v1726, 5
      %v1729 = vor.u32 %v1725, %v1728
      %v1730 = vrot.slane %v1729, 4
      %v1732 = vshll.u32 %v1441, 16
      %v1734 = vrot.slane %v1732, 5
      %v1735 = vsel %vm1457, %v1730, %v1734
      %v1736 = vshrl.u32 %v1441, 16
      %v1738 = vrot.slane %v1736, 4
      %v1739 = vor.u32 %v1738, %v1734
      %v1740 = vrot.slane %v1739, 4
      %v1742 = vshll.u32 %v1442, 16
      %v1744 = vrot.slane %v1742, 5
      %v1745 = vsel %vm1457, %v1740, %v1744
      %v1747 = vshrl.u32 %v1443, 16
      %v1749 = vrot.slane %v1747, 4
      %v1750 = vshll.u32 %v1443, 16
      %v1752 = vrot.slane %v1750, 5
      %v1753 = vor.u32 %v1749, %v1752
      %v1754 = vrot.slane %v1753, 4
      %v1756 = vshll.u32 %v1444, 16
      %v1758 = vrot.slane %v1756, 5
      %v1759 = vsel %vm1457, %v1754, %v1758
      %v1760 = vshrl.u32 %v1444, 16
      %v1762 = vrot.slane %v1760, 4
      %v1763 = vor.u32 %v1762, %v1758
      %v1764 = vrot.slane %v1763, 4
      %v1766 = vshll.u32 %v1445, 16
      %v1768 = vrot.slane %v1766, 5
      %v1769 = vsel %vm1457, %v1764, %v1768
      %v1771 = vshrl.u32 %v1446, 16
      %v1773 = vrot.slane %v1771, 4
      %v1774 = vshll.u32 %v1446, 16
      %v1776 = vrot.slane %v1774, 5
      %v1777 = vor.u32 %v1773, %v1776
      %v1778 = vrot.slane %v1777, 4
      %v1780 = vshll.u32 %v1447, 16
      %v1782 = vrot.slane %v1780, 5
      %v1783 = vsel %vm1457, %v1778, %v1782
      %v1784 = vshrl.u32 %v1447, 16
      %v1786 = vrot.slane %v1784, 4
      %v1787 = vor.u32 %v1786, %v1782
      %v1788 = vrot.slane %v1787, 4
      %v1790 = vshll.u32 %v1448, 16
      %v1792 = vrot.slane %v1790, 5
      %v1793 = vsel %vm1457, %v1788, %v1792
      %v1795 = vshrl.u32 %v1449, 16
      %v1797 = vrot.slane %v1795, 4
      %v1798 = vshll.u32 %v1449, 16
      %v1800 = vrot.slane %v1798, 5
      %v1801 = vor.u32 %v1797, %v1800
      %v1802 = vrot.slane %v1801, 4
      %v1804 = vshll.u32 %v1450, 16
      %v1806 = vrot.slane %v1804, 5
      %v1807 = vsel %vm1457, %v1802, %v1806
      %v1808 = vshrl.u32 %v1450, 16
      %v1810 = vrot.slane %v1808, 4
      %v1811 = vor.u32 %v1810, %v1806
      %v1812 = vrot.slane %v1811, 4
      %v1814 = vshll.u32 %v1451, 16
      %v1816 = vrot.slane %v1814, 5
      %v1817 = vsel %vm1457, %v1812, %v1816
      %v1819 = vshrl.u32 %v1452, 16
      %v1821 = vrot.slane %v1819, 4
      %v1822 = vshll.u32 %v1452, 16
      %v1824 = vrot.slane %v1822, 5
      %v1825 = vor.u32 %v1821, %v1824
      %v1826 = vrot.slane %v1825, 4
      %v1828 = vshll.u32 %v1453, 16
      %v1830 = vrot.slane %v1828, 5
      %v1831 = vsel %vm1457, %v1826, %v1830
      %v1832 = vshrl.u32 %v1453, 16
      %v1834 = vrot.slane %v1832, 4
      %v1835 = vor.u32 %v1834, %v1830
      %v1836 = vrot.slane %v1835, 4
      %v1838 = vshll.u32 %v1454, 16
      %v1840 = vrot.slane %v1838, 5
      %v1841 = vsel %vm1457, %v1836, %v1840
      %1842 = vrot.lane.b32.xlu0 %v1471, 4
      %v1843 = vpop.permute.xlu0 %1842
      %1844 = vrot.lane.b32.xlu0 %v1481, 4
      %v1845 = vpop.permute.xlu0 %1844
      %1846 = vrot.lane.b32.xlu0 %v1495, 4
      %v1847 = vpop.permute.xlu0 %1846
      %1848 = vrot.lane.b32.xlu0 %v1505, 4
      %v1849 = vpop.permute.xlu0 %1848
      %1850 = vrot.lane.b32.xlu0 %v1519, 4
      %v1851 = vpop.permute.xlu0 %1850
      %1852 = vrot.lane.b32.xlu0 %v1529, 4
      %v1853 = vpop.permute.xlu0 %1852
      %1854 = vrot.lane.b32.xlu0 %v1543, 4
      %v1855 = vpop.permute.xlu0 %1854
      %1856 = vrot.lane.b32.xlu0 %v1553, 4
      %v1857 = vpop.permute.xlu0 %1856
      %1858 = vrot.lane.b32.xlu0 %v1567, 4
      %v1859 = vpop.permute.xlu0 %1858
      %1860 = vrot.lane.b32.xlu0 %v1577, 4
      %v1861 = vpop.permute.xlu0 %1860
      %1862 = vrot.lane.b32.xlu0 %v1591, 4
      %v1863 = vpop.permute.xlu0 %1862
      %1864 = vrot.lane.b32.xlu0 %v1601, 4
      %v1865 = vpop.permute.xlu0 %1864
      %1866 = vrot.lane.b32.xlu0 %v1615, 4
      %v1867 = vpop.permute.xlu0 %1866
      %1868 = vrot.lane.b32.xlu0 %v1625, 4
      %v1869 = vpop.permute.xlu0 %1868
      %1870 = vrot.lane.b32.xlu0 %v1639, 4
      %v1871 = vpop.permute.xlu0 %1870
      %1872 = vrot.lane.b32.xlu0 %v1649, 4
      %v1873 = vpop.permute.xlu0 %1872
      %1874 = vrot.lane.b32.xlu0 %v1663, 4
      %v1875 = vpop.permute.xlu0 %1874
      %1876 = vrot.lane.b32.xlu0 %v1673, 4
      %v1877 = vpop.permute.xlu0 %1876
      %1878 = vrot.lane.b32.xlu0 %v1687, 4
      %v1879 = vpop.permute.xlu0 %1878
      %1880 = vrot.lane.b32.xlu0 %v1697, 4
      %v1881 = vpop.permute.xlu0 %1880
      %1882 = vrot.lane.b32.xlu0 %v1711, 4
      %v1883 = vpop.permute.xlu0 %1882
      %1884 = vrot.lane.b32.xlu0 %v1721, 4
      %v1885 = vpop.permute.xlu0 %1884
      %1886 = vrot.lane.b32.xlu0 %v1735, 4
      %v1887 = vpop.permute.xlu0 %1886
      %1888 = vrot.lane.b32.xlu0 %v1745, 4
      %v1889 = vpop.permute.xlu0 %1888
      %1890 = vrot.lane.b32.xlu0 %v1759, 4
      %v1891 = vpop.permute.xlu0 %1890
      %1892 = vrot.lane.b32.xlu0 %v1769, 4
      %v1893 = vpop.permute.xlu0 %1892
      %1894 = vrot.lane.b32.xlu0 %v1783, 4
      %v1895 = vpop.permute.xlu0 %1894
      %1896 = vrot.lane.b32.xlu0 %v1793, 4
      %v1897 = vpop.permute.xlu0 %1896
      %1898 = vrot.lane.b32.xlu0 %v1807, 4
      %v1899 = vpop.permute.xlu0 %1898
      %1900 = vrot.lane.b32.xlu0 %v1817, 4
      %v1901 = vpop.permute.xlu0 %1900
      %1902 = vrot.lane.b32.xlu0 %v1831, 4
      %v1903 = vpop.permute.xlu0 %1902
      %1904 = vrot.lane.b32.xlu0 %v1841, 4
      %v1905 = vpop.permute.xlu0 %1904
      %vm1938 = vcmask 60448
      %1939 = vst.msk [vmem:[#allocation3] sm:$0xf] %vm1938, %v1843
      %1940 = vst.msk [vmem:[#allocation3 + $0x4] sm:$0xf] %vm1938, %v1845
      %1941 = vst.msk [vmem:[#allocation3 + $0x8] sm:$0xf] %vm1938, %v1847
      %1942 = vst.msk [vmem:[#allocation3 + $0xc] sm:$0xf] %vm1938, %v1849
      %1943 = vst.msk [vmem:[#allocation3 + $0x10] sm:$0xf] %vm1938, %v1851
      %1944 = vst.msk [vmem:[#allocation3 + $0x14] sm:$0xf] %vm1938, %v1853
      %1945 = vst.msk [vmem:[#allocation3 + $0x18] sm:$0xf] %vm1938, %v1855
      %1946 = vst.msk [vmem:[#allocation3 + $0x1c] sm:$0xf] %vm1938, %v1857
      %1947 = vst.msk [vmem:[#allocation3 + $0x20] sm:$0xf] %vm1938, %v1859
      %1948 = vst.msk [vmem:[#allocation3 + $0x24] sm:$0xf] %vm1938, %v1861
      %1949 = vst.msk [vmem:[#allocation3 + $0x28] sm:$0xf] %vm1938, %v1863
      %1950 = vst.msk [vmem:[#allocation3 + $0x2c] sm:$0xf] %vm1938, %v1865
      %1951 = vst.msk [vmem:[#allocation3 + $0x30] sm:$0xf] %vm1938, %v1867
      %1952 = vst.msk [vmem:[#allocation3 + $0x34] sm:$0xf] %vm1938, %v1869
      %1953 = vst.msk [vmem:[#allocation3 + $0x38] sm:$0xf] %vm1938, %v1871
      %1954 = vst.msk [vmem:[#allocation3 + $0x3c] sm:$0xf] %vm1938, %v1873
      %1955 = vst.msk [vmem:[#allocation3 + $0x40] sm:$0xf] %vm1938, %v1875
      %1956 = vst.msk [vmem:[#allocation3 + $0x44] sm:$0xf] %vm1938, %v1877
      %1957 = vst.msk [vmem:[#allocation3 + $0x48] sm:$0xf] %vm1938, %v1879
      %1958 = vst.msk [vmem:[#allocation3 + $0x4c] sm:$0xf] %vm1938, %v1881
      %1959 = vst.msk [vmem:[#allocation3 + $0x50] sm:$0xf] %vm1938, %v1883
      %1960 = vst.msk [vmem:[#allocation3 + $0x54] sm:$0xf] %vm1938, %v1885
      %1961 = vst.msk [vmem:[#allocation3 + $0x58] sm:$0xf] %vm1938, %v1887
      %1962 = vst.msk [vmem:[#allocation3 + $0x5c] sm:$0xf] %vm1938, %v1889
      %1963 = vst.msk [vmem:[#allocation3 + $0x60] sm:$0xf] %vm1938, %v1891
      %1964 = vst.msk [vmem:[#allocation3 + $0x64] sm:$0xf] %vm1938, %v1893
      %1965 = vst.msk [vmem:[#allocation3 + $0x68] sm:$0xf] %vm1938, %v1895
      %1966 = vst.msk [vmem:[#allocation3 + $0x6c] sm:$0xf] %vm1938, %v1897
      %1967 = vst.msk [vmem:[#allocation3 + $0x70] sm:$0xf] %vm1938, %v1899
      %1968 = vst.msk [vmem:[#allocation3 + $0x74] sm:$0xf] %vm1938, %v1901
      %1969 = vst.msk [vmem:[#allocation3 + $0x78] sm:$0xf] %vm1938, %v1903
      %1970 = vst.msk [vmem:[#allocation3 + $0x7c] sm:$0xf] %vm1938, %v1905
      %v1971 = vld [vmem:[#allocation2] sm:$0xe]
      %v1972 = vld [vmem:[#allocation2 + $0x4] sm:$0xf]
      %v1973 = vld [vmem:[#allocation2 + $0x8] sm:$0x1]
      %v1974 = vld [vmem:[#allocation2 + $0xc] sm:$0xe]
      %v1975 = vld [vmem:[#allocation2 + $0x10] sm:$0xf]
      %v1976 = vld [vmem:[#allocation2 + $0x14] sm:$0x1]
      %v1977 = vld [vmem:[#allocation2 + $0x18] sm:$0xe]
      %v1978 = vld [vmem:[#allocation2 + $0x1c] sm:$0xf]
      %v1979 = vld [vmem:[#allocation2 + $0x20] sm:$0x1]
      %v1980 = vld [vmem:[#allocation2 + $0x24] sm:$0xe]
      %v1981 = vld [vmem:[#allocation2 + $0x28] sm:$0xf]
      %v1982 = vld [vmem:[#allocation2 + $0x2c] sm:$0x1]
      %v1983 = vld [vmem:[#allocation2 + $0x30] sm:$0xe]
      %v1984 = vld [vmem:[#allocation2 + $0x34] sm:$0xf]
      %v1985 = vld [vmem:[#allocation2 + $0x38] sm:$0x1]
      %v1986 = vld [vmem:[#allocation2 + $0x3c] sm:$0xe]
      %v1987 = vld [vmem:[#allocation2 + $0x40] sm:$0xf]
      %v1988 = vld [vmem:[#allocation2 + $0x44] sm:$0x1]
      %v1989 = vld [vmem:[#allocation2 + $0x48] sm:$0xe]
      %v1990 = vld [vmem:[#allocation2 + $0x4c] sm:$0xf]
      %v1991 = vld [vmem:[#allocation2 + $0x50] sm:$0x1]
      %v1992 = vld [vmem:[#allocation2 + $0x54] sm:$0xe]
      %v1993 = vld [vmem:[#allocation2 + $0x58] sm:$0xf]
      %v1994 = vld [vmem:[#allocation2 + $0x5c] sm:$0x1]
      %v1995 = vld [vmem:[#allocation2 + $0x60] sm:$0xe]
      %v1996 = vld [vmem:[#allocation2 + $0x64] sm:$0xf]
      %v1997 = vld [vmem:[#allocation2 + $0x68] sm:$0x1]
      %v1998 = vld [vmem:[#allocation2 + $0x6c] sm:$0xe]
      %v1999 = vld [vmem:[#allocation2 + $0x70] sm:$0xf]
      %v2000 = vld [vmem:[#allocation2 + $0x74] sm:$0x1]
      %v2001 = vld [vmem:[#allocation2 + $0x78] sm:$0xe]
      %v2002 = vld [vmem:[#allocation2 + $0x7c] sm:$0xf]
      %v2003 = vld [vmem:[#allocation2 + $0x80] sm:$0x1]
      %v2004 = vld [vmem:[#allocation2 + $0x84] sm:$0xe]
      %v2005 = vld [vmem:[#allocation2 + $0x88] sm:$0xf]
      %v2006 = vld [vmem:[#allocation2 + $0x8c] sm:$0x1]
      %v2007 = vld [vmem:[#allocation2 + $0x90] sm:$0xe]
      %v2008 = vld [vmem:[#allocation2 + $0x94] sm:$0xf]
      %v2009 = vld [vmem:[#allocation2 + $0x98] sm:$0x1]
      %v2010 = vld [vmem:[#allocation2 + $0x9c] sm:$0xe]
      %v2011 = vld [vmem:[#allocation2 + $0xa0] sm:$0xf]
      %v2012 = vld [vmem:[#allocation2 + $0xa4] sm:$0x1]
      %v2013 = vld [vmem:[#allocation2 + $0xa8] sm:$0xe]
      %v2014 = vld [vmem:[#allocation2 + $0xac] sm:$0xf]
      %v2015 = vld [vmem:[#allocation2 + $0xb0] sm:$0x1]
      %v2016 = vld [vmem:[#allocation2 + $0xb4] sm:$0xe]
      %v2017 = vld [vmem:[#allocation2 + $0xb8] sm:$0xf]
      %v2018 = vld [vmem:[#allocation2 + $0xbc] sm:$0x1]
      %vm2067 = vcmask 1042432
      %vm2068 = vcmask 1046532
      %vm2069 = vmor %vm2067, %vm2068
      %v2070 = vrot.slane %v1971, 5
      %v2071 = vrot.slane %v2070, 4
      %v2072 = vrot.slane %v1972, 5
      %v2073 = vsel %vm2069, %v2071, %v2072
      %v2074 = vrot.slane %v2072, 4
      %v2075 = vrot.slane %v1973, 5
      %v2076 = vsel %vm2069, %v2074, %v2075
      %v2077 = vrot.slane %v1974, 5
      %v2078 = vrot.slane %v2077, 4
      %v2079 = vrot.slane %v1975, 5
      %v2080 = vsel %vm2069, %v2078, %v2079
      %v2081 = vrot.slane %v2079, 4
      %v2082 = vrot.slane %v1976, 5
      %v2083 = vsel %vm2069, %v2081, %v2082
      %v2084 = vrot.slane %v1977, 5
      %v2085 = vrot.slane %v2084, 4
      %v2086 = vrot.slane %v1978, 5
      %v2087 = vsel %vm2069, %v2085, %v2086
      %v2088 = vrot.slane %v2086, 4
      %v2089 = vrot.slane %v1979, 5
      %v2090 = vsel %vm2069, %v2088, %v2089
      %v2091 = vrot.slane %v1980, 5
      %v2092 = vrot.slane %v2091, 4
      %v2093 = vrot.slane %v1981, 5
      %v2094 = vsel %vm2069, %v2092, %v2093
      %v2095 = vrot.slane %v2093, 4
      %v2096 = vrot.slane %v1982, 5
      %v2097 = vsel %vm2069, %v2095, %v2096
      %v2098 = vrot.slane %v1983, 5
      %v2099 = vrot.slane %v2098, 4
      %v2100 = vrot.slane %v1984, 5
      %v2101 = vsel %vm2069, %v2099, %v2100
      %v2102 = vrot.slane %v2100, 4
      %v2103 = vrot.slane %v1985, 5
      %v2104 = vsel %vm2069, %v2102, %v2103
      %v2105 = vrot.slane %v1986, 5
      %v2106 = vrot.slane %v2105, 4
      %v2107 = vrot.slane %v1987, 5
      %v2108 = vsel %vm2069, %v2106, %v2107
      %v2109 = vrot.slane %v2107, 4
      %v2110 = vrot.slane %v1988, 5
      %v2111 = vsel %vm2069, %v2109, %v2110
      %v2112 = vrot.slane %v1989, 5
      %v2113 = vrot.slane %v2112, 4
      %v2114 = vrot.slane %v1990, 5
      %v2115 = vsel %vm2069, %v2113, %v2114
      %v2116 = vrot.slane %v2114, 4
      %v2117 = vrot.slane %v1991, 5
      %v2118 = vsel %vm2069, %v2116, %v2117
      %v2119 = vrot.slane %v1992, 5
      %v2120 = vrot.slane %v2119, 4
      %v2121 = vrot.slane %v1993, 5
      %v2122 = vsel %vm2069, %v2120, %v2121
      %v2123 = vrot.slane %v2121, 4
      %v2124 = vrot.slane %v1994, 5
      %v2125 = vsel %vm2069, %v2123, %v2124
      %v2126 = vrot.slane %v1995, 5
      %v2127 = vrot.slane %v2126, 4
      %v2128 = vrot.slane %v1996, 5
      %v2129 = vsel %vm2069, %v2127, %v2128
      %v2130 = vrot.slane %v2128, 4
      %v2131 = vrot.slane %v1997, 5
      %v2132 = vsel %vm2069, %v2130, %v2131
      %v2133 = vrot.slane %v1998, 5
      %v2134 = vrot.slane %v2133, 4
      %v2135 = vrot.slane %v1999, 5
      %v2136 = vsel %vm2069, %v2134, %v2135
      %v2137 = vrot.slane %v2135, 4
      %v2138 = vrot.slane %v2000, 5
      %v2139 = vsel %vm2069, %v2137, %v2138
      %v2140 = vrot.slane %v2001, 5
      %v2141 = vrot.slane %v2140, 4
      %v2142 = vrot.slane %v2002, 5
      %v2143 = vsel %vm2069, %v2141, %v2142
      %v2144 = vrot.slane %v2142, 4
      %v2145 = vrot.slane %v2003, 5
      %v2146 = vsel %vm2069, %v2144, %v2145
      %v2147 = vrot.slane %v2004, 5
      %v2148 = vrot.slane %v2147, 4
      %v2149 = vrot.slane %v2005, 5
      %v2150 = vsel %vm2069, %v2148, %v2149
      %v2151 = vrot.slane %v2149, 4
      %v2152 = vrot.slane %v2006, 5
      %v2153 = vsel %vm2069, %v2151, %v2152
      %v2154 = vrot.slane %v2007, 5
      %v2155 = vrot.slane %v2154, 4
      %v2156 = vrot.slane %v2008, 5
      %v2157 = vsel %vm2069, %v2155, %v2156
      %v2158 = vrot.slane %v2156, 4
      %v2159 = vrot.slane %v2009, 5
      %v2160 = vsel %vm2069, %v2158, %v2159
      %v2161 = vrot.slane %v2010, 5
      %v2162 = vrot.slane %v2161, 4
      %v2163 = vrot.slane %v2011, 5
      %v2164 = vsel %vm2069, %v2162, %v2163
      %v2165 = vrot.slane %v2163, 4
      %v2166 = vrot.slane %v2012, 5
      %v2167 = vsel %vm2069, %v2165, %v2166
      %v2168 = vrot.slane %v2013, 5
      %v2169 = vrot.slane %v2168, 4
      %v2170 = vrot.slane %v2014, 5
      %v2171 = vsel %vm2069, %v2169, %v2170
      %v2172 = vrot.slane %v2170, 4
      %v2173 = vrot.slane %v2015, 5
      %v2174 = vsel %vm2069, %v2172, %v2173
      %v2175 = vrot.slane %v2016, 5
      %v2176 = vrot.slane %v2175, 4
      %v2177 = vrot.slane %v2017, 5
      %v2178 = vsel %vm2069, %v2176, %v2177
      %v2179 = vrot.slane %v2177, 4
      %v2180 = vrot.slane %v2018, 5
      %v2181 = vsel %vm2069, %v2179, %v2180
      %2182 = vrot.lane.b32.xlu0 %v2073, 8
      %v2183 = vpop.permute.xlu0 %2182
      %2184 = vrot.lane.b32.xlu0 %v2076, 8
      %v2185 = vpop.permute.xlu0 %2184
      %2186 = vrot.lane.b32.xlu0 %v2080, 8
      %v2187 = vpop.permute.xlu0 %2186
      %2188 = vrot.lane.b32.xlu0 %v2083, 8
      %v2189 = vpop.permute.xlu0 %2188
      %2190 = vrot.lane.b32.xlu0 %v2087, 8
      %v2191 = vpop.permute.xlu0 %2190
      %2192 = vrot.lane.b32.xlu0 %v2090, 8
      %v2193 = vpop.permute.xlu0 %2192
      %2194 = vrot.lane.b32.xlu0 %v2094, 8
      %v2195 = vpop.permute.xlu0 %2194
      %2196 = vrot.lane.b32.xlu0 %v2097, 8
      %v2197 = vpop.permute.xlu0 %2196
      %2198 = vrot.lane.b32.xlu0 %v2101, 8
      %v2199 = vpop.permute.xlu0 %2198
      %2200 = vrot.lane.b32.xlu0 %v2104, 8
      %v2201 = vpop.permute.xlu0 %2200
      %2202 = vrot.lane.b32.xlu0 %v2108, 8
      %v2203 = vpop.permute.xlu0 %2202
      %2204 = vrot.lane.b32.xlu0 %v2111, 8
      %v2205 = vpop.permute.xlu0 %2204
      %2206 = vrot.lane.b32.xlu0 %v2115, 8
      %v2207 = vpop.permute.xlu0 %2206
      %2208 = vrot.lane.b32.xlu0 %v2118, 8
      %v2209 = vpop.permute.xlu0 %2208
      %2210 = vrot.lane.b32.xlu0 %v2122, 8
      %v2211 = vpop.permute.xlu0 %2210
      %2212 = vrot.lane.b32.xlu0 %v2125, 8
      %v2213 = vpop.permute.xlu0 %2212
      %2214 = vrot.lane.b32.xlu0 %v2129, 8
      %v2215 = vpop.permute.xlu0 %2214
      %2216 = vrot.lane.b32.xlu0 %v2132, 8
      %v2217 = vpop.permute.xlu0 %2216
      %2218 = vrot.lane.b32.xlu0 %v2136, 8
      %v2219 = vpop.permute.xlu0 %2218
      %2220 = vrot.lane.b32.xlu0 %v2139, 8
      %v2221 = vpop.permute.xlu0 %2220
      %2222 = vrot.lane.b32.xlu0 %v2143, 8
      %v2223 = vpop.permute.xlu0 %2222
      %2224 = vrot.lane.b32.xlu0 %v2146, 8
      %v2225 = vpop.permute.xlu0 %2224
      %2226 = vrot.lane.b32.xlu0 %v2150, 8
      %v2227 = vpop.permute.xlu0 %2226
      %2228 = vrot.lane.b32.xlu0 %v2153, 8
      %v2229 = vpop.permute.xlu0 %2228
      %2230 = vrot.lane.b32.xlu0 %v2157, 8
      %v2231 = vpop.permute.xlu0 %2230
      %2232 = vrot.lane.b32.xlu0 %v2160, 8
      %v2233 = vpop.permute.xlu0 %2232
      %2234 = vrot.lane.b32.xlu0 %v2164, 8
      %v2235 = vpop.permute.xlu0 %2234
      %2236 = vrot.lane.b32.xlu0 %v2167, 8
      %v2237 = vpop.permute.xlu0 %2236
      %2238 = vrot.lane.b32.xlu0 %v2171, 8
      %v2239 = vpop.permute.xlu0 %2238
      %2240 = vrot.lane.b32.xlu0 %v2174, 8
      %v2241 = vpop.permute.xlu0 %2240
      %2242 = vrot.lane.b32.xlu0 %v2178, 8
      %v2243 = vpop.permute.xlu0 %2242
      %2244 = vrot.lane.b32.xlu0 %v2181, 8
      %v2245 = vpop.permute.xlu0 %2244
      %vm2278 = vcmask 93248
      %2279 = vst.msk [vmem:[#allocation3] sm:$0xf] %vm2278, %v2183
      %2280 = vst.msk [vmem:[#allocation3 + $0x4] sm:$0xf] %vm2278, %v2185
      %2281 = vst.msk [vmem:[#allocation3 + $0x8] sm:$0xf] %vm2278, %v2187
      %2282 = vst.msk [vmem:[#allocation3 + $0xc] sm:$0xf] %vm2278, %v2189
      %2283 = vst.msk [vmem:[#allocation3 + $0x10] sm:$0xf] %vm2278, %v2191
      %2284 = vst.msk [vmem:[#allocation3 + $0x14] sm:$0xf] %vm2278, %v2193
      %2285 = vst.msk [vmem:[#allocation3 + $0x18] sm:$0xf] %vm2278, %v2195
      %2286 = vst.msk [vmem:[#allocation3 + $0x1c] sm:$0xf] %vm2278, %v2197
      %2287 = vst.msk [vmem:[#allocation3 + $0x20] sm:$0xf] %vm2278, %v2199
      %2288 = vst.msk [vmem:[#allocation3 + $0x24] sm:$0xf] %vm2278, %v2201
      %2289 = vst.msk [vmem:[#allocation3 + $0x28] sm:$0xf] %vm2278, %v2203
      %2290 = vst.msk [vmem:[#allocation3 + $0x2c] sm:$0xf] %vm2278, %v2205
      %2291 = vst.msk [vmem:[#allocation3 + $0x30] sm:$0xf] %vm2278, %v2207
      %2292 = vst.msk [vmem:[#allocation3 + $0x34] sm:$0xf] %vm2278, %v2209
      %2293 = vst.msk [vmem:[#allocation3 + $0x38] sm:$0xf] %vm2278, %v2211
      %2294 = vst.msk [vmem:[#allocation3 + $0x3c] sm:$0xf] %vm2278, %v2213
      %2295 = vst.msk [vmem:[#allocation3 + $0x40] sm:$0xf] %vm2278, %v2215
      %2296 = vst.msk [vmem:[#allocation3 + $0x44] sm:$0xf] %vm2278, %v2217
      %2297 = vst.msk [vmem:[#allocation3 + $0x48] sm:$0xf] %vm2278, %v2219
      %2298 = vst.msk [vmem:[#allocation3 + $0x4c] sm:$0xf] %vm2278, %v2221
      %2299 = vst.msk [vmem:[#allocation3 + $0x50] sm:$0xf] %vm2278, %v2223
      %2300 = vst.msk [vmem:[#allocation3 + $0x54] sm:$0xf] %vm2278, %v2225
      %2301 = vst.msk [vmem:[#allocation3 + $0x58] sm:$0xf] %vm2278, %v2227
      %2302 = vst.msk [vmem:[#allocation3 + $0x5c] sm:$0xf] %vm2278, %v2229
      %2303 = vst.msk [vmem:[#allocation3 + $0x60] sm:$0xf] %vm2278, %v2231
      %2304 = vst.msk [vmem:[#allocation3 + $0x64] sm:$0xf] %vm2278, %v2233
      %2305 = vst.msk [vmem:[#allocation3 + $0x68] sm:$0xf] %vm2278, %v2235
      %2306 = vst.msk [vmem:[#allocation3 + $0x6c] sm:$0xf] %vm2278, %v2237
      %2307 = vst.msk [vmem:[#allocation3 + $0x70] sm:$0xf] %vm2278, %v2239
      %2308 = vst.msk [vmem:[#allocation3 + $0x74] sm:$0xf] %vm2278, %v2241
      %2309 = vst.msk [vmem:[#allocation3 + $0x78] sm:$0xf] %vm2278, %v2243
      %2310 = vst.msk [vmem:[#allocation3 + $0x7c] sm:$0xf] %vm2278, %v2245
      %v2311 = vld [vmem:[%s1112] sm:$0xf]
      %v2312 = vld [vmem:[%s1112 + $0x4] sm:$0xf]
      %v2313 = vld [vmem:[%s1112 + $0xc] sm:$0xf]
      %v2314 = vld [vmem:[%s1112 + $0x10] sm:$0xf]
      %v2315 = vld [vmem:[%s1112 + $0x18] sm:$0xf]
      %v2316 = vld [vmem:[%s1112 + $0x1c] sm:$0xf]
      %v2317 = vld [vmem:[%s1112 + $0x24] sm:$0xf]
      %v2318 = vld [vmem:[%s1112 + $0x28] sm:$0xf]
      %v2319 = vld [vmem:[%s1112 + $0x30] sm:$0xf]
      %v2320 = vld [vmem:[%s1112 + $0x34] sm:$0xf]
      %v2321 = vld [vmem:[%s1112 + $0x3c] sm:$0xf]
      %v2322 = vld [vmem:[%s1112 + $0x40] sm:$0xf]
      %v2323 = vld [vmem:[%s1112 + $0x48] sm:$0xf]
      %v2324 = vld [vmem:[%s1112 + $0x4c] sm:$0xf]
      %v2325 = vld [vmem:[%s1112 + $0x54] sm:$0xf]
      %v2326 = vld [vmem:[%s1112 + $0x58] sm:$0xf]
      %v2327 = vld [vmem:[%s1112 + $0x60] sm:$0xf]
      %v2328 = vld [vmem:[%s1112 + $0x64] sm:$0xf]
      %v2329 = vld [vmem:[%s1112 + $0x6c] sm:$0xf]
      %v2330 = vld [vmem:[%s1112 + $0x70] sm:$0xf]
      %v2331 = vld [vmem:[%s1112 + $0x78] sm:$0xf]
      %v2332 = vld [vmem:[%s1112 + $0x7c] sm:$0xf]
      %v2333 = vld [vmem:[%s1112 + $0x84] sm:$0xf]
      %v2334 = vld [vmem:[%s1112 + $0x88] sm:$0xf]
      %v2335 = vld [vmem:[%s1112 + $0x90] sm:$0xf]
      %v2336 = vld [vmem:[%s1112 + $0x94] sm:$0xf]
      %v2337 = vld [vmem:[%s1112 + $0x9c] sm:$0xf]
      %v2338 = vld [vmem:[%s1112 + $0xa0] sm:$0xf]
      %v2339 = vld [vmem:[%s1112 + $0xa8] sm:$0xf]
      %v2340 = vld [vmem:[%s1112 + $0xac] sm:$0xf]
      %v2341 = vld [vmem:[%s1112 + $0xb4] sm:$0xf]
      %v2342 = vld [vmem:[%s1112 + $0xb8] sm:$0xf]
      %2375 = vrot.lane.b32.xlu0 %v2311, 12
      %v2376 = vpop.permute.xlu0 %2375
      %2377 = vrot.lane.b32.xlu0 %v2312, 12
      %v2378 = vpop.permute.xlu0 %2377
      %2379 = vrot.lane.b32.xlu0 %v2313, 12
      %v2380 = vpop.permute.xlu0 %2379
      %2381 = vrot.lane.b32.xlu0 %v2314, 12
      %v2382 = vpop.permute.xlu0 %2381
      %2383 = vrot.lane.b32.xlu0 %v2315, 12
      %v2384 = vpop.permute.xlu0 %2383
      %2385 = vrot.lane.b32.xlu0 %v2316, 12
      %v2386 = vpop.permute.xlu0 %2385
      %2387 = vrot.lane.b32.xlu0 %v2317, 12
      %v2388 = vpop.permute.xlu0 %2387
      %2389 = vrot.lane.b32.xlu0 %v2318, 12
      %v2390 = vpop.permute.xlu0 %2389
      %2391 = vrot.lane.b32.xlu0 %v2319, 12
      %v2392 = vpop.permute.xlu0 %2391
      %2393 = vrot.lane.b32.xlu0 %v2320, 12
      %v2394 = vpop.permute.xlu0 %2393
      %2395 = vrot.lane.b32.xlu0 %v2321, 12
      %v2396 = vpop.permute.xlu0 %2395
      %2397 = vrot.lane.b32.xlu0 %v2322, 12
      %v2398 = vpop.permute.xlu0 %2397
      %2399 = vrot.lane.b32.xlu0 %v2323, 12
      %v2400 = vpop.permute.xlu0 %2399
      %2401 = vrot.lane.b32.xlu0 %v2324, 12
      %v2402 = vpop.permute.xlu0 %2401
      %2403 = vrot.lane.b32.xlu0 %v2325, 12
      %v2404 = vpop.permute.xlu0 %2403
      %2405 = vrot.lane.b32.xlu0 %v2326, 12
      %v2406 = vpop.permute.xlu0 %2405
      %2407 = vrot.lane.b32.xlu0 %v2327, 12
      %v2408 = vpop.permute.xlu0 %2407
      %2409 = vrot.lane.b32.xlu0 %v2328, 12
      %v2410 = vpop.permute.xlu0 %2409
      %2411 = vrot.lane.b32.xlu0 %v2329, 12
      %v2412 = vpop.permute.xlu0 %2411
      %2413 = vrot.lane.b32.xlu0 %v2330, 12
      %v2414 = vpop.permute.xlu0 %2413
      %2415 = vrot.lane.b32.xlu0 %v2331, 12
      %v2416 = vpop.permute.xlu0 %2415
      %2417 = vrot.lane.b32.xlu0 %v2332, 12
      %v2418 = vpop.permute.xlu0 %2417
      %2419 = vrot.lane.b32.xlu0 %v2333, 12
      %v2420 = vpop.permute.xlu0 %2419
      %2421 = vrot.lane.b32.xlu0 %v2334, 12
      %v2422 = vpop.permute.xlu0 %2421
      %2423 = vrot.lane.b32.xlu0 %v2335, 12
      %v2424 = vpop.permute.xlu0 %2423
      %2425 = vrot.lane.b32.xlu0 %v2336, 12
      %v2426 = vpop.permute.xlu0 %2425
      %2427 = vrot.lane.b32.xlu0 %v2337, 12
      %v2428 = vpop.permute.xlu0 %2427
      %2429 = vrot.lane.b32.xlu0 %v2338, 12
      %v2430 = vpop.permute.xlu0 %2429
      %2431 = vrot.lane.b32.xlu0 %v2339, 12
      %v2432 = vpop.permute.xlu0 %2431
      %2433 = vrot.lane.b32.xlu0 %v2340, 12
      %v2434 = vpop.permute.xlu0 %2433
      %2435 = vrot.lane.b32.xlu0 %v2341, 12
      %v2436 = vpop.permute.xlu0 %2435
      %2437 = vrot.lane.b32.xlu0 %v2342, 12
      %v2438 = vpop.permute.xlu0 %2437
      %vm2471 = vcmask 126048
      %2472 = vst.msk [vmem:[#allocation3] sm:$0xf] %vm2471, %v2376
      %2473 = vst.msk [vmem:[#allocation3 + $0x4] sm:$0xf] %vm2471, %v2378
      %2474 = vst.msk [vmem:[#allocation3 + $0x8] sm:$0xf] %vm2471, %v2380
      %2475 = vst.msk [vmem:[#allocation3 + $0xc] sm:$0xf] %vm2471, %v2382
      %2476 = vst.msk [vmem:[#allocation3 + $0x10] sm:$0xf] %vm2471, %v2384
      %2477 = vst.msk [vmem:[#allocation3 + $0x14] sm:$0xf] %vm2471, %v2386
      %2478 = vst.msk [vmem:[#allocation3 + $0x18] sm:$0xf] %vm2471, %v2388
      %2479 = vst.msk [vmem:[#allocation3 + $0x1c] sm:$0xf] %vm2471, %v2390
      %2480 = vst.msk [vmem:[#allocation3 + $0x20] sm:$0xf] %vm2471, %v2392
      %2481 = vst.msk [vmem:[#allocation3 + $0x24] sm:$0xf] %vm2471, %v2394
      %2482 = vst.msk [vmem:[#allocation3 + $0x28] sm:$0xf] %vm2471, %v2396
      %2483 = vst.msk [vmem:[#allocation3 + $0x2c] sm:$0xf] %vm2471, %v2398
      %2484 = vst.msk [vmem:[#allocation3 + $0x30] sm:$0xf] %vm2471, %v2400
      %2485 = vst.msk [vmem:[#allocation3 + $0x34] sm:$0xf] %vm2471, %v2402
      %2486 = vst.msk [vmem:[#allocation3 + $0x38] sm:$0xf] %vm2471, %v2404
      %2487 = vst.msk [vmem:[#allocation3 + $0x3c] sm:$0xf] %vm2471, %v2406
      %2488 = vst.msk [vmem:[#allocation3 + $0x40] sm:$0xf] %vm2471, %v2408
      %2489 = vst.msk [vmem:[#allocation3 + $0x44] sm:$0xf] %vm2471, %v2410
      %2490 = vst.msk [vmem:[#allocation3 + $0x48] sm:$0xf] %vm2471, %v2412
      %2491 = vst.msk [vmem:[#allocation3 + $0x4c] sm:$0xf] %vm2471, %v2414
      %2492 = vst.msk [vmem:[#allocation3 + $0x50] sm:$0xf] %vm2471, %v2416
      %2493 = vst.msk [vmem:[#allocation3 + $0x54] sm:$0xf] %vm2471, %v2418
      %2494 = vst.msk [vmem:[#allocation3 + $0x58] sm:$0xf] %vm2471, %v2420
      %2495 = vst.msk [vmem:[#allocation3 + $0x5c] sm:$0xf] %vm2471, %v2422
      %2496 = vst.msk [vmem:[#allocation3 + $0x60] sm:$0xf] %vm2471, %v2424
      %2497 = vst.msk [vmem:[#allocation3 + $0x64] sm:$0xf] %vm2471, %v2426
      %2498 = vst.msk [vmem:[#allocation3 + $0x68] sm:$0xf] %vm2471, %v2428
      %2499 = vst.msk [vmem:[#allocation3 + $0x6c] sm:$0xf] %vm2471, %v2430
      %2500 = vst.msk [vmem:[#allocation3 + $0x70] sm:$0xf] %vm2471, %v2432
      %2501 = vst.msk [vmem:[#allocation3 + $0x74] sm:$0xf] %vm2471, %v2434
      %2502 = vst.msk [vmem:[#allocation3 + $0x78] sm:$0xf] %vm2471, %v2436
      %2503 = vst.msk [vmem:[#allocation3 + $0x7c] sm:$0xf] %vm2471, %v2438
      %v2504 = vld [vmem:[%s1112] sm:$0xf]
      %v2505 = vld [vmem:[%s1112 + $0x4] sm:$0xf]
      %v2506 = vld [vmem:[%s1112 + $0x8] sm:$0x1]
      %v2507 = vld [vmem:[%s1112 + $0xc] sm:$0xf]
      %v2508 = vld [vmem:[%s1112 + $0x10] sm:$0xf]
      %v2509 = vld [vmem:[%s1112 + $0x14] sm:$0x1]
      %v2510 = vld [vmem:[%s1112 + $0x18] sm:$0xf]
      %v2511 = vld [vmem:[%s1112 + $0x1c] sm:$0xf]
      %v2512 = vld [vmem:[%s1112 + $0x20] sm:$0x1]
      %v2513 = vld [vmem:[%s1112 + $0x24] sm:$0xf]
      %v2514 = vld [vmem:[%s1112 + $0x28] sm:$0xf]
      %v2515 = vld [vmem:[%s1112 + $0x2c] sm:$0x1]
      %v2516 = vld [vmem:[%s1112 + $0x30] sm:$0xf]
      %v2517 = vld [vmem:[%s1112 + $0x34] sm:$0xf]
      %v2518 = vld [vmem:[%s1112 + $0x38] sm:$0x1]
      %v2519 = vld [vmem:[%s1112 + $0x3c] sm:$0xf]
      %v2520 = vld [vmem:[%s1112 + $0x40] sm:$0xf]
      %v2521 = vld [vmem:[%s1112 + $0x44] sm:$0x1]
      %v2522 = vld [vmem:[%s1112 + $0x48] sm:$0xf]
      %v2523 = vld [vmem:[%s1112 + $0x4c] sm:$0xf]
      %v2524 = vld [vmem:[%s1112 + $0x50] sm:$0x1]
      %v2525 = vld [vmem:[%s1112 + $0x54] sm:$0xf]
      %v2526 = vld [vmem:[%s1112 + $0x58] sm:$0xf]
      %v2527 = vld [vmem:[%s1112 + $0x5c] sm:$0x1]
      %v2528 = vld [vmem:[%s1112 + $0x60] sm:$0xf]
      %v2529 = vld [vmem:[%s1112 + $0x64] sm:$0xf]
      %v2530 = vld [vmem:[%s1112 + $0x68] sm:$0x1]
      %v2531 = vld [vmem:[%s1112 + $0x6c] sm:$0xf]
      %v2532 = vld [vmem:[%s1112 + $0x70] sm:$0xf]
      %v2533 = vld [vmem:[%s1112 + $0x74] sm:$0x1]
      %v2534 = vld [vmem:[%s1112 + $0x78] sm:$0xf]
      %v2535 = vld [vmem:[%s1112 + $0x7c] sm:$0xf]
      %v2536 = vld [vmem:[%s1112 + $0x80] sm:$0x1]
      %v2537 = vld [vmem:[%s1112 + $0x84] sm:$0xf]
      %v2538 = vld [vmem:[%s1112 + $0x88] sm:$0xf]
      %v2539 = vld [vmem:[%s1112 + $0x8c] sm:$0x1]
      %v2540 = vld [vmem:[%s1112 + $0x90] sm:$0xf]
      %v2541 = vld [vmem:[%s1112 + $0x94] sm:$0xf]
      %v2542 = vld [vmem:[%s1112 + $0x98] sm:$0x1]
      %v2543 = vld [vmem:[%s1112 + $0x9c] sm:$0xf]
      %v2544 = vld [vmem:[%s1112 + $0xa0] sm:$0xf]
      %v2545 = vld [vmem:[%s1112 + $0xa4] sm:$0x1]
      %v2546 = vld [vmem:[%s1112 + $0xa8] sm:$0xf]
      %v2547 = vld [vmem:[%s1112 + $0xac] sm:$0xf]
      %v2548 = vld [vmem:[%s1112 + $0xb0] sm:$0x1]
      %v2549 = vld [vmem:[%s1112 + $0xb4] sm:$0xf]
      %v2550 = vld [vmem:[%s1112 + $0xb8] sm:$0xf]
      %v2551 = vld [vmem:[%s1112 + $0xbc] sm:$0x1]
      %v2553 = vshrl.u32 %v2504, 16
      %v2555 = vrot.slane %v2553, 4
      %v2556 = vshll.u32 %v2504, 16
      %v2558 = vrot.slane %v2556, 5
      %v2559 = vor.u32 %v2555, %v2558
      %v2560 = vrot.slane %v2559, 4
      %v2562 = vshll.u32 %v2505, 16
      %v2564 = vrot.slane %v2562, 5
      %v2565 = vsel %vm1457, %v2560, %v2564
      %v2566 = vshrl.u32 %v2505, 16
      %v2568 = vrot.slane %v2566, 4
      %v2569 = vor.u32 %v2568, %v2564
      %v2570 = vrot.slane %v2569, 4
      %v2572 = vshll.u32 %v2506, 16
      %v2574 = vrot.slane %v2572, 5
      %v2575 = vsel %vm1457, %v2570, %v2574
      %v2577 = vshrl.u32 %v2507, 16
      %v2579 = vrot.slane %v2577, 4
      %v2580 = vshll.u32 %v2507, 16
      %v2582 = vrot.slane %v2580, 5
      %v2583 = vor.u32 %v2579, %v2582
      %v2584 = vrot.slane %v2583, 4
      %v2586 = vshll.u32 %v2508, 16
      %v2588 = vrot.slane %v2586, 5
      %v2589 = vsel %vm1457, %v2584, %v2588
      %v2590 = vshrl.u32 %v2508, 16
      %v2592 = vrot.slane %v2590, 4
      %v2593 = vor.u32 %v2592, %v2588
      %v2594 = vrot.slane %v2593, 4
      %v2596 = vshll.u32 %v2509, 16
      %v2598 = vrot.slane %v2596, 5
      %v2599 = vsel %vm1457, %v2594, %v2598
      %v2601 = vshrl.u32 %v2510, 16
      %v2603 = vrot.slane %v2601, 4
      %v2604 = vshll.u32 %v2510, 16
      %v2606 = vrot.slane %v2604, 5
      %v2607 = vor.u32 %v2603, %v2606
      %v2608 = vrot.slane %v2607, 4
      %v2610 = vshll.u32 %v2511, 16
      %v2612 = vrot.slane %v2610, 5
      %v2613 = vsel %vm1457, %v2608, %v2612
      %v2614 = vshrl.u32 %v2511, 16
      %v2616 = vrot.slane %v2614, 4
      %v2617 = vor.u32 %v2616, %v2612
      %v2618 = vrot.slane %v2617, 4
      %v2620 = vshll.u32 %v2512, 16
      %v2622 = vrot.slane %v2620, 5
      %v2623 = vsel %vm1457, %v2618, %v2622
      %v2625 = vshrl.u32 %v2513, 16
      %v2627 = vrot.slane %v2625, 4
      %v2628 = vshll.u32 %v2513, 16
      %v2630 = vrot.slane %v2628, 5
      %v2631 = vor.u32 %v2627, %v2630
      %v2632 = vrot.slane %v2631, 4
      %v2634 = vshll.u32 %v2514, 16
      %v2636 = vrot.slane %v2634, 5
      %v2637 = vsel %vm1457, %v2632, %v2636
      %v2638 = vshrl.u32 %v2514, 16
      %v2640 = vrot.slane %v2638, 4
      %v2641 = vor.u32 %v2640, %v2636
      %v2642 = vrot.slane %v2641, 4
      %v2644 = vshll.u32 %v2515, 16
      %v2646 = vrot.slane %v2644, 5
      %v2647 = vsel %vm1457, %v2642, %v2646
      %v2649 = vshrl.u32 %v2516, 16
      %v2651 = vrot.slane %v2649, 4
      %v2652 = vshll.u32 %v2516, 16
      %v2654 = vrot.slane %v2652, 5
      %v2655 = vor.u32 %v2651, %v2654
      %v2656 = vrot.slane %v2655, 4
      %v2658 = vshll.u32 %v2517, 16
      %v2660 = vrot.slane %v2658, 5
      %v2661 = vsel %vm1457, %v2656, %v2660
      %v2662 = vshrl.u32 %v2517, 16
      %v2664 = vrot.slane %v2662, 4
      %v2665 = vor.u32 %v2664, %v2660
      %v2666 = vrot.slane %v2665, 4
      %v2668 = vshll.u32 %v2518, 16
      %v2670 = vrot.slane %v2668, 5
      %v2671 = vsel %vm1457, %v2666, %v2670
      %v2673 = vshrl.u32 %v2519, 16
      %v2675 = vrot.slane %v2673, 4
      %v2676 = vshll.u32 %v2519, 16
      %v2678 = vrot.slane %v2676, 5
      %v2679 = vor.u32 %v2675, %v2678
      %v2680 = vrot.slane %v2679, 4
      %v2682 = vshll.u32 %v2520, 16
      %v2684 = vrot.slane %v2682, 5
      %v2685 = vsel %vm1457, %v2680, %v2684
      %v2686 = vshrl.u32 %v2520, 16
      %v2688 = vrot.slane %v2686, 4
      %v2689 = vor.u32 %v2688, %v2684
      %v2690 = vrot.slane %v2689, 4
      %v2692 = vshll.u32 %v2521, 16
      %v2694 = vrot.slane %v2692, 5
      %v2695 = vsel %vm1457, %v2690, %v2694
      %v2697 = vshrl.u32 %v2522, 16
      %v2699 = vrot.slane %v2697, 4
      %v2700 = vshll.u32 %v2522, 16
      %v2702 = vrot.slane %v2700, 5
      %v2703 = vor.u32 %v2699, %v2702
      %v2704 = vrot.slane %v2703, 4
      %v2706 = vshll.u32 %v2523, 16
      %v2708 = vrot.slane %v2706, 5
      %v2709 = vsel %vm1457, %v2704, %v2708
      %v2710 = vshrl.u32 %v2523, 16
      %v2712 = vrot.slane %v2710, 4
      %v2713 = vor.u32 %v2712, %v2708
      %v2714 = vrot.slane %v2713, 4
      %v2716 = vshll.u32 %v2524, 16
      %v2718 = vrot.slane %v2716, 5
      %v2719 = vsel %vm1457, %v2714, %v2718
      %v2721 = vshrl.u32 %v2525, 16
      %v2723 = vrot.slane %v2721, 4
      %v2724 = vshll.u32 %v2525, 16
      %v2726 = vrot.slane %v2724, 5
      %v2727 = vor.u32 %v2723, %v2726
      %v2728 = vrot.slane %v2727, 4
      %v2730 = vshll.u32 %v2526, 16
      %v2732 = vrot.slane %v2730, 5
      %v2733 = vsel %vm1457, %v2728, %v2732
      %v2734 = vshrl.u32 %v2526, 16
      %v2736 = vrot.slane %v2734, 4
      %v2737 = vor.u32 %v2736, %v2732
      %v2738 = vrot.slane %v2737, 4
      %v2740 = vshll.u32 %v2527, 16
      %v2742 = vrot.slane %v2740, 5
      %v2743 = vsel %vm1457, %v2738, %v2742
      %v2745 = vshrl.u32 %v2528, 16
      %v2747 = vrot.slane %v2745, 4
      %v2748 = vshll.u32 %v2528, 16
      %v2750 = vrot.slane %v2748, 5
      %v2751 = vor.u32 %v2747, %v2750
      %v2752 = vrot.slane %v2751, 4
      %v2754 = vshll.u32 %v2529, 16
      %v2756 = vrot.slane %v2754, 5
      %v2757 = vsel %vm1457, %v2752, %v2756
      %v2758 = vshrl.u32 %v2529, 16
      %v2760 = vrot.slane %v2758, 4
      %v2761 = vor.u32 %v2760, %v2756
      %v2762 = vrot.slane %v2761, 4
      %v2764 = vshll.u32 %v2530, 16
      %v2766 = vrot.slane %v2764, 5
      %v2767 = vsel %vm1457, %v2762, %v2766
      %v2769 = vshrl.u32 %v2531, 16
      %v2771 = vrot.slane %v2769, 4
      %v2772 = vshll.u32 %v2531, 16
      %v2774 = vrot.slane %v2772, 5
      %v2775 = vor.u32 %v2771, %v2774
      %v2776 = vrot.slane %v2775, 4
      %v2778 = vshll.u32 %v2532, 16
      %v2780 = vrot.slane %v2778, 5
      %v2781 = vsel %vm1457, %v2776, %v2780
      %v2782 = vshrl.u32 %v2532, 16
      %v2784 = vrot.slane %v2782, 4
      %v2785 = vor.u32 %v2784, %v2780
      %v2786 = vrot.slane %v2785, 4
      %v2788 = vshll.u32 %v2533, 16
      %v2790 = vrot.slane %v2788, 5
      %v2791 = vsel %vm1457, %v2786, %v2790
      %v2793 = vshrl.u32 %v2534, 16
      %v2795 = vrot.slane %v2793, 4
      %v2796 = vshll.u32 %v2534, 16
      %v2798 = vrot.slane %v2796, 5
      %v2799 = vor.u32 %v2795, %v2798
      %v2800 = vrot.slane %v2799, 4
      %v2802 = vshll.u32 %v2535, 16
      %v2804 = vrot.slane %v2802, 5
      %v2805 = vsel %vm1457, %v2800, %v2804
      %v2806 = vshrl.u32 %v2535, 16
      %v2808 = vrot.slane %v2806, 4
      %v2809 = vor.u32 %v2808, %v2804
      %v2810 = vrot.slane %v2809, 4
      %v2812 = vshll.u32 %v2536, 16
      %v2814 = vrot.slane %v2812, 5
      %v2815 = vsel %vm1457, %v2810, %v2814
      %v2817 = vshrl.u32 %v2537, 16
      %v2819 = vrot.slane %v2817, 4
      %v2820 = vshll.u32 %v2537, 16
      %v2822 = vrot.slane %v2820, 5
      %v2823 = vor.u32 %v2819, %v2822
      %v2824 = vrot.slane %v2823, 4
      %v2826 = vshll.u32 %v2538, 16
      %v2828 = vrot.slane %v2826, 5
      %v2829 = vsel %vm1457, %v2824, %v2828
      %v2830 = vshrl.u32 %v2538, 16
      %v2832 = vrot.slane %v2830, 4
      %v2833 = vor.u32 %v2832, %v2828
      %v2834 = vrot.slane %v2833, 4
      %v2836 = vshll.u32 %v2539, 16
      %v2838 = vrot.slane %v2836, 5
      %v2839 = vsel %vm1457, %v2834, %v2838
      %v2841 = vshrl.u32 %v2540, 16
      %v2843 = vrot.slane %v2841, 4
      %v2844 = vshll.u32 %v2540, 16
      %v2846 = vrot.slane %v2844, 5
      %v2847 = vor.u32 %v2843, %v2846
      %v2848 = vrot.slane %v2847, 4
      %v2850 = vshll.u32 %v2541, 16
      %v2852 = vrot.slane %v2850, 5
      %v2853 = vsel %vm1457, %v2848, %v2852
      %v2854 = vshrl.u32 %v2541, 16
      %v2856 = vrot.slane %v2854, 4
      %v2857 = vor.u32 %v2856, %v2852
      %v2858 = vrot.slane %v2857, 4
      %v2860 = vshll.u32 %v2542, 16
      %v2862 = vrot.slane %v2860, 5
      %v2863 = vsel %vm1457, %v2858, %v2862
      %v2865 = vshrl.u32 %v2543, 16
      %v2867 = vrot.slane %v2865, 4
      %v2868 = vshll.u32 %v2543, 16
      %v2870 = vrot.slane %v2868, 5
      %v2871 = vor.u32 %v2867, %v2870
      %v2872 = vrot.slane %v2871, 4
      %v2874 = vshll.u32 %v2544, 16
      %v2876 = vrot.slane %v2874, 5
      %v2877 = vsel %vm1457, %v2872, %v2876
      %v2878 = vshrl.u32 %v2544, 16
      %v2880 = vrot.slane %v2878, 4
      %v2881 = vor.u32 %v2880, %v2876
      %v2882 = vrot.slane %v2881, 4
      %v2884 = vshll.u32 %v2545, 16
      %v2886 = vrot.slane %v2884, 5
      %v2887 = vsel %vm1457, %v2882, %v2886
      %v2889 = vshrl.u32 %v2546, 16
      %v2891 = vrot.slane %v2889, 4
      %v2892 = vshll.u32 %v2546, 16
      %v2894 = vrot.slane %v2892, 5
      %v2895 = vor.u32 %v2891, %v2894
      %v2896 = vrot.slane %v2895, 4
      %v2898 = vshll.u32 %v2547, 16
      %v2900 = vrot.slane %v2898, 5
      %v2901 = vsel %vm1457, %v2896, %v2900
      %v2902 = vshrl.u32 %v2547, 16
      %v2904 = vrot.slane %v2902, 4
      %v2905 = vor.u32 %v2904, %v2900
      %v2906 = vrot.slane %v2905, 4
      %v2908 = vshll.u32 %v2548, 16
      %v2910 = vrot.slane %v2908, 5
      %v2911 = vsel %vm1457, %v2906, %v2910
      %v2913 = vshrl.u32 %v2549, 16
      %v2915 = vrot.slane %v2913, 4
      %v2916 = vshll.u32 %v2549, 16
      %v2918 = vrot.slane %v2916, 5
      %v2919 = vor.u32 %v2915, %v2918
      %v2920 = vrot.slane %v2919, 4
      %v2922 = vshll.u32 %v2550, 16
      %v2924 = vrot.slane %v2922, 5
      %v2925 = vsel %vm1457, %v2920, %v2924
      %v2926 = vshrl.u32 %v2550, 16
      %v2928 = vrot.slane %v2926, 4
      %v2929 = vor.u32 %v2928, %v2924
      %v2930 = vrot.slane %v2929, 4
      %v2932 = vshll.u32 %v2551, 16
      %v2934 = vrot.slane %v2932, 5
      %v2935 = vsel %vm1457, %v2930, %v2934
      %2936 = vrot.lane.b32.xlu0 %v2565, 16
      %v2937 = vpop.permute.xlu0 %2936
      %2938 = vrot.lane.b32.xlu0 %v2575, 16
      %v2939 = vpop.permute.xlu0 %2938
      %2940 = vrot.lane.b32.xlu0 %v2589, 16
      %v2941 = vpop.permute.xlu0 %2940
      %2942 = vrot.lane.b32.xlu0 %v2599, 16
      %v2943 = vpop.permute.xlu0 %2942
      %2944 = vrot.lane.b32.xlu0 %v2613, 16
      %v2945 = vpop.permute.xlu0 %2944
      %2946 = vrot.lane.b32.xlu0 %v2623, 16
      %v2947 = vpop.permute.xlu0 %2946
      %2948 = vrot.lane.b32.xlu0 %v2637, 16
      %v2949 = vpop.permute.xlu0 %2948
      %2950 = vrot.lane.b32.xlu0 %v2647, 16
      %v2951 = vpop.permute.xlu0 %2950
      %2952 = vrot.lane.b32.xlu0 %v2661, 16
      %v2953 = vpop.permute.xlu0 %2952
      %2954 = vrot.lane.b32.xlu0 %v2671, 16
      %v2955 = vpop.permute.xlu0 %2954
      %2956 = vrot.lane.b32.xlu0 %v2685, 16
      %v2957 = vpop.permute.xlu0 %2956
      %2958 = vrot.lane.b32.xlu0 %v2695, 16
      %v2959 = vpop.permute.xlu0 %2958
      %2960 = vrot.lane.b32.xlu0 %v2709, 16
      %v2961 = vpop.permute.xlu0 %2960
      %2962 = vrot.lane.b32.xlu0 %v2719, 16
      %v2963 = vpop.permute.xlu0 %2962
      %2964 = vrot.lane.b32.xlu0 %v2733, 16
      %v2965 = vpop.permute.xlu0 %2964
      %2966 = vrot.lane.b32.xlu0 %v2743, 16
      %v2967 = vpop.permute.xlu0 %2966
      %2968 = vrot.lane.b32.xlu0 %v2757, 16
      %v2969 = vpop.permute.xlu0 %2968
      %2970 = vrot.lane.b32.xlu0 %v2767, 16
      %v2971 = vpop.permute.xlu0 %2970
      %2972 = vrot.lane.b32.xlu0 %v2781, 16
      %v2973 = vpop.permute.xlu0 %2972
      %2974 = vrot.lane.b32.xlu0 %v2791, 16
      %v2975 = vpop.permute.xlu0 %2974
      %2976 = vrot.lane.b32.xlu0 %v2805, 16
      %v2977 = vpop.permute.xlu0 %2976
      %2978 = vrot.lane.b32.xlu0 %v2815, 16
      %v2979 = vpop.permute.xlu0 %2978
      %2980 = vrot.lane.b32.xlu0 %v2829, 16
      %v2981 = vpop.permute.xlu0 %2980
      %2982 = vrot.lane.b32.xlu0 %v2839, 16
      %v2983 = vpop.permute.xlu0 %2982
      %2984 = vrot.lane.b32.xlu0 %v2853, 16
      %v2985 = vpop.permute.xlu0 %2984
      %2986 = vrot.lane.b32.xlu0 %v2863, 16
      %v2987 = vpop.permute.xlu0 %2986
      %2988 = vrot.lane.b32.xlu0 %v2877, 16
      %v2989 = vpop.permute.xlu0 %2988
      %2990 = vrot.lane.b32.xlu0 %v2887, 16
      %v2991 = vpop.permute.xlu0 %2990
      %2992 = vrot.lane.b32.xlu0 %v2901, 16
      %v2993 = vpop.permute.xlu0 %2992
      %2994 = vrot.lane.b32.xlu0 %v2911, 16
      %v2995 = vpop.permute.xlu0 %2994
      %2996 = vrot.lane.b32.xlu0 %v2925, 16
      %v2997 = vpop.permute.xlu0 %2996
      %2998 = vrot.lane.b32.xlu0 %v2935, 16
      %v2999 = vpop.permute.xlu0 %2998
      %vm3032 = vcmask 158848
      %3033 = vst.msk [vmem:[#allocation3] sm:$0xf] %vm3032, %v2937
      %3034 = vst.msk [vmem:[#allocation3 + $0x4] sm:$0xf] %vm3032, %v2939
      %3035 = vst.msk [vmem:[#allocation3 + $0x8] sm:$0xf] %vm3032, %v2941
      %3036 = vst.msk [vmem:[#allocation3 + $0xc] sm:$0xf] %vm3032, %v2943
      %3037 = vst.msk [vmem:[#allocation3 + $0x10] sm:$0xf] %vm3032, %v2945
      %3038 = vst.msk [vmem:[#allocation3 + $0x14] sm:$0xf] %vm3032, %v2947
      %3039 = vst.msk [vmem:[#allocation3 + $0x18] sm:$0xf] %vm3032, %v2949
      %3040 = vst.msk [vmem:[#allocation3 + $0x1c] sm:$0xf] %vm3032, %v2951
      %3041 = vst.msk [vmem:[#allocation3 + $0x20] sm:$0xf] %vm3032, %v2953
      %3042 = vst.msk [vmem:[#allocation3 + $0x24] sm:$0xf] %vm3032, %v2955
      %3043 = vst.msk [vmem:[#allocation3 + $0x28] sm:$0xf] %vm3032, %v2957
      %3044 = vst.msk [vmem:[#allocation3 + $0x2c] sm:$0xf] %vm3032, %v2959
      %3045 = vst.msk [vmem:[#allocation3 + $0x30] sm:$0xf] %vm3032, %v2961
      %3046 = vst.msk [vmem:[#allocation3 + $0x34] sm:$0xf] %vm3032, %v2963
      %3047 = vst.msk [vmem:[#allocation3 + $0x38] sm:$0xf] %vm3032, %v2965
      %3048 = vst.msk [vmem:[#allocation3 + $0x3c] sm:$0xf] %vm3032, %v2967
      %3049 = vst.msk [vmem:[#allocation3 + $0x40] sm:$0xf] %vm3032, %v2969
      %3050 = vst.msk [vmem:[#allocation3 + $0x44] sm:$0xf] %vm3032, %v2971
      %3051 = vst.msk [vmem:[#allocation3 + $0x48] sm:$0xf] %vm3032, %v2973
      %3052 = vst.msk [vmem:[#allocation3 + $0x4c] sm:$0xf] %vm3032, %v2975
      %3053 = vst.msk [vmem:[#allocation3 + $0x50] sm:$0xf] %vm3032, %v2977
      %3054 = vst.msk [vmem:[#allocation3 + $0x54] sm:$0xf] %vm3032, %v2979
      %3055 = vst.msk [vmem:[#allocation3 + $0x58] sm:$0xf] %vm3032, %v2981
      %3056 = vst.msk [vmem:[#allocation3 + $0x5c] sm:$0xf] %vm3032, %v2983
      %3057 = vst.msk [vmem:[#allocation3 + $0x60] sm:$0xf] %vm3032, %v2985
      %3058 = vst.msk [vmem:[#allocation3 + $0x64] sm:$0xf] %vm3032, %v2987
      %3059 = vst.msk [vmem:[#allocation3 + $0x68] sm:$0xf] %vm3032, %v2989
      %3060 = vst.msk [vmem:[#allocation3 + $0x6c] sm:$0xf] %vm3032, %v2991
      %3061 = vst.msk [vmem:[#allocation3 + $0x70] sm:$0xf] %vm3032, %v2993
      %3062 = vst.msk [vmem:[#allocation3 + $0x74] sm:$0xf] %vm3032, %v2995
      %3063 = vst.msk [vmem:[#allocation3 + $0x78] sm:$0xf] %vm3032, %v2997
      %3064 = vst.msk [vmem:[#allocation3 + $0x7c] sm:$0xf] %vm3032, %v2999
      %v3065 = vld [vmem:[%s1112] sm:$0xe]
      %v3066 = vld [vmem:[%s1112 + $0x4] sm:$0xf]
      %v3067 = vld [vmem:[%s1112 + $0x8] sm:$0x1]
      %v3068 = vld [vmem:[%s1112 + $0xc] sm:$0xe]
      %v3069 = vld [vmem:[%s1112 + $0x10] sm:$0xf]
      %v3070 = vld [vmem:[%s1112 + $0x14] sm:$0x1]
      %v3071 = vld [vmem:[%s1112 + $0x18] sm:$0xe]
      %v3072 = vld [vmem:[%s1112 + $0x1c] sm:$0xf]
      %v3073 = vld [vmem:[%s1112 + $0x20] sm:$0x1]
      %v3074 = vld [vmem:[%s1112 + $0x24] sm:$0xe]
      %v3075 = vld [vmem:[%s1112 + $0x28] sm:$0xf]
      %v3076 = vld [vmem:[%s1112 + $0x2c] sm:$0x1]
      %v3077 = vld [vmem:[%s1112 + $0x30] sm:$0xe]
      %v3078 = vld [vmem:[%s1112 + $0x34] sm:$0xf]
      %v3079 = vld [vmem:[%s1112 + $0x38] sm:$0x1]
      %v3080 = vld [vmem:[%s1112 + $0x3c] sm:$0xe]
      %v3081 = vld [vmem:[%s1112 + $0x40] sm:$0xf]
      %v3082 = vld [vmem:[%s1112 + $0x44] sm:$0x1]
      %v3083 = vld [vmem:[%s1112 + $0x48] sm:$0xe]
      %v3084 = vld [vmem:[%s1112 + $0x4c] sm:$0xf]
      %v3085 = vld [vmem:[%s1112 + $0x50] sm:$0x1]
      %v3086 = vld [vmem:[%s1112 + $0x54] sm:$0xe]
      %v3087 = vld [vmem:[%s1112 + $0x58] sm:$0xf]
      %v3088 = vld [vmem:[%s1112 + $0x5c] sm:$0x1]
      %v3089 = vld [vmem:[%s1112 + $0x60] sm:$0xe]
      %v3090 = vld [vmem:[%s1112 + $0x64] sm:$0xf]
      %v3091 = vld [vmem:[%s1112 + $0x68] sm:$0x1]
      %v3092 = vld [vmem:[%s1112 + $0x6c] sm:$0xe]
      %v3093 = vld [vmem:[%s1112 + $0x70] sm:$0xf]
      %v3094 = vld [vmem:[%s1112 + $0x74] sm:$0x1]
      %v3095 = vld [vmem:[%s1112 + $0x78] sm:$0xe]
      %v3096 = vld [vmem:[%s1112 + $0x7c] sm:$0xf]
      %v3097 = vld [vmem:[%s1112 + $0x80] sm:$0x1]
      %v3098 = vld [vmem:[%s1112 + $0x84] sm:$0xe]
      %v3099 = vld [vmem:[%s1112 + $0x88] sm:$0xf]
      %v3100 = vld [vmem:[%s1112 + $0x8c] sm:$0x1]
      %v3101 = vld [vmem:[%s1112 + $0x90] sm:$0xe]
      %v3102 = vld [vmem:[%s1112 + $0x94] sm:$0xf]
      %v3103 = vld [vmem:[%s1112 + $0x98] sm:$0x1]
      %v3104 = vld [vmem:[%s1112 + $0x9c] sm:$0xe]
      %v3105 = vld [vmem:[%s1112 + $0xa0] sm:$0xf]
      %v3106 = vld [vmem:[%s1112 + $0xa4] sm:$0x1]
      %v3107 = vld [vmem:[%s1112 + $0xa8] sm:$0xe]
      %v3108 = vld [vmem:[%s1112 + $0xac] sm:$0xf]
      %v3109 = vld [vmem:[%s1112 + $0xb0] sm:$0x1]
      %v3110 = vld [vmem:[%s1112 + $0xb4] sm:$0xe]
      %v3111 = vld [vmem:[%s1112 + $0xb8] sm:$0xf]
      %v3112 = vld [vmem:[%s1112 + $0xbc] sm:$0x1]
      %v3161 = vrot.slane %v3065, 5
      %v3162 = vrot.slane %v3161, 4
      %v3163 = vrot.slane %v3066, 5
      %v3164 = vsel %vm2069, %v3162, %v3163
      %v3165 = vrot.slane %v3163, 4
      %v3166 = vrot.slane %v3067, 5
      %v3167 = vsel %vm2069, %v3165, %v3166
      %v3168 = vrot.slane %v3068, 5
      %v3169 = vrot.slane %v3168, 4
      %v3170 = vrot.slane %v3069, 5
      %v3171 = vsel %vm2069, %v3169, %v3170
      %v3172 = vrot.slane %v3170, 4
      %v3173 = vrot.slane %v3070, 5
      %v3174 = vsel %vm2069, %v3172, %v3173
      %v3175 = vrot.slane %v3071, 5
      %v3176 = vrot.slane %v3175, 4
      %v3177 = vrot.slane %v3072, 5
      %v3178 = vsel %vm2069, %v3176, %v3177
      %v3179 = vrot.slane %v3177, 4
      %v3180 = vrot.slane %v3073, 5
      %v3181 = vsel %vm2069, %v3179, %v3180
      %v3182 = vrot.slane %v3074, 5
      %v3183 = vrot.slane %v3182, 4
      %v3184 = vrot.slane %v3075, 5
      %v3185 = vsel %vm2069, %v3183, %v3184
      %v3186 = vrot.slane %v3184, 4
      %v3187 = vrot.slane %v3076, 5
      %v3188 = vsel %vm2069, %v3186, %v3187
      %v3189 = vrot.slane %v3077, 5
      %v3190 = vrot.slane %v3189, 4
      %v3191 = vrot.slane %v3078, 5
      %v3192 = vsel %vm2069, %v3190, %v3191
      %v3193 = vrot.slane %v3191, 4
      %v3194 = vrot.slane %v3079, 5
      %v3195 = vsel %vm2069, %v3193, %v3194
      %v3196 = vrot.slane %v3080, 5
      %v3197 = vrot.slane %v3196, 4
      %v3198 = vrot.slane %v3081, 5
      %v3199 = vsel %vm2069, %v3197, %v3198
      %v3200 = vrot.slane %v3198, 4
      %v3201 = vrot.slane %v3082, 5
      %v3202 = vsel %vm2069, %v3200, %v3201
      %v3203 = vrot.slane %v3083, 5
      %v3204 = vrot.slane %v3203, 4
      %v3205 = vrot.slane %v3084, 5
      %v3206 = vsel %vm2069, %v3204, %v3205
      %v3207 = vrot.slane %v3205, 4
      %v3208 = vrot.slane %v3085, 5
      %v3209 = vsel %vm2069, %v3207, %v3208
      %v3210 = vrot.slane %v3086, 5
      %v3211 = vrot.slane %v3210, 4
      %v3212 = vrot.slane %v3087, 5
      %v3213 = vsel %vm2069, %v3211, %v3212
      %v3214 = vrot.slane %v3212, 4
      %v3215 = vrot.slane %v3088, 5
      %v3216 = vsel %vm2069, %v3214, %v3215
      %v3217 = vrot.slane %v3089, 5
      %v3218 = vrot.slane %v3217, 4
      %v3219 = vrot.slane %v3090, 5
      %v3220 = vsel %vm2069, %v3218, %v3219
      %v3221 = vrot.slane %v3219, 4
      %v3222 = vrot.slane %v3091, 5
      %v3223 = vsel %vm2069, %v3221, %v3222
      %v3224 = vrot.slane %v3092, 5
      %v3225 = vrot.slane %v3224, 4
      %v3226 = vrot.slane %v3093, 5
      %v3227 = vsel %vm2069, %v3225, %v3226
      %v3228 = vrot.slane %v3226, 4
      %v3229 = vrot.slane %v3094, 5
      %v3230 = vsel %vm2069, %v3228, %v3229
      %v3231 = vrot.slane %v3095, 5
      %v3232 = vrot.slane %v3231, 4
      %v3233 = vrot.slane %v3096, 5
      %v3234 = vsel %vm2069, %v3232, %v3233
      %v3235 = vrot.slane %v3233, 4
      %v3236 = vrot.slane %v3097, 5
      %v3237 = vsel %vm2069, %v3235, %v3236
      %v3238 = vrot.slane %v3098, 5
      %v3239 = vrot.slane %v3238, 4
      %v3240 = vrot.slane %v3099, 5
      %v3241 = vsel %vm2069, %v3239, %v3240
      %v3242 = vrot.slane %v3240, 4
      %v3243 = vrot.slane %v3100, 5
      %v3244 = vsel %vm2069, %v3242, %v3243
      %v3245 = vrot.slane %v3101, 5
      %v3246 = vrot.slane %v3245, 4
      %v3247 = vrot.slane %v3102, 5
      %v3248 = vsel %vm2069, %v3246, %v3247
      %v3249 = vrot.slane %v3247, 4
      %v3250 = vrot.slane %v3103, 5
      %v3251 = vsel %vm2069, %v3249, %v3250
      %v3252 = vrot.slane %v3104, 5
      %v3253 = vrot.slane %v3252, 4
      %v3254 = vrot.slane %v3105, 5
      %v3255 = vsel %vm2069, %v3253, %v3254
      %v3256 = vrot.slane %v3254, 4
      %v3257 = vrot.slane %v3106, 5
      %v3258 = vsel %vm2069, %v3256, %v3257
      %v3259 = vrot.slane %v3107, 5
      %v3260 = vrot.slane %v3259, 4
      %v3261 = vrot.slane %v3108, 5
      %v3262 = vsel %vm2069, %v3260, %v3261
      %v3263 = vrot.slane %v3261, 4
      %v3264 = vrot.slane %v3109, 5
      %v3265 = vsel %vm2069, %v3263, %v3264
      %v3266 = vrot.slane %v3110, 5
      %v3267 = vrot.slane %v3266, 4
      %v3268 = vrot.slane %v3111, 5
      %v3269 = vsel %vm2069, %v3267, %v3268
      %v3270 = vrot.slane %v3268, 4
      %v3271 = vrot.slane %v3112, 5
      %v3272 = vsel %vm2069, %v3270, %v3271
      %3273 = vrot.lane.b32.xlu0 %v3164, 20
      %v3274 = vpop.permute.xlu0 %3273
      %3275 = vrot.lane.b32.xlu0 %v3167, 20
      %v3276 = vpop.permute.xlu0 %3275
      %3277 = vrot.lane.b32.xlu0 %v3171, 20
      %v3278 = vpop.permute.xlu0 %3277
      %3279 = vrot.lane.b32.xlu0 %v3174, 20
      %v3280 = vpop.permute.xlu0 %3279
      %3281 = vrot.lane.b32.xlu0 %v3178, 20
      %v3282 = vpop.permute.xlu0 %3281
      %3283 = vrot.lane.b32.xlu0 %v3181, 20
      %v3284 = vpop.permute.xlu0 %3283
      %3285 = vrot.lane.b32.xlu0 %v3185, 20
      %v3286 = vpop.permute.xlu0 %3285
      %3287 = vrot.lane.b32.xlu0 %v3188, 20
      %v3288 = vpop.permute.xlu0 %3287
      %3289 = vrot.lane.b32.xlu0 %v3192, 20
      %v3290 = vpop.permute.xlu0 %3289
      %3291 = vrot.lane.b32.xlu0 %v3195, 20
      %v3292 = vpop.permute.xlu0 %3291
      %3293 = vrot.lane.b32.xlu0 %v3199, 20
      %v3294 = vpop.permute.xlu0 %3293
      %3295 = vrot.lane.b32.xlu0 %v3202, 20
      %v3296 = vpop.permute.xlu0 %3295
      %3297 = vrot.lane.b32.xlu0 %v3206, 20
      %v3298 = vpop.permute.xlu0 %3297
      %3299 = vrot.lane.b32.xlu0 %v3209, 20
      %v3300 = vpop.permute.xlu0 %3299
      %3301 = vrot.lane.b32.xlu0 %v3213, 20
      %v3302 = vpop.permute.xlu0 %3301
      %3303 = vrot.lane.b32.xlu0 %v3216, 20
      %v3304 = vpop.permute.xlu0 %3303
      %3305 = vrot.lane.b32.xlu0 %v3220, 20
      %v3306 = vpop.permute.xlu0 %3305
      %3307 = vrot.lane.b32.xlu0 %v3223, 20
      %v3308 = vpop.permute.xlu0 %3307
      %3309 = vrot.lane.b32.xlu0 %v3227, 20
      %v3310 = vpop.permute.xlu0 %3309
      %3311 = vrot.lane.b32.xlu0 %v3230, 20
      %v3312 = vpop.permute.xlu0 %3311
      %3313 = vrot.lane.b32.xlu0 %v3234, 20
      %v3314 = vpop.permute.xlu0 %3313
      %3315 = vrot.lane.b32.xlu0 %v3237, 20
      %v3316 = vpop.permute.xlu0 %3315
      %3317 = vrot.lane.b32.xlu0 %v3241, 20
      %v3318 = vpop.permute.xlu0 %3317
      %3319 = vrot.lane.b32.xlu0 %v3244, 20
      %v3320 = vpop.permute.xlu0 %3319
      %3321 = vrot.lane.b32.xlu0 %v3248, 20
      %v3322 = vpop.permute.xlu0 %3321
      %3323 = vrot.lane.b32.xlu0 %v3251, 20
      %v3324 = vpop.permute.xlu0 %3323
      %3325 = vrot.lane.b32.xlu0 %v3255, 20
      %v3326 = vpop.permute.xlu0 %3325
      %3327 = vrot.lane.b32.xlu0 %v3258, 20
      %v3328 = vpop.permute.xlu0 %3327
      %3329 = vrot.lane.b32.xlu0 %v3262, 20
      %v3330 = vpop.permute.xlu0 %3329
      %3331 = vrot.lane.b32.xlu0 %v3265, 20
      %v3332 = vpop.permute.xlu0 %3331
      %3333 = vrot.lane.b32.xlu0 %v3269, 20
      %v3334 = vpop.permute.xlu0 %3333
      %3335 = vrot.lane.b32.xlu0 %v3272, 20
      %v3336 = vpop.permute.xlu0 %3335
      %vm3369 = vcmask 191648
      %3370 = vst.msk [vmem:[#allocation3] sm:$0xf] %vm3369, %v3274
      %3371 = vst.msk [vmem:[#allocation3 + $0x4] sm:$0xf] %vm3369, %v3276
      %3372 = vst.msk [vmem:[#allocation3 + $0x8] sm:$0xf] %vm3369, %v3278
      %3373 = vst.msk [vmem:[#allocation3 + $0xc] sm:$0xf] %vm3369, %v3280
      %3374 = vst.msk [vmem:[#allocation3 + $0x10] sm:$0xf] %vm3369, %v3282
      %3375 = vst.msk [vmem:[#allocation3 + $0x14] sm:$0xf] %vm3369, %v3284
      %3376 = vst.msk [vmem:[#allocation3 + $0x18] sm:$0xf] %vm3369, %v3286
      %3377 = vst.msk [vmem:[#allocation3 + $0x1c] sm:$0xf] %vm3369, %v3288
      %3378 = vst.msk [vmem:[#allocation3 + $0x20] sm:$0xf] %vm3369, %v3290
      %3379 = vst.msk [vmem:[#allocation3 + $0x24] sm:$0xf] %vm3369, %v3292
      %3380 = vst.msk [vmem:[#allocation3 + $0x28] sm:$0xf] %vm3369, %v3294
      %3381 = vst.msk [vmem:[#allocation3 + $0x2c] sm:$0xf] %vm3369, %v3296
      %3382 = vst.msk [vmem:[#allocation3 + $0x30] sm:$0xf] %vm3369, %v3298
      %3383 = vst.msk [vmem:[#allocation3 + $0x34] sm:$0xf] %vm3369, %v3300
      %3384 = vst.msk [vmem:[#allocation3 + $0x38] sm:$0xf] %vm3369, %v3302
      %3385 = vst.msk [vmem:[#allocation3 + $0x3c] sm:$0xf] %vm3369, %v3304
      %3386 = vst.msk [vmem:[#allocation3 + $0x40] sm:$0xf] %vm3369, %v3306
      %3387 = vst.msk [vmem:[#allocation3 + $0x44] sm:$0xf] %vm3369, %v3308
      %3388 = vst.msk [vmem:[#allocation3 + $0x48] sm:$0xf] %vm3369, %v3310
      %3389 = vst.msk [vmem:[#allocation3 + $0x4c] sm:$0xf] %vm3369, %v3312
      %3390 = vst.msk [vmem:[#allocation3 + $0x50] sm:$0xf] %vm3369, %v3314
      %3391 = vst.msk [vmem:[#allocation3 + $0x54] sm:$0xf] %vm3369, %v3316
      %3392 = vst.msk [vmem:[#allocation3 + $0x58] sm:$0xf] %vm3369, %v3318
      %3393 = vst.msk [vmem:[#allocation3 + $0x5c] sm:$0xf] %vm3369, %v3320
      %3394 = vst.msk [vmem:[#allocation3 + $0x60] sm:$0xf] %vm3369, %v3322
      %3395 = vst.msk [vmem:[#allocation3 + $0x64] sm:$0xf] %vm3369, %v3324
      %3396 = vst.msk [vmem:[#allocation3 + $0x68] sm:$0xf] %vm3369, %v3326
      %3397 = vst.msk [vmem:[#allocation3 + $0x6c] sm:$0xf] %vm3369, %v3328
      %3398 = vst.msk [vmem:[#allocation3 + $0x70] sm:$0xf] %vm3369, %v3330
      %3399 = vst.msk [vmem:[#allocation3 + $0x74] sm:$0xf] %vm3369, %v3332
      %3400 = vst.msk [vmem:[#allocation3 + $0x78] sm:$0xf] %vm3369, %v3334
      %3401 = vst.msk [vmem:[#allocation3 + $0x7c] sm:$0xf] %vm3369, %v3336
      %s3402 = scalar_lea.vmem [#allocation2], 24
      %v3403 = vld [vmem:[%s3402] sm:$0xf]
      %v3404 = vld [vmem:[%s3402 + $0x4] sm:$0xf]
      %v3405 = vld [vmem:[%s3402 + $0xc] sm:$0xf]
      %v3406 = vld [vmem:[%s3402 + $0x10] sm:$0xf]
      %v3407 = vld [vmem:[%s3402 + $0x18] sm:$0xf]
      %v3408 = vld [vmem:[%s3402 + $0x1c] sm:$0xf]
      %v3409 = vld [vmem:[%s3402 + $0x24] sm:$0xf]
      %v3410 = vld [vmem:[%s3402 + $0x28] sm:$0xf]
      %v3411 = vld [vmem:[%s3402 + $0x30] sm:$0xf]
      %v3412 = vld [vmem:[%s3402 + $0x34] sm:$0xf]
      %v3413 = vld [vmem:[%s3402 + $0x3c] sm:$0xf]
      %v3414 = vld [vmem:[%s3402 + $0x40] sm:$0xf]
      %v3415 = vld [vmem:[%s3402 + $0x48] sm:$0xf]
      %v3416 = vld [vmem:[%s3402 + $0x4c] sm:$0xf]
      %v3417 = vld [vmem:[%s3402 + $0x54] sm:$0xf]
      %v3418 = vld [vmem:[%s3402 + $0x58] sm:$0xf]
      %v3419 = vld [vmem:[%s3402 + $0x60] sm:$0xf]
      %v3420 = vld [vmem:[%s3402 + $0x64] sm:$0xf]
      %v3421 = vld [vmem:[%s3402 + $0x6c] sm:$0xf]
      %v3422 = vld [vmem:[%s3402 + $0x70] sm:$0xf]
      %v3423 = vld [vmem:[%s3402 + $0x78] sm:$0xf]
      %v3424 = vld [vmem:[%s3402 + $0x7c] sm:$0xf]
      %v3425 = vld [vmem:[%s3402 + $0x84] sm:$0xf]
      %v3426 = vld [vmem:[%s3402 + $0x88] sm:$0xf]
      %v3427 = vld [vmem:[%s3402 + $0x90] sm:$0xf]
      %v3428 = vld [vmem:[%s3402 + $0x94] sm:$0xf]
      %v3429 = vld [vmem:[%s3402 + $0x9c] sm:$0xf]
      %v3430 = vld [vmem:[%s3402 + $0xa0] sm:$0xf]
      %v3431 = vld [vmem:[%s3402 + $0xa8] sm:$0xf]
      %v3432 = vld [vmem:[%s3402 + $0xac] sm:$0xf]
      %v3433 = vld [vmem:[%s3402 + $0xb4] sm:$0xf]
      %v3434 = vld [vmem:[%s3402 + $0xb8] sm:$0xf]
      %3467 = vrot.lane.b32.xlu0 %v3403, 24
      %v3468 = vpop.permute.xlu0 %3467
      %3469 = vrot.lane.b32.xlu0 %v3404, 24
      %v3470 = vpop.permute.xlu0 %3469
      %3471 = vrot.lane.b32.xlu0 %v3405, 24
      %v3472 = vpop.permute.xlu0 %3471
      %3473 = vrot.lane.b32.xlu0 %v3406, 24
      %v3474 = vpop.permute.xlu0 %3473
      %3475 = vrot.lane.b32.xlu0 %v3407, 24
      %v3476 = vpop.permute.xlu0 %3475
      %3477 = vrot.lane.b32.xlu0 %v3408, 24
      %v3478 = vpop.permute.xlu0 %3477
      %3479 = vrot.lane.b32.xlu0 %v3409, 24
      %v3480 = vpop.permute.xlu0 %3479
      %3481 = vrot.lane.b32.xlu0 %v3410, 24
      %v3482 = vpop.permute.xlu0 %3481
      %3483 = vrot.lane.b32.xlu0 %v3411, 24
      %v3484 = vpop.permute.xlu0 %3483
      %3485 = vrot.lane.b32.xlu0 %v3412, 24
      %v3486 = vpop.permute.xlu0 %3485
      %3487 = vrot.lane.b32.xlu0 %v3413, 24
      %v3488 = vpop.permute.xlu0 %3487
      %3489 = vrot.lane.b32.xlu0 %v3414, 24
      %v3490 = vpop.permute.xlu0 %3489
      %3491 = vrot.lane.b32.xlu0 %v3415, 24
      %v3492 = vpop.permute.xlu0 %3491
      %3493 = vrot.lane.b32.xlu0 %v3416, 24
      %v3494 = vpop.permute.xlu0 %3493
      %3495 = vrot.lane.b32.xlu0 %v3417, 24
      %v3496 = vpop.permute.xlu0 %3495
      %3497 = vrot.lane.b32.xlu0 %v3418, 24
      %v3498 = vpop.permute.xlu0 %3497
      %3499 = vrot.lane.b32.xlu0 %v3419, 24
      %v3500 = vpop.permute.xlu0 %3499
      %3501 = vrot.lane.b32.xlu0 %v3420, 24
      %v3502 = vpop.permute.xlu0 %3501
      %3503 = vrot.lane.b32.xlu0 %v3421, 24
      %v3504 = vpop.permute.xlu0 %3503
      %3505 = vrot.lane.b32.xlu0 %v3422, 24
      %v3506 = vpop.permute.xlu0 %3505
      %3507 = vrot.lane.b32.xlu0 %v3423, 24
      %v3508 = vpop.permute.xlu0 %3507
      %3509 = vrot.lane.b32.xlu0 %v3424, 24
      %v3510 = vpop.permute.xlu0 %3509
      %3511 = vrot.lane.b32.xlu0 %v3425, 24
      %v3512 = vpop.permute.xlu0 %3511
      %3513 = vrot.lane.b32.xlu0 %v3426, 24
      %v3514 = vpop.permute.xlu0 %3513
      %3515 = vrot.lane.b32.xlu0 %v3427, 24
      %v3516 = vpop.permute.xlu0 %3515
      %3517 = vrot.lane.b32.xlu0 %v3428, 24
      %v3518 = vpop.permute.xlu0 %3517
      %3519 = vrot.lane.b32.xlu0 %v3429, 24
      %v3520 = vpop.permute.xlu0 %3519
      %3521 = vrot.lane.b32.xlu0 %v3430, 24
      %v3522 = vpop.permute.xlu0 %3521
      %3523 = vrot.lane.b32.xlu0 %v3431, 24
      %v3524 = vpop.permute.xlu0 %3523
      %3525 = vrot.lane.b32.xlu0 %v3432, 24
      %v3526 = vpop.permute.xlu0 %3525
      %3527 = vrot.lane.b32.xlu0 %v3433, 24
      %v3528 = vpop.permute.xlu0 %3527
      %3529 = vrot.lane.b32.xlu0 %v3434, 24
      %v3530 = vpop.permute.xlu0 %3529
      %vm3563 = vcmask 224448
      %3564 = vst.msk [vmem:[#allocation3] sm:$0xf] %vm3563, %v3468
      %3565 = vst.msk [vmem:[#allocation3 + $0x4] sm:$0xf] %vm3563, %v3470
      %3566 = vst.msk [vmem:[#allocation3 + $0x8] sm:$0xf] %vm3563, %v3472
      %3567 = vst.msk [vmem:[#allocation3 + $0xc] sm:$0xf] %vm3563, %v3474
      %3568 = vst.msk [vmem:[#allocation3 + $0x10] sm:$0xf] %vm3563, %v3476
      %3569 = vst.msk [vmem:[#allocation3 + $0x14] sm:$0xf] %vm3563, %v3478
      %3570 = vst.msk [vmem:[#allocation3 + $0x18] sm:$0xf] %vm3563, %v3480
      %3571 = vst.msk [vmem:[#allocation3 + $0x1c] sm:$0xf] %vm3563, %v3482
      %3572 = vst.msk [vmem:[#allocation3 + $0x20] sm:$0xf] %vm3563, %v3484
      %3573 = vst.msk [vmem:[#allocation3 + $0x24] sm:$0xf] %vm3563, %v3486
      %3574 = vst.msk [vmem:[#allocation3 + $0x28] sm:$0xf] %vm3563, %v3488
      %3575 = vst.msk [vmem:[#allocation3 + $0x2c] sm:$0xf] %vm3563, %v3490
      %3576 = vst.msk [vmem:[#allocation3 + $0x30] sm:$0xf] %vm3563, %v3492
      %3577 = vst.msk [vmem:[#allocation3 + $0x34] sm:$0xf] %vm3563, %v3494
      %3578 = vst.msk [vmem:[#allocation3 + $0x38] sm:$0xf] %vm3563, %v3496
      %3579 = vst.msk [vmem:[#allocation3 + $0x3c] sm:$0xf] %vm3563, %v3498
      %3580 = vst.msk [vmem:[#allocation3 + $0x40] sm:$0xf] %vm3563, %v3500
      %3581 = vst.msk [vmem:[#allocation3 + $0x44] sm:$0xf] %vm3563, %v3502
      %3582 = vst.msk [vmem:[#allocation3 + $0x48] sm:$0xf] %vm3563, %v3504
      %3583 = vst.msk [vmem:[#allocation3 + $0x4c] sm:$0xf] %vm3563, %v3506
      %3584 = vst.msk [vmem:[#allocation3 + $0x50] sm:$0xf] %vm3563, %v3508
      %3585 = vst.msk [vmem:[#allocation3 + $0x54] sm:$0xf] %vm3563, %v3510
      %3586 = vst.msk [vmem:[#allocation3 + $0x58] sm:$0xf] %vm3563, %v3512
      %3587 = vst.msk [vmem:[#allocation3 + $0x5c] sm:$0xf] %vm3563, %v3514
      %3588 = vst.msk [vmem:[#allocation3 + $0x60] sm:$0xf] %vm3563, %v3516
      %3589 = vst.msk [vmem:[#allocation3 + $0x64] sm:$0xf] %vm3563, %v3518
      %3590 = vst.msk [vmem:[#allocation3 + $0x68] sm:$0xf] %vm3563, %v3520
      %3591 = vst.msk [vmem:[#allocation3 + $0x6c] sm:$0xf] %vm3563, %v3522
      %3592 = vst.msk [vmem:[#allocation3 + $0x70] sm:$0xf] %vm3563, %v3524
      %3593 = vst.msk [vmem:[#allocation3 + $0x74] sm:$0xf] %vm3563, %v3526
      %3594 = vst.msk [vmem:[#allocation3 + $0x78] sm:$0xf] %vm3563, %v3528
      %3595 = vst.msk [vmem:[#allocation3 + $0x7c] sm:$0xf] %vm3563, %v3530
      %v3596 = vld [vmem:[%s3402] sm:$0xf]
      %v3597 = vld [vmem:[%s3402 + $0x4] sm:$0xf]
      %v3598 = vld [vmem:[%s3402 + $0x8] sm:$0x1]
      %v3599 = vld [vmem:[%s3402 + $0xc] sm:$0xf]
      %v3600 = vld [vmem:[%s3402 + $0x10] sm:$0xf]
      %v3601 = vld [vmem:[%s3402 + $0x14] sm:$0x1]
      %v3602 = vld [vmem:[%s3402 + $0x18] sm:$0xf]
      %v3603 = vld [vmem:[%s3402 + $0x1c] sm:$0xf]
      %v3604 = vld [vmem:[%s3402 + $0x20] sm:$0x1]
      %v3605 = vld [vmem:[%s3402 + $0x24] sm:$0xf]
      %v3606 = vld [vmem:[%s3402 + $0x28] sm:$0xf]
      %v3607 = vld [vmem:[%s3402 + $0x2c] sm:$0x1]
      %v3608 = vld [vmem:[%s3402 + $0x30] sm:$0xf]
      %v3609 = vld [vmem:[%s3402 + $0x34] sm:$0xf]
      %v3610 = vld [vmem:[%s3402 + $0x38] sm:$0x1]
      %v3611 = vld [vmem:[%s3402 + $0x3c] sm:$0xf]
      %v3612 = vld [vmem:[%s3402 + $0x40] sm:$0xf]
      %v3613 = vld [vmem:[%s3402 + $0x44] sm:$0x1]
      %v3614 = vld [vmem:[%s3402 + $0x48] sm:$0xf]
      %v3615 = vld [vmem:[%s3402 + $0x4c] sm:$0xf]
      %v3616 = vld [vmem:[%s3402 + $0x50] sm:$0x1]
      %v3617 = vld [vmem:[%s3402 + $0x54] sm:$0xf]
      %v3618 = vld [vmem:[%s3402 + $0x58] sm:$0xf]
      %v3619 = vld [vmem:[%s3402 + $0x5c] sm:$0x1]
      %v3620 = vld [vmem:[%s3402 + $0x60] sm:$0xf]
      %v3621 = vld [vmem:[%s3402 + $0x64] sm:$0xf]
      %v3622 = vld [vmem:[%s3402 + $0x68] sm:$0x1]
      %v3623 = vld [vmem:[%s3402 + $0x6c] sm:$0xf]
      %v3624 = vld [vmem:[%s3402 + $0x70] sm:$0xf]
      %v3625 = vld [vmem:[%s3402 + $0x74] sm:$0x1]
      %v3626 = vld [vmem:[%s3402 + $0x78] sm:$0xf]
      %v3627 = vld [vmem:[%s3402 + $0x7c] sm:$0xf]
      %v3628 = vld [vmem:[%s3402 + $0x80] sm:$0x1]
      %v3629 = vld [vmem:[%s3402 + $0x84] sm:$0xf]
      %v3630 = vld [vmem:[%s3402 + $0x88] sm:$0xf]
      %v3631 = vld [vmem:[%s3402 + $0x8c] sm:$0x1]
      %v3632 = vld [vmem:[%s3402 + $0x90] sm:$0xf]
      %v3633 = vld [vmem:[%s3402 + $0x94] sm:$0xf]
      %v3634 = vld [vmem:[%s3402 + $0x98] sm:$0x1]
      %v3635 = vld [vmem:[%s3402 + $0x9c] sm:$0xf]
      %v3636 = vld [vmem:[%s3402 + $0xa0] sm:$0xf]
      %v3637 = vld [vmem:[%s3402 + $0xa4] sm:$0x1]
      %v3638 = vld [vmem:[%s3402 + $0xa8] sm:$0xf]
      %v3639 = vld [vmem:[%s3402 + $0xac] sm:$0xf]
      %v3640 = vld [vmem:[%s3402 + $0xb0] sm:$0x1]
      %v3641 = vld [vmem:[%s3402 + $0xb4] sm:$0xf]
      %v3642 = vld [vmem:[%s3402 + $0xb8] sm:$0xf]
      %v3643 = vld [vmem:[%s3402 + $0xbc] sm:$0x1]
      %v3645 = vshrl.u32 %v3596, 16
      %v3647 = vrot.slane %v3645, 4
      %v3648 = vshll.u32 %v3596, 16
      %v3650 = vrot.slane %v3648, 5
      %v3651 = vor.u32 %v3647, %v3650
      %v3652 = vrot.slane %v3651, 4
      %v3654 = vshll.u32 %v3597, 16
      %v3656 = vrot.slane %v3654, 5
      %v3657 = vsel %vm1457, %v3652, %v3656
      %v3658 = vshrl.u32 %v3597, 16
      %v3660 = vrot.slane %v3658, 4
      %v3661 = vor.u32 %v3660, %v3656
      %v3662 = vrot.slane %v3661, 4
      %v3664 = vshll.u32 %v3598, 16
      %v3666 = vrot.slane %v3664, 5
      %v3667 = vsel %vm1457, %v3662, %v3666
      %v3669 = vshrl.u32 %v3599, 16
      %v3671 = vrot.slane %v3669, 4
      %v3672 = vshll.u32 %v3599, 16
      %v3674 = vrot.slane %v3672, 5
      %v3675 = vor.u32 %v3671, %v3674
      %v3676 = vrot.slane %v3675, 4
      %v3678 = vshll.u32 %v3600, 16
      %v3680 = vrot.slane %v3678, 5
      %v3681 = vsel %vm1457, %v3676, %v3680
      %v3682 = vshrl.u32 %v3600, 16
      %v3684 = vrot.slane %v3682, 4
      %v3685 = vor.u32 %v3684, %v3680
      %v3686 = vrot.slane %v3685, 4
      %v3688 = vshll.u32 %v3601, 16
      %v3690 = vrot.slane %v3688, 5
      %v3691 = vsel %vm1457, %v3686, %v3690
      %v3693 = vshrl.u32 %v3602, 16
      %v3695 = vrot.slane %v3693, 4
      %v3696 = vshll.u32 %v3602, 16
      %v3698 = vrot.slane %v3696, 5
      %v3699 = vor.u32 %v3695, %v3698
      %v3700 = vrot.slane %v3699, 4
      %v3702 = vshll.u32 %v3603, 16
      %v3704 = vrot.slane %v3702, 5
      %v3705 = vsel %vm1457, %v3700, %v3704
      %v3706 = vshrl.u32 %v3603, 16
      %v3708 = vrot.slane %v3706, 4
      %v3709 = vor.u32 %v3708, %v3704
      %v3710 = vrot.slane %v3709, 4
      %v3712 = vshll.u32 %v3604, 16
      %v3714 = vrot.slane %v3712, 5
      %v3715 = vsel %vm1457, %v3710, %v3714
      %v3717 = vshrl.u32 %v3605, 16
      %v3719 = vrot.slane %v3717, 4
      %v3720 = vshll.u32 %v3605, 16
      %v3722 = vrot.slane %v3720, 5
      %v3723 = vor.u32 %v3719, %v3722
      %v3724 = vrot.slane %v3723, 4
      %v3726 = vshll.u32 %v3606, 16
      %v3728 = vrot.slane %v3726, 5
      %v3729 = vsel %vm1457, %v3724, %v3728
      %v3730 = vshrl.u32 %v3606, 16
      %v3732 = vrot.slane %v3730, 4
      %v3733 = vor.u32 %v3732, %v3728
      %v3734 = vrot.slane %v3733, 4
      %v3736 = vshll.u32 %v3607, 16
      %v3738 = vrot.slane %v3736, 5
      %v3739 = vsel %vm1457, %v3734, %v3738
      %v3741 = vshrl.u32 %v3608, 16
      %v3743 = vrot.slane %v3741, 4
      %v3744 = vshll.u32 %v3608, 16
      %v3746 = vrot.slane %v3744, 5
      %v3747 = vor.u32 %v3743, %v3746
      %v3748 = vrot.slane %v3747, 4
      %v3750 = vshll.u32 %v3609, 16
      %v3752 = vrot.slane %v3750, 5
      %v3753 = vsel %vm1457, %v3748, %v3752
      %v3754 = vshrl.u32 %v3609, 16
      %v3756 = vrot.slane %v3754, 4
      %v3757 = vor.u32 %v3756, %v3752
      %v3758 = vrot.slane %v3757, 4
      %v3760 = vshll.u32 %v3610, 16
      %v3762 = vrot.slane %v3760, 5
      %v3763 = vsel %vm1457, %v3758, %v3762
      %v3765 = vshrl.u32 %v3611, 16
      %v3767 = vrot.slane %v3765, 4
      %v3768 = vshll.u32 %v3611, 16
      %v3770 = vrot.slane %v3768, 5
      %v3771 = vor.u32 %v3767, %v3770
      %v3772 = vrot.slane %v3771, 4
      %v3774 = vshll.u32 %v3612, 16
      %v3776 = vrot.slane %v3774, 5
      %v3777 = vsel %vm1457, %v3772, %v3776
      %v3778 = vshrl.u32 %v3612, 16
      %v3780 = vrot.slane %v3778, 4
      %v3781 = vor.u32 %v3780, %v3776
      %v3782 = vrot.slane %v3781, 4
      %v3784 = vshll.u32 %v3613, 16
      %v3786 = vrot.slane %v3784, 5
      %v3787 = vsel %vm1457, %v3782, %v3786
      %v3789 = vshrl.u32 %v3614, 16
      %v3791 = vrot.slane %v3789, 4
      %v3792 = vshll.u32 %v3614, 16
      %v3794 = vrot.slane %v3792, 5
      %v3795 = vor.u32 %v3791, %v3794
      %v3796 = vrot.slane %v3795, 4
      %v3798 = vshll.u32 %v3615, 16
      %v3800 = vrot.slane %v3798, 5
      %v3801 = vsel %vm1457, %v3796, %v3800
      %v3802 = vshrl.u32 %v3615, 16
      %v3804 = vrot.slane %v3802, 4
      %v3805 = vor.u32 %v3804, %v3800
      %v3806 = vrot.slane %v3805, 4
      %v3808 = vshll.u32 %v3616, 16
      %v3810 = vrot.slane %v3808, 5
      %v3811 = vsel %vm1457, %v3806, %v3810
      %v3813 = vshrl.u32 %v3617, 16
      %v3815 = vrot.slane %v3813, 4
      %v3816 = vshll.u32 %v3617, 16
      %v3818 = vrot.slane %v3816, 5
      %v3819 = vor.u32 %v3815, %v3818
      %v3820 = vrot.slane %v3819, 4
      %v3822 = vshll.u32 %v3618, 16
      %v3824 = vrot.slane %v3822, 5
      %v3825 = vsel %vm1457, %v3820, %v3824
      %v3826 = vshrl.u32 %v3618, 16
      %v3828 = vrot.slane %v3826, 4
      %v3829 = vor.u32 %v3828, %v3824
      %v3830 = vrot.slane %v3829, 4
      %v3832 = vshll.u32 %v3619, 16
      %v3834 = vrot.slane %v3832, 5
      %v3835 = vsel %vm1457, %v3830, %v3834
      %v3837 = vshrl.u32 %v3620, 16
      %v3839 = vrot.slane %v3837, 4
      %v3840 = vshll.u32 %v3620, 16
      %v3842 = vrot.slane %v3840, 5
      %v3843 = vor.u32 %v3839, %v3842
      %v3844 = vrot.slane %v3843, 4
      %v3846 = vshll.u32 %v3621, 16
      %v3848 = vrot.slane %v3846, 5
      %v3849 = vsel %vm1457, %v3844, %v3848
      %v3850 = vshrl.u32 %v3621, 16
      %v3852 = vrot.slane %v3850, 4
      %v3853 = vor.u32 %v3852, %v3848
      %v3854 = vrot.slane %v3853, 4
      %v3856 = vshll.u32 %v3622, 16
      %v3858 = vrot.slane %v3856, 5
      %v3859 = vsel %vm1457, %v3854, %v3858
      %v3861 = vshrl.u32 %v3623, 16
      %v3863 = vrot.slane %v3861, 4
      %v3864 = vshll.u32 %v3623, 16
      %v3866 = vrot.slane %v3864, 5
      %v3867 = vor.u32 %v3863, %v3866
      %v3868 = vrot.slane %v3867, 4
      %v3870 = vshll.u32 %v3624, 16
      %v3872 = vrot.slane %v3870, 5
      %v3873 = vsel %vm1457, %v3868, %v3872
      %v3874 = vshrl.u32 %v3624, 16
      %v3876 = vrot.slane %v3874, 4
      %v3877 = vor.u32 %v3876, %v3872
      %v3878 = vrot.slane %v3877, 4
      %v3880 = vshll.u32 %v3625, 16
      %v3882 = vrot.slane %v3880, 5
      %v3883 = vsel %vm1457, %v3878, %v3882
      %v3885 = vshrl.u32 %v3626, 16
      %v3887 = vrot.slane %v3885, 4
      %v3888 = vshll.u32 %v3626, 16
      %v3890 = vrot.slane %v3888, 5
      %v3891 = vor.u32 %v3887, %v3890
      %v3892 = vrot.slane %v3891, 4
      %v3894 = vshll.u32 %v3627, 16
      %v3896 = vrot.slane %v3894, 5
      %v3897 = vsel %vm1457, %v3892, %v3896
      %v3898 = vshrl.u32 %v3627, 16
      %v3900 = vrot.slane %v3898, 4
      %v3901 = vor.u32 %v3900, %v3896
      %v3902 = vrot.slane %v3901, 4
      %v3904 = vshll.u32 %v3628, 16
      %v3906 = vrot.slane %v3904, 5
      %v3907 = vsel %vm1457, %v3902, %v3906
      %v3909 = vshrl.u32 %v3629, 16
      %v3911 = vrot.slane %v3909, 4
      %v3912 = vshll.u32 %v3629, 16
      %v3914 = vrot.slane %v3912, 5
      %v3915 = vor.u32 %v3911, %v3914
      %v3916 = vrot.slane %v3915, 4
      %v3918 = vshll.u32 %v3630, 16
      %v3920 = vrot.slane %v3918, 5
      %v3921 = vsel %vm1457, %v3916, %v3920
      %v3922 = vshrl.u32 %v3630, 16
      %v3924 = vrot.slane %v3922, 4
      %v3925 = vor.u32 %v3924, %v3920
      %v3926 = vrot.slane %v3925, 4
      %v3928 = vshll.u32 %v3631, 16
      %v3930 = vrot.slane %v3928, 5
      %v3931 = vsel %vm1457, %v3926, %v3930
      %v3933 = vshrl.u32 %v3632, 16
      %v3935 = vrot.slane %v3933, 4
      %v3936 = vshll.u32 %v3632, 16
      %v3938 = vrot.slane %v3936, 5
      %v3939 = vor.u32 %v3935, %v3938
      %v3940 = vrot.slane %v3939, 4
      %v3942 = vshll.u32 %v3633, 16
      %v3944 = vrot.slane %v3942, 5
      %v3945 = vsel %vm1457, %v3940, %v3944
      %v3946 = vshrl.u32 %v3633, 16
      %v3948 = vrot.slane %v3946, 4
      %v3949 = vor.u32 %v3948, %v3944
      %v3950 = vrot.slane %v3949, 4
      %v3952 = vshll.u32 %v3634, 16
      %v3954 = vrot.slane %v3952, 5
      %v3955 = vsel %vm1457, %v3950, %v3954
      %v3957 = vshrl.u32 %v3635, 16
      %v3959 = vrot.slane %v3957, 4
      %v3960 = vshll.u32 %v3635, 16
      %v3962 = vrot.slane %v3960, 5
      %v3963 = vor.u32 %v3959, %v3962
      %v3964 = vrot.slane %v3963, 4
      %v3966 = vshll.u32 %v3636, 16
      %v3968 = vrot.slane %v3966, 5
      %v3969 = vsel %vm1457, %v3964, %v3968
      %v3970 = vshrl.u32 %v3636, 16
      %v3972 = vrot.slane %v3970, 4
      %v3973 = vor.u32 %v3972, %v3968
      %v3974 = vrot.slane %v3973, 4
      %v3976 = vshll.u32 %v3637, 16
      %v3978 = vrot.slane %v3976, 5
      %v3979 = vsel %vm1457, %v3974, %v3978
      %v3981 = vshrl.u32 %v3638, 16
      %v3983 = vrot.slane %v3981, 4
      %v3984 = vshll.u32 %v3638, 16
      %v3986 = vrot.slane %v3984, 5
      %v3987 = vor.u32 %v3983, %v3986
      %v3988 = vrot.slane %v3987, 4
      %v3990 = vshll.u32 %v3639, 16
      %v3992 = vrot.slane %v3990, 5
      %v3993 = vsel %vm1457, %v3988, %v3992
      %v3994 = vshrl.u32 %v3639, 16
      %v3996 = vrot.slane %v3994, 4
      %v3997 = vor.u32 %v3996, %v3992
      %v3998 = vrot.slane %v3997, 4
      %v4000 = vshll.u32 %v3640, 16
      %v4002 = vrot.slane %v4000, 5
      %v4003 = vsel %vm1457, %v3998, %v4002
      %v4005 = vshrl.u32 %v3641, 16
      %v4007 = vrot.slane %v4005, 4
      %v4008 = vshll.u32 %v3641, 16
      %v4010 = vrot.slane %v4008, 5
      %v4011 = vor.u32 %v4007, %v4010
      %v4012 = vrot.slane %v4011, 4
      %v4014 = vshll.u32 %v3642, 16
      %v4016 = vrot.slane %v4014, 5
      %v4017 = vsel %vm1457, %v4012, %v4016
      %v4018 = vshrl.u32 %v3642, 16
      %v4020 = vrot.slane %v4018, 4
      %v4021 = vor.u32 %v4020, %v4016
      %v4022 = vrot.slane %v4021, 4
      %v4024 = vshll.u32 %v3643, 16
      %v4026 = vrot.slane %v4024, 5
      %v4027 = vsel %vm1457, %v4022, %v4026
      %4028 = vrot.lane.b32.xlu0 %v3657, 28
      %v4029 = vpop.permute.xlu0 %4028
      %4030 = vrot.lane.b32.xlu0 %v3667, 28
      %v4031 = vpop.permute.xlu0 %4030
      %4032 = vrot.lane.b32.xlu0 %v3681, 28
      %v4033 = vpop.permute.xlu0 %4032
      %4034 = vrot.lane.b32.xlu0 %v3691, 28
      %v4035 = vpop.permute.xlu0 %4034
      %4036 = vrot.lane.b32.xlu0 %v3705, 28
      %v4037 = vpop.permute.xlu0 %4036
      %4038 = vrot.lane.b32.xlu0 %v3715, 28
      %v4039 = vpop.permute.xlu0 %4038
      %4040 = vrot.lane.b32.xlu0 %v3729, 28
      %v4041 = vpop.permute.xlu0 %4040
      %4042 = vrot.lane.b32.xlu0 %v3739, 28
      %v4043 = vpop.permute.xlu0 %4042
      %4044 = vrot.lane.b32.xlu0 %v3753, 28
      %v4045 = vpop.permute.xlu0 %4044
      %4046 = vrot.lane.b32.xlu0 %v3763, 28
      %v4047 = vpop.permute.xlu0 %4046
      %4048 = vrot.lane.b32.xlu0 %v3777, 28
      %v4049 = vpop.permute.xlu0 %4048
      %4050 = vrot.lane.b32.xlu0 %v3787, 28
      %v4051 = vpop.permute.xlu0 %4050
      %4052 = vrot.lane.b32.xlu0 %v3801, 28
      %v4053 = vpop.permute.xlu0 %4052
      %4054 = vrot.lane.b32.xlu0 %v3811, 28
      %v4055 = vpop.permute.xlu0 %4054
      %4056 = vrot.lane.b32.xlu0 %v3825, 28
      %v4057 = vpop.permute.xlu0 %4056
      %4058 = vrot.lane.b32.xlu0 %v3835, 28
      %v4059 = vpop.permute.xlu0 %4058
      %4060 = vrot.lane.b32.xlu0 %v3849, 28
      %v4061 = vpop.permute.xlu0 %4060
      %4062 = vrot.lane.b32.xlu0 %v3859, 28
      %v4063 = vpop.permute.xlu0 %4062
      %4064 = vrot.lane.b32.xlu0 %v3873, 28
      %v4065 = vpop.permute.xlu0 %4064
      %4066 = vrot.lane.b32.xlu0 %v3883, 28
      %v4067 = vpop.permute.xlu0 %4066
      %4068 = vrot.lane.b32.xlu0 %v3897, 28
      %v4069 = vpop.permute.xlu0 %4068
      %4070 = vrot.lane.b32.xlu0 %v3907, 28
      %v4071 = vpop.permute.xlu0 %4070
      %4072 = vrot.lane.b32.xlu0 %v3921, 28
      %v4073 = vpop.permute.xlu0 %4072
      %4074 = vrot.lane.b32.xlu0 %v3931, 28
      %v4075 = vpop.permute.xlu0 %4074
      %4076 = vrot.lane.b32.xlu0 %v3945, 28
      %v4077 = vpop.permute.xlu0 %4076
      %4078 = vrot.lane.b32.xlu0 %v3955, 28
      %v4079 = vpop.permute.xlu0 %4078
      %4080 = vrot.lane.b32.xlu0 %v3969, 28
      %v4081 = vpop.permute.xlu0 %4080
      %4082 = vrot.lane.b32.xlu0 %v3979, 28
      %v4083 = vpop.permute.xlu0 %4082
      %4084 = vrot.lane.b32.xlu0 %v3993, 28
      %v4085 = vpop.permute.xlu0 %4084
      %4086 = vrot.lane.b32.xlu0 %v4003, 28
      %v4087 = vpop.permute.xlu0 %4086
      %4088 = vrot.lane.b32.xlu0 %v4017, 28
      %v4089 = vpop.permute.xlu0 %4088
      %4090 = vrot.lane.b32.xlu0 %v4027, 28
      %v4091 = vpop.permute.xlu0 %4090
      %vm4124 = vcmask 257248
      %4125 = vst.msk [vmem:[#allocation3] sm:$0xf] %vm4124, %v4029
      %4126 = vst.msk [vmem:[#allocation3 + $0x4] sm:$0xf] %vm4124, %v4031
      %4127 = vst.msk [vmem:[#allocation3 + $0x8] sm:$0xf] %vm4124, %v4033
      %4128 = vst.msk [vmem:[#allocation3 + $0xc] sm:$0xf] %vm4124, %v4035
      %4129 = vst.msk [vmem:[#allocation3 + $0x10] sm:$0xf] %vm4124, %v4037
      %4130 = vst.msk [vmem:[#allocation3 + $0x14] sm:$0xf] %vm4124, %v4039
      %4131 = vst.msk [vmem:[#allocation3 + $0x18] sm:$0xf] %vm4124, %v4041
      %4132 = vst.msk [vmem:[#allocation3 + $0x1c] sm:$0xf] %vm4124, %v4043
      %4133 = vst.msk [vmem:[#allocation3 + $0x20] sm:$0xf] %vm4124, %v4045
      %4134 = vst.msk [vmem:[#allocation3 + $0x24] sm:$0xf] %vm4124, %v4047
      %4135 = vst.msk [vmem:[#allocation3 + $0x28] sm:$0xf] %vm4124, %v4049
      %4136 = vst.msk [vmem:[#allocation3 + $0x2c] sm:$0xf] %vm4124, %v4051
      %4137 = vst.msk [vmem:[#allocation3 + $0x30] sm:$0xf] %vm4124, %v4053
      %4138 = vst.msk [vmem:[#allocation3 + $0x34] sm:$0xf] %vm4124, %v4055
      %4139 = vst.msk [vmem:[#allocation3 + $0x38] sm:$0xf] %vm4124, %v4057
      %4140 = vst.msk [vmem:[#allocation3 + $0x3c] sm:$0xf] %vm4124, %v4059
      %4141 = vst.msk [vmem:[#allocation3 + $0x40] sm:$0xf] %vm4124, %v4061
      %4142 = vst.msk [vmem:[#allocation3 + $0x44] sm:$0xf] %vm4124, %v4063
      %4143 = vst.msk [vmem:[#allocation3 + $0x48] sm:$0xf] %vm4124, %v4065
      %4144 = vst.msk [vmem:[#allocation3 + $0x4c] sm:$0xf] %vm4124, %v4067
      %4145 = vst.msk [vmem:[#allocation3 + $0x50] sm:$0xf] %vm4124, %v4069
      %4146 = vst.msk [vmem:[#allocation3 + $0x54] sm:$0xf] %vm4124, %v4071
      %4147 = vst.msk [vmem:[#allocation3 + $0x58] sm:$0xf] %vm4124, %v4073
      %4148 = vst.msk [vmem:[#allocation3 + $0x5c] sm:$0xf] %vm4124, %v4075
      %4149 = vst.msk [vmem:[#allocation3 + $0x60] sm:$0xf] %vm4124, %v4077
      %4150 = vst.msk [vmem:[#allocation3 + $0x64] sm:$0xf] %vm4124, %v4079
      %4151 = vst.msk [vmem:[#allocation3 + $0x68] sm:$0xf] %vm4124, %v4081
      %4152 = vst.msk [vmem:[#allocation3 + $0x6c] sm:$0xf] %vm4124, %v4083
      %4153 = vst.msk [vmem:[#allocation3 + $0x70] sm:$0xf] %vm4124, %v4085
      %4154 = vst.msk [vmem:[#allocation3 + $0x74] sm:$0xf] %vm4124, %v4087
      %4155 = vst.msk [vmem:[#allocation3 + $0x78] sm:$0xf] %vm4124, %v4089
      %4156 = vst.msk [vmem:[#allocation3 + $0x7c] sm:$0xf] %vm4124, %v4091
      %v4157 = vld [vmem:[%s3402] sm:$0xe]
      %v4158 = vld [vmem:[%s3402 + $0x4] sm:$0xf]
      %v4159 = vld [vmem:[%s3402 + $0x8] sm:$0x1]
      %v4160 = vld [vmem:[%s3402 + $0xc] sm:$0xe]
      %v4161 = vld [vmem:[%s3402 + $0x10] sm:$0xf]
      %v4162 = vld [vmem:[%s3402 + $0x14] sm:$0x1]
      %v4163 = vld [vmem:[%s3402 + $0x18] sm:$0xe]
      %v4164 = vld [vmem:[%s3402 + $0x1c] sm:$0xf]
      %v4165 = vld [vmem:[%s3402 + $0x20] sm:$0x1]
      %v4166 = vld [vmem:[%s3402 + $0x24] sm:$0xe]
      %v4167 = vld [vmem:[%s3402 + $0x28] sm:$0xf]
      %v4168 = vld [vmem:[%s3402 + $0x2c] sm:$0x1]
      %v4169 = vld [vmem:[%s3402 + $0x30] sm:$0xe]
      %v4170 = vld [vmem:[%s3402 + $0x34] sm:$0xf]
      %v4171 = vld [vmem:[%s3402 + $0x38] sm:$0x1]
      %v4172 = vld [vmem:[%s3402 + $0x3c] sm:$0xe]
      %v4173 = vld [vmem:[%s3402 + $0x40] sm:$0xf]
      %v4174 = vld [vmem:[%s3402 + $0x44] sm:$0x1]
      %v4175 = vld [vmem:[%s3402 + $0x48] sm:$0xe]
      %v4176 = vld [vmem:[%s3402 + $0x4c] sm:$0xf]
      %v4177 = vld [vmem:[%s3402 + $0x50] sm:$0x1]
      %v4178 = vld [vmem:[%s3402 + $0x54] sm:$0xe]
      %v4179 = vld [vmem:[%s3402 + $0x58] sm:$0xf]
      %v4180 = vld [vmem:[%s3402 + $0x5c] sm:$0x1]
      %v4181 = vld [vmem:[%s3402 + $0x60] sm:$0xe]
      %v4182 = vld [vmem:[%s3402 + $0x64] sm:$0xf]
      %v4183 = vld [vmem:[%s3402 + $0x68] sm:$0x1]
      %v4184 = vld [vmem:[%s3402 + $0x6c] sm:$0xe]
      %v4185 = vld [vmem:[%s3402 + $0x70] sm:$0xf]
      %v4186 = vld [vmem:[%s3402 + $0x74] sm:$0x1]
      %v4187 = vld [vmem:[%s3402 + $0x78] sm:$0xe]
      %v4188 = vld [vmem:[%s3402 + $0x7c] sm:$0xf]
      %v4189 = vld [vmem:[%s3402 + $0x80] sm:$0x1]
      %v4190 = vld [vmem:[%s3402 + $0x84] sm:$0xe]
      %v4191 = vld [vmem:[%s3402 + $0x88] sm:$0xf]
      %v4192 = vld [vmem:[%s3402 + $0x8c] sm:$0x1]
      %v4193 = vld [vmem:[%s3402 + $0x90] sm:$0xe]
      %v4194 = vld [vmem:[%s3402 + $0x94] sm:$0xf]
      %v4195 = vld [vmem:[%s3402 + $0x98] sm:$0x1]
      %v4196 = vld [vmem:[%s3402 + $0x9c] sm:$0xe]
      %v4197 = vld [vmem:[%s3402 + $0xa0] sm:$0xf]
      %v4198 = vld [vmem:[%s3402 + $0xa4] sm:$0x1]
      %v4199 = vld [vmem:[%s3402 + $0xa8] sm:$0xe]
      %v4200 = vld [vmem:[%s3402 + $0xac] sm:$0xf]
      %v4201 = vld [vmem:[%s3402 + $0xb0] sm:$0x1]
      %v4202 = vld [vmem:[%s3402 + $0xb4] sm:$0xe]
      %v4203 = vld [vmem:[%s3402 + $0xb8] sm:$0xf]
      %v4204 = vld [vmem:[%s3402 + $0xbc] sm:$0x1]
      %v4253 = vrot.slane %v4157, 5
      %v4254 = vrot.slane %v4253, 4
      %v4255 = vrot.slane %v4158, 5
      %v4256 = vsel %vm2069, %v4254, %v4255
      %v4257 = vrot.slane %v4255, 4
      %v4258 = vrot.slane %v4159, 5
      %v4259 = vsel %vm2069, %v4257, %v4258
      %v4260 = vrot.slane %v4160, 5
      %v4261 = vrot.slane %v4260, 4
      %v4262 = vrot.slane %v4161, 5
      %v4263 = vsel %vm2069, %v4261, %v4262
      %v4264 = vrot.slane %v4262, 4
      %v4265 = vrot.slane %v4162, 5
      %v4266 = vsel %vm2069, %v4264, %v4265
      %v4267 = vrot.slane %v4163, 5
      %v4268 = vrot.slane %v4267, 4
      %v4269 = vrot.slane %v4164, 5
      %v4270 = vsel %vm2069, %v4268, %v4269
      %v4271 = vrot.slane %v4269, 4
      %v4272 = vrot.slane %v4165, 5
      %v4273 = vsel %vm2069, %v4271, %v4272
      %v4274 = vrot.slane %v4166, 5
      %v4275 = vrot.slane %v4274, 4
      %v4276 = vrot.slane %v4167, 5
      %v4277 = vsel %vm2069, %v4275, %v4276
      %v4278 = vrot.slane %v4276, 4
      %v4279 = vrot.slane %v4168, 5
      %v4280 = vsel %vm2069, %v4278, %v4279
      %v4281 = vrot.slane %v4169, 5
      %v4282 = vrot.slane %v4281, 4
      %v4283 = vrot.slane %v4170, 5
      %v4284 = vsel %vm2069, %v4282, %v4283
      %v4285 = vrot.slane %v4283, 4
      %v4286 = vrot.slane %v4171, 5
      %v4287 = vsel %vm2069, %v4285, %v4286
      %v4288 = vrot.slane %v4172, 5
      %v4289 = vrot.slane %v4288, 4
      %v4290 = vrot.slane %v4173, 5
      %v4291 = vsel %vm2069, %v4289, %v4290
      %v4292 = vrot.slane %v4290, 4
      %v4293 = vrot.slane %v4174, 5
      %v4294 = vsel %vm2069, %v4292, %v4293
      %v4295 = vrot.slane %v4175, 5
      %v4296 = vrot.slane %v4295, 4
      %v4297 = vrot.slane %v4176, 5
      %v4298 = vsel %vm2069, %v4296, %v4297
      %v4299 = vrot.slane %v4297, 4
      %v4300 = vrot.slane %v4177, 5
      %v4301 = vsel %vm2069, %v4299, %v4300
      %v4302 = vrot.slane %v4178, 5
      %v4303 = vrot.slane %v4302, 4
      %v4304 = vrot.slane %v4179, 5
      %v4305 = vsel %vm2069, %v4303, %v4304
      %v4306 = vrot.slane %v4304, 4
      %v4307 = vrot.slane %v4180, 5
      %v4308 = vsel %vm2069, %v4306, %v4307
      %v4309 = vrot.slane %v4181, 5
      %v4310 = vrot.slane %v4309, 4
      %v4311 = vrot.slane %v4182, 5
      %v4312 = vsel %vm2069, %v4310, %v4311
      %v4313 = vrot.slane %v4311, 4
      %v4314 = vrot.slane %v4183, 5
      %v4315 = vsel %vm2069, %v4313, %v4314
      %v4316 = vrot.slane %v4184, 5
      %v4317 = vrot.slane %v4316, 4
      %v4318 = vrot.slane %v4185, 5
      %v4319 = vsel %vm2069, %v4317, %v4318
      %v4320 = vrot.slane %v4318, 4
      %v4321 = vrot.slane %v4186, 5
      %v4322 = vsel %vm2069, %v4320, %v4321
      %v4323 = vrot.slane %v4187, 5
      %v4324 = vrot.slane %v4323, 4
      %v4325 = vrot.slane %v4188, 5
      %v4326 = vsel %vm2069, %v4324, %v4325
      %v4327 = vrot.slane %v4325, 4
      %v4328 = vrot.slane %v4189, 5
      %v4329 = vsel %vm2069, %v4327, %v4328
      %v4330 = vrot.slane %v4190, 5
      %v4331 = vrot.slane %v4330, 4
      %v4332 = vrot.slane %v4191, 5
      %v4333 = vsel %vm2069, %v4331, %v4332
      %v4334 = vrot.slane %v4332, 4
      %v4335 = vrot.slane %v4192, 5
      %v4336 = vsel %vm2069, %v4334, %v4335
      %v4337 = vrot.slane %v4193, 5
      %v4338 = vrot.slane %v4337, 4
      %v4339 = vrot.slane %v4194, 5
      %v4340 = vsel %vm2069, %v4338, %v4339
      %v4341 = vrot.slane %v4339, 4
      %v4342 = vrot.slane %v4195, 5
      %v4343 = vsel %vm2069, %v4341, %v4342
      %v4344 = vrot.slane %v4196, 5
      %v4345 = vrot.slane %v4344, 4
      %v4346 = vrot.slane %v4197, 5
      %v4347 = vsel %vm2069, %v4345, %v4346
      %v4348 = vrot.slane %v4346, 4
      %v4349 = vrot.slane %v4198, 5
      %v4350 = vsel %vm2069, %v4348, %v4349
      %v4351 = vrot.slane %v4199, 5
      %v4352 = vrot.slane %v4351, 4
      %v4353 = vrot.slane %v4200, 5
      %v4354 = vsel %vm2069, %v4352, %v4353
      %v4355 = vrot.slane %v4353, 4
      %v4356 = vrot.slane %v4201, 5
      %v4357 = vsel %vm2069, %v4355, %v4356
      %v4358 = vrot.slane %v4202, 5
      %v4359 = vrot.slane %v4358, 4
      %v4360 = vrot.slane %v4203, 5
      %v4361 = vsel %vm2069, %v4359, %v4360
      %v4362 = vrot.slane %v4360, 4
      %v4363 = vrot.slane %v4204, 5
      %v4364 = vsel %vm2069, %v4362, %v4363
      %4365 = vrot.lane.b32.xlu0 %v4256, 32
      %v4366 = vpop.permute.xlu0 %4365
      %4367 = vrot.lane.b32.xlu0 %v4259, 32
      %v4368 = vpop.permute.xlu0 %4367
      %4369 = vrot.lane.b32.xlu0 %v4263, 32
      %v4370 = vpop.permute.xlu0 %4369
      %4371 = vrot.lane.b32.xlu0 %v4266, 32
      %v4372 = vpop.permute.xlu0 %4371
      %4373 = vrot.lane.b32.xlu0 %v4270, 32
      %v4374 = vpop.permute.xlu0 %4373
      %4375 = vrot.lane.b32.xlu0 %v4273, 32
      %v4376 = vpop.permute.xlu0 %4375
      %4377 = vrot.lane.b32.xlu0 %v4277, 32
      %v4378 = vpop.permute.xlu0 %4377
      %4379 = vrot.lane.b32.xlu0 %v4280, 32
      %v4380 = vpop.permute.xlu0 %4379
      %4381 = vrot.lane.b32.xlu0 %v4284, 32
      %v4382 = vpop.permute.xlu0 %4381
      %4383 = vrot.lane.b32.xlu0 %v4287, 32
      %v4384 = vpop.permute.xlu0 %4383
      %4385 = vrot.lane.b32.xlu0 %v4291, 32
      %v4386 = vpop.permute.xlu0 %4385
      %4387 = vrot.lane.b32.xlu0 %v4294, 32
      %v4388 = vpop.permute.xlu0 %4387
      %4389 = vrot.lane.b32.xlu0 %v4298, 32
      %v4390 = vpop.permute.xlu0 %4389
      %4391 = vrot.lane.b32.xlu0 %v4301, 32
      %v4392 = vpop.permute.xlu0 %4391
      %4393 = vrot.lane.b32.xlu0 %v4305, 32
      %v4394 = vpop.permute.xlu0 %4393
      %4395 = vrot.lane.b32.xlu0 %v4308, 32
      %v4396 = vpop.permute.xlu0 %4395
      %4397 = vrot.lane.b32.xlu0 %v4312, 32
      %v4398 = vpop.permute.xlu0 %4397
      %4399 = vrot.lane.b32.xlu0 %v4315, 32
      %v4400 = vpop.permute.xlu0 %4399
      %4401 = vrot.lane.b32.xlu0 %v4319, 32
      %v4402 = vpop.permute.xlu0 %4401
      %4403 = vrot.lane.b32.xlu0 %v4322, 32
      %v4404 = vpop.permute.xlu0 %4403
      %4405 = vrot.lane.b32.xlu0 %v4326, 32
      %v4406 = vpop.permute.xlu0 %4405
      %4407 = vrot.lane.b32.xlu0 %v4329, 32
      %v4408 = vpop.permute.xlu0 %4407
      %4409 = vrot.lane.b32.xlu0 %v4333, 32
      %v4410 = vpop.permute.xlu0 %4409
      %4411 = vrot.lane.b32.xlu0 %v4336, 32
      %v4412 = vpop.permute.xlu0 %4411
      %4413 = vrot.lane.b32.xlu0 %v4340, 32
      %v4414 = vpop.permute.xlu0 %4413
      %4415 = vrot.lane.b32.xlu0 %v4343, 32
      %v4416 = vpop.permute.xlu0 %4415
      %4417 = vrot.lane.b32.xlu0 %v4347, 32
      %v4418 = vpop.permute.xlu0 %4417
      %4419 = vrot.lane.b32.xlu0 %v4350, 32
      %v4420 = vpop.permute.xlu0 %4419
      %4421 = vrot.lane.b32.xlu0 %v4354, 32
      %v4422 = vpop.permute.xlu0 %4421
      %4423 = vrot.lane.b32.xlu0 %v4357, 32
      %v4424 = vpop.permute.xlu0 %4423
      %4425 = vrot.lane.b32.xlu0 %v4361, 32
      %v4426 = vpop.permute.xlu0 %4425
      %4427 = vrot.lane.b32.xlu0 %v4364, 32
      %v4428 = vpop.permute.xlu0 %4427
      %vm4461 = vcmask 290048
      %4462 = vst.msk [vmem:[#allocation3] sm:$0xf] %vm4461, %v4366
      %4463 = vst.msk [vmem:[#allocation3 + $0x4] sm:$0xf] %vm4461, %v4368
      %4464 = vst.msk [vmem:[#allocation3 + $0x8] sm:$0xf] %vm4461, %v4370
      %4465 = vst.msk [vmem:[#allocation3 + $0xc] sm:$0xf] %vm4461, %v4372
      %4466 = vst.msk [vmem:[#allocation3 + $0x10] sm:$0xf] %vm4461, %v4374
      %4467 = vst.msk [vmem:[#allocation3 + $0x14] sm:$0xf] %vm4461, %v4376
      %4468 = vst.msk [vmem:[#allocation3 + $0x18] sm:$0xf] %vm4461, %v4378
      %4469 = vst.msk [vmem:[#allocation3 + $0x1c] sm:$0xf] %vm4461, %v4380
      %4470 = vst.msk [vmem:[#allocation3 + $0x20] sm:$0xf] %vm4461, %v4382
      %4471 = vst.msk [vmem:[#allocation3 + $0x24] sm:$0xf] %vm4461, %v4384
      %4472 = vst.msk [vmem:[#allocation3 + $0x28] sm:$0xf] %vm4461, %v4386
      %4473 = vst.msk [vmem:[#allocation3 + $0x2c] sm:$0xf] %vm4461, %v4388
      %4474 = vst.msk [vmem:[#allocation3 + $0x30] sm:$0xf] %vm4461, %v4390
      %4475 = vst.msk [vmem:[#allocation3 + $0x34] sm:$0xf] %vm4461, %v4392
      %4476 = vst.msk [vmem:[#allocation3 + $0x38] sm:$0xf] %vm4461, %v4394
      %4477 = vst.msk [vmem:[#allocation3 + $0x3c] sm:$0xf] %vm4461, %v4396
      %4478 = vst.msk [vmem:[#allocation3 + $0x40] sm:$0xf] %vm4461, %v4398
      %4479 = vst.msk [vmem:[#allocation3 + $0x44] sm:$0xf] %vm4461, %v4400
      %4480 = vst.msk [vmem:[#allocation3 + $0x48] sm:$0xf] %vm4461, %v4402
      %4481 = vst.msk [vmem:[#allocation3 + $0x4c] sm:$0xf] %vm4461, %v4404
      %4482 = vst.msk [vmem:[#allocation3 + $0x50] sm:$0xf] %vm4461, %v4406
      %4483 = vst.msk [vmem:[#allocation3 + $0x54] sm:$0xf] %vm4461, %v4408
      %4484 = vst.msk [vmem:[#allocation3 + $0x58] sm:$0xf] %vm4461, %v4410
      %4485 = vst.msk [vmem:[#allocation3 + $0x5c] sm:$0xf] %vm4461, %v4412
      %4486 = vst.msk [vmem:[#allocation3 + $0x60] sm:$0xf] %vm4461, %v4414
      %4487 = vst.msk [vmem:[#allocation3 + $0x64] sm:$0xf] %vm4461, %v4416
      %4488 = vst.msk [vmem:[#allocation3 + $0x68] sm:$0xf] %vm4461, %v4418
      %4489 = vst.msk [vmem:[#allocation3 + $0x6c] sm:$0xf] %vm4461, %v4420
      %4490 = vst.msk [vmem:[#allocation3 + $0x70] sm:$0xf] %vm4461, %v4422
      %4491 = vst.msk [vmem:[#allocation3 + $0x74] sm:$0xf] %vm4461, %v4424
      %4492 = vst.msk [vmem:[#allocation3 + $0x78] sm:$0xf] %vm4461, %v4426
      %4493 = vst.msk [vmem:[#allocation3 + $0x7c] sm:$0xf] %vm4461, %v4428
      %v4494 = vld [vmem:[#allocation3] sm:$0xf]
      %v4495 = vld [vmem:[#allocation3 + $0x4] sm:$0xf]
      %v4496 = vld [vmem:[#allocation3 + $0x8] sm:$0xf]
      %v4497 = vld [vmem:[#allocation3 + $0xc] sm:$0xf]
      %v4498 = vld [vmem:[#allocation3 + $0x10] sm:$0xf]
      %v4499 = vld [vmem:[#allocation3 + $0x14] sm:$0xf]
      %v4500 = vld [vmem:[#allocation3 + $0x18] sm:$0xf]
      %v4501 = vld [vmem:[#allocation3 + $0x1c] sm:$0xf]
      %v4502 = vld [vmem:[#allocation3 + $0x20] sm:$0xf]
      %v4503 = vld [vmem:[#allocation3 + $0x24] sm:$0xf]
      %v4504 = vld [vmem:[#allocation3 + $0x28] sm:$0xf]
      %v4505 = vld [vmem:[#allocation3 + $0x2c] sm:$0xf]
      %v4506 = vld [vmem:[#allocation3 + $0x30] sm:$0xf]
      %v4507 = vld [vmem:[#allocation3 + $0x34] sm:$0xf]
      %v4508 = vld [vmem:[#allocation3 + $0x38] sm:$0xf]
      %v4509 = vld [vmem:[#allocation3 + $0x3c] sm:$0xf]
      %v4510 = vld [vmem:[#allocation3 + $0x40] sm:$0xf]
      %v4511 = vld [vmem:[#allocation3 + $0x44] sm:$0xf]
      %v4512 = vld [vmem:[#allocation3 + $0x48] sm:$0xf]
      %v4513 = vld [vmem:[#allocation3 + $0x4c] sm:$0xf]
      %v4514 = vld [vmem:[#allocation3 + $0x50] sm:$0xf]
      %v4515 = vld [vmem:[#allocation3 + $0x54] sm:$0xf]
      %v4516 = vld [vmem:[#allocation3 + $0x58] sm:$0xf]
      %v4517 = vld [vmem:[#allocation3 + $0x5c] sm:$0xf]
      %v4518 = vld [vmem:[#allocation3 + $0x60] sm:$0xf]
      %v4519 = vld [vmem:[#allocation3 + $0x64] sm:$0xf]
      %v4520 = vld [vmem:[#allocation3 + $0x68] sm:$0xf]
      %v4521 = vld [vmem:[#allocation3 + $0x6c] sm:$0xf]
      %v4522 = vld [vmem:[#allocation3 + $0x70] sm:$0xf]
      %v4523 = vld [vmem:[#allocation3 + $0x74] sm:$0xf]
      %v4524 = vld [vmem:[#allocation3 + $0x78] sm:$0xf]
      %v4525 = vld [vmem:[#allocation3 + $0x7c] sm:$0xf]
      %v4526 = vld [vmem:[%s5] sm:$0xf]
      %v4527 = vld [vmem:[%s5 + $0x4] sm:$0xf]
      %v4528 = vld [vmem:[%s5 + $0x8] sm:$0xf]
      %v4529 = vld [vmem:[%s5 + $0xc] sm:$0xf]
      %v4530 = vld [vmem:[%s5 + $0x10] sm:$0x3]
      %v4563 = vunpack.c.l.b16 %v4494
      %v4564 = vunpack.c.l.b16 %v4495
      %v4565 = vunpack.c.l.b16 %v4496
      %v4566 = vunpack.c.l.b16 %v4497
      %v4567 = vunpack.c.l.b16 %v4498
      %v4568 = vunpack.c.l.b16 %v4499
      %v4569 = vunpack.c.l.b16 %v4500
      %v4570 = vunpack.c.l.b16 %v4501
      %v4571 = vunpack.c.l.b16 %v4502
      %v4572 = vunpack.c.l.b16 %v4503
      %v4573 = vunpack.c.l.b16 %v4504
      %v4574 = vunpack.c.l.b16 %v4505
      %v4575 = vunpack.c.l.b16 %v4506
      %v4576 = vunpack.c.l.b16 %v4507
      %v4577 = vunpack.c.l.b16 %v4508
      %v4578 = vunpack.c.l.b16 %v4509
      %v4579 = vunpack.c.l.b16 %v4510
      %v4580 = vunpack.c.l.b16 %v4511
      %v4581 = vunpack.c.l.b16 %v4512
      %v4582 = vunpack.c.l.b16 %v4513
      %v4583 = vunpack.c.l.b16 %v4514
      %v4584 = vunpack.c.l.b16 %v4515
      %v4585 = vunpack.c.l.b16 %v4516
      %v4586 = vunpack.c.l.b16 %v4517
      %v4587 = vunpack.c.l.b16 %v4518
      %v4588 = vunpack.c.l.b16 %v4519
      %v4589 = vunpack.c.l.b16 %v4520
      %v4590 = vunpack.c.l.b16 %v4521
      %v4591 = vunpack.c.l.b16 %v4522
      %v4592 = vunpack.c.l.b16 %v4523
      %v4593 = vunpack.c.l.b16 %v4524
      %v4594 = vunpack.c.l.b16 %v4525
      %v4595 = vpack.c.b16 %v4564, %v4563
      %v4596 = vpack.c.b16 %v4566, %v4565
      %v4597 = vpack.c.b16 %v4568, %v4567
      %v4598 = vpack.c.b16 %v4570, %v4569
      %v4599 = vpack.c.b16 %v4572, %v4571
      %v4600 = vpack.c.b16 %v4574, %v4573
      %v4601 = vpack.c.b16 %v4576, %v4575
      %v4602 = vpack.c.b16 %v4578, %v4577
      %v4603 = vpack.c.b16 %v4580, %v4579
      %v4604 = vpack.c.b16 %v4582, %v4581
      %v4605 = vpack.c.b16 %v4584, %v4583
      %v4606 = vpack.c.b16 %v4586, %v4585
      %v4607 = vpack.c.b16 %v4588, %v4587
      %v4608 = vpack.c.b16 %v4590, %v4589
      %v4609 = vpack.c.b16 %v4592, %v4591
      %v4610 = vpack.c.b16 %v4594, %v4593
      %v4616 = vunpack.c.l.b16 %v4526
      %v4617 = vunpack.c.l.b16 %v4527
      %v4618 = vunpack.c.l.b16 %v4528
      %v4619 = vunpack.c.l.b16 %v4529
      %v4620 = vunpack.c.l.b16 %v4530
      %v4621 = vpack.c.b16 %v4617, %v4616
      %v4622 = vpack.c.b16 %v4619, %v4618
      %v4623 = vpack.c.b16 %v4620, %v4620
      %vm4626 = vcmask 293888
      %v4628 = vsel %vm4626, %v4595, 0
      %v4631 = vsel %vm4626, %v4596, 0
      %v4634 = vsel %vm4626, %v4597, 0
      %v4637 = vsel %vm4626, %v4598, 0
      %v4640 = vsel %vm4626, %v4599, 0
      %v4643 = vsel %vm4626, %v4600, 0
      %v4646 = vsel %vm4626, %v4601, 0
      %v4649 = vsel %vm4626, %v4602, 0
      %v4652 = vsel %vm4626, %v4603, 0
      %v4655 = vsel %vm4626, %v4604, 0
      %v4658 = vsel %vm4626, %v4605, 0
      %v4661 = vsel %vm4626, %v4606, 0
      %v4664 = vsel %vm4626, %v4607, 0
      %v4667 = vsel %vm4626, %v4608, 0
      %v4670 = vsel %vm4626, %v4609, 0
      %v4673 = vsel %vm4626, %v4610, 0
      %vm4675 = vcmask 1041408
      %v4677 = vsel %vm4675, %v4623, 0
      %4679 = vmatprep.subr.bf16.mxu0 0
      %4680 = vmatpush1.bf16.msra.mxu0 0
      %4681 = vmatprep.subr.bf16.mxu0 0
      %4682 = vmatpush1.bf16.msra.mxu0 0
      %4683 = vmatprep.subr.bf16.mxu0 0
      %4684 = vmatpush1.bf16.msra.mxu0 0
      %4685 = vmatprep.subr.bf16.mxu0 0
      %4686 = vmatpush1.bf16.msra.mxu0 0
      %4687 = vmatprep.subr.bf16.mxu0 0
      %4688 = vmatpush1.bf16.msra.mxu0 0
      %4689 = vmatprep.subr.bf16.mxu0 0
      %4690 = vmatpush1.bf16.msra.mxu0 %v4677
      %4691 = vmatprep.subr.bf16.mxu0 0
      %4692 = vmatpush1.bf16.msra.mxu0 %v4622
      %4693 = vmatprep.subr.bf16.mxu0 0
      %4694 = vmatpush1.bf16.msra.mxu0 %v4621
      %4695 = vmatprep.subr.bf16.mxu0 0
      %4696 = vmatpush2.bf16.msra.mxu0 0
      %4697 = vmatprep.subr.bf16.mxu0 0
      %4698 = vmatpush2.bf16.msra.mxu0 0
      %4699 = vmatprep.subr.bf16.mxu0 0
      %4700 = vmatpush2.bf16.msra.mxu0 0
      %4701 = vmatprep.subr.bf16.mxu0 0
      %4702 = vmatpush2.bf16.msra.mxu0 0
      %4703 = vmatprep.subr.bf16.mxu0 0
      %4704 = vmatpush2.bf16.msra.mxu0 0
      %4705 = vmatprep.subr.bf16.mxu0 0
      %4706 = vmatpush2.bf16.msra.mxu0 0
      %4707 = vmatprep.subr.bf16.mxu0 0
      %4708 = vmatpush2.bf16.msra.mxu0 0
      %4709 = vmatprep.subr.bf16.mxu0 0
      %4710 = vmatpush2.bf16.msra.mxu0 0
      %4711 = vmatprep.mubr.bf16.mxu0 0
      %4712 = vmatmul.mubr.bf16.gmra.mxu0 %v4628
      %v4713 = vpop.f32.mrf.mxu0
      %v4714 = vadd.f32 0.0, %v4713
      %v4715 = vpop.f32.mrf.mxu0
      %v4716 = vpop.f32.mrf.mxu0
      %v4717 = vadd.f32 0.0, %v4716
      %v4718 = vpop.f32.mrf.mxu0
      %4719 = vmatprep.mubr.bf16.mxu0 0
      %4720 = vmatmul.mubr.bf16.gmra.mxu0 %v4631
      %v4721 = vpop.f32.mrf.mxu0
      %v4722 = vadd.f32 0.0, %v4721
      %v4723 = vpop.f32.mrf.mxu0
      %v4724 = vpop.f32.mrf.mxu0
      %v4725 = vadd.f32 0.0, %v4724
      %v4726 = vpop.f32.mrf.mxu0
      %4727 = vmatprep.mubr.bf16.mxu0 0
      %4728 = vmatmul.mubr.bf16.gmra.mxu0 %v4634
      %v4729 = vpop.f32.mrf.mxu0
      %v4730 = vadd.f32 0.0, %v4729
      %v4731 = vpop.f32.mrf.mxu0
      %v4732 = vpop.f32.mrf.mxu0
      %v4733 = vadd.f32 0.0, %v4732
      %v4734 = vpop.f32.mrf.mxu0
      %4735 = vmatprep.mubr.bf16.mxu0 0
      %4736 = vmatmul.mubr.bf16.gmra.mxu0 %v4637
      %v4737 = vpop.f32.mrf.mxu0
      %v4738 = vadd.f32 0.0, %v4737
      %v4739 = vpop.f32.mrf.mxu0
      %v4740 = vpop.f32.mrf.mxu0
      %v4741 = vadd.f32 0.0, %v4740
      %v4742 = vpop.f32.mrf.mxu0
      %4743 = vmatprep.mubr.bf16.mxu0 0
      %4744 = vmatmul.mubr.bf16.gmra.mxu0 %v4640
      %v4745 = vpop.f32.mrf.mxu0
      %v4746 = vadd.f32 0.0, %v4745
      %v4747 = vpop.f32.mrf.mxu0
      %v4748 = vpop.f32.mrf.mxu0
      %v4749 = vadd.f32 0.0, %v4748
      %v4750 = vpop.f32.mrf.mxu0
      %4751 = vmatprep.mubr.bf16.mxu0 0
      %4752 = vmatmul.mubr.bf16.gmra.mxu0 %v4643
      %v4753 = vpop.f32.mrf.mxu0
      %v4754 = vadd.f32 0.0, %v4753
      %v4755 = vpop.f32.mrf.mxu0
      %v4756 = vpop.f32.mrf.mxu0
      %v4757 = vadd.f32 0.0, %v4756
      %v4758 = vpop.f32.mrf.mxu0
      %4759 = vmatprep.mubr.bf16.mxu0 0
      %4760 = vmatmul.mubr.bf16.gmra.mxu0 %v4646
      %v4761 = vpop.f32.mrf.mxu0
      %v4762 = vadd.f32 0.0, %v4761
      %v4763 = vpop.f32.mrf.mxu0
      %v4764 = vpop.f32.mrf.mxu0
      %v4765 = vadd.f32 0.0, %v4764
      %v4766 = vpop.f32.mrf.mxu0
      %4767 = vmatprep.mubr.bf16.mxu0 0
      %4768 = vmatmul.mubr.bf16.gmra.mxu0 %v4649
      %v4769 = vpop.f32.mrf.mxu0
      %v4770 = vadd.f32 0.0, %v4769
      %v4771 = vpop.f32.mrf.mxu0
      %v4772 = vpop.f32.mrf.mxu0
      %v4773 = vadd.f32 0.0, %v4772
      %v4774 = vpop.f32.mrf.mxu0
      %4775 = vmatprep.mubr.bf16.mxu0 0
      %4776 = vmatmul.mubr.bf16.gmra.mxu0 %v4652
      %v4777 = vpop.f32.mrf.mxu0
      %v4778 = vadd.f32 0.0, %v4777
      %v4779 = vpop.f32.mrf.mxu0
      %v4780 = vpop.f32.mrf.mxu0
      %v4781 = vadd.f32 0.0, %v4780
      %v4782 = vpop.f32.mrf.mxu0
      %4783 = vmatprep.mubr.bf16.mxu0 0
      %4784 = vmatmul.mubr.bf16.gmra.mxu0 %v4655
      %v4785 = vpop.f32.mrf.mxu0
      %v4786 = vadd.f32 0.0, %v4785
      %v4787 = vpop.f32.mrf.mxu0
      %v4788 = vpop.f32.mrf.mxu0
      %v4789 = vadd.f32 0.0, %v4788
      %v4790 = vpop.f32.mrf.mxu0
      %4791 = vmatprep.mubr.bf16.mxu0 0
      %4792 = vmatmul.mubr.bf16.gmra.mxu0 %v4658
      %v4793 = vpop.f32.mrf.mxu0
      %v4794 = vadd.f32 0.0, %v4793
      %v4795 = vpop.f32.mrf.mxu0
      %v4796 = vpop.f32.mrf.mxu0
      %v4797 = vadd.f32 0.0, %v4796
      %v4798 = vpop.f32.mrf.mxu0
      %4799 = vmatprep.mubr.bf16.mxu0 0
      %4800 = vmatmul.mubr.bf16.gmra.mxu0 %v4661
      %v4801 = vpop.f32.mrf.mxu0
      %v4802 = vadd.f32 0.0, %v4801
      %v4803 = vpop.f32.mrf.mxu0
      %v4804 = vpop.f32.mrf.mxu0
      %v4805 = vadd.f32 0.0, %v4804
      %v4806 = vpop.f32.mrf.mxu0
      %4807 = vmatprep.mubr.bf16.mxu0 0
      %4808 = vmatmul.mubr.bf16.gmra.mxu0 %v4664
      %v4809 = vpop.f32.mrf.mxu0
      %v4810 = vadd.f32 0.0, %v4809
      %v4811 = vpop.f32.mrf.mxu0
      %v4812 = vpop.f32.mrf.mxu0
      %v4813 = vadd.f32 0.0, %v4812
      %v4814 = vpop.f32.mrf.mxu0
      %4815 = vmatprep.mubr.bf16.mxu0 0
      %4816 = vmatmul.mubr.bf16.gmra.mxu0 %v4667
      %v4817 = vpop.f32.mrf.mxu0
      %v4818 = vadd.f32 0.0, %v4817
      %v4819 = vpop.f32.mrf.mxu0
      %v4820 = vpop.f32.mrf.mxu0
      %v4821 = vadd.f32 0.0, %v4820
      %v4822 = vpop.f32.mrf.mxu0
      %4823 = vmatprep.mubr.bf16.mxu0 0
      %4824 = vmatmul.mubr.bf16.gmra.mxu0 %v4670
      %v4825 = vpop.f32.mrf.mxu0
      %v4826 = vadd.f32 0.0, %v4825
      %v4827 = vpop.f32.mrf.mxu0
      %v4828 = vpop.f32.mrf.mxu0
      %v4829 = vadd.f32 0.0, %v4828
      %v4830 = vpop.f32.mrf.mxu0
      %4831 = vmatprep.mubr.bf16.mxu0 0
      %4832 = vmatmul.mubr.bf16.gmra.mxu0 %v4673
      %v4833 = vpop.f32.mrf.mxu0
      %v4834 = vadd.f32 0.0, %v4833
      %v4835 = vpop.f32.mrf.mxu0
      %v4836 = vpop.f32.mrf.mxu0
      %v4837 = vadd.f32 0.0, %v4836
      %v4838 = vpop.f32.mrf.mxu0
      %4839 = vdwg.mxu0
      %v4840 = vpack.c.bf16 %v4717, %v4714
      %v4841 = vpack.c.bf16 %v4725, %v4722
      %v4842 = vpack.c.bf16 %v4733, %v4730
      %v4843 = vpack.c.bf16 %v4741, %v4738
      %v4844 = vpack.c.bf16 %v4749, %v4746
      %v4845 = vpack.c.bf16 %v4757, %v4754
      %v4846 = vpack.c.bf16 %v4765, %v4762
      %v4847 = vpack.c.bf16 %v4773, %v4770
      %v4848 = vpack.c.bf16 %v4781, %v4778
      %v4849 = vpack.c.bf16 %v4789, %v4786
      %v4850 = vpack.c.bf16 %v4797, %v4794
      %v4851 = vpack.c.bf16 %v4805, %v4802
      %v4852 = vpack.c.bf16 %v4813, %v4810
      %v4853 = vpack.c.bf16 %v4821, %v4818
      %v4854 = vpack.c.bf16 %v4829, %v4826
      %v4855 = vpack.c.bf16 %v4837, %v4834
      %v4872 = vunpack.c.l.b16 %v4840
      %v4873 = vunpack.c.h.b16 %v4840
      %v4874 = vunpack.c.l.b16 %v4841
      %v4875 = vunpack.c.h.b16 %v4841
      %v4876 = vunpack.c.l.b16 %v4842
      %v4877 = vunpack.c.h.b16 %v4842
      %v4878 = vunpack.c.l.b16 %v4843
      %v4879 = vunpack.c.h.b16 %v4843
      %v4880 = vunpack.c.l.b16 %v4844
      %v4881 = vunpack.c.h.b16 %v4844
      %v4882 = vunpack.c.l.b16 %v4845
      %v4883 = vunpack.c.h.b16 %v4845
      %v4884 = vunpack.c.l.b16 %v4846
      %v4885 = vunpack.c.h.b16 %v4846
      %v4886 = vunpack.c.l.b16 %v4847
      %v4887 = vunpack.c.h.b16 %v4847
      %v4888 = vunpack.c.l.b16 %v4848
      %v4889 = vunpack.c.h.b16 %v4848
      %v4890 = vunpack.c.l.b16 %v4849
      %v4891 = vunpack.c.h.b16 %v4849
      %v4892 = vunpack.c.l.b16 %v4850
      %v4893 = vunpack.c.h.b16 %v4850
      %v4894 = vunpack.c.l.b16 %v4851
      %v4895 = vunpack.c.h.b16 %v4851
      %v4896 = vunpack.c.l.b16 %v4852
      %v4897 = vunpack.c.h.b16 %v4852
      %v4898 = vunpack.c.l.b16 %v4853
      %v4899 = vunpack.c.h.b16 %v4853
      %v4900 = vunpack.c.l.b16 %v4854
      %v4901 = vunpack.c.h.b16 %v4854
      %v4902 = vunpack.c.l.b16 %v4855
      %v4903 = vunpack.c.h.b16 %v4855
      %v4904 = vpack.c.b16 %v4872, %v4872
      %v4905 = vpack.c.b16 %v4873, %v4873
      %v4906 = vpack.c.b16 %v4874, %v4874
      %v4907 = vpack.c.b16 %v4875, %v4875
      %v4908 = vpack.c.b16 %v4876, %v4876
      %v4909 = vpack.c.b16 %v4877, %v4877
      %v4910 = vpack.c.b16 %v4878, %v4878
      %v4911 = vpack.c.b16 %v4879, %v4879
      %v4912 = vpack.c.b16 %v4880, %v4880
      %v4913 = vpack.c.b16 %v4881, %v4881
      %v4914 = vpack.c.b16 %v4882, %v4882
      %v4915 = vpack.c.b16 %v4883, %v4883
      %v4916 = vpack.c.b16 %v4884, %v4884
      %v4917 = vpack.c.b16 %v4885, %v4885
      %v4918 = vpack.c.b16 %v4886, %v4886
      %v4919 = vpack.c.b16 %v4887, %v4887
      %v4920 = vpack.c.b16 %v4888, %v4888
      %v4921 = vpack.c.b16 %v4889, %v4889
      %v4922 = vpack.c.b16 %v4890, %v4890
      %v4923 = vpack.c.b16 %v4891, %v4891
      %v4924 = vpack.c.b16 %v4892, %v4892
      %v4925 = vpack.c.b16 %v4893, %v4893
      %v4926 = vpack.c.b16 %v4894, %v4894
      %v4927 = vpack.c.b16 %v4895, %v4895
      %v4928 = vpack.c.b16 %v4896, %v4896
      %v4929 = vpack.c.b16 %v4897, %v4897
      %v4930 = vpack.c.b16 %v4898, %v4898
      %v4931 = vpack.c.b16 %v4899, %v4899
      %v4932 = vpack.c.b16 %v4900, %v4900
      %v4933 = vpack.c.b16 %v4901, %v4901
      %v4934 = vpack.c.b16 %v4902, %v4902
      %v4935 = vpack.c.b16 %v4903, %v4903
      %4968 = vst.msk [vmem:[%s452] sm:$0xf] %vm1119, %v4904
      %4969 = vst.msk [vmem:[%s452 + $0x4] sm:$0xf] %vm1119, %v4905
      %4970 = vst.msk [vmem:[%s452 + $0x8] sm:$0xf] %vm1119, %v4906
      %4971 = vst.msk [vmem:[%s452 + $0xc] sm:$0xf] %vm1119, %v4907
      %4972 = vst.msk [vmem:[%s452 + $0x10] sm:$0xf] %vm1119, %v4908
      %4973 = vst.msk [vmem:[%s452 + $0x14] sm:$0xf] %vm1119, %v4909
      %4974 = vst.msk [vmem:[%s452 + $0x18] sm:$0xf] %vm1119, %v4910
      %4975 = vst.msk [vmem:[%s452 + $0x1c] sm:$0xf] %vm1119, %v4911
      %4976 = vst.msk [vmem:[%s452 + $0x20] sm:$0xf] %vm1119, %v4912
      %4977 = vst.msk [vmem:[%s452 + $0x24] sm:$0xf] %vm1119, %v4913
      %4978 = vst.msk [vmem:[%s452 + $0x28] sm:$0xf] %vm1119, %v4914
      %4979 = vst.msk [vmem:[%s452 + $0x2c] sm:$0xf] %vm1119, %v4915
      %4980 = vst.msk [vmem:[%s452 + $0x30] sm:$0xf] %vm1119, %v4916
      %4981 = vst.msk [vmem:[%s452 + $0x34] sm:$0xf] %vm1119, %v4917
      %4982 = vst.msk [vmem:[%s452 + $0x38] sm:$0xf] %vm1119, %v4918
      %4983 = vst.msk [vmem:[%s452 + $0x3c] sm:$0xf] %vm1119, %v4919
      %4984 = vst.msk [vmem:[%s452 + $0x40] sm:$0xf] %vm1119, %v4920
      %4985 = vst.msk [vmem:[%s452 + $0x44] sm:$0xf] %vm1119, %v4921
      %4986 = vst.msk [vmem:[%s452 + $0x48] sm:$0xf] %vm1119, %v4922
      %4987 = vst.msk [vmem:[%s452 + $0x4c] sm:$0xf] %vm1119, %v4923
      %4988 = vst.msk [vmem:[%s452 + $0x50] sm:$0xf] %vm1119, %v4924
      %4989 = vst.msk [vmem:[%s452 + $0x54] sm:$0xf] %vm1119, %v4925
      %4990 = vst.msk [vmem:[%s452 + $0x58] sm:$0xf] %vm1119, %v4926
      %4991 = vst.msk [vmem:[%s452 + $0x5c] sm:$0xf] %vm1119, %v4927
      %4992 = vst.msk [vmem:[%s452 + $0x60] sm:$0xf] %vm1119, %v4928
      %4993 = vst.msk [vmem:[%s452 + $0x64] sm:$0xf] %vm1119, %v4929
      %4994 = vst.msk [vmem:[%s452 + $0x68] sm:$0xf] %vm1119, %v4930
      %4995 = vst.msk [vmem:[%s452 + $0x6c] sm:$0xf] %vm1119, %v4931
      %4996 = vst.msk [vmem:[%s452 + $0x70] sm:$0xf] %vm1119, %v4932
      %4997 = vst.msk [vmem:[%s452 + $0x74] sm:$0xf] %vm1119, %v4933
      %4998 = vst.msk [vmem:[%s452 + $0x78] sm:$0xf] %vm1119, %v4934
      %4999 = vst.msk [vmem:[%s452 + $0x7c] sm:$0xf] %vm1119, %v4935
      %vm5000 = vcmask 31744
      %v5001 = vsel %vm5000, %v4714, 0.0
      %v5002 = vsel %vm5000, %v4717, 0.0
      %v5003 = vadd.f32 %v5001, %v5002
      %v5004 = vsel %vm5000, %v4722, 0.0
      %v5005 = vadd.f32 %v5003, %v5004
      %v5006 = vsel %vm5000, %v4725, 0.0
      %v5007 = vadd.f32 %v5005, %v5006
      %v5008 = vsel %vm5000, %v4730, 0.0
      %v5009 = vadd.f32 %v5007, %v5008
      %v5010 = vsel %vm5000, %v4733, 0.0
      %v5011 = vadd.f32 %v5009, %v5010
      %v5012 = vsel %vm5000, %v4738, 0.0
      %v5013 = vadd.f32 %v5011, %v5012
      %v5014 = vsel %vm5000, %v4741, 0.0
      %v5015 = vadd.f32 %v5013, %v5014
      %v5016 = vsel %vm5000, %v4746, 0.0
      %v5017 = vadd.f32 %v5015, %v5016
      %v5018 = vsel %vm5000, %v4749, 0.0
      %v5019 = vadd.f32 %v5017, %v5018
      %v5020 = vsel %vm5000, %v4754, 0.0
      %v5021 = vadd.f32 %v5019, %v5020
      %v5022 = vsel %vm5000, %v4757, 0.0
      %v5023 = vadd.f32 %v5021, %v5022
      %v5024 = vsel %vm5000, %v4762, 0.0
      %v5025 = vadd.f32 %v5023, %v5024
      %v5026 = vsel %vm5000, %v4765, 0.0
      %v5027 = vadd.f32 %v5025, %v5026
      %v5028 = vsel %vm5000, %v4770, 0.0
      %v5029 = vadd.f32 %v5027, %v5028
      %v5030 = vsel %vm5000, %v4773, 0.0
      %v5031 = vadd.f32 %v5029, %v5030
      %v5032 = vsel %vm5000, %v4778, 0.0
      %v5033 = vadd.f32 %v5031, %v5032
      %v5034 = vsel %vm5000, %v4781, 0.0
      %v5035 = vadd.f32 %v5033, %v5034
      %v5036 = vsel %vm5000, %v4786, 0.0
      %v5037 = vadd.f32 %v5035, %v5036
      %v5038 = vsel %vm5000, %v4789, 0.0
      %v5039 = vadd.f32 %v5037, %v5038
      %v5040 = vsel %vm5000, %v4794, 0.0
      %v5041 = vadd.f32 %v5039, %v5040
      %v5042 = vsel %vm5000, %v4797, 0.0
      %v5043 = vadd.f32 %v5041, %v5042
      %v5044 = vsel %vm5000, %v4802, 0.0
      %v5045 = vadd.f32 %v5043, %v5044
      %v5046 = vsel %vm5000, %v4805, 0.0
      %v5047 = vadd.f32 %v5045, %v5046
      %v5048 = vsel %vm5000, %v4810, 0.0
      %v5049 = vadd.f32 %v5047, %v5048
      %v5050 = vsel %vm5000, %v4813, 0.0
      %v5051 = vadd.f32 %v5049, %v5050
      %v5052 = vsel %vm5000, %v4818, 0.0
      %v5053 = vadd.f32 %v5051, %v5052
      %v5054 = vsel %vm5000, %v4821, 0.0
      %v5055 = vadd.f32 %v5053, %v5054
      %v5056 = vsel %vm5000, %v4826, 0.0
      %v5057 = vadd.f32 %v5055, %v5056
      %v5058 = vsel %vm5000, %v4829, 0.0
      %v5059 = vadd.f32 %v5057, %v5058
      %v5060 = vsel %vm5000, %v4834, 0.0
      %v5061 = vadd.f32 %v5059, %v5060
      %v5062 = vsel %vm5000, %v4837, 0.0
      %v5063 = vadd.f32 %v5061, %v5062
      %v5064 = vrot.slane %v5063, 4
      %v5065 = vadd.f32 %v5063, %v5064
      %v5066 = vrot.slane %v5065, 2
      %v5067 = vadd.f32 %v5065, %v5066
      %v5068 = vrot.slane %v5067, 1
      %v5069 = vadd.f32 %v5067, %v5068
      %v5070 = vmul.f32 %v5069, 0.00390625
      %v5071 = vsub.f32 %v4714, %v5070
      %v5072 = vsub.f32 %v4717, %v5070
      %v5073 = vsub.f32 %v4722, %v5070
      %v5074 = vsub.f32 %v4725, %v5070
      %v5075 = vsub.f32 %v4730, %v5070
      %v5076 = vsub.f32 %v4733, %v5070
      %v5077 = vsub.f32 %v4738, %v5070
      %v5078 = vsub.f32 %v4741, %v5070
      %v5079 = vsub.f32 %v4746, %v5070
      %v5080 = vsub.f32 %v4749, %v5070
      %v5081 = vsub.f32 %v4754, %v5070
      %v5082 = vsub.f32 %v4757, %v5070
      %v5083 = vsub.f32 %v4762, %v5070
      %v5084 = vsub.f32 %v4765, %v5070
      %v5085 = vsub.f32 %v4770, %v5070
      %v5086 = vsub.f32 %v4773, %v5070
      %v5087 = vsub.f32 %v4778, %v5070
      %v5088 = vsub.f32 %v4781, %v5070
      %v5089 = vsub.f32 %v4786, %v5070
      %v5090 = vsub.f32 %v4789, %v5070
      %v5091 = vsub.f32 %v4794, %v5070
      %v5092 = vsub.f32 %v4797, %v5070
      %v5093 = vsub.f32 %v4802, %v5070
      %v5094 = vsub.f32 %v4805, %v5070
      %v5095 = vsub.f32 %v4810, %v5070
      %v5096 = vsub.f32 %v4813, %v5070
      %v5097 = vsub.f32 %v4818, %v5070
      %v5098 = vsub.f32 %v4821, %v5070
      %v5099 = vsub.f32 %v4826, %v5070
      %v5100 = vsub.f32 %v4829, %v5070
      %v5101 = vsub.f32 %v4834, %v5070
      %v5102 = vsub.f32 %v4837, %v5070
      %v5103 = vmul.f32 %v5071, %v5071
      %v5104 = vmul.f32 %v5072, %v5072
      %v5105 = vmul.f32 %v5073, %v5073
      %v5106 = vmul.f32 %v5074, %v5074
      %v5107 = vmul.f32 %v5075, %v5075
      %v5108 = vmul.f32 %v5076, %v5076
      %v5109 = vmul.f32 %v5077, %v5077
      %v5110 = vmul.f32 %v5078, %v5078
      %v5111 = vmul.f32 %v5079, %v5079
      %v5112 = vmul.f32 %v5080, %v5080
      %v5113 = vmul.f32 %v5081, %v5081
      %v5114 = vmul.f32 %v5082, %v5082
      %v5115 = vmul.f32 %v5083, %v5083
      %v5116 = vmul.f32 %v5084, %v5084
      %v5117 = vmul.f32 %v5085, %v5085
      %v5118 = vmul.f32 %v5086, %v5086
      %v5119 = vmul.f32 %v5087, %v5087
      %v5120 = vmul.f32 %v5088, %v5088
      %v5121 = vmul.f32 %v5089, %v5089
      %v5122 = vmul.f32 %v5090, %v5090
      %v5123 = vmul.f32 %v5091, %v5091
      %v5124 = vmul.f32 %v5092, %v5092
      %v5125 = vmul.f32 %v5093, %v5093
      %v5126 = vmul.f32 %v5094, %v5094
      %v5127 = vmul.f32 %v5095, %v5095
      %v5128 = vmul.f32 %v5096, %v5096
      %v5129 = vmul.f32 %v5097, %v5097
      %v5130 = vmul.f32 %v5098, %v5098
      %v5131 = vmul.f32 %v5099, %v5099
      %v5132 = vmul.f32 %v5100, %v5100
      %v5133 = vmul.f32 %v5101, %v5101
      %v5134 = vmul.f32 %v5102, %v5102
      %v5135 = vsel %vm5000, %v5103, 0.0
      %v5136 = vsel %vm5000, %v5104, 0.0
      %v5137 = vadd.f32 %v5135, %v5136
      %v5138 = vsel %vm5000, %v5105, 0.0
      %v5139 = vadd.f32 %v5137, %v5138
      %v5140 = vsel %vm5000, %v5106, 0.0
      %v5141 = vadd.f32 %v5139, %v5140
      %v5142 = vsel %vm5000, %v5107, 0.0
      %v5143 = vadd.f32 %v5141, %v5142
      %v5144 = vsel %vm5000, %v5108, 0.0
      %v5145 = vadd.f32 %v5143, %v5144
      %v5146 = vsel %vm5000, %v5109, 0.0
      %v5147 = vadd.f32 %v5145, %v5146
      %v5148 = vsel %vm5000, %v5110, 0.0
      %v5149 = vadd.f32 %v5147, %v5148
      %v5150 = vsel %vm5000, %v5111, 0.0
      %v5151 = vadd.f32 %v5149, %v5150
      %v5152 = vsel %vm5000, %v5112, 0.0
      %v5153 = vadd.f32 %v5151, %v5152
      %v5154 = vsel %vm5000, %v5113, 0.0
      %v5155 = vadd.f32 %v5153, %v5154
      %v5156 = vsel %vm5000, %v5114, 0.0
      %v5157 = vadd.f32 %v5155, %v5156
      %v5158 = vsel %vm5000, %v5115, 0.0
      %v5159 = vadd.f32 %v5157, %v5158
      %v5160 = vsel %vm5000, %v5116, 0.0
      %v5161 = vadd.f32 %v5159, %v5160
      %v5162 = vsel %vm5000, %v5117, 0.0
      %v5163 = vadd.f32 %v5161, %v5162
      %v5164 = vsel %vm5000, %v5118, 0.0
      %v5165 = vadd.f32 %v5163, %v5164
      %v5166 = vsel %vm5000, %v5119, 0.0
      %v5167 = vadd.f32 %v5165, %v5166
      %v5168 = vsel %vm5000, %v5120, 0.0
      %v5169 = vadd.f32 %v5167, %v5168
      %v5170 = vsel %vm5000, %v5121, 0.0
      %v5171 = vadd.f32 %v5169, %v5170
      %v5172 = vsel %vm5000, %v5122, 0.0
      %v5173 = vadd.f32 %v5171, %v5172
      %v5174 = vsel %vm5000, %v5123, 0.0
      %v5175 = vadd.f32 %v5173, %v5174
      %v5176 = vsel %vm5000, %v5124, 0.0
      %v5177 = vadd.f32 %v5175, %v5176
      %v5178 = vsel %vm5000, %v5125, 0.0
      %v5179 = vadd.f32 %v5177, %v5178
      %v5180 = vsel %vm5000, %v5126, 0.0
      %v5181 = vadd.f32 %v5179, %v5180
      %v5182 = vsel %vm5000, %v5127, 0.0
      %v5183 = vadd.f32 %v5181, %v5182
      %v5184 = vsel %vm5000, %v5128, 0.0
      %v5185 = vadd.f32 %v5183, %v5184
      %v5186 = vsel %vm5000, %v5129, 0.0
      %v5187 = vadd.f32 %v5185, %v5186
      %v5188 = vsel %vm5000, %v5130, 0.0
      %v5189 = vadd.f32 %v5187, %v5188
      %v5190 = vsel %vm5000, %v5131, 0.0
      %v5191 = vadd.f32 %v5189, %v5190
      %v5192 = vsel %vm5000, %v5132, 0.0
      %v5193 = vadd.f32 %v5191, %v5192
      %v5194 = vsel %vm5000, %v5133, 0.0
      %v5195 = vadd.f32 %v5193, %v5194
      %v5196 = vsel %vm5000, %v5134, 0.0
      %v5197 = vadd.f32 %v5195, %v5196
      %v5198 = vrot.slane %v5197, 4
      %v5199 = vadd.f32 %v5197, %v5198
      %v5200 = vrot.slane %v5199, 2
      %v5201 = vadd.f32 %v5199, %v5200
      %v5202 = vrot.slane %v5201, 1
      %v5203 = vadd.f32 %v5201, %v5202
      // Predicated region
      $region49: #{resblock_forward.4} parent=43 // pred_check
        %p5204 = pneg %p459
      $region50: #{resblock_forward.4} parent=43 // pred_check_branch
        %5206 = sbr.rel (%p5204) target = $region52
      $region51: #{resblock_forward.4} parent=43 // pred_region
        %vm5207 = vcmask 24576
        %5208 = vst.msk [vmem:[%s457] sm:$0x1] %vm5207, %v5070
        %5209 = vst.msk [vmem:[%s457 + $0x1] sm:$0x1] %vm5207, %v5203
      $region52: #{resblock_forward.4} parent=43 // pred_fallthru
        _
      // Predicated region
      $region53: #{resblock_forward.4} parent=43 // pred_check
        %p5210 = pneg %p1267
      $region54: #{resblock_forward.4} parent=43 // pred_check_branch
        %5212 = sbr.rel (%p5210) target = $region56
      $region55: #{resblock_forward.4} parent=43 // pred_region
        %v5213 = vld [vmem:[%s457] sm:$0x1]
        %v5214 = vld [vmem:[%s457 + $0x1] sm:$0x1]
        %s5215 = smul.u32 %s24, 256
        %s5216 = scvt.s32.f32 %s5215
        %s5217 = sadd.f32 %s5216, 256.0
        %v5218 = vsub.f32 %v5070, %v5213
        %v5219 = vstv %s5217
        %v5220 = vrcp.pop %v5219
        %s5221 = vtos %v5220
        %s5222 = smul.f32 256.0, %s5221
        %v5223 = vstv %s5222
        %v5224 = vmul.f32 %v5218, %v5223
        %v5225 = vadd.f32 %v5213, %v5224
        %vm5226 = vcmask 24576
        %5227 = vst.msk [vmem:[%s457] sm:$0x1] %vm5226, %v5225
        %v5228 = vadd.f32 %v5214, %v5203
        %v5229 = vmul.f32 %v5218, %v5218
        %s5230 = smul.f32 %s5216, 256.0
        %v5231 = vstv %s5217
        %v5232 = vrcp.pop %v5231
        %s5233 = vtos %v5232
        %s5234 = smul.f32 %s5230, %s5233
        %v5235 = vstv %s5234
        %v5236 = vmul.f32 %v5229, %v5235
        %v5237 = vadd.f32 %v5228, %v5236
        %5238 = vst.msk [vmem:[%s457 + $0x1] sm:$0x1] %vm5226, %v5237
      $region56: #{resblock_forward.4} parent=43 // pred_fallthru
        _
      %s5239 = smul.u32 16, %s24
      %p5240 = scmp.lt.s32.totalorder %s23, 1
      %s5241 = scalar_select %p5240, %s23, 1
      %p5242 = scmp.lt.s32.totalorder %s5239, 15
      %s5243 = scalar_select %p5242, %s5239, 15
      %s5244 = smul.addr %s5243, 2
      %s5245 = smul.addr %s5241, 32
      %s5246 = sadd.s32 %s5244, %s5245
      %s5247 = smul.addr %s5246, 4
      %s5248 = scalar_lea.vmem %s6, %s5247
      %p5249 = scmp.lt.s32.totalorder %s23, 1
      %s5250 = scalar_select %p5249, %s23, 1
      %s5251 = smul.addr %s5250, 2
      %s5252 = scalar_lea.vmem %s7, %s5251
      // Predicated region
      $region57: #{resblock_forward.4} parent=43 // pred_check
        %p5253 = pneg %p214
      $region58: #{resblock_forward.4} parent=43 // pred_check_branch
        %5255 = sbr.rel (%p5253) target = $region60
      $region59: #{resblock_forward.4} parent=43 // pred_region
        %s5256 = smul.u32 16, %s24
      $region60: #{resblock_forward.4} parent=43 // pred_fallthru
        _
      // Predicated region
      $region61: #{resblock_forward.4} parent=43 // pred_check
        %p5257 = pneg %p240
      $region62: #{resblock_forward.4} parent=43 // pred_check_branch
        %5259 = sbr.rel (%p5257) target = $region64
      $region63: #{resblock_forward.4} parent=43 // pred_region
        _
      $region64: #{resblock_forward.4} parent=43 // pred_fallthru
        _
    $region44: #{resblock_forward.4} parent=5 // pred_fallthru
      _
    %p5260 = scmp.le.s32.totalorder 2, %s14
    // Predicated region
    $region65: #{resblock_forward.4} parent=5 // pred_check
      %p5261 = pneg %p5260
    $region66: #{resblock_forward.4} parent=5 // pred_check_branch
      %5263 = sbr.rel (%p5261) target = $region68
    $region67: #{resblock_forward.4} parent=5 // pred_region
      %s5264 = ssub.s32 %s14, 2
      // Predicated region
      $region69: #{resblock_forward.4} parent=67 // pred_check
        %p5265 = pneg %p220
      $region70: #{resblock_forward.4} parent=67 // pred_check_branch
        %5267 = sbr.rel (%p5265) target = $region72
      $region71: #{resblock_forward.4} parent=67 // pred_region
        %s5268 = smul.u32 16, %s26
        %p5269 = scmp.lt.s32.totalorder %s25, 1
        %s5270 = scalar_select %p5269, %s25, 1
        %p5271 = scmp.lt.s32.totalorder %s5268, 15
        %s5272 = scalar_select %p5271, %s5268, 15
        %s5273 = smul.addr %s5272, 2
        %s5274 = smul.addr %s5270, 32
        %s5275 = sadd.s32 %s5273, %s5274
        %s5276 = smul.addr %s5275, 4
        %s5277 = scalar_lea.vmem %s6, %s5276
      $region72: #{resblock_forward.4} parent=67 // pred_fallthru
        _
      // Predicated region
      $region73: #{resblock_forward.4} parent=67 // pred_check
        %p5278 = pneg %p246
      $region74: #{resblock_forward.4} parent=67 // pred_check_branch
        %5280 = sbr.rel (%p5278) target = $region76
      $region75: #{resblock_forward.4} parent=67 // pred_region
        %p5281 = scmp.lt.s32.totalorder %s25, 1
        %s5282 = scalar_select %p5281, %s25, 1
        %s5283 = smul.addr %s5282, 2
        %s5284 = scalar_lea.vmem %s7, %s5283
      $region76: #{resblock_forward.4} parent=67 // pred_fallthru
        _
    $region68: #{resblock_forward.4} parent=5 // pred_fallthru
      _
  $region6: #{resblock_forward.4} parent=0 // loop_footer
    %s18 = sadd.s32 1, %s14
  $region7: #{resblock_forward.4} parent=0 // loop_footer_branch
    %13 = sbr.rel target = $region3
  $region8: #{resblock_forward.4} parent=0 // loop_exit
    _

// kernel: resblock_forward.3
$region0: #{resblock_forward.3}
  #allocation0 [shape = 'u32[]', space=smem, size = 0x4, offset = 0x4, fixed_abs, tag = 'smem constant byte address 0x4 - core index']
  #allocation1 [shape = 'u32[144,128]{1,0:T(1,128)}', space=vmem, size = 0x12000, scoped, tag = 'internal scratch']
  #allocation2 [shape = 'bf16[18,18,4]{2,1,0:T(8,128)(2,1)}', space=vmem, size = 0x1b000, scoped, tag = 'scratch operand']
  #allocation3 [shape = 'bf16[256,36]{1,0:T(8,128)(2,1)}', space=vmem, size = 0x10000, scoped, tag = 'scratch operand']
  %s0 = inlined_call_operand.vmem [shape: f32[2,16,16,4], index: 0, kind: input, shape index: {}, may-alias: {0,1,2}]
  %s1 = inlined_call_operand.vmem [shape: f32[2,16,16,4], index: 1, kind: input, shape index: {}, may-alias: {0,1,2}]
  %s2 = inlined_call_operand.vmem [shape: f32[2,16,16,4], index: 2, kind: input, shape index: {}, may-alias: {0,1,2}]
  %s3 = inlined_call_operand.vmem [shape: f32[1,4], index: 3, kind: input, shape index: {}]
  %s4 = inlined_call_operand.vmem [shape: f32[1,4], index: 4, kind: input, shape index: {}]
  %s5 = inlined_call_operand.vmem [shape: bf16[36,4], index: 5, kind: input, shape index: {}]
  %s6 = inlined_call_operand.vmem [shape: bf16[2,16,16,4], index: 6, kind: output, shape index: {0}]
  %s7 = inlined_call_operand.vmem [shape: f32[2,2,4], index: 7, kind: output, shape index: {1}]
  %8 = xla_tuple %s6, %s7
  %s9 = sld [smem:[#allocation0]]
  $region77: #{resblock_forward.3} parent=0
    _
  %s11 = ssub.s32 1, %s9
  %s12 = scalar_select 0, %s11, %s9
  loop: start=0, step=1, limit=4
  $region2: #{resblock_forward.3} parent=0 // loop_pre_header
    _
  $region3: #{resblock_forward.3} parent=0 // loop_header
    %s14 = sphi 0, %s18
    %p15 = scmp.ge.s32.totalorder %s14, 4
    %s21 = sphi 0, %s33
    %s22 = sphi 0, %s29
    %s23 = sphi 0, %s21
    %s24 = sphi 0, %s22
    %s25 = sphi 0, %s23
    %s26 = sphi 0, %s24
    %s38 = sphi 0, %s40
    %s41 = sphi 0, %s38
    %s42 = sphi 0, %s41
    %s58 = sphi 0, %s42
    %s74 = sphi 0, %s76
    %s77 = sphi 0, %s74
    %s78 = sphi 0, %s77
    %s94 = sphi 0, %s78
    %s110 = sphi 0, %s112
    %s113 = sphi 0, %s110
    %s114 = sphi 0, %s113
    %s130 = sphi 0, %s114
    %s134 = sphi 0, %s134
    %s136 = sphi 0, %s134
    %s137 = sphi 0, %s136
    %s151 = sphi 0, %s137
    %s155 = sphi 0, %s155
    %s157 = sphi 0, %s155
    %s158 = sphi 0, %s157
    %s172 = sphi 0, %s158
    %s176 = sphi 0, %s176
    %s178 = sphi 0, %s176
    %s179 = sphi 0, %s178
    %s193 = sphi 0, %s179
    %s201 = sphi 0, %s203
    %s204 = sphi 0, %s201
    %s205 = sphi 0, %s204
    %s221 = sphi 0, %s205
    %s227 = sphi 0, %s229
    %s230 = sphi 0, %s227
    %s231 = sphi 0, %s230
    %s247 = sphi 0, %s231
  $region4: #{resblock_forward.3} parent=0 // loop_header_branch
    %17 = sbr.rel (%p15) target = $region8
  $region5: #{resblock_forward.3} parent=0 // loop_body
    %s19 = ssub.s32 %s14, 1
    %s20 = ssub.s32 %s14, 2
    %s27 = sadd.s32 1, %s22
    %p28 = scmp.ge.s32.totalorder %s27, 1
    %s29 = scalar_select %p28, 0, %s27
    %s30 = sadd.s32 1, %s21
    %s31 = scalar_select %p28, %s30, %s21
    %p32 = scmp.ge.s32.totalorder %s31, 2
    %s33 = scalar_select %p32, 0, %s31
    %s34 = ssub.s32 %s21, %s33
    %s35 = ssub.s32 %s22, %s29
    %s36 = sor.u32 %s34, %s35
    %p37 = scmp.eq.s32.totalorder %s36, 0
    %s39 = sadd.s32 %s38, 1
    %s40 = scalar_select %p37, %s38, %s39
    %p43 = pneg %p37
    %p44 = scmp.eq.s32.totalorder %s14, 1
    %p45 = por %p43, %p44
    %p46 = scmp.ne.s32.totalorder %s38, %s41
    %p47 = scmp.eq.s32.totalorder %s14, 0
    %p48 = por %p46, %p47
    %p49 = scmp.ne.s32.totalorder %s38, %s41
    %p50 = scmp.eq.s32.totalorder %s19, 1
    %p51 = por %p49, %p50
    %p52 = scmp.ne.s32.totalorder %s41, %s42
    %p53 = scmp.eq.s32.totalorder %s19, 0
    %p54 = por %p52, %p53
    %p55 = scmp.ne.s32.totalorder %s41, %s42
    %p56 = scmp.eq.s32.totalorder %s20, 1
    %p57 = por %p55, %p56
    %p59 = scmp.ne.s32.totalorder %s42, %s58
    %p60 = scmp.eq.s32.totalorder %s20, 0
    %p61 = por %p59, %p60
    %s62 = smul.u32 %s22, 16
    %s63 = ssub.s32 %s62, 1
    %p64 = scmp.gt.s32.totalorder %s63, 0
    %s65 = scalar_select %p64, %s63, 0
    %s66 = smul.u32 %s29, 16
    %s67 = ssub.s32 %s66, 1
    %p68 = scmp.gt.s32.totalorder %s67, 0
    %s69 = scalar_select %p68, %s67, 0
    %s70 = ssub.s32 %s21, %s33
    %s71 = ssub.s32 %s65, %s69
    %s72 = sor.u32 %s70, %s71
    %p73 = scmp.eq.s32.totalorder %s72, 0
    %s75 = sadd.s32 %s74, 1
    %s76 = scalar_select %p73, %s74, %s75
    %p79 = pneg %p73
    %p80 = scmp.eq.s32.totalorder %s14, 1
    %p81 = por %p79, %p80
    %p82 = scmp.ne.s32.totalorder %s74, %s77
    %p83 = scmp.eq.s32.totalorder %s14, 0
    %p84 = por %p82, %p83
    %p85 = scmp.ne.s32.totalorder %s74, %s77
    %p86 = scmp.eq.s32.totalorder %s19, 1
    %p87 = por %p85, %p86
    %p88 = scmp.ne.s32.totalorder %s77, %s78
    %p89 = scmp.eq.s32.totalorder %s19, 0
    %p90 = por %p88, %p89
    %p91 = scmp.ne.s32.totalorder %s77, %s78
    %p92 = scmp.eq.s32.totalorder %s20, 1
    %p93 = por %p91, %p92
    %p95 = scmp.ne.s32.totalorder %s78, %s94
    %p96 = scmp.eq.s32.totalorder %s20, 0
    %p97 = por %p95, %p96
    %s98 = sadd.s32 %s22, 1
    %s99 = smul.u32 %s98, 16
    %p100 = scmp.lt.s32.totalorder %s99, 15
    %s101 = scalar_select %p100, %s99, 15
    %s102 = sadd.s32 %s29, 1
    %s103 = smul.u32 %s102, 16
    %p104 = scmp.lt.s32.totalorder %s103, 15
    %s105 = scalar_select %p104, %s103, 15
    %s106 = ssub.s32 %s21, %s33
    %s107 = ssub.s32 %s101, %s105
    %s108 = sor.u32 %s106, %s107
    %p109 = scmp.eq.s32.totalorder %s108, 0
    %s111 = sadd.s32 %s110, 1
    %s112 = scalar_select %p109, %s110, %s111
    %p115 = pneg %p109
    %p116 = scmp.eq.s32.totalorder %s14, 1
    %p117 = por %p115, %p116
    %p118 = scmp.ne.s32.totalorder %s110, %s113
    %p119 = scmp.eq.s32.totalorder %s14, 0
    %p120 = por %p118, %p119
    %p121 = scmp.ne.s32.totalorder %s110, %s113
    %p122 = scmp.eq.s32.totalorder %s19, 1
    %p123 = por %p121, %p122
    %p124 = scmp.ne.s32.totalorder %s113, %s114
    %p125 = scmp.eq.s32.totalorder %s19, 0
    %p126 = por %p124, %p125
    %p127 = scmp.ne.s32.totalorder %s113, %s114
    %p128 = scmp.eq.s32.totalorder %s20, 1
    %p129 = por %p127, %p128
    %p131 = scmp.ne.s32.totalorder %s114, %s130
    %p132 = scmp.eq.s32.totalorder %s20, 0
    %p133 = por %p131, %p132
    %s135 = sadd.s32 %s134, 1
    %p138 = scmp.eq.s32.totalorder %s14, 1
    %p139 = scmp.ne.s32.totalorder %s134, %s136
    %p140 = scmp.eq.s32.totalorder %s14, 0
    %p141 = por %p139, %p140
    %p142 = scmp.ne.s32.totalorder %s134, %s136
    %p143 = scmp.eq.s32.totalorder %s19, 1
    %p144 = por %p142, %p143
    %p145 = scmp.ne.s32.totalorder %s136, %s137
    %p146 = scmp.eq.s32.totalorder %s19, 0
    %p147 = por %p145, %p146
    %p148 = scmp.ne.s32.totalorder %s136, %s137
    %p149 = scmp.eq.s32.totalorder %s20, 1
    %p150 = por %p148, %p149
    %p152 = scmp.ne.s32.totalorder %s137, %s151
    %p153 = scmp.eq.s32.totalorder %s20, 0
    %p154 = por %p152, %p153
    %s156 = sadd.s32 %s155, 1
    %p159 = scmp.eq.s32.totalorder %s14, 1
    %p160 = scmp.ne.s32.totalorder %s155, %s157
    %p161 = scmp.eq.s32.totalorder %s14, 0
    %p162 = por %p160, %p161
    %p163 = scmp.ne.s32.totalorder %s155, %s157
    %p164 = scmp.eq.s32.totalorder %s19, 1
    %p165 = por %p163, %p164
    %p166 = scmp.ne.s32.totalorder %s157, %s158
    %p167 = scmp.eq.s32.totalorder %s19, 0
    %p168 = por %p166, %p167
    %p169 = scmp.ne.s32.totalorder %s157, %s158
    %p170 = scmp.eq.s32.totalorder %s20, 1
    %p171 = por %p169, %p170
    %p173 = scmp.ne.s32.totalorder %s158, %s172
    %p174 = scmp.eq.s32.totalorder %s20, 0
    %p175 = por %p173, %p174
    %s177 = sadd.s32 %s176, 1
    %p180 = scmp.eq.s32.totalorder %s14, 1
    %p181 = scmp.ne.s32.totalorder %s176, %s178
    %p182 = scmp.eq.s32.totalorder %s14, 0
    %p183 = por %p181, %p182
    %p184 = scmp.ne.s32.totalorder %s176, %s178
    %p185 = scmp.eq.s32.totalorder %s19, 1
    %p186 = por %p184, %p185
    %p187 = scmp.ne.s32.totalorder %s178, %s179
    %p188 = scmp.eq.s32.totalorder %s19, 0
    %p189 = por %p187, %p188
    %p190 = scmp.ne.s32.totalorder %s178, %s179
    %p191 = scmp.eq.s32.totalorder %s20, 1
    %p192 = por %p190, %p191
    %p194 = scmp.ne.s32.totalorder %s179, %s193
    %p195 = scmp.eq.s32.totalorder %s20, 0
    %p196 = por %p194, %p195
    %s197 = ssub.s32 %s21, %s33
    %s198 = ssub.s32 %s22, %s29
    %s199 = sor.u32 %s197, %s198
    %p200 = scmp.eq.s32.totalorder %s199, 0
    %s202 = sadd.s32 %s201, 1
    %s203 = scalar_select %p200, %s201, %s202
    %p206 = pneg %p200
    %p207 = scmp.eq.s32.totalorder %s14, 1
    %p208 = por %p206, %p207
    %p209 = scmp.ne.s32.totalorder %s201, %s204
    %p210 = scmp.eq.s32.totalorder %s14, 0
    %p211 = por %p209, %p210
    %p212 = scmp.ne.s32.totalorder %s201, %s204
    %p213 = scmp.eq.s32.totalorder %s19, 1
    %p214 = por %p212, %p213
    %p215 = scmp.ne.s32.totalorder %s204, %s205
    %p216 = scmp.eq.s32.totalorder %s19, 0
    %p217 = por %p215, %p216
    %p218 = scmp.ne.s32.totalorder %s204, %s205
    %p219 = scmp.eq.s32.totalorder %s20, 1
    %p220 = por %p218, %p219
    %p222 = scmp.ne.s32.totalorder %s205, %s221
    %p223 = scmp.eq.s32.totalorder %s20, 0
    %p224 = por %p222, %p223
    %s225 = ssub.s32 %s21, %s33
    %p226 = scmp.eq.s32.totalorder %s225, 0
    %s228 = sadd.s32 %s227, 1
    %s229 = scalar_select %p226, %s227, %s228
    %p232 = pneg %p226
    %p233 = scmp.eq.s32.totalorder %s14, 1
    %p234 = por %p232, %p233
    %p235 = scmp.ne.s32.totalorder %s227, %s230
    %p236 = scmp.eq.s32.totalorder %s14, 0
    %p237 = por %p235, %p236
    %p238 = scmp.ne.s32.totalorder %s227, %s230
    %p239 = scmp.eq.s32.totalorder %s19, 1
    %p240 = por %p238, %p239
    %p241 = scmp.ne.s32.totalorder %s230, %s231
    %p242 = scmp.eq.s32.totalorder %s19, 0
    %p243 = por %p241, %p242
    %p244 = scmp.ne.s32.totalorder %s230, %s231
    %p245 = scmp.eq.s32.totalorder %s20, 1
    %p246 = por %p244, %p245
    %p248 = scmp.ne.s32.totalorder %s231, %s247
    %p249 = scmp.eq.s32.totalorder %s20, 0
    %p250 = por %p248, %p249
    %p251 = scmp.le.s32.totalorder 1, %s14
    %p252 = scmp.lt.s32.totalorder %s14, 3
    %p253 = pnand %p251, %p252
    %p254 = pneg %p253
    // Predicated region
    $region9: #{resblock_forward.3} parent=5 // pred_check
      _
    $region10: #{resblock_forward.3} parent=5 // pred_check_branch
      %256 = sbr.rel (%p253) target = $region12
    $region11: #{resblock_forward.3} parent=5 // pred_region
      %s257 = ssub.s32 %s14, 1
      // Predicated region
      $region13: #{resblock_forward.3} parent=11 // pred_check
        %p258 = pneg %p147
      $region14: #{resblock_forward.3} parent=11 // pred_check_branch
        %260 = sbr.rel (%p258) target = $region16
      $region15: #{resblock_forward.3} parent=11 // pred_region
        _
      $region16: #{resblock_forward.3} parent=11 // pred_fallthru
        _
      // Predicated region
      $region17: #{resblock_forward.3} parent=11 // pred_check
        %p261 = pneg %p168
      $region18: #{resblock_forward.3} parent=11 // pred_check_branch
        %263 = sbr.rel (%p261) target = $region20
      $region19: #{resblock_forward.3} parent=11 // pred_region
        _
      $region20: #{resblock_forward.3} parent=11 // pred_fallthru
        _
      // Predicated region
      $region21: #{resblock_forward.3} parent=11 // pred_check
        %p264 = pneg %p189
      $region22: #{resblock_forward.3} parent=11 // pred_check_branch
        %266 = sbr.rel (%p264) target = $region24
      $region23: #{resblock_forward.3} parent=11 // pred_region
        _
      $region24: #{resblock_forward.3} parent=11 // pred_fallthru
        _
    $region12: #{resblock_forward.3} parent=5 // pred_fallthru
      _
    %p267 = scmp.lt.s32.totalorder %s14, 2
    // Predicated region
    $region25: #{resblock_forward.3} parent=5 // pred_check
      %p268 = pneg %p267
    $region26: #{resblock_forward.3} parent=5 // pred_check_branch
      %270 = sbr.rel (%p268) target = $region28
    $region27: #{resblock_forward.3} parent=5 // pred_region
      // Predicated region
      $region29: #{resblock_forward.3} parent=27 // pred_check
        %p271 = pneg %p48
      $region30: #{resblock_forward.3} parent=27 // pred_check_branch
        %273 = sbr.rel (%p271) target = $region32
      $region31: #{resblock_forward.3} parent=27 // pred_region
        %s274 = smul.u32 16, %s22
        %p275 = scmp.lt.s32.totalorder %s21, 1
        %s276 = scalar_select %p275, %s21, 1
        %p277 = scmp.lt.s32.totalorder %s274, 15
        %s278 = scalar_select %p277, %s274, 15
        %s279 = smul.addr %s278, 2
        %s280 = smul.addr %s276, 32
        %s281 = sadd.s32 %s279, %s280
        %s282 = smul.addr %s281, 8
        %s283 = scalar_lea.vmem %s0, %s282
        %s284 = smul.u32 16, %s22
      $region32: #{resblock_forward.3} parent=27 // pred_fallthru
        _
      // Predicated region
      $region33: #{resblock_forward.3} parent=27 // pred_check
        %p285 = pneg %p84
      $region34: #{resblock_forward.3} parent=27 // pred_check_branch
        %287 = sbr.rel (%p285) target = $region36
      $region35: #{resblock_forward.3} parent=27 // pred_region
        %s288 = smul.u32 %s22, 16
        %s289 = ssub.s32 %s288, 1
        %p290 = scmp.gt.s32.totalorder %s289, 0
        %s291 = scalar_select %p290, %s289, 0
        %p292 = scmp.lt.s32.totalorder %s21, 1
        %s293 = scalar_select %p292, %s21, 1
        %p294 = scmp.lt.s32.totalorder %s291, 15
        %s295 = scalar_select %p294, %s291, 15
        %s296 = smul.addr %s295, 2
        %s297 = smul.addr %s293, 32
        %s298 = sadd.s32 %s296, %s297
        %s299 = smul.addr %s298, 8
        %s300 = scalar_lea.vmem %s1, %s299
        %s301 = smul.u32 %s22, 16
        %s302 = ssub.s32 %s301, 1
        %p303 = scmp.gt.s32.totalorder %s302, 0
        %s304 = scalar_select %p303, %s302, 0
      $region36: #{resblock_forward.3} parent=27 // pred_fallthru
        _
      // Predicated region
      $region37: #{resblock_forward.3} parent=27 // pred_check
        %p305 = pneg %p120
      $region38: #{resblock_forward.3} parent=27 // pred_check_branch
        %307 = sbr.rel (%p305) target = $region40
      $region39: #{resblock_forward.3} parent=27 // pred_region
        %s308 = sadd.s32 %s22, 1
        %s309 = smul.u32 %s308, 16
        %p310 = scmp.lt.s32.totalorder %s309, 15
        %s311 = scalar_select %p310, %s309, 15
        %p312 = scmp.lt.s32.totalorder %s21, 1
        %s313 = scalar_select %p312, %s21, 1
        %p314 = scmp.lt.s32.totalorder %s311, 15
        %s315 = scalar_select %p314, %s311, 15
        %s316 = smul.addr %s315, 2
        %s317 = smul.addr %s313, 32
        %s318 = sadd.s32 %s316, %s317
        %s319 = smul.addr %s318, 8
        %s320 = scalar_lea.vmem %s2, %s319
        %s321 = sadd.s32 %s22, 1
        %s322 = smul.u32 %s321, 16
        %p323 = scmp.lt.s32.totalorder %s322, 15
        %s324 = scalar_select %p323, %s322, 15
      $region40: #{resblock_forward.3} parent=27 // pred_fallthru
        _
    $region28: #{resblock_forward.3} parent=5 // pred_fallthru
      _
    %p325 = scmp.le.s32.totalorder 1, %s14
    %p326 = scmp.lt.s32.totalorder %s14, 3
    %p327 = pnand %p325, %p326
    %p328 = pneg %p327
    // Predicated region
    $region41: #{resblock_forward.3} parent=5 // pred_check
      _
    $region42: #{resblock_forward.3} parent=5 // pred_check_branch
      %330 = sbr.rel (%p327) target = $region44
    $region43: #{resblock_forward.3} parent=5 // pred_region
      %s331 = ssub.s32 %s14, 1
      %s332 = smul.u32 16, %s24
      %p333 = scmp.lt.s32.totalorder %s23, 1
      %s334 = scalar_select %p333, %s23, 1
      %p335 = scmp.lt.s32.totalorder %s332, 15
      %s336 = scalar_select %p335, %s332, 15
      %s337 = smul.addr %s336, 2
      %s338 = smul.addr %s334, 32
      %s339 = sadd.s32 %s337, %s338
      %s340 = smul.addr %s339, 8
      %s341 = scalar_lea.vmem %s0, %s340
      %p342 = pneg %p54
      %p343 = pneg %p51
      %s344 = smul.u32 %s24, 16
      %s345 = ssub.s32 %s344, 1
      %p346 = scmp.gt.s32.totalorder %s345, 0
      %s347 = scalar_select %p346, %s345, 0
      %p348 = scmp.lt.s32.totalorder %s23, 1
      %s349 = scalar_select %p348, %s23, 1
      %p350 = scmp.lt.s32.totalorder %s347, 15
      %s351 = scalar_select %p350, %s347, 15
      %s352 = smul.addr %s351, 2
      %s353 = smul.addr %s349, 32
      %s354 = sadd.s32 %s352, %s353
      %s355 = smul.addr %s354, 8
      %s356 = scalar_lea.vmem %s1, %s355
      %p357 = pneg %p90
      %p358 = pneg %p87
      %s359 = sadd.s32 %s24, 1
      %s360 = smul.u32 %s359, 16
      %p361 = scmp.lt.s32.totalorder %s360, 15
      %s362 = scalar_select %p361, %s360, 15
      %p363 = scmp.lt.s32.totalorder %s23, 1
      %s364 = scalar_select %p363, %s23, 1
      %p365 = scmp.lt.s32.totalorder %s362, 15
      %s366 = scalar_select %p365, %s362, 15
      %s367 = smul.addr %s366, 2
      %s368 = smul.addr %s364, 32
      %s369 = sadd.s32 %s367, %s368
      %s370 = smul.addr %s369, 8
      %s371 = scalar_lea.vmem %s2, %s370
      %p372 = pneg %p126
      %p373 = pneg %p123
      %p374 = pneg %p147
      %p375 = pneg %p144
      %p376 = pneg %p168
      %p377 = pneg %p165
      %p378 = pneg %p189
      %p379 = pneg %p186
      %p380 = pneg %p217
      %p381 = pneg %p214
      %s382 = smul.u32 16, %s24
      %p383 = scmp.lt.s32.totalorder %s23, 1
      %s384 = scalar_select %p383, %s23, 1
      %p385 = scmp.lt.s32.totalorder %s382, 15
      %s386 = scalar_select %p385, %s382, 15
      %s387 = smul.addr %s386, 2
      %s388 = smul.addr %s384, 32
      %s389 = sadd.s32 %s387, %s388
      %s390 = smul.addr %s389, 4
      %s391 = scalar_lea.vmem %s6, %s390
      %p392 = pneg %p243
      %p393 = pneg %p240
      %p394 = scmp.lt.s32.totalorder %s23, 1
      %s395 = scalar_select %p394, %s23, 1
      %s396 = smul.addr %s395, 2
      %s397 = scalar_lea.vmem %s7, %s396
      %s398 = smul.u32 16, %s24
      %p399 = scmp.lt.s32.totalorder %s23, 1
      %s400 = scalar_select %p399, %s23, 1
      %p401 = scmp.lt.s32.totalorder %s398, 15
      %s402 = scalar_select %p401, %s398, 15
      %s403 = smul.addr %s402, 2
      %s404 = smul.addr %s400, 32
      %s405 = sadd.s32 %s403, %s404
      %s406 = smul.addr %s405, 8
      %s407 = scalar_lea.vmem %s0, %s406
      %s408 = smul.u32 16, %s24
      %s409 = smul.u32 %s24, 16
      %s410 = ssub.s32 %s409, 1
      %p411 = scmp.gt.s32.totalorder %s410, 0
      %s412 = scalar_select %p411, %s410, 0
      %p413 = scmp.lt.s32.totalorder %s23, 1
      %s414 = scalar_select %p413, %s23, 1
      %p415 = scmp.lt.s32.totalorder %s412, 15
      %s416 = scalar_select %p415, %s412, 15
      %s417 = smul.addr %s416, 2
      %s418 = smul.addr %s414, 32
      %s419 = sadd.s32 %s417, %s418
      %s420 = smul.addr %s419, 8
      %s421 = scalar_lea.vmem %s1, %s420
      %s422 = smul.u32 %s24, 16
      %s423 = ssub.s32 %s422, 1
      %p424 = scmp.gt.s32.totalorder %s423, 0
      %s425 = scalar_select %p424, %s423, 0
      %s426 = sadd.s32 %s24, 1
      %s427 = smul.u32 %s426, 16
      %p428 = scmp.lt.s32.totalorder %s427, 15
      %s429 = scalar_select %p428, %s427, 15
      %p430 = scmp.lt.s32.totalorder %s23, 1
      %s431 = scalar_select %p430, %s23, 1
      %p432 = scmp.lt.s32.totalorder %s429, 15
      %s433 = scalar_select %p432, %s429, 15
      %s434 = smul.addr %s433, 2
      %s435 = smul.addr %s431, 32
      %s436 = sadd.s32 %s434, %s435
      %s437 = smul.addr %s436, 8
      %s438 = scalar_lea.vmem %s2, %s437
      %s439 = sadd.s32 %s24, 1
      %s440 = smul.u32 %s439, 16
      %p441 = scmp.lt.s32.totalorder %s440, 15
      %s442 = scalar_select %p441, %s440, 15
      %s443 = smul.u32 16, %s24
      %p444 = scmp.lt.s32.totalorder %s23, 1
      %s445 = scalar_select %p444, %s23, 1
      %p446 = scmp.lt.s32.totalorder %s443, 15
      %s447 = scalar_select %p446, %s443, 15
      %s448 = smul.addr %s447, 2
      %s449 = smul.addr %s445, 32
      %s450 = sadd.s32 %s448, %s449
      %s451 = smul.addr %s450, 4
      %s452 = scalar_lea.vmem %s6, %s451
      %s453 = smul.u32 16, %s24
      %p454 = scmp.lt.s32.totalorder %s23, 1
      %s455 = scalar_select %p454, %s23, 1
      %s456 = smul.addr %s455, 2
      %s457 = scalar_lea.vmem %s7, %s456
      %p459 = scmp.eq.s32.totalorder %s24, 0
      // Predicated region
      $region45: #{resblock_forward.3} parent=43 // pred_check
        %p460 = pneg %p459
      $region46: #{resblock_forward.3} parent=43 // pred_check_branch
        %462 = sbr.rel (%p460) target = $region48
      $region47: #{resblock_forward.3} parent=43 // pred_region
        %vm463 = vcmask 27648
        %464 = vst.msk [vmem:[#allocation2] sm:$0xf] %vm463, 0
        %465 = vst.msk [vmem:[#allocation2 + $0x4] sm:$0xf] %vm463, 0
        %vm466 = vcmask 24576
        %467 = vst.msk [vmem:[#allocation2 + $0x8] sm:$0x1] %vm466, 0
        %468 = vst.msk [vmem:[#allocation2 + $0xc] sm:$0xf] %vm463, 0
        %469 = vst.msk [vmem:[#allocation2 + $0x10] sm:$0xf] %vm463, 0
        %470 = vst.msk [vmem:[#allocation2 + $0x14] sm:$0x1] %vm466, 0
        %471 = vst.msk [vmem:[#allocation2 + $0x18] sm:$0xf] %vm463, 0
        %472 = vst.msk [vmem:[#allocation2 + $0x1c] sm:$0xf] %vm463, 0
        %473 = vst.msk [vmem:[#allocation2 + $0x20] sm:$0x1] %vm466, 0
        %474 = vst.msk [vmem:[#allocation2 + $0x24] sm:$0xf] %vm463, 0
        %475 = vst.msk [vmem:[#allocation2 + $0x28] sm:$0xf] %vm463, 0
        %476 = vst.msk [vmem:[#allocation2 + $0x2c] sm:$0x1] %vm466, 0
        %477 = vst.msk [vmem:[#allocation2 + $0x30] sm:$0xf] %vm463, 0
        %478 = vst.msk [vmem:[#allocation2 + $0x34] sm:$0xf] %vm463, 0
        %479 = vst.msk [vmem:[#allocation2 + $0x38] sm:$0x1] %vm466, 0
        %480 = vst.msk [vmem:[#allocation2 + $0x3c] sm:$0xf] %vm463, 0
        %481 = vst.msk [vmem:[#allocation2 + $0x40] sm:$0xf] %vm463, 0
        %482 = vst.msk [vmem:[#allocation2 + $0x44] sm:$0x1] %vm466, 0
        %483 = vst.msk [vmem:[#allocation2 + $0x48] sm:$0xf] %vm463, 0
        %484 = vst.msk [vmem:[#allocation2 + $0x4c] sm:$0xf] %vm463, 0
        %485 = vst.msk [vmem:[#allocation2 + $0x50] sm:$0x1] %vm466, 0
        %486 = vst.msk [vmem:[#allocation2 + $0x54] sm:$0xf] %vm463, 0
        %487 = vst.msk [vmem:[#allocation2 + $0x58] sm:$0xf] %vm463, 0
        %488 = vst.msk [vmem:[#allocation2 + $0x5c] sm:$0x1] %vm466, 0
        %489 = vst.msk [vmem:[#allocation2 + $0x60] sm:$0xf] %vm463, 0
        %490 = vst.msk [vmem:[#allocation2 + $0x64] sm:$0xf] %vm463, 0
        %491 = vst.msk [vmem:[#allocation2 + $0x68] sm:$0x1] %vm466, 0
        %492 = vst.msk [vmem:[#allocation2 + $0x6c] sm:$0xf] %vm463, 0
        %493 = vst.msk [vmem:[#allocation2 + $0x70] sm:$0xf] %vm463, 0
        %494 = vst.msk [vmem:[#allocation2 + $0x74] sm:$0x1] %vm466, 0
        %495 = vst.msk [vmem:[#allocation2 + $0x78] sm:$0xf] %vm463, 0
        %496 = vst.msk [vmem:[#allocation2 + $0x7c] sm:$0xf] %vm463, 0
        %497 = vst.msk [vmem:[#allocation2 + $0x80] sm:$0x1] %vm466, 0
        %498 = vst.msk [vmem:[#allocation2 + $0x84] sm:$0xf] %vm463, 0
        %499 = vst.msk [vmem:[#allocation2 + $0x88] sm:$0xf] %vm463, 0
        %500 = vst.msk [vmem:[#allocation2 + $0x8c] sm:$0x1] %vm466, 0
        %501 = vst.msk [vmem:[#allocation2 + $0x90] sm:$0xf] %vm463, 0
        %502 = vst.msk [vmem:[#allocation2 + $0x94] sm:$0xf] %vm463, 0
        %503 = vst.msk [vmem:[#allocation2 + $0x98] sm:$0x1] %vm466, 0
        %504 = vst.msk [vmem:[#allocation2 + $0x9c] sm:$0xf] %vm463, 0
        %505 = vst.msk [vmem:[#allocation2 + $0xa0] sm:$0xf] %vm463, 0
        %506 = vst.msk [vmem:[#allocation2 + $0xa4] sm:$0x1] %vm466, 0
        %507 = vst.msk [vmem:[#allocation2 + $0xa8] sm:$0xf] %vm463, 0
        %508 = vst.msk [vmem:[#allocation2 + $0xac] sm:$0xf] %vm463, 0
        %509 = vst.msk [vmem:[#allocation2 + $0xb0] sm:$0x1] %vm466, 0
        %510 = vst.msk [vmem:[#allocation2 + $0xb4] sm:$0xf] %vm463, 0
        %511 = vst.msk [vmem:[#allocation2 + $0xb8] sm:$0xf] %vm463, 0
        %512 = vst.msk [vmem:[#allocation2 + $0xbc] sm:$0x1] %vm466, 0
        %513 = vst.msk [vmem:[#allocation2 + $0xc0] sm:$0xf] %vm463, 0
        %514 = vst.msk [vmem:[#allocation2 + $0xc4] sm:$0xf] %vm463, 0
        %515 = vst.msk [vmem:[#allocation2 + $0xc8] sm:$0x1] %vm466, 0
        %516 = vst.msk [vmem:[#allocation2 + $0xcc] sm:$0xf] %vm463, 0
        %517 = vst.msk [vmem:[#allocation2 + $0xd0] sm:$0xf] %vm463, 0
        %518 = vst.msk [vmem:[#allocation2 + $0xd4] sm:$0x1] %vm466, 0
      $region48: #{resblock_forward.3} parent=43 // pred_fallthru
        _
      %v519 = vld [vmem:[%s407] sm:$0xff]
      %v520 = vld [vmem:[%s407 + $0x8] sm:$0xff]
      %v521 = vld [vmem:[%s407 + $0x10] sm:$0xff]
      %v522 = vld [vmem:[%s407 + $0x18] sm:$0xff]
      %v523 = vld [vmem:[%s407 + $0x20] sm:$0xff]
      %v524 = vld [vmem:[%s407 + $0x28] sm:$0xff]
      %v525 = vld [vmem:[%s407 + $0x30] sm:$0xff]
      %v526 = vld [vmem:[%s407 + $0x38] sm:$0xff]
      %v527 = vld [vmem:[%s407 + $0x40] sm:$0xff]
      %v528 = vld [vmem:[%s407 + $0x48] sm:$0xff]
      %v529 = vld [vmem:[%s407 + $0x50] sm:$0xff]
      %v530 = vld [vmem:[%s407 + $0x58] sm:$0xff]
      %v531 = vld [vmem:[%s407 + $0x60] sm:$0xff]
      %v532 = vld [vmem:[%s407 + $0x68] sm:$0xff]
      %v533 = vld [vmem:[%s407 + $0x70] sm:$0xff]
      %v534 = vld [vmem:[%s407 + $0x78] sm:$0xff]
      %v535 = vld [vmem:[%s407 + $0x80] sm:$0xff]
      %v536 = vld [vmem:[%s407 + $0x88] sm:$0xff]
      %v537 = vld [vmem:[%s407 + $0x90] sm:$0xff]
      %v538 = vld [vmem:[%s407 + $0x98] sm:$0xff]
      %v539 = vld [vmem:[%s407 + $0xa0] sm:$0xff]
      %v540 = vld [vmem:[%s407 + $0xa8] sm:$0xff]
      %v541 = vld [vmem:[%s407 + $0xb0] sm:$0xff]
      %v542 = vld [vmem:[%s407 + $0xb8] sm:$0xff]
      %v543 = vld [vmem:[%s407 + $0xc0] sm:$0xff]
      %v544 = vld [vmem:[%s407 + $0xc8] sm:$0xff]
      %v545 = vld [vmem:[%s407 + $0xd0] sm:$0xff]
      %v546 = vld [vmem:[%s407 + $0xd8] sm:$0xff]
      %v547 = vld [vmem:[%s407 + $0xe0] sm:$0xff]
      %v548 = vld [vmem:[%s407 + $0xe8] sm:$0xff]
      %v549 = vld [vmem:[%s407 + $0xf0] sm:$0xff]
      %v550 = vld [vmem:[%s407 + $0xf8] sm:$0xff]
      %v551 = vpack.c.bf16 %v520, %v519
      %v552 = vpack.c.bf16 %v522, %v521
      %v553 = vpack.c.bf16 %v524, %v523
      %v554 = vpack.c.bf16 %v526, %v525
      %v555 = vpack.c.bf16 %v528, %v527
      %v556 = vpack.c.bf16 %v530, %v529
      %v557 = vpack.c.bf16 %v532, %v531
      %v558 = vpack.c.bf16 %v534, %v533
      %v559 = vpack.c.bf16 %v536, %v535
      %v560 = vpack.c.bf16 %v538, %v537
      %v561 = vpack.c.bf16 %v540, %v539
      %v562 = vpack.c.bf16 %v542, %v541
      %v563 = vpack.c.bf16 %v544, %v543
      %v564 = vpack.c.bf16 %v546, %v545
      %v565 = vpack.c.bf16 %v548, %v547
      %v566 = vpack.c.bf16 %v550, %v549
      %v583 = vunpack.c.l.b16 %v551
      %v584 = vunpack.c.h.b16 %v551
      %v585 = vunpack.c.l.b16 %v552
      %v586 = vunpack.c.h.b16 %v552
      %v587 = vunpack.c.l.b16 %v553
      %v588 = vunpack.c.h.b16 %v553
      %v589 = vunpack.c.l.b16 %v554
      %v590 = vunpack.c.h.b16 %v554
      %v591 = vunpack.c.l.b16 %v555
      %v592 = vunpack.c.h.b16 %v555
      %v593 = vunpack.c.l.b16 %v556
      %v594 = vunpack.c.h.b16 %v556
      %v595 = vunpack.c.l.b16 %v557
      %v596 = vunpack.c.h.b16 %v557
      %v597 = vunpack.c.l.b16 %v558
      %v598 = vunpack.c.h.b16 %v558
      %v599 = vunpack.c.l.b16 %v559
      %v600 = vunpack.c.h.b16 %v559
      %v601 = vunpack.c.l.b16 %v560
      %v602 = vunpack.c.h.b16 %v560
      %v603 = vunpack.c.l.b16 %v561
      %v604 = vunpack.c.h.b16 %v561
      %v605 = vunpack.c.l.b16 %v562
      %v606 = vunpack.c.h.b16 %v562
      %v607 = vunpack.c.l.b16 %v563
      %v608 = vunpack.c.h.b16 %v563
      %v609 = vunpack.c.l.b16 %v564
      %v610 = vunpack.c.h.b16 %v564
      %v611 = vunpack.c.l.b16 %v565
      %v612 = vunpack.c.h.b16 %v565
      %v613 = vunpack.c.l.b16 %v566
      %v614 = vunpack.c.h.b16 %v566
      %v615 = vpack.c.b16 %v583, %v583
      %v616 = vpack.c.b16 %v584, %v584
      %v617 = vpack.c.b16 %v585, %v585
      %v618 = vpack.c.b16 %v586, %v586
      %v619 = vpack.c.b16 %v587, %v587
      %v620 = vpack.c.b16 %v588, %v588
      %v621 = vpack.c.b16 %v589, %v589
      %v622 = vpack.c.b16 %v590, %v590
      %v623 = vpack.c.b16 %v591, %v591
      %v624 = vpack.c.b16 %v592, %v592
      %v625 = vpack.c.b16 %v593, %v593
      %v626 = vpack.c.b16 %v594, %v594
      %v627 = vpack.c.b16 %v595, %v595
      %v628 = vpack.c.b16 %v596, %v596
      %v629 = vpack.c.b16 %v597, %v597
      %v630 = vpack.c.b16 %v598, %v598
      %v631 = vpack.c.b16 %v599, %v599
      %v632 = vpack.c.b16 %v600, %v600
      %v633 = vpack.c.b16 %v601, %v601
      %v634 = vpack.c.b16 %v602, %v602
      %v635 = vpack.c.b16 %v603, %v603
      %v636 = vpack.c.b16 %v604, %v604
      %v637 = vpack.c.b16 %v605, %v605
      %v638 = vpack.c.b16 %v606, %v606
      %v639 = vpack.c.b16 %v607, %v607
      %v640 = vpack.c.b16 %v608, %v608
      %v641 = vpack.c.b16 %v609, %v609
      %v642 = vpack.c.b16 %v610, %v610
      %v643 = vpack.c.b16 %v611, %v611
      %v644 = vpack.c.b16 %v612, %v612
      %v645 = vpack.c.b16 %v613, %v613
      %v646 = vpack.c.b16 %v614, %v614
      %vm647 = vsmask.f32 256
      %vm648 = vsmask.f32 4368
      %vm649 = vmor %vm647, %vm648
      %v651 = vshrl.u32 %v615, 16
      %v653 = vrot.slane %v651, 7
      %v654 = vshll.u32 %v615, 16
      %v656 = vor.u32 %v653, %v654
      %v657 = vrot.slane %v653, 4
      %v659 = vshrl.u32 %v616, 16
      %v661 = vrot.slane %v659, 7
      %v662 = vshll.u32 %v616, 16
      %v664 = vor.u32 %v661, %v662
      %v665 = vsel %vm649, %v657, %v664
      %v666 = vrot.slane %v661, 4
      %v668 = vshrl.u32 %v617, 16
      %v670 = vrot.slane %v668, 7
      %v671 = vshll.u32 %v617, 16
      %v673 = vor.u32 %v670, %v671
      %v674 = vrot.slane %v670, 4
      %v676 = vshrl.u32 %v618, 16
      %v678 = vrot.slane %v676, 7
      %v679 = vshll.u32 %v618, 16
      %v681 = vor.u32 %v678, %v679
      %v682 = vsel %vm649, %v674, %v681
      %v683 = vrot.slane %v678, 4
      %v685 = vshrl.u32 %v619, 16
      %v687 = vrot.slane %v685, 7
      %v688 = vshll.u32 %v619, 16
      %v690 = vor.u32 %v687, %v688
      %v691 = vrot.slane %v687, 4
      %v693 = vshrl.u32 %v620, 16
      %v695 = vrot.slane %v693, 7
      %v696 = vshll.u32 %v620, 16
      %v698 = vor.u32 %v695, %v696
      %v699 = vsel %vm649, %v691, %v698
      %v700 = vrot.slane %v695, 4
      %v702 = vshrl.u32 %v621, 16
      %v704 = vrot.slane %v702, 7
      %v705 = vshll.u32 %v621, 16
      %v707 = vor.u32 %v704, %v705
      %v708 = vrot.slane %v704, 4
      %v710 = vshrl.u32 %v622, 16
      %v712 = vrot.slane %v710, 7
      %v713 = vshll.u32 %v622, 16
      %v715 = vor.u32 %v712, %v713
      %v716 = vsel %vm649, %v708, %v715
      %v717 = vrot.slane %v712, 4
      %v719 = vshrl.u32 %v623, 16
      %v721 = vrot.slane %v719, 7
      %v722 = vshll.u32 %v623, 16
      %v724 = vor.u32 %v721, %v722
      %v725 = vrot.slane %v721, 4
      %v727 = vshrl.u32 %v624, 16
      %v729 = vrot.slane %v727, 7
      %v730 = vshll.u32 %v624, 16
      %v732 = vor.u32 %v729, %v730
      %v733 = vsel %vm649, %v725, %v732
      %v734 = vrot.slane %v729, 4
      %v736 = vshrl.u32 %v625, 16
      %v738 = vrot.slane %v736, 7
      %v739 = vshll.u32 %v625, 16
      %v741 = vor.u32 %v738, %v739
      %v742 = vrot.slane %v738, 4
      %v744 = vshrl.u32 %v626, 16
      %v746 = vrot.slane %v744, 7
      %v747 = vshll.u32 %v626, 16
      %v749 = vor.u32 %v746, %v747
      %v750 = vsel %vm649, %v742, %v749
      %v751 = vrot.slane %v746, 4
      %v753 = vshrl.u32 %v627, 16
      %v755 = vrot.slane %v753, 7
      %v756 = vshll.u32 %v627, 16
      %v758 = vor.u32 %v755, %v756
      %v759 = vrot.slane %v755, 4
      %v761 = vshrl.u32 %v628, 16
      %v763 = vrot.slane %v761, 7
      %v764 = vshll.u32 %v628, 16
      %v766 = vor.u32 %v763, %v764
      %v767 = vsel %vm649, %v759, %v766
      %v768 = vrot.slane %v763, 4
      %v770 = vshrl.u32 %v629, 16
      %v772 = vrot.slane %v770, 7
      %v773 = vshll.u32 %v629, 16
      %v775 = vor.u32 %v772, %v773
      %v776 = vrot.slane %v772, 4
      %v778 = vshrl.u32 %v630, 16
      %v780 = vrot.slane %v778, 7
      %v781 = vshll.u32 %v630, 16
      %v783 = vor.u32 %v780, %v781
      %v784 = vsel %vm649, %v776, %v783
      %v785 = vrot.slane %v780, 4
      %v787 = vshrl.u32 %v631, 16
      %v789 = vrot.slane %v787, 7
      %v790 = vshll.u32 %v631, 16
      %v792 = vor.u32 %v789, %v790
      %v793 = vrot.slane %v789, 4
      %v795 = vshrl.u32 %v632, 16
      %v797 = vrot.slane %v795, 7
      %v798 = vshll.u32 %v632, 16
      %v800 = vor.u32 %v797, %v798
      %v801 = vsel %vm649, %v793, %v800
      %v802 = vrot.slane %v797, 4
      %v804 = vshrl.u32 %v633, 16
      %v806 = vrot.slane %v804, 7
      %v807 = vshll.u32 %v633, 16
      %v809 = vor.u32 %v806, %v807
      %v810 = vrot.slane %v806, 4
      %v812 = vshrl.u32 %v634, 16
      %v814 = vrot.slane %v812, 7
      %v815 = vshll.u32 %v634, 16
      %v817 = vor.u32 %v814, %v815
      %v818 = vsel %vm649, %v810, %v817
      %v819 = vrot.slane %v814, 4
      %v821 = vshrl.u32 %v635, 16
      %v823 = vrot.slane %v821, 7
      %v824 = vshll.u32 %v635, 16
      %v826 = vor.u32 %v823, %v824
      %v827 = vrot.slane %v823, 4
      %v829 = vshrl.u32 %v636, 16
      %v831 = vrot.slane %v829, 7
      %v832 = vshll.u32 %v636, 16
      %v834 = vor.u32 %v831, %v832
      %v835 = vsel %vm649, %v827, %v834
      %v836 = vrot.slane %v831, 4
      %v838 = vshrl.u32 %v637, 16
      %v840 = vrot.slane %v838, 7
      %v841 = vshll.u32 %v637, 16
      %v843 = vor.u32 %v840, %v841
      %v844 = vrot.slane %v840, 4
      %v846 = vshrl.u32 %v638, 16
      %v848 = vrot.slane %v846, 7
      %v849 = vshll.u32 %v638, 16
      %v851 = vor.u32 %v848, %v849
      %v852 = vsel %vm649, %v844, %v851
      %v853 = vrot.slane %v848, 4
      %v855 = vshrl.u32 %v639, 16
      %v857 = vrot.slane %v855, 7
      %v858 = vshll.u32 %v639, 16
      %v860 = vor.u32 %v857, %v858
      %v861 = vrot.slane %v857, 4
      %v863 = vshrl.u32 %v640, 16
      %v865 = vrot.slane %v863, 7
      %v866 = vshll.u32 %v640, 16
      %v868 = vor.u32 %v865, %v866
      %v869 = vsel %vm649, %v861, %v868
      %v870 = vrot.slane %v865, 4
      %v872 = vshrl.u32 %v641, 16
      %v874 = vrot.slane %v872, 7
      %v875 = vshll.u32 %v641, 16
      %v877 = vor.u32 %v874, %v875
      %v878 = vrot.slane %v874, 4
      %v880 = vshrl.u32 %v642, 16
      %v882 = vrot.slane %v880, 7
      %v883 = vshll.u32 %v642, 16
      %v885 = vor.u32 %v882, %v883
      %v886 = vsel %vm649, %v878, %v885
      %v887 = vrot.slane %v882, 4
      %v889 = vshrl.u32 %v643, 16
      %v891 = vrot.slane %v889, 7
      %v892 = vshll.u32 %v643, 16
      %v894 = vor.u32 %v891, %v892
      %v895 = vrot.slane %v891, 4
      %v897 = vshrl.u32 %v644, 16
      %v899 = vrot.slane %v897, 7
      %v900 = vshll.u32 %v644, 16
      %v902 = vor.u32 %v899, %v900
      %v903 = vsel %vm649, %v895, %v902
      %v904 = vrot.slane %v899, 4
      %v906 = vshrl.u32 %v645, 16
      %v908 = vrot.slane %v906, 7
      %v909 = vshll.u32 %v645, 16
      %v911 = vor.u32 %v908, %v909
      %v912 = vrot.slane %v908, 4
      %v914 = vshrl.u32 %v646, 16
      %v916 = vrot.slane %v914, 7
      %v917 = vshll.u32 %v646, 16
      %v919 = vor.u32 %v916, %v917
      %v920 = vsel %vm649, %v912, %v919
      %v921 = vrot.slane %v916, 4
      %s970 = scalar_lea.vmem [#allocation2], 12
      %vm971 = vcmask 27648
      %vm972 = vsmask.f32 7938
      %vm973 = vmand %vm971, %vm972
      %v974 = vld [vmem:[%s970] sm:$0xf]
      %v975 = vsel %vm973, %v656, %v974
      %976 = vst [vmem:[%s970] sm:$0xf] %v975
      %vm977 = vcmask 27648
      %978 = vst.msk [vmem:[%s970 + $0x4] sm:$0xf] %vm977, %v665
      %vm979 = vcmask 24576
      %vm980 = vmand %vm979, %vm647
      %v981 = vld [vmem:[%s970 + $0x8] sm:$0x1]
      %v982 = vsel %vm980, %v666, %v981
      %983 = vst [vmem:[%s970 + $0x8] sm:$0x1] %v982
      %v984 = vld [vmem:[%s970 + $0xc] sm:$0xf]
      %v985 = vsel %vm973, %v673, %v984
      %986 = vst [vmem:[%s970 + $0xc] sm:$0xf] %v985
      %987 = vst.msk [vmem:[%s970 + $0x10] sm:$0xf] %vm977, %v682
      %v988 = vld [vmem:[%s970 + $0x14] sm:$0x1]
      %v989 = vsel %vm980, %v683, %v988
      %990 = vst [vmem:[%s970 + $0x14] sm:$0x1] %v989
      %v991 = vld [vmem:[%s970 + $0x18] sm:$0xf]
      %v992 = vsel %vm973, %v690, %v991
      %993 = vst [vmem:[%s970 + $0x18] sm:$0xf] %v992
      %994 = vst.msk [vmem:[%s970 + $0x1c] sm:$0xf] %vm977, %v699
      %v995 = vld [vmem:[%s970 + $0x20] sm:$0x1]
      %v996 = vsel %vm980, %v700, %v995
      %997 = vst [vmem:[%s970 + $0x20] sm:$0x1] %v996
      %v998 = vld [vmem:[%s970 + $0x24] sm:$0xf]
      %v999 = vsel %vm973, %v707, %v998
      %1000 = vst [vmem:[%s970 + $0x24] sm:$0xf] %v999
      %1001 = vst.msk [vmem:[%s970 + $0x28] sm:$0xf] %vm977, %v716
      %v1002 = vld [vmem:[%s970 + $0x2c] sm:$0x1]
      %v1003 = vsel %vm980, %v717, %v1002
      %1004 = vst [vmem:[%s970 + $0x2c] sm:$0x1] %v1003
      %v1005 = vld [vmem:[%s970 + $0x30] sm:$0xf]
      %v1006 = vsel %vm973, %v724, %v1005
      %1007 = vst [vmem:[%s970 + $0x30] sm:$0xf] %v1006
      %1008 = vst.msk [vmem:[%s970 + $0x34] sm:$0xf] %vm977, %v733
      %v1009 = vld [vmem:[%s970 + $0x38] sm:$0x1]
      %v1010 = vsel %vm980, %v734, %v1009
      %1011 = vst [vmem:[%s970 + $0x38] sm:$0x1] %v1010
      %v1012 = vld [vmem:[%s970 + $0x3c] sm:$0xf]
      %v1013 = vsel %vm973, %v741, %v1012
      %1014 = vst [vmem:[%s970 + $0x3c] sm:$0xf] %v1013
      %1015 = vst.msk [vmem:[%s970 + $0x40] sm:$0xf] %vm977, %v750
      %v1016 = vld [vmem:[%s970 + $0x44] sm:$0x1]
      %v1017 = vsel %vm980, %v751, %v1016
      %1018 = vst [vmem:[%s970 + $0x44] sm:$0x1] %v1017
      %v1019 = vld [vmem:[%s970 + $0x48] sm:$0xf]
      %v1020 = vsel %vm973, %v758, %v1019
      %1021 = vst [vmem:[%s970 + $0x48] sm:$0xf] %v1020
      %1022 = vst.msk [vmem:[%s970 + $0x4c] sm:$0xf] %vm977, %v767
      %v1023 = vld [vmem:[%s970 + $0x50] sm:$0x1]
      %v1024 = vsel %vm980, %v768, %v1023
      %1025 = vst [vmem:[%s970 + $0x50] sm:$0x1] %v1024
      %v1026 = vld [vmem:[%s970 + $0x54] sm:$0xf]
      %v1027 = vsel %vm973, %v775, %v1026
      %1028 = vst [vmem:[%s970 + $0x54] sm:$0xf] %v1027
      %1029 = vst.msk [vmem:[%s970 + $0x58] sm:$0xf] %vm977, %v784
      %v1030 = vld [vmem:[%s970 + $0x5c] sm:$0x1]
      %v1031 = vsel %vm980, %v785, %v1030
      %1032 = vst [vmem:[%s970 + $0x5c] sm:$0x1] %v1031
      %v1033 = vld [vmem:[%s970 + $0x60] sm:$0xf]
      %v1034 = vsel %vm973, %v792, %v1033
      %1035 = vst [vmem:[%s970 + $0x60] sm:$0xf] %v1034
      %1036 = vst.msk [vmem:[%s970 + $0x64] sm:$0xf] %vm977, %v801
      %v1037 = vld [vmem:[%s970 + $0x68] sm:$0x1]
      %v1038 = vsel %vm980, %v802, %v1037
      %1039 = vst [vmem:[%s970 + $0x68] sm:$0x1] %v1038
      %v1040 = vld [vmem:[%s970 + $0x6c] sm:$0xf]
      %v1041 = vsel %vm973, %v809, %v1040
      %1042 = vst [vmem:[%s970 + $0x6c] sm:$0xf] %v1041
      %1043 = vst.msk [vmem:[%s970 + $0x70] sm:$0xf] %vm977, %v818
      %v1044 = vld [vmem:[%s970 + $0x74] sm:$0x1]
      %v1045 = vsel %vm980, %v819, %v1044
      %1046 = vst [vmem:[%s970 + $0x74] sm:$0x1] %v1045
      %v1047 = vld [vmem:[%s970 + $0x78] sm:$0xf]
      %v1048 = vsel %vm973, %v826, %v1047
      %1049 = vst [vmem:[%s970 + $0x78] sm:$0xf] %v1048
      %1050 = vst.msk [vmem:[%s970 + $0x7c] sm:$0xf] %vm977, %v835
      %v1051 = vld [vmem:[%s970 + $0x80] sm:$0x1]
      %v1052 = vsel %vm980, %v836, %v1051
      %1053 = vst [vmem:[%s970 + $0x80] sm:$0x1] %v1052
      %v1054 = vld [vmem:[%s970 + $0x84] sm:$0xf]
      %v1055 = vsel %vm973, %v843, %v1054
      %1056 = vst [vmem:[%s970 + $0x84] sm:$0xf] %v1055
      %1057 = vst.msk [vmem:[%s970 + $0x88] sm:$0xf] %vm977, %v852
      %v1058 = vld [vmem:[%s970 + $0x8c] sm:$0x1]
      %v1059 = vsel %vm980, %v853, %v1058
      %1060 = vst [vmem:[%s970 + $0x8c] sm:$0x1] %v1059
      %v1061 = vld [vmem:[%s970 + $0x90] sm:$0xf]
      %v1062 = vsel %vm973, %v860, %v1061
      %1063 = vst [vmem:[%s970 + $0x90] sm:$0xf] %v1062
      %1064 = vst.msk [vmem:[%s970 + $0x94] sm:$0xf] %vm977, %v869
      %v1065 = vld [vmem:[%s970 + $0x98] sm:$0x1]
      %v1066 = vsel %vm980, %v870, %v1065
      %1067 = vst [vmem:[%s970 + $0x98] sm:$0x1] %v1066
      %v1068 = vld [vmem:[%s970 + $0x9c] sm:$0xf]
      %v1069 = vsel %vm973, %v877, %v1068
      %1070 = vst [vmem:[%s970 + $0x9c] sm:$0xf] %v1069
      %1071 = vst.msk [vmem:[%s970 + $0xa0] sm:$0xf] %vm977, %v886
      %v1072 = vld [vmem:[%s970 + $0xa4] sm:$0x1]
      %v1073 = vsel %vm980, %v887, %v1072
      %1074 = vst [vmem:[%s970 + $0xa4] sm:$0x1] %v1073
      %v1075 = vld [vmem:[%s970 + $0xa8] sm:$0xf]
      %v1076 = vsel %vm973, %v894, %v1075
      %1077 = vst [vmem:[%s970 + $0xa8] sm:$0xf] %v1076
      %1078 = vst.msk [vmem:[%s970 + $0xac] sm:$0xf] %vm977, %v903
      %v1079 = vld [vmem:[%s970 + $0xb0] sm:$0x1]
      %v1080 = vsel %vm980, %v904, %v1079
      %1081 = vst [vmem:[%s970 + $0xb0] sm:$0x1] %v1080
      %v1082 = vld [vmem:[%s970 + $0xb4] sm:$0xf]
      %v1083 = vsel %vm973, %v911, %v1082
      %1084 = vst [vmem:[%s970 + $0xb4] sm:$0xf] %v1083
      %1085 = vst.msk [vmem:[%s970 + $0xb8] sm:$0xf] %vm977, %v920
      %v1086 = vld [vmem:[%s970 + $0xbc] sm:$0x1]
      %v1087 = vsel %vm980, %v921, %v1086
      %1088 = vst [vmem:[%s970 + $0xbc] sm:$0x1] %v1087
      %v1089 = vld [vmem:[%s421] sm:$0xff]
      %v1090 = vld [vmem:[%s421 + $0x8] sm:$0xff]
      %v1091 = vpack.c.bf16 %v1090, %v1089
      %v1092 = vld [vmem:[%s438] sm:$0xff]
      %v1093 = vld [vmem:[%s438 + $0x8] sm:$0xff]
      %v1094 = vpack.c.bf16 %v1093, %v1092
      %p1095 = scmp.gt.s32.totalorder %s24, 0
      %s1096 = scalar_select %p1095, 1, 0
      %v1097 = vstv %s1096
      %vm1098 = vcmp.eq.s32.totalorder %v1097, 1
      %v1099 = vsel %vm1098, %v1091, 0
      %v1101 = vunpack.c.l.b16 %v1099
      %v1102 = vunpack.c.h.b16 %v1099
      %v1103 = vpack.c.b16 %v1101, %v1101
      %v1104 = vpack.c.b16 %v1102, %v1102
      %v1106 = vshrl.u32 %v1103, 16
      %v1108 = vrot.slane %v1106, 7
      %v1109 = vshll.u32 %v1103, 16
      %v1111 = vor.u32 %v1108, %v1109
      %v1112 = vrot.slane %v1108, 4
      %v1114 = vshrl.u32 %v1104, 16
      %v1116 = vrot.slane %v1114, 7
      %v1117 = vshll.u32 %v1104, 16
      %v1119 = vor.u32 %v1116, %v1117
      %v1120 = vsel %vm649, %v1112, %v1119
      %v1121 = vrot.slane %v1116, 4
      %v1125 = vld [vmem:[#allocation2] sm:$0xf]
      %v1126 = vsel %vm973, %v1111, %v1125
      %1127 = vst [vmem:[#allocation2] sm:$0xf] %v1126
      %1128 = vst.msk [vmem:[#allocation2 + $0x4] sm:$0xf] %vm977, %v1120
      %v1129 = vld [vmem:[#allocation2 + $0x8] sm:$0x1]
      %v1130 = vsel %vm980, %v1121, %v1129
      %1131 = vst [vmem:[#allocation2 + $0x8] sm:$0x1] %v1130
      %s1132 = sadd.s32 %s24, 1
      %p1133 = scmp.lt.s32.totalorder %s1132, 1
      %s1134 = scalar_select %p1133, 1, 0
      %v1135 = vstv %s1134
      %vm1136 = vcmp.eq.s32.totalorder %v1135, 1
      %v1137 = vsel %vm1136, %v1094, 0
      %v1139 = vunpack.c.l.b16 %v1137
      %v1140 = vunpack.c.h.b16 %v1137
      %v1141 = vpack.c.b16 %v1139, %v1139
      %v1142 = vpack.c.b16 %v1140, %v1140
      %v1144 = vshrl.u32 %v1141, 16
      %v1146 = vrot.slane %v1144, 7
      %v1147 = vshll.u32 %v1141, 16
      %v1149 = vor.u32 %v1146, %v1147
      %v1150 = vrot.slane %v1146, 4
      %v1152 = vshrl.u32 %v1142, 16
      %v1154 = vrot.slane %v1152, 7
      %v1155 = vshll.u32 %v1142, 16
      %v1157 = vor.u32 %v1154, %v1155
      %v1158 = vsel %vm649, %v1150, %v1157
      %v1159 = vrot.slane %v1154, 4
      %s1163 = scalar_lea.vmem [#allocation2], 204
      %v1164 = vld [vmem:[%s1163] sm:$0xf]
      %v1165 = vsel %vm973, %v1149, %v1164
      %1166 = vst [vmem:[%s1163] sm:$0xf] %v1165
      %1167 = vst.msk [vmem:[%s1163 + $0x4] sm:$0xf] %vm977, %v1158
      %v1168 = vld [vmem:[%s1163 + $0x8] sm:$0x1]
      %v1169 = vsel %vm980, %v1159, %v1168
      %1170 = vst [vmem:[%s1163 + $0x8] sm:$0x1] %v1169
      %v1171 = vld [vmem:[#allocation2] sm:$0xf]
      %v1172 = vld [vmem:[#allocation2 + $0x4] sm:$0xf]
      %v1173 = vld [vmem:[#allocation2 + $0xc] sm:$0xf]
      %v1174 = vld [vmem:[#allocation2 + $0x10] sm:$0xf]
      %v1175 = vld [vmem:[#allocation2 + $0x18] sm:$0xf]
      %v1176 = vld [vmem:[#allocation2 + $0x1c] sm:$0xf]
      %v1177 = vld [vmem:[#allocation2 + $0x24] sm:$0xf]
      %v1178 = vld [vmem:[#allocation2 + $0x28] sm:$0xf]
      %v1179 = vld [vmem:[#allocation2 + $0x30] sm:$0xf]
      %v1180 = vld [vmem:[#allocation2 + $0x34] sm:$0xf]
      %v1181 = vld [vmem:[#allocation2 + $0x3c] sm:$0xf]
      %v1182 = vld [vmem:[#allocation2 + $0x40] sm:$0xf]
      %v1183 = vld [vmem:[#allocation2 + $0x48] sm:$0xf]
      %v1184 = vld [vmem:[#allocation2 + $0x4c] sm:$0xf]
      %v1185 = vld [vmem:[#allocation2 + $0x54] sm:$0xf]
      %v1186 = vld [vmem:[#allocation2 + $0x58] sm:$0xf]
      %v1187 = vld [vmem:[#allocation2 + $0x60] sm:$0xf]
      %v1188 = vld [vmem:[#allocation2 + $0x64] sm:$0xf]
      %v1189 = vld [vmem:[#allocation2 + $0x6c] sm:$0xf]
      %v1190 = vld [vmem:[#allocation2 + $0x70] sm:$0xf]
      %v1191 = vld [vmem:[#allocation2 + $0x78] sm:$0xf]
      %v1192 = vld [vmem:[#allocation2 + $0x7c] sm:$0xf]
      %v1193 = vld [vmem:[#allocation2 + $0x84] sm:$0xf]
      %v1194 = vld [vmem:[#allocation2 + $0x88] sm:$0xf]
      %v1195 = vld [vmem:[#allocation2 + $0x90] sm:$0xf]
      %v1196 = vld [vmem:[#allocation2 + $0x94] sm:$0xf]
      %v1197 = vld [vmem:[#allocation2 + $0x9c] sm:$0xf]
      %v1198 = vld [vmem:[#allocation2 + $0xa0] sm:$0xf]
      %v1199 = vld [vmem:[#allocation2 + $0xa8] sm:$0xf]
      %v1200 = vld [vmem:[#allocation2 + $0xac] sm:$0xf]
      %v1201 = vld [vmem:[#allocation2 + $0xb4] sm:$0xf]
      %v1202 = vld [vmem:[#allocation2 + $0xb8] sm:$0xf]
      %1203 = vst.msk [vmem:[#allocation3] sm:$0xf] %vm977, %v1171
      %1204 = vst.msk [vmem:[#allocation3 + $0x4] sm:$0xf] %vm977, %v1172
      %1205 = vst.msk [vmem:[#allocation3 + $0x8] sm:$0xf] %vm977, %v1173
      %1206 = vst.msk [vmem:[#allocation3 + $0xc] sm:$0xf] %vm977, %v1174
      %1207 = vst.msk [vmem:[#allocation3 + $0x10] sm:$0xf] %vm977, %v1175
      %1208 = vst.msk [vmem:[#allocation3 + $0x14] sm:$0xf] %vm977, %v1176
      %1209 = vst.msk [vmem:[#allocation3 + $0x18] sm:$0xf] %vm977, %v1177
      %1210 = vst.msk [vmem:[#allocation3 + $0x1c] sm:$0xf] %vm977, %v1178
      %1211 = vst.msk [vmem:[#allocation3 + $0x20] sm:$0xf] %vm977, %v1179
      %1212 = vst.msk [vmem:[#allocation3 + $0x24] sm:$0xf] %vm977, %v1180
      %1213 = vst.msk [vmem:[#allocation3 + $0x28] sm:$0xf] %vm977, %v1181
      %1214 = vst.msk [vmem:[#allocation3 + $0x2c] sm:$0xf] %vm977, %v1182
      %1215 = vst.msk [vmem:[#allocation3 + $0x30] sm:$0xf] %vm977, %v1183
      %1216 = vst.msk [vmem:[#allocation3 + $0x34] sm:$0xf] %vm977, %v1184
      %1217 = vst.msk [vmem:[#allocation3 + $0x38] sm:$0xf] %vm977, %v1185
      %1218 = vst.msk [vmem:[#allocation3 + $0x3c] sm:$0xf] %vm977, %v1186
      %1219 = vst.msk [vmem:[#allocation3 + $0x40] sm:$0xf] %vm977, %v1187
      %1220 = vst.msk [vmem:[#allocation3 + $0x44] sm:$0xf] %vm977, %v1188
      %1221 = vst.msk [vmem:[#allocation3 + $0x48] sm:$0xf] %vm977, %v1189
      %1222 = vst.msk [vmem:[#allocation3 + $0x4c] sm:$0xf] %vm977, %v1190
      %1223 = vst.msk [vmem:[#allocation3 + $0x50] sm:$0xf] %vm977, %v1191
      %1224 = vst.msk [vmem:[#allocation3 + $0x54] sm:$0xf] %vm977, %v1192
      %1225 = vst.msk [vmem:[#allocation3 + $0x58] sm:$0xf] %vm977, %v1193
      %1226 = vst.msk [vmem:[#allocation3 + $0x5c] sm:$0xf] %vm977, %v1194
      %1227 = vst.msk [vmem:[#allocation3 + $0x60] sm:$0xf] %vm977, %v1195
      %1228 = vst.msk [vmem:[#allocation3 + $0x64] sm:$0xf] %vm977, %v1196
      %1229 = vst.msk [vmem:[#allocation3 + $0x68] sm:$0xf] %vm977, %v1197
      %1230 = vst.msk [vmem:[#allocation3 + $0x6c] sm:$0xf] %vm977, %v1198
      %1231 = vst.msk [vmem:[#allocation3 + $0x70] sm:$0xf] %vm977, %v1199
      %1232 = vst.msk [vmem:[#allocation3 + $0x74] sm:$0xf] %vm977, %v1200
      %1233 = vst.msk [vmem:[#allocation3 + $0x78] sm:$0xf] %vm977, %v1201
      %1234 = vst.msk [vmem:[#allocation3 + $0x7c] sm:$0xf] %vm977, %v1202
      %v1235 = vld [vmem:[#allocation2] sm:$0xf]
      %v1236 = vld [vmem:[#allocation2 + $0x4] sm:$0xf]
      %v1237 = vld [vmem:[#allocation2 + $0x8] sm:$0x1]
      %v1238 = vld [vmem:[#allocation2 + $0xc] sm:$0xf]
      %v1239 = vld [vmem:[#allocation2 + $0x10] sm:$0xf]
      %v1240 = vld [vmem:[#allocation2 + $0x14] sm:$0x1]
      %v1241 = vld [vmem:[#allocation2 + $0x18] sm:$0xf]
      %v1242 = vld [vmem:[#allocation2 + $0x1c] sm:$0xf]
      %v1243 = vld [vmem:[#allocation2 + $0x20] sm:$0x1]
      %v1244 = vld [vmem:[#allocation2 + $0x24] sm:$0xf]
      %v1245 = vld [vmem:[#allocation2 + $0x28] sm:$0xf]
      %v1246 = vld [vmem:[#allocation2 + $0x2c] sm:$0x1]
      %v1247 = vld [vmem:[#allocation2 + $0x30] sm:$0xf]
      %v1248 = vld [vmem:[#allocation2 + $0x34] sm:$0xf]
      %v1249 = vld [vmem:[#allocation2 + $0x38] sm:$0x1]
      %v1250 = vld [vmem:[#allocation2 + $0x3c] sm:$0xf]
      %v1251 = vld [vmem:[#allocation2 + $0x40] sm:$0xf]
      %v1252 = vld [vmem:[#allocation2 + $0x44] sm:$0x1]
      %v1253 = vld [vmem:[#allocation2 + $0x48] sm:$0xf]
      %v1254 = vld [vmem:[#allocation2 + $0x4c] sm:$0xf]
      %v1255 = vld [vmem:[#allocation2 + $0x50] sm:$0x1]
      %v1256 = vld [vmem:[#allocation2 + $0x54] sm:$0xf]
      %v1257 = vld [vmem:[#allocation2 + $0x58] sm:$0xf]
      %v1258 = vld [vmem:[#allocation2 + $0x5c] sm:$0x1]
      %v1259 = vld [vmem:[#allocation2 + $0x60] sm:$0xf]
      %v1260 = vld [vmem:[#allocation2 + $0x64] sm:$0xf]
      %v1261 = vld [vmem:[#allocation2 + $0x68] sm:$0x1]
      %v1262 = vld [vmem:[#allocation2 + $0x6c] sm:$0xf]
      %v1263 = vld [vmem:[#allocation2 + $0x70] sm:$0xf]
      %v1264 = vld [vmem:[#allocation2 + $0x74] sm:$0x1]
      %v1265 = vld [vmem:[#allocation2 + $0x78] sm:$0xf]
      %v1266 = vld [vmem:[#allocation2 + $0x7c] sm:$0xf]
      %v1267 = vld [vmem:[#allocation2 + $0x80] sm:$0x1]
      %v1268 = vld [vmem:[#allocation2 + $0x84] sm:$0xf]
      %v1269 = vld [vmem:[#allocation2 + $0x88] sm:$0xf]
      %v1270 = vld [vmem:[#allocation2 + $0x8c] sm:$0x1]
      %v1271 = vld [vmem:[#allocation2 + $0x90] sm:$0xf]
      %v1272 = vld [vmem:[#allocation2 + $0x94] sm:$0xf]
      %v1273 = vld [vmem:[#allocation2 + $0x98] sm:$0x1]
      %v1274 = vld [vmem:[#allocation2 + $0x9c] sm:$0xf]
      %v1275 = vld [vmem:[#allocation2 + $0xa0] sm:$0xf]
      %v1276 = vld [vmem:[#allocation2 + $0xa4] sm:$0x1]
      %v1277 = vld [vmem:[#allocation2 + $0xa8] sm:$0xf]
      %v1278 = vld [vmem:[#allocation2 + $0xac] sm:$0xf]
      %v1279 = vld [vmem:[#allocation2 + $0xb0] sm:$0x1]
      %v1280 = vld [vmem:[#allocation2 + $0xb4] sm:$0xf]
      %v1281 = vld [vmem:[#allocation2 + $0xb8] sm:$0xf]
      %v1282 = vld [vmem:[#allocation2 + $0xbc] sm:$0x1]
      %vm1283 = vsmask.f32 3328
      %vm1284 = vsmask.f32 7440
      %vm1285 = vmor %vm1283, %vm1284
      %v1287 = vshrl.u32 %v1235, 16
      %v1289 = vrot.slane %v1287, 4
      %v1290 = vshll.u32 %v1235, 16
      %v1292 = vrot.slane %v1290, 5
      %v1293 = vor.u32 %v1289, %v1292
      %v1294 = vrot.slane %v1293, 4
      %v1296 = vshll.u32 %v1236, 16
      %v1298 = vrot.slane %v1296, 5
      %v1299 = vsel %vm1285, %v1294, %v1298
      %v1300 = vshrl.u32 %v1236, 16
      %v1302 = vrot.slane %v1300, 4
      %v1303 = vor.u32 %v1302, %v1298
      %v1304 = vrot.slane %v1303, 4
      %v1306 = vshll.u32 %v1237, 16
      %v1308 = vrot.slane %v1306, 5
      %v1309 = vsel %vm1285, %v1304, %v1308
      %v1311 = vshrl.u32 %v1238, 16
      %v1313 = vrot.slane %v1311, 4
      %v1314 = vshll.u32 %v1238, 16
      %v1316 = vrot.slane %v1314, 5
      %v1317 = vor.u32 %v1313, %v1316
      %v1318 = vrot.slane %v1317, 4
      %v1320 = vshll.u32 %v1239, 16
      %v1322 = vrot.slane %v1320, 5
      %v1323 = vsel %vm1285, %v1318, %v1322
      %v1324 = vshrl.u32 %v1239, 16
      %v1326 = vrot.slane %v1324, 4
      %v1327 = vor.u32 %v1326, %v1322
      %v1328 = vrot.slane %v1327, 4
      %v1330 = vshll.u32 %v1240, 16
      %v1332 = vrot.slane %v1330, 5
      %v1333 = vsel %vm1285, %v1328, %v1332
      %v1335 = vshrl.u32 %v1241, 16
      %v1337 = vrot.slane %v1335, 4
      %v1338 = vshll.u32 %v1241, 16
      %v1340 = vrot.slane %v1338, 5
      %v1341 = vor.u32 %v1337, %v1340
      %v1342 = vrot.slane %v1341, 4
      %v1344 = vshll.u32 %v1242, 16
      %v1346 = vrot.slane %v1344, 5
      %v1347 = vsel %vm1285, %v1342, %v1346
      %v1348 = vshrl.u32 %v1242, 16
      %v1350 = vrot.slane %v1348, 4
      %v1351 = vor.u32 %v1350, %v1346
      %v1352 = vrot.slane %v1351, 4
      %v1354 = vshll.u32 %v1243, 16
      %v1356 = vrot.slane %v1354, 5
      %v1357 = vsel %vm1285, %v1352, %v1356
      %v1359 = vshrl.u32 %v1244, 16
      %v1361 = vrot.slane %v1359, 4
      %v1362 = vshll.u32 %v1244, 16
      %v1364 = vrot.slane %v1362, 5
      %v1365 = vor.u32 %v1361, %v1364
      %v1366 = vrot.slane %v1365, 4
      %v1368 = vshll.u32 %v1245, 16
      %v1370 = vrot.slane %v1368, 5
      %v1371 = vsel %vm1285, %v1366, %v1370
      %v1372 = vshrl.u32 %v1245, 16
      %v1374 = vrot.slane %v1372, 4
      %v1375 = vor.u32 %v1374, %v1370
      %v1376 = vrot.slane %v1375, 4
      %v1378 = vshll.u32 %v1246, 16
      %v1380 = vrot.slane %v1378, 5
      %v1381 = vsel %vm1285, %v1376, %v1380
      %v1383 = vshrl.u32 %v1247, 16
      %v1385 = vrot.slane %v1383, 4
      %v1386 = vshll.u32 %v1247, 16
      %v1388 = vrot.slane %v1386, 5
      %v1389 = vor.u32 %v1385, %v1388
      %v1390 = vrot.slane %v1389, 4
      %v1392 = vshll.u32 %v1248, 16
      %v1394 = vrot.slane %v1392, 5
      %v1395 = vsel %vm1285, %v1390, %v1394
      %v1396 = vshrl.u32 %v1248, 16
      %v1398 = vrot.slane %v1396, 4
      %v1399 = vor.u32 %v1398, %v1394
      %v1400 = vrot.slane %v1399, 4
      %v1402 = vshll.u32 %v1249, 16
      %v1404 = vrot.slane %v1402, 5
      %v1405 = vsel %vm1285, %v1400, %v1404
      %v1407 = vshrl.u32 %v1250, 16
      %v1409 = vrot.slane %v1407, 4
      %v1410 = vshll.u32 %v1250, 16
      %v1412 = vrot.slane %v1410, 5
      %v1413 = vor.u32 %v1409, %v1412
      %v1414 = vrot.slane %v1413, 4
      %v1416 = vshll.u32 %v1251, 16
      %v1418 = vrot.slane %v1416, 5
      %v1419 = vsel %vm1285, %v1414, %v1418
      %v1420 = vshrl.u32 %v1251, 16
      %v1422 = vrot.slane %v1420, 4
      %v1423 = vor.u32 %v1422, %v1418
      %v1424 = vrot.slane %v1423, 4
      %v1426 = vshll.u32 %v1252, 16
      %v1428 = vrot.slane %v1426, 5
      %v1429 = vsel %vm1285, %v1424, %v1428
      %v1431 = vshrl.u32 %v1253, 16
      %v1433 = vrot.slane %v1431, 4
      %v1434 = vshll.u32 %v1253, 16
      %v1436 = vrot.slane %v1434, 5
      %v1437 = vor.u32 %v1433, %v1436
      %v1438 = vrot.slane %v1437, 4
      %v1440 = vshll.u32 %v1254, 16
      %v1442 = vrot.slane %v1440, 5
      %v1443 = vsel %vm1285, %v1438, %v1442
      %v1444 = vshrl.u32 %v1254, 16
      %v1446 = vrot.slane %v1444, 4
      %v1447 = vor.u32 %v1446, %v1442
      %v1448 = vrot.slane %v1447, 4
      %v1450 = vshll.u32 %v1255, 16
      %v1452 = vrot.slane %v1450, 5
      %v1453 = vsel %vm1285, %v1448, %v1452
      %v1455 = vshrl.u32 %v1256, 16
      %v1457 = vrot.slane %v1455, 4
      %v1458 = vshll.u32 %v1256, 16
      %v1460 = vrot.slane %v1458, 5
      %v1461 = vor.u32 %v1457, %v1460
      %v1462 = vrot.slane %v1461, 4
      %v1464 = vshll.u32 %v1257, 16
      %v1466 = vrot.slane %v1464, 5
      %v1467 = vsel %vm1285, %v1462, %v1466
      %v1468 = vshrl.u32 %v1257, 16
      %v1470 = vrot.slane %v1468, 4
      %v1471 = vor.u32 %v1470, %v1466
      %v1472 = vrot.slane %v1471, 4
      %v1474 = vshll.u32 %v1258, 16
      %v1476 = vrot.slane %v1474, 5
      %v1477 = vsel %vm1285, %v1472, %v1476
      %v1479 = vshrl.u32 %v1259, 16
      %v1481 = vrot.slane %v1479, 4
      %v1482 = vshll.u32 %v1259, 16
      %v1484 = vrot.slane %v1482, 5
      %v1485 = vor.u32 %v1481, %v1484
      %v1486 = vrot.slane %v1485, 4
      %v1488 = vshll.u32 %v1260, 16
      %v1490 = vrot.slane %v1488, 5
      %v1491 = vsel %vm1285, %v1486, %v1490
      %v1492 = vshrl.u32 %v1260, 16
      %v1494 = vrot.slane %v1492, 4
      %v1495 = vor.u32 %v1494, %v1490
      %v1496 = vrot.slane %v1495, 4
      %v1498 = vshll.u32 %v1261, 16
      %v1500 = vrot.slane %v1498, 5
      %v1501 = vsel %vm1285, %v1496, %v1500
      %v1503 = vshrl.u32 %v1262, 16
      %v1505 = vrot.slane %v1503, 4
      %v1506 = vshll.u32 %v1262, 16
      %v1508 = vrot.slane %v1506, 5
      %v1509 = vor.u32 %v1505, %v1508
      %v1510 = vrot.slane %v1509, 4
      %v1512 = vshll.u32 %v1263, 16
      %v1514 = vrot.slane %v1512, 5
      %v1515 = vsel %vm1285, %v1510, %v1514
      %v1516 = vshrl.u32 %v1263, 16
      %v1518 = vrot.slane %v1516, 4
      %v1519 = vor.u32 %v1518, %v1514
      %v1520 = vrot.slane %v1519, 4
      %v1522 = vshll.u32 %v1264, 16
      %v1524 = vrot.slane %v1522, 5
      %v1525 = vsel %vm1285, %v1520, %v1524
      %v1527 = vshrl.u32 %v1265, 16
      %v1529 = vrot.slane %v1527, 4
      %v1530 = vshll.u32 %v1265, 16
      %v1532 = vrot.slane %v1530, 5
      %v1533 = vor.u32 %v1529, %v1532
      %v1534 = vrot.slane %v1533, 4
      %v1536 = vshll.u32 %v1266, 16
      %v1538 = vrot.slane %v1536, 5
      %v1539 = vsel %vm1285, %v1534, %v1538
      %v1540 = vshrl.u32 %v1266, 16
      %v1542 = vrot.slane %v1540, 4
      %v1543 = vor.u32 %v1542, %v1538
      %v1544 = vrot.slane %v1543, 4
      %v1546 = vshll.u32 %v1267, 16
      %v1548 = vrot.slane %v1546, 5
      %v1549 = vsel %vm1285, %v1544, %v1548
      %v1551 = vshrl.u32 %v1268, 16
      %v1553 = vrot.slane %v1551, 4
      %v1554 = vshll.u32 %v1268, 16
      %v1556 = vrot.slane %v1554, 5
      %v1557 = vor.u32 %v1553, %v1556
      %v1558 = vrot.slane %v1557, 4
      %v1560 = vshll.u32 %v1269, 16
      %v1562 = vrot.slane %v1560, 5
      %v1563 = vsel %vm1285, %v1558, %v1562
      %v1564 = vshrl.u32 %v1269, 16
      %v1566 = vrot.slane %v1564, 4
      %v1567 = vor.u32 %v1566, %v1562
      %v1568 = vrot.slane %v1567, 4
      %v1570 = vshll.u32 %v1270, 16
      %v1572 = vrot.slane %v1570, 5
      %v1573 = vsel %vm1285, %v1568, %v1572
      %v1575 = vshrl.u32 %v1271, 16
      %v1577 = vrot.slane %v1575, 4
      %v1578 = vshll.u32 %v1271, 16
      %v1580 = vrot.slane %v1578, 5
      %v1581 = vor.u32 %v1577, %v1580
      %v1582 = vrot.slane %v1581, 4
      %v1584 = vshll.u32 %v1272, 16
      %v1586 = vrot.slane %v1584, 5
      %v1587 = vsel %vm1285, %v1582, %v1586
      %v1588 = vshrl.u32 %v1272, 16
      %v1590 = vrot.slane %v1588, 4
      %v1591 = vor.u32 %v1590, %v1586
      %v1592 = vrot.slane %v1591, 4
      %v1594 = vshll.u32 %v1273, 16
      %v1596 = vrot.slane %v1594, 5
      %v1597 = vsel %vm1285, %v1592, %v1596
      %v1599 = vshrl.u32 %v1274, 16
      %v1601 = vrot.slane %v1599, 4
      %v1602 = vshll.u32 %v1274, 16
      %v1604 = vrot.slane %v1602, 5
      %v1605 = vor.u32 %v1601, %v1604
      %v1606 = vrot.slane %v1605, 4
      %v1608 = vshll.u32 %v1275, 16
      %v1610 = vrot.slane %v1608, 5
      %v1611 = vsel %vm1285, %v1606, %v1610
      %v1612 = vshrl.u32 %v1275, 16
      %v1614 = vrot.slane %v1612, 4
      %v1615 = vor.u32 %v1614, %v1610
      %v1616 = vrot.slane %v1615, 4
      %v1618 = vshll.u32 %v1276, 16
      %v1620 = vrot.slane %v1618, 5
      %v1621 = vsel %vm1285, %v1616, %v1620
      %v1623 = vshrl.u32 %v1277, 16
      %v1625 = vrot.slane %v1623, 4
      %v1626 = vshll.u32 %v1277, 16
      %v1628 = vrot.slane %v1626, 5
      %v1629 = vor.u32 %v1625, %v1628
      %v1630 = vrot.slane %v1629, 4
      %v1632 = vshll.u32 %v1278, 16
      %v1634 = vrot.slane %v1632, 5
      %v1635 = vsel %vm1285, %v1630, %v1634
      %v1636 = vshrl.u32 %v1278, 16
      %v1638 = vrot.slane %v1636, 4
      %v1639 = vor.u32 %v1638, %v1634
      %v1640 = vrot.slane %v1639, 4
      %v1642 = vshll.u32 %v1279, 16
      %v1644 = vrot.slane %v1642, 5
      %v1645 = vsel %vm1285, %v1640, %v1644
      %v1647 = vshrl.u32 %v1280, 16
      %v1649 = vrot.slane %v1647, 4
      %v1650 = vshll.u32 %v1280, 16
      %v1652 = vrot.slane %v1650, 5
      %v1653 = vor.u32 %v1649, %v1652
      %v1654 = vrot.slane %v1653, 4
      %v1656 = vshll.u32 %v1281, 16
      %v1658 = vrot.slane %v1656, 5
      %v1659 = vsel %vm1285, %v1654, %v1658
      %v1660 = vshrl.u32 %v1281, 16
      %v1662 = vrot.slane %v1660, 4
      %v1663 = vor.u32 %v1662, %v1658
      %v1664 = vrot.slane %v1663, 4
      %v1666 = vshll.u32 %v1282, 16
      %v1668 = vrot.slane %v1666, 5
      %v1669 = vsel %vm1285, %v1664, %v1668
      %1670 = vrot.lane.b32.xlu0 %v1299, 4
      %v1671 = vpop.permute.xlu0 %1670
      %1672 = vrot.lane.b32.xlu0 %v1309, 4
      %v1673 = vpop.permute.xlu0 %1672
      %1674 = vrot.lane.b32.xlu0 %v1323, 4
      %v1675 = vpop.permute.xlu0 %1674
      %1676 = vrot.lane.b32.xlu0 %v1333, 4
      %v1677 = vpop.permute.xlu0 %1676
      %1678 = vrot.lane.b32.xlu0 %v1347, 4
      %v1679 = vpop.permute.xlu0 %1678
      %1680 = vrot.lane.b32.xlu0 %v1357, 4
      %v1681 = vpop.permute.xlu0 %1680
      %1682 = vrot.lane.b32.xlu0 %v1371, 4
      %v1683 = vpop.permute.xlu0 %1682
      %1684 = vrot.lane.b32.xlu0 %v1381, 4
      %v1685 = vpop.permute.xlu0 %1684
      %1686 = vrot.lane.b32.xlu0 %v1395, 4
      %v1687 = vpop.permute.xlu0 %1686
      %1688 = vrot.lane.b32.xlu0 %v1405, 4
      %v1689 = vpop.permute.xlu0 %1688
      %1690 = vrot.lane.b32.xlu0 %v1419, 4
      %v1691 = vpop.permute.xlu0 %1690
      %1692 = vrot.lane.b32.xlu0 %v1429, 4
      %v1693 = vpop.permute.xlu0 %1692
      %1694 = vrot.lane.b32.xlu0 %v1443, 4
      %v1695 = vpop.permute.xlu0 %1694
      %1696 = vrot.lane.b32.xlu0 %v1453, 4
      %v1697 = vpop.permute.xlu0 %1696
      %1698 = vrot.lane.b32.xlu0 %v1467, 4
      %v1699 = vpop.permute.xlu0 %1698
      %1700 = vrot.lane.b32.xlu0 %v1477, 4
      %v1701 = vpop.permute.xlu0 %1700
      %1702 = vrot.lane.b32.xlu0 %v1491, 4
      %v1703 = vpop.permute.xlu0 %1702
      %1704 = vrot.lane.b32.xlu0 %v1501, 4
      %v1705 = vpop.permute.xlu0 %1704
      %1706 = vrot.lane.b32.xlu0 %v1515, 4
      %v1707 = vpop.permute.xlu0 %1706
      %1708 = vrot.lane.b32.xlu0 %v1525, 4
      %v1709 = vpop.permute.xlu0 %1708
      %1710 = vrot.lane.b32.xlu0 %v1539, 4
      %v1711 = vpop.permute.xlu0 %1710
      %1712 = vrot.lane.b32.xlu0 %v1549, 4
      %v1713 = vpop.permute.xlu0 %1712
      %1714 = vrot.lane.b32.xlu0 %v1563, 4
      %v1715 = vpop.permute.xlu0 %1714
      %1716 = vrot.lane.b32.xlu0 %v1573, 4
      %v1717 = vpop.permute.xlu0 %1716
      %1718 = vrot.lane.b32.xlu0 %v1587, 4
      %v1719 = vpop.permute.xlu0 %1718
      %1720 = vrot.lane.b32.xlu0 %v1597, 4
      %v1721 = vpop.permute.xlu0 %1720
      %1722 = vrot.lane.b32.xlu0 %v1611, 4
      %v1723 = vpop.permute.xlu0 %1722
      %1724 = vrot.lane.b32.xlu0 %v1621, 4
      %v1725 = vpop.permute.xlu0 %1724
      %1726 = vrot.lane.b32.xlu0 %v1635, 4
      %v1727 = vpop.permute.xlu0 %1726
      %1728 = vrot.lane.b32.xlu0 %v1645, 4
      %v1729 = vpop.permute.xlu0 %1728
      %1730 = vrot.lane.b32.xlu0 %v1659, 4
      %v1731 = vpop.permute.xlu0 %1730
      %1732 = vrot.lane.b32.xlu0 %v1669, 4
      %v1733 = vpop.permute.xlu0 %1732
      %vm1766 = vcmask 60448
      %1767 = vst.msk [vmem:[#allocation3] sm:$0xf] %vm1766, %v1671
      %1768 = vst.msk [vmem:[#allocation3 + $0x4] sm:$0xf] %vm1766, %v1673
      %1769 = vst.msk [vmem:[#allocation3 + $0x8] sm:$0xf] %vm1766, %v1675
      %1770 = vst.msk [vmem:[#allocation3 + $0xc] sm:$0xf] %vm1766, %v1677
      %1771 = vst.msk [vmem:[#allocation3 + $0x10] sm:$0xf] %vm1766, %v1679
      %1772 = vst.msk [vmem:[#allocation3 + $0x14] sm:$0xf] %vm1766, %v1681
      %1773 = vst.msk [vmem:[#allocation3 + $0x18] sm:$0xf] %vm1766, %v1683
      %1774 = vst.msk [vmem:[#allocation3 + $0x1c] sm:$0xf] %vm1766, %v1685
      %1775 = vst.msk [vmem:[#allocation3 + $0x20] sm:$0xf] %vm1766, %v1687
      %1776 = vst.msk [vmem:[#allocation3 + $0x24] sm:$0xf] %vm1766, %v1689
      %1777 = vst.msk [vmem:[#allocation3 + $0x28] sm:$0xf] %vm1766, %v1691
      %1778 = vst.msk [vmem:[#allocation3 + $0x2c] sm:$0xf] %vm1766, %v1693
      %1779 = vst.msk [vmem:[#allocation3 + $0x30] sm:$0xf] %vm1766, %v1695
      %1780 = vst.msk [vmem:[#allocation3 + $0x34] sm:$0xf] %vm1766, %v1697
      %1781 = vst.msk [vmem:[#allocation3 + $0x38] sm:$0xf] %vm1766, %v1699
      %1782 = vst.msk [vmem:[#allocation3 + $0x3c] sm:$0xf] %vm1766, %v1701
      %1783 = vst.msk [vmem:[#allocation3 + $0x40] sm:$0xf] %vm1766, %v1703
      %1784 = vst.msk [vmem:[#allocation3 + $0x44] sm:$0xf] %vm1766, %v1705
      %1785 = vst.msk [vmem:[#allocation3 + $0x48] sm:$0xf] %vm1766, %v1707
      %1786 = vst.msk [vmem:[#allocation3 + $0x4c] sm:$0xf] %vm1766, %v1709
      %1787 = vst.msk [vmem:[#allocation3 + $0x50] sm:$0xf] %vm1766, %v1711
      %1788 = vst.msk [vmem:[#allocation3 + $0x54] sm:$0xf] %vm1766, %v1713
      %1789 = vst.msk [vmem:[#allocation3 + $0x58] sm:$0xf] %vm1766, %v1715
      %1790 = vst.msk [vmem:[#allocation3 + $0x5c] sm:$0xf] %vm1766, %v1717
      %1791 = vst.msk [vmem:[#allocation3 + $0x60] sm:$0xf] %vm1766, %v1719
      %1792 = vst.msk [vmem:[#allocation3 + $0x64] sm:$0xf] %vm1766, %v1721
      %1793 = vst.msk [vmem:[#allocation3 + $0x68] sm:$0xf] %vm1766, %v1723
      %1794 = vst.msk [vmem:[#allocation3 + $0x6c] sm:$0xf] %vm1766, %v1725
      %1795 = vst.msk [vmem:[#allocation3 + $0x70] sm:$0xf] %vm1766, %v1727
      %1796 = vst.msk [vmem:[#allocation3 + $0x74] sm:$0xf] %vm1766, %v1729
      %1797 = vst.msk [vmem:[#allocation3 + $0x78] sm:$0xf] %vm1766, %v1731
      %1798 = vst.msk [vmem:[#allocation3 + $0x7c] sm:$0xf] %vm1766, %v1733
      %v1799 = vld [vmem:[#allocation2] sm:$0xe]
      %v1800 = vld [vmem:[#allocation2 + $0x4] sm:$0xf]
      %v1801 = vld [vmem:[#allocation2 + $0x8] sm:$0x1]
      %v1802 = vld [vmem:[#allocation2 + $0xc] sm:$0xe]
      %v1803 = vld [vmem:[#allocation2 + $0x10] sm:$0xf]
      %v1804 = vld [vmem:[#allocation2 + $0x14] sm:$0x1]
      %v1805 = vld [vmem:[#allocation2 + $0x18] sm:$0xe]
      %v1806 = vld [vmem:[#allocation2 + $0x1c] sm:$0xf]
      %v1807 = vld [vmem:[#allocation2 + $0x20] sm:$0x1]
      %v1808 = vld [vmem:[#allocation2 + $0x24] sm:$0xe]
      %v1809 = vld [vmem:[#allocation2 + $0x28] sm:$0xf]
      %v1810 = vld [vmem:[#allocation2 + $0x2c] sm:$0x1]
      %v1811 = vld [vmem:[#allocation2 + $0x30] sm:$0xe]
      %v1812 = vld [vmem:[#allocation2 + $0x34] sm:$0xf]
      %v1813 = vld [vmem:[#allocation2 + $0x38] sm:$0x1]
      %v1814 = vld [vmem:[#allocation2 + $0x3c] sm:$0xe]
      %v1815 = vld [vmem:[#allocation2 + $0x40] sm:$0xf]
      %v1816 = vld [vmem:[#allocation2 + $0x44] sm:$0x1]
      %v1817 = vld [vmem:[#allocation2 + $0x48] sm:$0xe]
      %v1818 = vld [vmem:[#allocation2 + $0x4c] sm:$0xf]
      %v1819 = vld [vmem:[#allocation2 + $0x50] sm:$0x1]
      %v1820 = vld [vmem:[#allocation2 + $0x54] sm:$0xe]
      %v1821 = vld [vmem:[#allocation2 + $0x58] sm:$0xf]
      %v1822 = vld [vmem:[#allocation2 + $0x5c] sm:$0x1]
      %v1823 = vld [vmem:[#allocation2 + $0x60] sm:$0xe]
      %v1824 = vld [vmem:[#allocation2 + $0x64] sm:$0xf]
      %v1825 = vld [vmem:[#allocation2 + $0x68] sm:$0x1]
      %v1826 = vld [vmem:[#allocation2 + $0x6c] sm:$0xe]
      %v1827 = vld [vmem:[#allocation2 + $0x70] sm:$0xf]
      %v1828 = vld [vmem:[#allocation2 + $0x74] sm:$0x1]
      %v1829 = vld [vmem:[#allocation2 + $0x78] sm:$0xe]
      %v1830 = vld [vmem:[#allocation2 + $0x7c] sm:$0xf]
      %v1831 = vld [vmem:[#allocation2 + $0x80] sm:$0x1]
      %v1832 = vld [vmem:[#allocation2 + $0x84] sm:$0xe]
      %v1833 = vld [vmem:[#allocation2 + $0x88] sm:$0xf]
      %v1834 = vld [vmem:[#allocation2 + $0x8c] sm:$0x1]
      %v1835 = vld [vmem:[#allocation2 + $0x90] sm:$0xe]
      %v1836 = vld [vmem:[#allocation2 + $0x94] sm:$0xf]
      %v1837 = vld [vmem:[#allocation2 + $0x98] sm:$0x1]
      %v1838 = vld [vmem:[#allocation2 + $0x9c] sm:$0xe]
      %v1839 = vld [vmem:[#allocation2 + $0xa0] sm:$0xf]
      %v1840 = vld [vmem:[#allocation2 + $0xa4] sm:$0x1]
      %v1841 = vld [vmem:[#allocation2 + $0xa8] sm:$0xe]
      %v1842 = vld [vmem:[#allocation2 + $0xac] sm:$0xf]
      %v1843 = vld [vmem:[#allocation2 + $0xb0] sm:$0x1]
      %v1844 = vld [vmem:[#allocation2 + $0xb4] sm:$0xe]
      %v1845 = vld [vmem:[#allocation2 + $0xb8] sm:$0xf]
      %v1846 = vld [vmem:[#allocation2 + $0xbc] sm:$0x1]
      %vm1895 = vcmask 1042432
      %vm1896 = vcmask 1046532
      %vm1897 = vmor %vm1895, %vm1896
      %v1898 = vrot.slane %v1799, 5
      %v1899 = vrot.slane %v1898, 4
      %v1900 = vrot.slane %v1800, 5
      %v1901 = vsel %vm1897, %v1899, %v1900
      %v1902 = vrot.slane %v1900, 4
      %v1903 = vrot.slane %v1801, 5
      %v1904 = vsel %vm1897, %v1902, %v1903
      %v1905 = vrot.slane %v1802, 5
      %v1906 = vrot.slane %v1905, 4
      %v1907 = vrot.slane %v1803, 5
      %v1908 = vsel %vm1897, %v1906, %v1907
      %v1909 = vrot.slane %v1907, 4
      %v1910 = vrot.slane %v1804, 5
      %v1911 = vsel %vm1897, %v1909, %v1910
      %v1912 = vrot.slane %v1805, 5
      %v1913 = vrot.slane %v1912, 4
      %v1914 = vrot.slane %v1806, 5
      %v1915 = vsel %vm1897, %v1913, %v1914
      %v1916 = vrot.slane %v1914, 4
      %v1917 = vrot.slane %v1807, 5
      %v1918 = vsel %vm1897, %v1916, %v1917
      %v1919 = vrot.slane %v1808, 5
      %v1920 = vrot.slane %v1919, 4
      %v1921 = vrot.slane %v1809, 5
      %v1922 = vsel %vm1897, %v1920, %v1921
      %v1923 = vrot.slane %v1921, 4
      %v1924 = vrot.slane %v1810, 5
      %v1925 = vsel %vm1897, %v1923, %v1924
      %v1926 = vrot.slane %v1811, 5
      %v1927 = vrot.slane %v1926, 4
      %v1928 = vrot.slane %v1812, 5
      %v1929 = vsel %vm1897, %v1927, %v1928
      %v1930 = vrot.slane %v1928, 4
      %v1931 = vrot.slane %v1813, 5
      %v1932 = vsel %vm1897, %v1930, %v1931
      %v1933 = vrot.slane %v1814, 5
      %v1934 = vrot.slane %v1933, 4
      %v1935 = vrot.slane %v1815, 5
      %v1936 = vsel %vm1897, %v1934, %v1935
      %v1937 = vrot.slane %v1935, 4
      %v1938 = vrot.slane %v1816, 5
      %v1939 = vsel %vm1897, %v1937, %v1938
      %v1940 = vrot.slane %v1817, 5
      %v1941 = vrot.slane %v1940, 4
      %v1942 = vrot.slane %v1818, 5
      %v1943 = vsel %vm1897, %v1941, %v1942
      %v1944 = vrot.slane %v1942, 4
      %v1945 = vrot.slane %v1819, 5
      %v1946 = vsel %vm1897, %v1944, %v1945
      %v1947 = vrot.slane %v1820, 5
      %v1948 = vrot.slane %v1947, 4
      %v1949 = vrot.slane %v1821, 5
      %v1950 = vsel %vm1897, %v1948, %v1949
      %v1951 = vrot.slane %v1949, 4
      %v1952 = vrot.slane %v1822, 5
      %v1953 = vsel %vm1897, %v1951, %v1952
      %v1954 = vrot.slane %v1823, 5
      %v1955 = vrot.slane %v1954, 4
      %v1956 = vrot.slane %v1824, 5
      %v1957 = vsel %vm1897, %v1955, %v1956
      %v1958 = vrot.slane %v1956, 4
      %v1959 = vrot.slane %v1825, 5
      %v1960 = vsel %vm1897, %v1958, %v1959
      %v1961 = vrot.slane %v1826, 5
      %v1962 = vrot.slane %v1961, 4
      %v1963 = vrot.slane %v1827, 5
      %v1964 = vsel %vm1897, %v1962, %v1963
      %v1965 = vrot.slane %v1963, 4
      %v1966 = vrot.slane %v1828, 5
      %v1967 = vsel %vm1897, %v1965, %v1966
      %v1968 = vrot.slane %v1829, 5
      %v1969 = vrot.slane %v1968, 4
      %v1970 = vrot.slane %v1830, 5
      %v1971 = vsel %vm1897, %v1969, %v1970
      %v1972 = vrot.slane %v1970, 4
      %v1973 = vrot.slane %v1831, 5
      %v1974 = vsel %vm1897, %v1972, %v1973
      %v1975 = vrot.slane %v1832, 5
      %v1976 = vrot.slane %v1975, 4
      %v1977 = vrot.slane %v1833, 5
      %v1978 = vsel %vm1897, %v1976, %v1977
      %v1979 = vrot.slane %v1977, 4
      %v1980 = vrot.slane %v1834, 5
      %v1981 = vsel %vm1897, %v1979, %v1980
      %v1982 = vrot.slane %v1835, 5
      %v1983 = vrot.slane %v1982, 4
      %v1984 = vrot.slane %v1836, 5
      %v1985 = vsel %vm1897, %v1983, %v1984
      %v1986 = vrot.slane %v1984, 4
      %v1987 = vrot.slane %v1837, 5
      %v1988 = vsel %vm1897, %v1986, %v1987
      %v1989 = vrot.slane %v1838, 5
      %v1990 = vrot.slane %v1989, 4
      %v1991 = vrot.slane %v1839, 5
      %v1992 = vsel %vm1897, %v1990, %v1991
      %v1993 = vrot.slane %v1991, 4
      %v1994 = vrot.slane %v1840, 5
      %v1995 = vsel %vm1897, %v1993, %v1994
      %v1996 = vrot.slane %v1841, 5
      %v1997 = vrot.slane %v1996, 4
      %v1998 = vrot.slane %v1842, 5
      %v1999 = vsel %vm1897, %v1997, %v1998
      %v2000 = vrot.slane %v1998, 4
      %v2001 = vrot.slane %v1843, 5
      %v2002 = vsel %vm1897, %v2000, %v2001
      %v2003 = vrot.slane %v1844, 5
      %v2004 = vrot.slane %v2003, 4
      %v2005 = vrot.slane %v1845, 5
      %v2006 = vsel %vm1897, %v2004, %v2005
      %v2007 = vrot.slane %v2005, 4
      %v2008 = vrot.slane %v1846, 5
      %v2009 = vsel %vm1897, %v2007, %v2008
      %2010 = vrot.lane.b32.xlu0 %v1901, 8
      %v2011 = vpop.permute.xlu0 %2010
      %2012 = vrot.lane.b32.xlu0 %v1904, 8
      %v2013 = vpop.permute.xlu0 %2012
      %2014 = vrot.lane.b32.xlu0 %v1908, 8
      %v2015 = vpop.permute.xlu0 %2014
      %2016 = vrot.lane.b32.xlu0 %v1911, 8
      %v2017 = vpop.permute.xlu0 %2016
      %2018 = vrot.lane.b32.xlu0 %v1915, 8
      %v2019 = vpop.permute.xlu0 %2018
      %2020 = vrot.lane.b32.xlu0 %v1918, 8
      %v2021 = vpop.permute.xlu0 %2020
      %2022 = vrot.lane.b32.xlu0 %v1922, 8
      %v2023 = vpop.permute.xlu0 %2022
      %2024 = vrot.lane.b32.xlu0 %v1925, 8
      %v2025 = vpop.permute.xlu0 %2024
      %2026 = vrot.lane.b32.xlu0 %v1929, 8
      %v2027 = vpop.permute.xlu0 %2026
      %2028 = vrot.lane.b32.xlu0 %v1932, 8
      %v2029 = vpop.permute.xlu0 %2028
      %2030 = vrot.lane.b32.xlu0 %v1936, 8
      %v2031 = vpop.permute.xlu0 %2030
      %2032 = vrot.lane.b32.xlu0 %v1939, 8
      %v2033 = vpop.permute.xlu0 %2032
      %2034 = vrot.lane.b32.xlu0 %v1943, 8
      %v2035 = vpop.permute.xlu0 %2034
      %2036 = vrot.lane.b32.xlu0 %v1946, 8
      %v2037 = vpop.permute.xlu0 %2036
      %2038 = vrot.lane.b32.xlu0 %v1950, 8
      %v2039 = vpop.permute.xlu0 %2038
      %2040 = vrot.lane.b32.xlu0 %v1953, 8
      %v2041 = vpop.permute.xlu0 %2040
      %2042 = vrot.lane.b32.xlu0 %v1957, 8
      %v2043 = vpop.permute.xlu0 %2042
      %2044 = vrot.lane.b32.xlu0 %v1960, 8
      %v2045 = vpop.permute.xlu0 %2044
      %2046 = vrot.lane.b32.xlu0 %v1964, 8
      %v2047 = vpop.permute.xlu0 %2046
      %2048 = vrot.lane.b32.xlu0 %v1967, 8
      %v2049 = vpop.permute.xlu0 %2048
      %2050 = vrot.lane.b32.xlu0 %v1971, 8
      %v2051 = vpop.permute.xlu0 %2050
      %2052 = vrot.lane.b32.xlu0 %v1974, 8
      %v2053 = vpop.permute.xlu0 %2052
      %2054 = vrot.lane.b32.xlu0 %v1978, 8
      %v2055 = vpop.permute.xlu0 %2054
      %2056 = vrot.lane.b32.xlu0 %v1981, 8
      %v2057 = vpop.permute.xlu0 %2056
      %2058 = vrot.lane.b32.xlu0 %v1985, 8
      %v2059 = vpop.permute.xlu0 %2058
      %2060 = vrot.lane.b32.xlu0 %v1988, 8
      %v2061 = vpop.permute.xlu0 %2060
      %2062 = vrot.lane.b32.xlu0 %v1992, 8
      %v2063 = vpop.permute.xlu0 %2062
      %2064 = vrot.lane.b32.xlu0 %v1995, 8
      %v2065 = vpop.permute.xlu0 %2064
      %2066 = vrot.lane.b32.xlu0 %v1999, 8
      %v2067 = vpop.permute.xlu0 %2066
      %2068 = vrot.lane.b32.xlu0 %v2002, 8
      %v2069 = vpop.permute.xlu0 %2068
      %2070 = vrot.lane.b32.xlu0 %v2006, 8
      %v2071 = vpop.permute.xlu0 %2070
      %2072 = vrot.lane.b32.xlu0 %v2009, 8
      %v2073 = vpop.permute.xlu0 %2072
      %vm2106 = vcmask 93248
      %2107 = vst.msk [vmem:[#allocation3] sm:$0xf] %vm2106, %v2011
      %2108 = vst.msk [vmem:[#allocation3 + $0x4] sm:$0xf] %vm2106, %v2013
      %2109 = vst.msk [vmem:[#allocation3 + $0x8] sm:$0xf] %vm2106, %v2015
      %2110 = vst.msk [vmem:[#allocation3 + $0xc] sm:$0xf] %vm2106, %v2017
      %2111 = vst.msk [vmem:[#allocation3 + $0x10] sm:$0xf] %vm2106, %v2019
      %2112 = vst.msk [vmem:[#allocation3 + $0x14] sm:$0xf] %vm2106, %v2021
      %2113 = vst.msk [vmem:[#allocation3 + $0x18] sm:$0xf] %vm2106, %v2023
      %2114 = vst.msk [vmem:[#allocation3 + $0x1c] sm:$0xf] %vm2106, %v2025
      %2115 = vst.msk [vmem:[#allocation3 + $0x20] sm:$0xf] %vm2106, %v2027
      %2116 = vst.msk [vmem:[#allocation3 + $0x24] sm:$0xf] %vm2106, %v2029
      %2117 = vst.msk [vmem:[#allocation3 + $0x28] sm:$0xf] %vm2106, %v2031
      %2118 = vst.msk [vmem:[#allocation3 + $0x2c] sm:$0xf] %vm2106, %v2033
      %2119 = vst.msk [vmem:[#allocation3 + $0x30] sm:$0xf] %vm2106, %v2035
      %2120 = vst.msk [vmem:[#allocation3 + $0x34] sm:$0xf] %vm2106, %v2037
      %2121 = vst.msk [vmem:[#allocation3 + $0x38] sm:$0xf] %vm2106, %v2039
      %2122 = vst.msk [vmem:[#allocation3 + $0x3c] sm:$0xf] %vm2106, %v2041
      %2123 = vst.msk [vmem:[#allocation3 + $0x40] sm:$0xf] %vm2106, %v2043
      %2124 = vst.msk [vmem:[#allocation3 + $0x44] sm:$0xf] %vm2106, %v2045
      %2125 = vst.msk [vmem:[#allocation3 + $0x48] sm:$0xf] %vm2106, %v2047
      %2126 = vst.msk [vmem:[#allocation3 + $0x4c] sm:$0xf] %vm2106, %v2049
      %2127 = vst.msk [vmem:[#allocation3 + $0x50] sm:$0xf] %vm2106, %v2051
      %2128 = vst.msk [vmem:[#allocation3 + $0x54] sm:$0xf] %vm2106, %v2053
      %2129 = vst.msk [vmem:[#allocation3 + $0x58] sm:$0xf] %vm2106, %v2055
      %2130 = vst.msk [vmem:[#allocation3 + $0x5c] sm:$0xf] %vm2106, %v2057
      %2131 = vst.msk [vmem:[#allocation3 + $0x60] sm:$0xf] %vm2106, %v2059
      %2132 = vst.msk [vmem:[#allocation3 + $0x64] sm:$0xf] %vm2106, %v2061
      %2133 = vst.msk [vmem:[#allocation3 + $0x68] sm:$0xf] %vm2106, %v2063
      %2134 = vst.msk [vmem:[#allocation3 + $0x6c] sm:$0xf] %vm2106, %v2065
      %2135 = vst.msk [vmem:[#allocation3 + $0x70] sm:$0xf] %vm2106, %v2067
      %2136 = vst.msk [vmem:[#allocation3 + $0x74] sm:$0xf] %vm2106, %v2069
      %2137 = vst.msk [vmem:[#allocation3 + $0x78] sm:$0xf] %vm2106, %v2071
      %2138 = vst.msk [vmem:[#allocation3 + $0x7c] sm:$0xf] %vm2106, %v2073
      %v2139 = vld [vmem:[%s970] sm:$0xf]
      %v2140 = vld [vmem:[%s970 + $0x4] sm:$0xf]
      %v2141 = vld [vmem:[%s970 + $0xc] sm:$0xf]
      %v2142 = vld [vmem:[%s970 + $0x10] sm:$0xf]
      %v2143 = vld [vmem:[%s970 + $0x18] sm:$0xf]
      %v2144 = vld [vmem:[%s970 + $0x1c] sm:$0xf]
      %v2145 = vld [vmem:[%s970 + $0x24] sm:$0xf]
      %v2146 = vld [vmem:[%s970 + $0x28] sm:$0xf]
      %v2147 = vld [vmem:[%s970 + $0x30] sm:$0xf]
      %v2148 = vld [vmem:[%s970 + $0x34] sm:$0xf]
      %v2149 = vld [vmem:[%s970 + $0x3c] sm:$0xf]
      %v2150 = vld [vmem:[%s970 + $0x40] sm:$0xf]
      %v2151 = vld [vmem:[%s970 + $0x48] sm:$0xf]
      %v2152 = vld [vmem:[%s970 + $0x4c] sm:$0xf]
      %v2153 = vld [vmem:[%s970 + $0x54] sm:$0xf]
      %v2154 = vld [vmem:[%s970 + $0x58] sm:$0xf]
      %v2155 = vld [vmem:[%s970 + $0x60] sm:$0xf]
      %v2156 = vld [vmem:[%s970 + $0x64] sm:$0xf]
      %v2157 = vld [vmem:[%s970 + $0x6c] sm:$0xf]
      %v2158 = vld [vmem:[%s970 + $0x70] sm:$0xf]
      %v2159 = vld [vmem:[%s970 + $0x78] sm:$0xf]
      %v2160 = vld [vmem:[%s970 + $0x7c] sm:$0xf]
      %v2161 = vld [vmem:[%s970 + $0x84] sm:$0xf]
      %v2162 = vld [vmem:[%s970 + $0x88] sm:$0xf]
      %v2163 = vld [vmem:[%s970 + $0x90] sm:$0xf]
      %v2164 = vld [vmem:[%s970 + $0x94] sm:$0xf]
      %v2165 = vld [vmem:[%s970 + $0x9c] sm:$0xf]
      %v2166 = vld [vmem:[%s970 + $0xa0] sm:$0xf]
      %v2167 = vld [vmem:[%s970 + $0xa8] sm:$0xf]
      %v2168 = vld [vmem:[%s970 + $0xac] sm:$0xf]
      %v2169 = vld [vmem:[%s970 + $0xb4] sm:$0xf]
      %v2170 = vld [vmem:[%s970 + $0xb8] sm:$0xf]
      %2203 = vrot.lane.b32.xlu0 %v2139, 12
      %v2204 = vpop.permute.xlu0 %2203
      %2205 = vrot.lane.b32.xlu0 %v2140, 12
      %v2206 = vpop.permute.xlu0 %2205
      %2207 = vrot.lane.b32.xlu0 %v2141, 12
      %v2208 = vpop.permute.xlu0 %2207
      %2209 = vrot.lane.b32.xlu0 %v2142, 12
      %v2210 = vpop.permute.xlu0 %2209
      %2211 = vrot.lane.b32.xlu0 %v2143, 12
      %v2212 = vpop.permute.xlu0 %2211
      %2213 = vrot.lane.b32.xlu0 %v2144, 12
      %v2214 = vpop.permute.xlu0 %2213
      %2215 = vrot.lane.b32.xlu0 %v2145, 12
      %v2216 = vpop.permute.xlu0 %2215
      %2217 = vrot.lane.b32.xlu0 %v2146, 12
      %v2218 = vpop.permute.xlu0 %2217
      %2219 = vrot.lane.b32.xlu0 %v2147, 12
      %v2220 = vpop.permute.xlu0 %2219
      %2221 = vrot.lane.b32.xlu0 %v2148, 12
      %v2222 = vpop.permute.xlu0 %2221
      %2223 = vrot.lane.b32.xlu0 %v2149, 12
      %v2224 = vpop.permute.xlu0 %2223
      %2225 = vrot.lane.b32.xlu0 %v2150, 12
      %v2226 = vpop.permute.xlu0 %2225
      %2227 = vrot.lane.b32.xlu0 %v2151, 12
      %v2228 = vpop.permute.xlu0 %2227
      %2229 = vrot.lane.b32.xlu0 %v2152, 12
      %v2230 = vpop.permute.xlu0 %2229
      %2231 = vrot.lane.b32.xlu0 %v2153, 12
      %v2232 = vpop.permute.xlu0 %2231
      %2233 = vrot.lane.b32.xlu0 %v2154, 12
      %v2234 = vpop.permute.xlu0 %2233
      %2235 = vrot.lane.b32.xlu0 %v2155, 12
      %v2236 = vpop.permute.xlu0 %2235
      %2237 = vrot.lane.b32.xlu0 %v2156, 12
      %v2238 = vpop.permute.xlu0 %2237
      %2239 = vrot.lane.b32.xlu0 %v2157, 12
      %v2240 = vpop.permute.xlu0 %2239
      %2241 = vrot.lane.b32.xlu0 %v2158, 12
      %v2242 = vpop.permute.xlu0 %2241
      %2243 = vrot.lane.b32.xlu0 %v2159, 12
      %v2244 = vpop.permute.xlu0 %2243
      %2245 = vrot.lane.b32.xlu0 %v2160, 12
      %v2246 = vpop.permute.xlu0 %2245
      %2247 = vrot.lane.b32.xlu0 %v2161, 12
      %v2248 = vpop.permute.xlu0 %2247
      %2249 = vrot.lane.b32.xlu0 %v2162, 12
      %v2250 = vpop.permute.xlu0 %2249
      %2251 = vrot.lane.b32.xlu0 %v2163, 12
      %v2252 = vpop.permute.xlu0 %2251
      %2253 = vrot.lane.b32.xlu0 %v2164, 12
      %v2254 = vpop.permute.xlu0 %2253
      %2255 = vrot.lane.b32.xlu0 %v2165, 12
      %v2256 = vpop.permute.xlu0 %2255
      %2257 = vrot.lane.b32.xlu0 %v2166, 12
      %v2258 = vpop.permute.xlu0 %2257
      %2259 = vrot.lane.b32.xlu0 %v2167, 12
      %v2260 = vpop.permute.xlu0 %2259
      %2261 = vrot.lane.b32.xlu0 %v2168, 12
      %v2262 = vpop.permute.xlu0 %2261
      %2263 = vrot.lane.b32.xlu0 %v2169, 12
      %v2264 = vpop.permute.xlu0 %2263
      %2265 = vrot.lane.b32.xlu0 %v2170, 12
      %v2266 = vpop.permute.xlu0 %2265
      %vm2299 = vcmask 126048
      %2300 = vst.msk [vmem:[#allocation3] sm:$0xf] %vm2299, %v2204
      %2301 = vst.msk [vmem:[#allocation3 + $0x4] sm:$0xf] %vm2299, %v2206
      %2302 = vst.msk [vmem:[#allocation3 + $0x8] sm:$0xf] %vm2299, %v2208
      %2303 = vst.msk [vmem:[#allocation3 + $0xc] sm:$0xf] %vm2299, %v2210
      %2304 = vst.msk [vmem:[#allocation3 + $0x10] sm:$0xf] %vm2299, %v2212
      %2305 = vst.msk [vmem:[#allocation3 + $0x14] sm:$0xf] %vm2299, %v2214
      %2306 = vst.msk [vmem:[#allocation3 + $0x18] sm:$0xf] %vm2299, %v2216
      %2307 = vst.msk [vmem:[#allocation3 + $0x1c] sm:$0xf] %vm2299, %v2218
      %2308 = vst.msk [vmem:[#allocation3 + $0x20] sm:$0xf] %vm2299, %v2220
      %2309 = vst.msk [vmem:[#allocation3 + $0x24] sm:$0xf] %vm2299, %v2222
      %2310 = vst.msk [vmem:[#allocation3 + $0x28] sm:$0xf] %vm2299, %v2224
      %2311 = vst.msk [vmem:[#allocation3 + $0x2c] sm:$0xf] %vm2299, %v2226
      %2312 = vst.msk [vmem:[#allocation3 + $0x30] sm:$0xf] %vm2299, %v2228
      %2313 = vst.msk [vmem:[#allocation3 + $0x34] sm:$0xf] %vm2299, %v2230
      %2314 = vst.msk [vmem:[#allocation3 + $0x38] sm:$0xf] %vm2299, %v2232
      %2315 = vst.msk [vmem:[#allocation3 + $0x3c] sm:$0xf] %vm2299, %v2234
      %2316 = vst.msk [vmem:[#allocation3 + $0x40] sm:$0xf] %vm2299, %v2236
      %2317 = vst.msk [vmem:[#allocation3 + $0x44] sm:$0xf] %vm2299, %v2238
      %2318 = vst.msk [vmem:[#allocation3 + $0x48] sm:$0xf] %vm2299, %v2240
      %2319 = vst.msk [vmem:[#allocation3 + $0x4c] sm:$0xf] %vm2299, %v2242
      %2320 = vst.msk [vmem:[#allocation3 + $0x50] sm:$0xf] %vm2299, %v2244
      %2321 = vst.msk [vmem:[#allocation3 + $0x54] sm:$0xf] %vm2299, %v2246
      %2322 = vst.msk [vmem:[#allocation3 + $0x58] sm:$0xf] %vm2299, %v2248
      %2323 = vst.msk [vmem:[#allocation3 + $0x5c] sm:$0xf] %vm2299, %v2250
      %2324 = vst.msk [vmem:[#allocation3 + $0x60] sm:$0xf] %vm2299, %v2252
      %2325 = vst.msk [vmem:[#allocation3 + $0x64] sm:$0xf] %vm2299, %v2254
      %2326 = vst.msk [vmem:[#allocation3 + $0x68] sm:$0xf] %vm2299, %v2256
      %2327 = vst.msk [vmem:[#allocation3 + $0x6c] sm:$0xf] %vm2299, %v2258
      %2328 = vst.msk [vmem:[#allocation3 + $0x70] sm:$0xf] %vm2299, %v2260
      %2329 = vst.msk [vmem:[#allocation3 + $0x74] sm:$0xf] %vm2299, %v2262
      %2330 = vst.msk [vmem:[#allocation3 + $0x78] sm:$0xf] %vm2299, %v2264
      %2331 = vst.msk [vmem:[#allocation3 + $0x7c] sm:$0xf] %vm2299, %v2266
      %v2332 = vld [vmem:[%s970] sm:$0xf]
      %v2333 = vld [vmem:[%s970 + $0x4] sm:$0xf]
      %v2334 = vld [vmem:[%s970 + $0x8] sm:$0x1]
      %v2335 = vld [vmem:[%s970 + $0xc] sm:$0xf]
      %v2336 = vld [vmem:[%s970 + $0x10] sm:$0xf]
      %v2337 = vld [vmem:[%s970 + $0x14] sm:$0x1]
      %v2338 = vld [vmem:[%s970 + $0x18] sm:$0xf]
      %v2339 = vld [vmem:[%s970 + $0x1c] sm:$0xf]
      %v2340 = vld [vmem:[%s970 + $0x20] sm:$0x1]
      %v2341 = vld [vmem:[%s970 + $0x24] sm:$0xf]
      %v2342 = vld [vmem:[%s970 + $0x28] sm:$0xf]
      %v2343 = vld [vmem:[%s970 + $0x2c] sm:$0x1]
      %v2344 = vld [vmem:[%s970 + $0x30] sm:$0xf]
      %v2345 = vld [vmem:[%s970 + $0x34] sm:$0xf]
      %v2346 = vld [vmem:[%s970 + $0x38] sm:$0x1]
      %v2347 = vld [vmem:[%s970 + $0x3c] sm:$0xf]
      %v2348 = vld [vmem:[%s970 + $0x40] sm:$0xf]
      %v2349 = vld [vmem:[%s970 + $0x44] sm:$0x1]
      %v2350 = vld [vmem:[%s970 + $0x48] sm:$0xf]
      %v2351 = vld [vmem:[%s970 + $0x4c] sm:$0xf]
      %v2352 = vld [vmem:[%s970 + $0x50] sm:$0x1]
      %v2353 = vld [vmem:[%s970 + $0x54] sm:$0xf]
      %v2354 = vld [vmem:[%s970 + $0x58] sm:$0xf]
      %v2355 = vld [vmem:[%s970 + $0x5c] sm:$0x1]
      %v2356 = vld [vmem:[%s970 + $0x60] sm:$0xf]
      %v2357 = vld [vmem:[%s970 + $0x64] sm:$0xf]
      %v2358 = vld [vmem:[%s970 + $0x68] sm:$0x1]
      %v2359 = vld [vmem:[%s970 + $0x6c] sm:$0xf]
      %v2360 = vld [vmem:[%s970 + $0x70] sm:$0xf]
      %v2361 = vld [vmem:[%s970 + $0x74] sm:$0x1]
      %v2362 = vld [vmem:[%s970 + $0x78] sm:$0xf]
      %v2363 = vld [vmem:[%s970 + $0x7c] sm:$0xf]
      %v2364 = vld [vmem:[%s970 + $0x80] sm:$0x1]
      %v2365 = vld [vmem:[%s970 + $0x84] sm:$0xf]
      %v2366 = vld [vmem:[%s970 + $0x88] sm:$0xf]
      %v2367 = vld [vmem:[%s970 + $0x8c] sm:$0x1]
      %v2368 = vld [vmem:[%s970 + $0x90] sm:$0xf]
      %v2369 = vld [vmem:[%s970 + $0x94] sm:$0xf]
      %v2370 = vld [vmem:[%s970 + $0x98] sm:$0x1]
      %v2371 = vld [vmem:[%s970 + $0x9c] sm:$0xf]
      %v2372 = vld [vmem:[%s970 + $0xa0] sm:$0xf]
      %v2373 = vld [vmem:[%s970 + $0xa4] sm:$0x1]
      %v2374 = vld [vmem:[%s970 + $0xa8] sm:$0xf]
      %v2375 = vld [vmem:[%s970 + $0xac] sm:$0xf]
      %v2376 = vld [vmem:[%s970 + $0xb0] sm:$0x1]
      %v2377 = vld [vmem:[%s970 + $0xb4] sm:$0xf]
      %v2378 = vld [vmem:[%s970 + $0xb8] sm:$0xf]
      %v2379 = vld [vmem:[%s970 + $0xbc] sm:$0x1]
      %v2381 = vshrl.u32 %v2332, 16
      %v2383 = vrot.slane %v2381, 4
      %v2384 = vshll.u32 %v2332, 16
      %v2386 = vrot.slane %v2384, 5
      %v2387 = vor.u32 %v2383, %v2386
      %v2388 = vrot.slane %v2387, 4
      %v2390 = vshll.u32 %v2333, 16
      %v2392 = vrot.slane %v2390, 5
      %v2393 = vsel %vm1285, %v2388, %v2392
      %v2394 = vshrl.u32 %v2333, 16
      %v2396 = vrot.slane %v2394, 4
      %v2397 = vor.u32 %v2396, %v2392
      %v2398 = vrot.slane %v2397, 4
      %v2400 = vshll.u32 %v2334, 16
      %v2402 = vrot.slane %v2400, 5
      %v2403 = vsel %vm1285, %v2398, %v2402
      %v2405 = vshrl.u32 %v2335, 16
      %v2407 = vrot.slane %v2405, 4
      %v2408 = vshll.u32 %v2335, 16
      %v2410 = vrot.slane %v2408, 5
      %v2411 = vor.u32 %v2407, %v2410
      %v2412 = vrot.slane %v2411, 4
      %v2414 = vshll.u32 %v2336, 16
      %v2416 = vrot.slane %v2414, 5
      %v2417 = vsel %vm1285, %v2412, %v2416
      %v2418 = vshrl.u32 %v2336, 16
      %v2420 = vrot.slane %v2418, 4
      %v2421 = vor.u32 %v2420, %v2416
      %v2422 = vrot.slane %v2421, 4
      %v2424 = vshll.u32 %v2337, 16
      %v2426 = vrot.slane %v2424, 5
      %v2427 = vsel %vm1285, %v2422, %v2426
      %v2429 = vshrl.u32 %v2338, 16
      %v2431 = vrot.slane %v2429, 4
      %v2432 = vshll.u32 %v2338, 16
      %v2434 = vrot.slane %v2432, 5
      %v2435 = vor.u32 %v2431, %v2434
      %v2436 = vrot.slane %v2435, 4
      %v2438 = vshll.u32 %v2339, 16
      %v2440 = vrot.slane %v2438, 5
      %v2441 = vsel %vm1285, %v2436, %v2440
      %v2442 = vshrl.u32 %v2339, 16
      %v2444 = vrot.slane %v2442, 4
      %v2445 = vor.u32 %v2444, %v2440
      %v2446 = vrot.slane %v2445, 4
      %v2448 = vshll.u32 %v2340, 16
      %v2450 = vrot.slane %v2448, 5
      %v2451 = vsel %vm1285, %v2446, %v2450
      %v2453 = vshrl.u32 %v2341, 16
      %v2455 = vrot.slane %v2453, 4
      %v2456 = vshll.u32 %v2341, 16
      %v2458 = vrot.slane %v2456, 5
      %v2459 = vor.u32 %v2455, %v2458
      %v2460 = vrot.slane %v2459, 4
      %v2462 = vshll.u32 %v2342, 16
      %v2464 = vrot.slane %v2462, 5
      %v2465 = vsel %vm1285, %v2460, %v2464
      %v2466 = vshrl.u32 %v2342, 16
      %v2468 = vrot.slane %v2466, 4
      %v2469 = vor.u32 %v2468, %v2464
      %v2470 = vrot.slane %v2469, 4
      %v2472 = vshll.u32 %v2343, 16
      %v2474 = vrot.slane %v2472, 5
      %v2475 = vsel %vm1285, %v2470, %v2474
      %v2477 = vshrl.u32 %v2344, 16
      %v2479 = vrot.slane %v2477, 4
      %v2480 = vshll.u32 %v2344, 16
      %v2482 = vrot.slane %v2480, 5
      %v2483 = vor.u32 %v2479, %v2482
      %v2484 = vrot.slane %v2483, 4
      %v2486 = vshll.u32 %v2345, 16
      %v2488 = vrot.slane %v2486, 5
      %v2489 = vsel %vm1285, %v2484, %v2488
      %v2490 = vshrl.u32 %v2345, 16
      %v2492 = vrot.slane %v2490, 4
      %v2493 = vor.u32 %v2492, %v2488
      %v2494 = vrot.slane %v2493, 4
      %v2496 = vshll.u32 %v2346, 16
      %v2498 = vrot.slane %v2496, 5
      %v2499 = vsel %vm1285, %v2494, %v2498
      %v2501 = vshrl.u32 %v2347, 16
      %v2503 = vrot.slane %v2501, 4
      %v2504 = vshll.u32 %v2347, 16
      %v2506 = vrot.slane %v2504, 5
      %v2507 = vor.u32 %v2503, %v2506
      %v2508 = vrot.slane %v2507, 4
      %v2510 = vshll.u32 %v2348, 16
      %v2512 = vrot.slane %v2510, 5
      %v2513 = vsel %vm1285, %v2508, %v2512
      %v2514 = vshrl.u32 %v2348, 16
      %v2516 = vrot.slane %v2514, 4
      %v2517 = vor.u32 %v2516, %v2512
      %v2518 = vrot.slane %v2517, 4
      %v2520 = vshll.u32 %v2349, 16
      %v2522 = vrot.slane %v2520, 5
      %v2523 = vsel %vm1285, %v2518, %v2522
      %v2525 = vshrl.u32 %v2350, 16
      %v2527 = vrot.slane %v2525, 4
      %v2528 = vshll.u32 %v2350, 16
      %v2530 = vrot.slane %v2528, 5
      %v2531 = vor.u32 %v2527, %v2530
      %v2532 = vrot.slane %v2531, 4
      %v2534 = vshll.u32 %v2351, 16
      %v2536 = vrot.slane %v2534, 5
      %v2537 = vsel %vm1285, %v2532, %v2536
      %v2538 = vshrl.u32 %v2351, 16
      %v2540 = vrot.slane %v2538, 4
      %v2541 = vor.u32 %v2540, %v2536
      %v2542 = vrot.slane %v2541, 4
      %v2544 = vshll.u32 %v2352, 16
      %v2546 = vrot.slane %v2544, 5
      %v2547 = vsel %vm1285, %v2542, %v2546
      %v2549 = vshrl.u32 %v2353, 16
      %v2551 = vrot.slane %v2549, 4
      %v2552 = vshll.u32 %v2353, 16
      %v2554 = vrot.slane %v2552, 5
      %v2555 = vor.u32 %v2551, %v2554
      %v2556 = vrot.slane %v2555, 4
      %v2558 = vshll.u32 %v2354, 16
      %v2560 = vrot.slane %v2558, 5
      %v2561 = vsel %vm1285, %v2556, %v2560
      %v2562 = vshrl.u32 %v2354, 16
      %v2564 = vrot.slane %v2562, 4
      %v2565 = vor.u32 %v2564, %v2560
      %v2566 = vrot.slane %v2565, 4
      %v2568 = vshll.u32 %v2355, 16
      %v2570 = vrot.slane %v2568, 5
      %v2571 = vsel %vm1285, %v2566, %v2570
      %v2573 = vshrl.u32 %v2356, 16
      %v2575 = vrot.slane %v2573, 4
      %v2576 = vshll.u32 %v2356, 16
      %v2578 = vrot.slane %v2576, 5
      %v2579 = vor.u32 %v2575, %v2578
      %v2580 = vrot.slane %v2579, 4
      %v2582 = vshll.u32 %v2357, 16
      %v2584 = vrot.slane %v2582, 5
      %v2585 = vsel %vm1285, %v2580, %v2584
      %v2586 = vshrl.u32 %v2357, 16
      %v2588 = vrot.slane %v2586, 4
      %v2589 = vor.u32 %v2588, %v2584
      %v2590 = vrot.slane %v2589, 4
      %v2592 = vshll.u32 %v2358, 16
      %v2594 = vrot.slane %v2592, 5
      %v2595 = vsel %vm1285, %v2590, %v2594
      %v2597 = vshrl.u32 %v2359, 16
      %v2599 = vrot.slane %v2597, 4
      %v2600 = vshll.u32 %v2359, 16
      %v2602 = vrot.slane %v2600, 5
      %v2603 = vor.u32 %v2599, %v2602
      %v2604 = vrot.slane %v2603, 4
      %v2606 = vshll.u32 %v2360, 16
      %v2608 = vrot.slane %v2606, 5
      %v2609 = vsel %vm1285, %v2604, %v2608
      %v2610 = vshrl.u32 %v2360, 16
      %v2612 = vrot.slane %v2610, 4
      %v2613 = vor.u32 %v2612, %v2608
      %v2614 = vrot.slane %v2613, 4
      %v2616 = vshll.u32 %v2361, 16
      %v2618 = vrot.slane %v2616, 5
      %v2619 = vsel %vm1285, %v2614, %v2618
      %v2621 = vshrl.u32 %v2362, 16
      %v2623 = vrot.slane %v2621, 4
      %v2624 = vshll.u32 %v2362, 16
      %v2626 = vrot.slane %v2624, 5
      %v2627 = vor.u32 %v2623, %v2626
      %v2628 = vrot.slane %v2627, 4
      %v2630 = vshll.u32 %v2363, 16
      %v2632 = vrot.slane %v2630, 5
      %v2633 = vsel %vm1285, %v2628, %v2632
      %v2634 = vshrl.u32 %v2363, 16
      %v2636 = vrot.slane %v2634, 4
      %v2637 = vor.u32 %v2636, %v2632
      %v2638 = vrot.slane %v2637, 4
      %v2640 = vshll.u32 %v2364, 16
      %v2642 = vrot.slane %v2640, 5
      %v2643 = vsel %vm1285, %v2638, %v2642
      %v2645 = vshrl.u32 %v2365, 16
      %v2647 = vrot.slane %v2645, 4
      %v2648 = vshll.u32 %v2365, 16
      %v2650 = vrot.slane %v2648, 5
      %v2651 = vor.u32 %v2647, %v2650
      %v2652 = vrot.slane %v2651, 4
      %v2654 = vshll.u32 %v2366, 16
      %v2656 = vrot.slane %v2654, 5
      %v2657 = vsel %vm1285, %v2652, %v2656
      %v2658 = vshrl.u32 %v2366, 16
      %v2660 = vrot.slane %v2658, 4
      %v2661 = vor.u32 %v2660, %v2656
      %v2662 = vrot.slane %v2661, 4
      %v2664 = vshll.u32 %v2367, 16
      %v2666 = vrot.slane %v2664, 5
      %v2667 = vsel %vm1285, %v2662, %v2666
      %v2669 = vshrl.u32 %v2368, 16
      %v2671 = vrot.slane %v2669, 4
      %v2672 = vshll.u32 %v2368, 16
      %v2674 = vrot.slane %v2672, 5
      %v2675 = vor.u32 %v2671, %v2674
      %v2676 = vrot.slane %v2675, 4
      %v2678 = vshll.u32 %v2369, 16
      %v2680 = vrot.slane %v2678, 5
      %v2681 = vsel %vm1285, %v2676, %v2680
      %v2682 = vshrl.u32 %v2369, 16
      %v2684 = vrot.slane %v2682, 4
      %v2685 = vor.u32 %v2684, %v2680
      %v2686 = vrot.slane %v2685, 4
      %v2688 = vshll.u32 %v2370, 16
      %v2690 = vrot.slane %v2688, 5
      %v2691 = vsel %vm1285, %v2686, %v2690
      %v2693 = vshrl.u32 %v2371, 16
      %v2695 = vrot.slane %v2693, 4
      %v2696 = vshll.u32 %v2371, 16
      %v2698 = vrot.slane %v2696, 5
      %v2699 = vor.u32 %v2695, %v2698
      %v2700 = vrot.slane %v2699, 4
      %v2702 = vshll.u32 %v2372, 16
      %v2704 = vrot.slane %v2702, 5
      %v2705 = vsel %vm1285, %v2700, %v2704
      %v2706 = vshrl.u32 %v2372, 16
      %v2708 = vrot.slane %v2706, 4
      %v2709 = vor.u32 %v2708, %v2704
      %v2710 = vrot.slane %v2709, 4
      %v2712 = vshll.u32 %v2373, 16
      %v2714 = vrot.slane %v2712, 5
      %v2715 = vsel %vm1285, %v2710, %v2714
      %v2717 = vshrl.u32 %v2374, 16
      %v2719 = vrot.slane %v2717, 4
      %v2720 = vshll.u32 %v2374, 16
      %v2722 = vrot.slane %v2720, 5
      %v2723 = vor.u32 %v2719, %v2722
      %v2724 = vrot.slane %v2723, 4
      %v2726 = vshll.u32 %v2375, 16
      %v2728 = vrot.slane %v2726, 5
      %v2729 = vsel %vm1285, %v2724, %v2728
      %v2730 = vshrl.u32 %v2375, 16
      %v2732 = vrot.slane %v2730, 4
      %v2733 = vor.u32 %v2732, %v2728
      %v2734 = vrot.slane %v2733, 4
      %v2736 = vshll.u32 %v2376, 16
      %v2738 = vrot.slane %v2736, 5
      %v2739 = vsel %vm1285, %v2734, %v2738
      %v2741 = vshrl.u32 %v2377, 16
      %v2743 = vrot.slane %v2741, 4
      %v2744 = vshll.u32 %v2377, 16
      %v2746 = vrot.slane %v2744, 5
      %v2747 = vor.u32 %v2743, %v2746
      %v2748 = vrot.slane %v2747, 4
      %v2750 = vshll.u32 %v2378, 16
      %v2752 = vrot.slane %v2750, 5
      %v2753 = vsel %vm1285, %v2748, %v2752
      %v2754 = vshrl.u32 %v2378, 16
      %v2756 = vrot.slane %v2754, 4
      %v2757 = vor.u32 %v2756, %v2752
      %v2758 = vrot.slane %v2757, 4
      %v2760 = vshll.u32 %v2379, 16
      %v2762 = vrot.slane %v2760, 5
      %v2763 = vsel %vm1285, %v2758, %v2762
      %2764 = vrot.lane.b32.xlu0 %v2393, 16
      %v2765 = vpop.permute.xlu0 %2764
      %2766 = vrot.lane.b32.xlu0 %v2403, 16
      %v2767 = vpop.permute.xlu0 %2766
      %2768 = vrot.lane.b32.xlu0 %v2417, 16
      %v2769 = vpop.permute.xlu0 %2768
      %2770 = vrot.lane.b32.xlu0 %v2427, 16
      %v2771 = vpop.permute.xlu0 %2770
      %2772 = vrot.lane.b32.xlu0 %v2441, 16
      %v2773 = vpop.permute.xlu0 %2772
      %2774 = vrot.lane.b32.xlu0 %v2451, 16
      %v2775 = vpop.permute.xlu0 %2774
      %2776 = vrot.lane.b32.xlu0 %v2465, 16
      %v2777 = vpop.permute.xlu0 %2776
      %2778 = vrot.lane.b32.xlu0 %v2475, 16
      %v2779 = vpop.permute.xlu0 %2778
      %2780 = vrot.lane.b32.xlu0 %v2489, 16
      %v2781 = vpop.permute.xlu0 %2780
      %2782 = vrot.lane.b32.xlu0 %v2499, 16
      %v2783 = vpop.permute.xlu0 %2782
      %2784 = vrot.lane.b32.xlu0 %v2513, 16
      %v2785 = vpop.permute.xlu0 %2784
      %2786 = vrot.lane.b32.xlu0 %v2523, 16
      %v2787 = vpop.permute.xlu0 %2786
      %2788 = vrot.lane.b32.xlu0 %v2537, 16
      %v2789 = vpop.permute.xlu0 %2788
      %2790 = vrot.lane.b32.xlu0 %v2547, 16
      %v2791 = vpop.permute.xlu0 %2790
      %2792 = vrot.lane.b32.xlu0 %v2561, 16
      %v2793 = vpop.permute.xlu0 %2792
      %2794 = vrot.lane.b32.xlu0 %v2571, 16
      %v2795 = vpop.permute.xlu0 %2794
      %2796 = vrot.lane.b32.xlu0 %v2585, 16
      %v2797 = vpop.permute.xlu0 %2796
      %2798 = vrot.lane.b32.xlu0 %v2595, 16
      %v2799 = vpop.permute.xlu0 %2798
      %2800 = vrot.lane.b32.xlu0 %v2609, 16
      %v2801 = vpop.permute.xlu0 %2800
      %2802 = vrot.lane.b32.xlu0 %v2619, 16
      %v2803 = vpop.permute.xlu0 %2802
      %2804 = vrot.lane.b32.xlu0 %v2633, 16
      %v2805 = vpop.permute.xlu0 %2804
      %2806 = vrot.lane.b32.xlu0 %v2643, 16
      %v2807 = vpop.permute.xlu0 %2806
      %2808 = vrot.lane.b32.xlu0 %v2657, 16
      %v2809 = vpop.permute.xlu0 %2808
      %2810 = vrot.lane.b32.xlu0 %v2667, 16
      %v2811 = vpop.permute.xlu0 %2810
      %2812 = vrot.lane.b32.xlu0 %v2681, 16
      %v2813 = vpop.permute.xlu0 %2812
      %2814 = vrot.lane.b32.xlu0 %v2691, 16
      %v2815 = vpop.permute.xlu0 %2814
      %2816 = vrot.lane.b32.xlu0 %v2705, 16
      %v2817 = vpop.permute.xlu0 %2816
      %2818 = vrot.lane.b32.xlu0 %v2715, 16
      %v2819 = vpop.permute.xlu0 %2818
      %2820 = vrot.lane.b32.xlu0 %v2729, 16
      %v2821 = vpop.permute.xlu0 %2820
      %2822 = vrot.lane.b32.xlu0 %v2739, 16
      %v2823 = vpop.permute.xlu0 %2822
      %2824 = vrot.lane.b32.xlu0 %v2753, 16
      %v2825 = vpop.permute.xlu0 %2824
      %2826 = vrot.lane.b32.xlu0 %v2763, 16
      %v2827 = vpop.permute.xlu0 %2826
      %vm2860 = vcmask 158848
      %2861 = vst.msk [vmem:[#allocation3] sm:$0xf] %vm2860, %v2765
      %2862 = vst.msk [vmem:[#allocation3 + $0x4] sm:$0xf] %vm2860, %v2767
      %2863 = vst.msk [vmem:[#allocation3 + $0x8] sm:$0xf] %vm2860, %v2769
      %2864 = vst.msk [vmem:[#allocation3 + $0xc] sm:$0xf] %vm2860, %v2771
      %2865 = vst.msk [vmem:[#allocation3 + $0x10] sm:$0xf] %vm2860, %v2773
      %2866 = vst.msk [vmem:[#allocation3 + $0x14] sm:$0xf] %vm2860, %v2775
      %2867 = vst.msk [vmem:[#allocation3 + $0x18] sm:$0xf] %vm2860, %v2777
      %2868 = vst.msk [vmem:[#allocation3 + $0x1c] sm:$0xf] %vm2860, %v2779
      %2869 = vst.msk [vmem:[#allocation3 + $0x20] sm:$0xf] %vm2860, %v2781
      %2870 = vst.msk [vmem:[#allocation3 + $0x24] sm:$0xf] %vm2860, %v2783
      %2871 = vst.msk [vmem:[#allocation3 + $0x28] sm:$0xf] %vm2860, %v2785
      %2872 = vst.msk [vmem:[#allocation3 + $0x2c] sm:$0xf] %vm2860, %v2787
      %2873 = vst.msk [vmem:[#allocation3 + $0x30] sm:$0xf] %vm2860, %v2789
      %2874 = vst.msk [vmem:[#allocation3 + $0x34] sm:$0xf] %vm2860, %v2791
      %2875 = vst.msk [vmem:[#allocation3 + $0x38] sm:$0xf] %vm2860, %v2793
      %2876 = vst.msk [vmem:[#allocation3 + $0x3c] sm:$0xf] %vm2860, %v2795
      %2877 = vst.msk [vmem:[#allocation3 + $0x40] sm:$0xf] %vm2860, %v2797
      %2878 = vst.msk [vmem:[#allocation3 + $0x44] sm:$0xf] %vm2860, %v2799
      %2879 = vst.msk [vmem:[#allocation3 + $0x48] sm:$0xf] %vm2860, %v2801
      %2880 = vst.msk [vmem:[#allocation3 + $0x4c] sm:$0xf] %vm2860, %v2803
      %2881 = vst.msk [vmem:[#allocation3 + $0x50] sm:$0xf] %vm2860, %v2805
      %2882 = vst.msk [vmem:[#allocation3 + $0x54] sm:$0xf] %vm2860, %v2807
      %2883 = vst.msk [vmem:[#allocation3 + $0x58] sm:$0xf] %vm2860, %v2809
      %2884 = vst.msk [vmem:[#allocation3 + $0x5c] sm:$0xf] %vm2860, %v2811
      %2885 = vst.msk [vmem:[#allocation3 + $0x60] sm:$0xf] %vm2860, %v2813
      %2886 = vst.msk [vmem:[#allocation3 + $0x64] sm:$0xf] %vm2860, %v2815
      %2887 = vst.msk [vmem:[#allocation3 + $0x68] sm:$0xf] %vm2860, %v2817
      %2888 = vst.msk [vmem:[#allocation3 + $0x6c] sm:$0xf] %vm2860, %v2819
      %2889 = vst.msk [vmem:[#allocation3 + $0x70] sm:$0xf] %vm2860, %v2821
      %2890 = vst.msk [vmem:[#allocation3 + $0x74] sm:$0xf] %vm2860, %v2823
      %2891 = vst.msk [vmem:[#allocation3 + $0x78] sm:$0xf] %vm2860, %v2825
      %2892 = vst.msk [vmem:[#allocation3 + $0x7c] sm:$0xf] %vm2860, %v2827
      %v2893 = vld [vmem:[%s970] sm:$0xe]
      %v2894 = vld [vmem:[%s970 + $0x4] sm:$0xf]
      %v2895 = vld [vmem:[%s970 + $0x8] sm:$0x1]
      %v2896 = vld [vmem:[%s970 + $0xc] sm:$0xe]
      %v2897 = vld [vmem:[%s970 + $0x10] sm:$0xf]
      %v2898 = vld [vmem:[%s970 + $0x14] sm:$0x1]
      %v2899 = vld [vmem:[%s970 + $0x18] sm:$0xe]
      %v2900 = vld [vmem:[%s970 + $0x1c] sm:$0xf]
      %v2901 = vld [vmem:[%s970 + $0x20] sm:$0x1]
      %v2902 = vld [vmem:[%s970 + $0x24] sm:$0xe]
      %v2903 = vld [vmem:[%s970 + $0x28] sm:$0xf]
      %v2904 = vld [vmem:[%s970 + $0x2c] sm:$0x1]
      %v2905 = vld [vmem:[%s970 + $0x30] sm:$0xe]
      %v2906 = vld [vmem:[%s970 + $0x34] sm:$0xf]
      %v2907 = vld [vmem:[%s970 + $0x38] sm:$0x1]
      %v2908 = vld [vmem:[%s970 + $0x3c] sm:$0xe]
      %v2909 = vld [vmem:[%s970 + $0x40] sm:$0xf]
      %v2910 = vld [vmem:[%s970 + $0x44] sm:$0x1]
      %v2911 = vld [vmem:[%s970 + $0x48] sm:$0xe]
      %v2912 = vld [vmem:[%s970 + $0x4c] sm:$0xf]
      %v2913 = vld [vmem:[%s970 + $0x50] sm:$0x1]
      %v2914 = vld [vmem:[%s970 + $0x54] sm:$0xe]
      %v2915 = vld [vmem:[%s970 + $0x58] sm:$0xf]
      %v2916 = vld [vmem:[%s970 + $0x5c] sm:$0x1]
      %v2917 = vld [vmem:[%s970 + $0x60] sm:$0xe]
      %v2918 = vld [vmem:[%s970 + $0x64] sm:$0xf]
      %v2919 = vld [vmem:[%s970 + $0x68] sm:$0x1]
      %v2920 = vld [vmem:[%s970 + $0x6c] sm:$0xe]
      %v2921 = vld [vmem:[%s970 + $0x70] sm:$0xf]
      %v2922 = vld [vmem:[%s970 + $0x74] sm:$0x1]
      %v2923 = vld [vmem:[%s970 + $0x78] sm:$0xe]
      %v2924 = vld [vmem:[%s970 + $0x7c] sm:$0xf]
      %v2925 = vld [vmem:[%s970 + $0x80] sm:$0x1]
      %v2926 = vld [vmem:[%s970 + $0x84] sm:$0xe]
      %v2927 = vld [vmem:[%s970 + $0x88] sm:$0xf]
      %v2928 = vld [vmem:[%s970 + $0x8c] sm:$0x1]
      %v2929 = vld [vmem:[%s970 + $0x90] sm:$0xe]
      %v2930 = vld [vmem:[%s970 + $0x94] sm:$0xf]
      %v2931 = vld [vmem:[%s970 + $0x98] sm:$0x1]
      %v2932 = vld [vmem:[%s970 + $0x9c] sm:$0xe]
      %v2933 = vld [vmem:[%s970 + $0xa0] sm:$0xf]
      %v2934 = vld [vmem:[%s970 + $0xa4] sm:$0x1]
      %v2935 = vld [vmem:[%s970 + $0xa8] sm:$0xe]
      %v2936 = vld [vmem:[%s970 + $0xac] sm:$0xf]
      %v2937 = vld [vmem:[%s970 + $0xb0] sm:$0x1]
      %v2938 = vld [vmem:[%s970 + $0xb4] sm:$0xe]
      %v2939 = vld [vmem:[%s970 + $0xb8] sm:$0xf]
      %v2940 = vld [vmem:[%s970 + $0xbc] sm:$0x1]
      %v2989 = vrot.slane %v2893, 5
      %v2990 = vrot.slane %v2989, 4
      %v2991 = vrot.slane %v2894, 5
      %v2992 = vsel %vm1897, %v2990, %v2991
      %v2993 = vrot.slane %v2991, 4
      %v2994 = vrot.slane %v2895, 5
      %v2995 = vsel %vm1897, %v2993, %v2994
      %v2996 = vrot.slane %v2896, 5
      %v2997 = vrot.slane %v2996, 4
      %v2998 = vrot.slane %v2897, 5
      %v2999 = vsel %vm1897, %v2997, %v2998
      %v3000 = vrot.slane %v2998, 4
      %v3001 = vrot.slane %v2898, 5
      %v3002 = vsel %vm1897, %v3000, %v3001
      %v3003 = vrot.slane %v2899, 5
      %v3004 = vrot.slane %v3003, 4
      %v3005 = vrot.slane %v2900, 5
      %v3006 = vsel %vm1897, %v3004, %v3005
      %v3007 = vrot.slane %v3005, 4
      %v3008 = vrot.slane %v2901, 5
      %v3009 = vsel %vm1897, %v3007, %v3008
      %v3010 = vrot.slane %v2902, 5
      %v3011 = vrot.slane %v3010, 4
      %v3012 = vrot.slane %v2903, 5
      %v3013 = vsel %vm1897, %v3011, %v3012
      %v3014 = vrot.slane %v3012, 4
      %v3015 = vrot.slane %v2904, 5
      %v3016 = vsel %vm1897, %v3014, %v3015
      %v3017 = vrot.slane %v2905, 5
      %v3018 = vrot.slane %v3017, 4
      %v3019 = vrot.slane %v2906, 5
      %v3020 = vsel %vm1897, %v3018, %v3019
      %v3021 = vrot.slane %v3019, 4
      %v3022 = vrot.slane %v2907, 5
      %v3023 = vsel %vm1897, %v3021, %v3022
      %v3024 = vrot.slane %v2908, 5
      %v3025 = vrot.slane %v3024, 4
      %v3026 = vrot.slane %v2909, 5
      %v3027 = vsel %vm1897, %v3025, %v3026
      %v3028 = vrot.slane %v3026, 4
      %v3029 = vrot.slane %v2910, 5
      %v3030 = vsel %vm1897, %v3028, %v3029
      %v3031 = vrot.slane %v2911, 5
      %v3032 = vrot.slane %v3031, 4
      %v3033 = vrot.slane %v2912, 5
      %v3034 = vsel %vm1897, %v3032, %v3033
      %v3035 = vrot.slane %v3033, 4
      %v3036 = vrot.slane %v2913, 5
      %v3037 = vsel %vm1897, %v3035, %v3036
      %v3038 = vrot.slane %v2914, 5
      %v3039 = vrot.slane %v3038, 4
      %v3040 = vrot.slane %v2915, 5
      %v3041 = vsel %vm1897, %v3039, %v3040
      %v3042 = vrot.slane %v3040, 4
      %v3043 = vrot.slane %v2916, 5
      %v3044 = vsel %vm1897, %v3042, %v3043
      %v3045 = vrot.slane %v2917, 5
      %v3046 = vrot.slane %v3045, 4
      %v3047 = vrot.slane %v2918, 5
      %v3048 = vsel %vm1897, %v3046, %v3047
      %v3049 = vrot.slane %v3047, 4
      %v3050 = vrot.slane %v2919, 5
      %v3051 = vsel %vm1897, %v3049, %v3050
      %v3052 = vrot.slane %v2920, 5
      %v3053 = vrot.slane %v3052, 4
      %v3054 = vrot.slane %v2921, 5
      %v3055 = vsel %vm1897, %v3053, %v3054
      %v3056 = vrot.slane %v3054, 4
      %v3057 = vrot.slane %v2922, 5
      %v3058 = vsel %vm1897, %v3056, %v3057
      %v3059 = vrot.slane %v2923, 5
      %v3060 = vrot.slane %v3059, 4
      %v3061 = vrot.slane %v2924, 5
      %v3062 = vsel %vm1897, %v3060, %v3061
      %v3063 = vrot.slane %v3061, 4
      %v3064 = vrot.slane %v2925, 5
      %v3065 = vsel %vm1897, %v3063, %v3064
      %v3066 = vrot.slane %v2926, 5
      %v3067 = vrot.slane %v3066, 4
      %v3068 = vrot.slane %v2927, 5
      %v3069 = vsel %vm1897, %v3067, %v3068
      %v3070 = vrot.slane %v3068, 4
      %v3071 = vrot.slane %v2928, 5
      %v3072 = vsel %vm1897, %v3070, %v3071
      %v3073 = vrot.slane %v2929, 5
      %v3074 = vrot.slane %v3073, 4
      %v3075 = vrot.slane %v2930, 5
      %v3076 = vsel %vm1897, %v3074, %v3075
      %v3077 = vrot.slane %v3075, 4
      %v3078 = vrot.slane %v2931, 5
      %v3079 = vsel %vm1897, %v3077, %v3078
      %v3080 = vrot.slane %v2932, 5
      %v3081 = vrot.slane %v3080, 4
      %v3082 = vrot.slane %v2933, 5
      %v3083 = vsel %vm1897, %v3081, %v3082
      %v3084 = vrot.slane %v3082, 4
      %v3085 = vrot.slane %v2934, 5
      %v3086 = vsel %vm1897, %v3084, %v3085
      %v3087 = vrot.slane %v2935, 5
      %v3088 = vrot.slane %v3087, 4
      %v3089 = vrot.slane %v2936, 5
      %v3090 = vsel %vm1897, %v3088, %v3089
      %v3091 = vrot.slane %v3089, 4
      %v3092 = vrot.slane %v2937, 5
      %v3093 = vsel %vm1897, %v3091, %v3092
      %v3094 = vrot.slane %v2938, 5
      %v3095 = vrot.slane %v3094, 4
      %v3096 = vrot.slane %v2939, 5
      %v3097 = vsel %vm1897, %v3095, %v3096
      %v3098 = vrot.slane %v3096, 4
      %v3099 = vrot.slane %v2940, 5
      %v3100 = vsel %vm1897, %v3098, %v3099
      %3101 = vrot.lane.b32.xlu0 %v2992, 20
      %v3102 = vpop.permute.xlu0 %3101
      %3103 = vrot.lane.b32.xlu0 %v2995, 20
      %v3104 = vpop.permute.xlu0 %3103
      %3105 = vrot.lane.b32.xlu0 %v2999, 20
      %v3106 = vpop.permute.xlu0 %3105
      %3107 = vrot.lane.b32.xlu0 %v3002, 20
      %v3108 = vpop.permute.xlu0 %3107
      %3109 = vrot.lane.b32.xlu0 %v3006, 20
      %v3110 = vpop.permute.xlu0 %3109
      %3111 = vrot.lane.b32.xlu0 %v3009, 20
      %v3112 = vpop.permute.xlu0 %3111
      %3113 = vrot.lane.b32.xlu0 %v3013, 20
      %v3114 = vpop.permute.xlu0 %3113
      %3115 = vrot.lane.b32.xlu0 %v3016, 20
      %v3116 = vpop.permute.xlu0 %3115
      %3117 = vrot.lane.b32.xlu0 %v3020, 20
      %v3118 = vpop.permute.xlu0 %3117
      %3119 = vrot.lane.b32.xlu0 %v3023, 20
      %v3120 = vpop.permute.xlu0 %3119
      %3121 = vrot.lane.b32.xlu0 %v3027, 20
      %v3122 = vpop.permute.xlu0 %3121
      %3123 = vrot.lane.b32.xlu0 %v3030, 20
      %v3124 = vpop.permute.xlu0 %3123
      %3125 = vrot.lane.b32.xlu0 %v3034, 20
      %v3126 = vpop.permute.xlu0 %3125
      %3127 = vrot.lane.b32.xlu0 %v3037, 20
      %v3128 = vpop.permute.xlu0 %3127
      %3129 = vrot.lane.b32.xlu0 %v3041, 20
      %v3130 = vpop.permute.xlu0 %3129
      %3131 = vrot.lane.b32.xlu0 %v3044, 20
      %v3132 = vpop.permute.xlu0 %3131
      %3133 = vrot.lane.b32.xlu0 %v3048, 20
      %v3134 = vpop.permute.xlu0 %3133
      %3135 = vrot.lane.b32.xlu0 %v3051, 20
      %v3136 = vpop.permute.xlu0 %3135
      %3137 = vrot.lane.b32.xlu0 %v3055, 20
      %v3138 = vpop.permute.xlu0 %3137
      %3139 = vrot.lane.b32.xlu0 %v3058, 20
      %v3140 = vpop.permute.xlu0 %3139
      %3141 = vrot.lane.b32.xlu0 %v3062, 20
      %v3142 = vpop.permute.xlu0 %3141
      %3143 = vrot.lane.b32.xlu0 %v3065, 20
      %v3144 = vpop.permute.xlu0 %3143
      %3145 = vrot.lane.b32.xlu0 %v3069, 20
      %v3146 = vpop.permute.xlu0 %3145
      %3147 = vrot.lane.b32.xlu0 %v3072, 20
      %v3148 = vpop.permute.xlu0 %3147
      %3149 = vrot.lane.b32.xlu0 %v3076, 20
      %v3150 = vpop.permute.xlu0 %3149
      %3151 = vrot.lane.b32.xlu0 %v3079, 20
      %v3152 = vpop.permute.xlu0 %3151
      %3153 = vrot.lane.b32.xlu0 %v3083, 20
      %v3154 = vpop.permute.xlu0 %3153
      %3155 = vrot.lane.b32.xlu0 %v3086, 20
      %v3156 = vpop.permute.xlu0 %3155
      %3157 = vrot.lane.b32.xlu0 %v3090, 20
      %v3158 = vpop.permute.xlu0 %3157
      %3159 = vrot.lane.b32.xlu0 %v3093, 20
      %v3160 = vpop.permute.xlu0 %3159
      %3161 = vrot.lane.b32.xlu0 %v3097, 20
      %v3162 = vpop.permute.xlu0 %3161
      %3163 = vrot.lane.b32.xlu0 %v3100, 20
      %v3164 = vpop.permute.xlu0 %3163
      %vm3197 = vcmask 191648
      %3198 = vst.msk [vmem:[#allocation3] sm:$0xf] %vm3197, %v3102
      %3199 = vst.msk [vmem:[#allocation3 + $0x4] sm:$0xf] %vm3197, %v3104
      %3200 = vst.msk [vmem:[#allocation3 + $0x8] sm:$0xf] %vm3197, %v3106
      %3201 = vst.msk [vmem:[#allocation3 + $0xc] sm:$0xf] %vm3197, %v3108
      %3202 = vst.msk [vmem:[#allocation3 + $0x10] sm:$0xf] %vm3197, %v3110
      %3203 = vst.msk [vmem:[#allocation3 + $0x14] sm:$0xf] %vm3197, %v3112
      %3204 = vst.msk [vmem:[#allocation3 + $0x18] sm:$0xf] %vm3197, %v3114
      %3205 = vst.msk [vmem:[#allocation3 + $0x1c] sm:$0xf] %vm3197, %v3116
      %3206 = vst.msk [vmem:[#allocation3 + $0x20] sm:$0xf] %vm3197, %v3118
      %3207 = vst.msk [vmem:[#allocation3 + $0x24] sm:$0xf] %vm3197, %v3120
      %3208 = vst.msk [vmem:[#allocation3 + $0x28] sm:$0xf] %vm3197, %v3122
      %3209 = vst.msk [vmem:[#allocation3 + $0x2c] sm:$0xf] %vm3197, %v3124
      %3210 = vst.msk [vmem:[#allocation3 + $0x30] sm:$0xf] %vm3197, %v3126
      %3211 = vst.msk [vmem:[#allocation3 + $0x34] sm:$0xf] %vm3197, %v3128
      %3212 = vst.msk [vmem:[#allocation3 + $0x38] sm:$0xf] %vm3197, %v3130
      %3213 = vst.msk [vmem:[#allocation3 + $0x3c] sm:$0xf] %vm3197, %v3132
      %3214 = vst.msk [vmem:[#allocation3 + $0x40] sm:$0xf] %vm3197, %v3134
      %3215 = vst.msk [vmem:[#allocation3 + $0x44] sm:$0xf] %vm3197, %v3136
      %3216 = vst.msk [vmem:[#allocation3 + $0x48] sm:$0xf] %vm3197, %v3138
      %3217 = vst.msk [vmem:[#allocation3 + $0x4c] sm:$0xf] %vm3197, %v3140
      %3218 = vst.msk [vmem:[#allocation3 + $0x50] sm:$0xf] %vm3197, %v3142
      %3219 = vst.msk [vmem:[#allocation3 + $0x54] sm:$0xf] %vm3197, %v3144
      %3220 = vst.msk [vmem:[#allocation3 + $0x58] sm:$0xf] %vm3197, %v3146
      %3221 = vst.msk [vmem:[#allocation3 + $0x5c] sm:$0xf] %vm3197, %v3148
      %3222 = vst.msk [vmem:[#allocation3 + $0x60] sm:$0xf] %vm3197, %v3150
      %3223 = vst.msk [vmem:[#allocation3 + $0x64] sm:$0xf] %vm3197, %v3152
      %3224 = vst.msk [vmem:[#allocation3 + $0x68] sm:$0xf] %vm3197, %v3154
      %3225 = vst.msk [vmem:[#allocation3 + $0x6c] sm:$0xf] %vm3197, %v3156
      %3226 = vst.msk [vmem:[#allocation3 + $0x70] sm:$0xf] %vm3197, %v3158
      %3227 = vst.msk [vmem:[#allocation3 + $0x74] sm:$0xf] %vm3197, %v3160
      %3228 = vst.msk [vmem:[#allocation3 + $0x78] sm:$0xf] %vm3197, %v3162
      %3229 = vst.msk [vmem:[#allocation3 + $0x7c] sm:$0xf] %vm3197, %v3164
      %s3230 = scalar_lea.vmem [#allocation2], 24
      %v3231 = vld [vmem:[%s3230] sm:$0xf]
      %v3232 = vld [vmem:[%s3230 + $0x4] sm:$0xf]
      %v3233 = vld [vmem:[%s3230 + $0xc] sm:$0xf]
      %v3234 = vld [vmem:[%s3230 + $0x10] sm:$0xf]
      %v3235 = vld [vmem:[%s3230 + $0x18] sm:$0xf]
      %v3236 = vld [vmem:[%s3230 + $0x1c] sm:$0xf]
      %v3237 = vld [vmem:[%s3230 + $0x24] sm:$0xf]
      %v3238 = vld [vmem:[%s3230 + $0x28] sm:$0xf]
      %v3239 = vld [vmem:[%s3230 + $0x30] sm:$0xf]
      %v3240 = vld [vmem:[%s3230 + $0x34] sm:$0xf]
      %v3241 = vld [vmem:[%s3230 + $0x3c] sm:$0xf]
      %v3242 = vld [vmem:[%s3230 + $0x40] sm:$0xf]
      %v3243 = vld [vmem:[%s3230 + $0x48] sm:$0xf]
      %v3244 = vld [vmem:[%s3230 + $0x4c] sm:$0xf]
      %v3245 = vld [vmem:[%s3230 + $0x54] sm:$0xf]
      %v3246 = vld [vmem:[%s3230 + $0x58] sm:$0xf]
      %v3247 = vld [vmem:[%s3230 + $0x60] sm:$0xf]
      %v3248 = vld [vmem:[%s3230 + $0x64] sm:$0xf]
      %v3249 = vld [vmem:[%s3230 + $0x6c] sm:$0xf]
      %v3250 = vld [vmem:[%s3230 + $0x70] sm:$0xf]
      %v3251 = vld [vmem:[%s3230 + $0x78] sm:$0xf]
      %v3252 = vld [vmem:[%s3230 + $0x7c] sm:$0xf]
      %v3253 = vld [vmem:[%s3230 + $0x84] sm:$0xf]
      %v3254 = vld [vmem:[%s3230 + $0x88] sm:$0xf]
      %v3255 = vld [vmem:[%s3230 + $0x90] sm:$0xf]
      %v3256 = vld [vmem:[%s3230 + $0x94] sm:$0xf]
      %v3257 = vld [vmem:[%s3230 + $0x9c] sm:$0xf]
      %v3258 = vld [vmem:[%s3230 + $0xa0] sm:$0xf]
      %v3259 = vld [vmem:[%s3230 + $0xa8] sm:$0xf]
      %v3260 = vld [vmem:[%s3230 + $0xac] sm:$0xf]
      %v3261 = vld [vmem:[%s3230 + $0xb4] sm:$0xf]
      %v3262 = vld [vmem:[%s3230 + $0xb8] sm:$0xf]
      %3295 = vrot.lane.b32.xlu0 %v3231, 24
      %v3296 = vpop.permute.xlu0 %3295
      %3297 = vrot.lane.b32.xlu0 %v3232, 24
      %v3298 = vpop.permute.xlu0 %3297
      %3299 = vrot.lane.b32.xlu0 %v3233, 24
      %v3300 = vpop.permute.xlu0 %3299
      %3301 = vrot.lane.b32.xlu0 %v3234, 24
      %v3302 = vpop.permute.xlu0 %3301
      %3303 = vrot.lane.b32.xlu0 %v3235, 24
      %v3304 = vpop.permute.xlu0 %3303
      %3305 = vrot.lane.b32.xlu0 %v3236, 24
      %v3306 = vpop.permute.xlu0 %3305
      %3307 = vrot.lane.b32.xlu0 %v3237, 24
      %v3308 = vpop.permute.xlu0 %3307
      %3309 = vrot.lane.b32.xlu0 %v3238, 24
      %v3310 = vpop.permute.xlu0 %3309
      %3311 = vrot.lane.b32.xlu0 %v3239, 24
      %v3312 = vpop.permute.xlu0 %3311
      %3313 = vrot.lane.b32.xlu0 %v3240, 24
      %v3314 = vpop.permute.xlu0 %3313
      %3315 = vrot.lane.b32.xlu0 %v3241, 24
      %v3316 = vpop.permute.xlu0 %3315
      %3317 = vrot.lane.b32.xlu0 %v3242, 24
      %v3318 = vpop.permute.xlu0 %3317
      %3319 = vrot.lane.b32.xlu0 %v3243, 24
      %v3320 = vpop.permute.xlu0 %3319
      %3321 = vrot.lane.b32.xlu0 %v3244, 24
      %v3322 = vpop.permute.xlu0 %3321
      %3323 = vrot.lane.b32.xlu0 %v3245, 24
      %v3324 = vpop.permute.xlu0 %3323
      %3325 = vrot.lane.b32.xlu0 %v3246, 24
      %v3326 = vpop.permute.xlu0 %3325
      %3327 = vrot.lane.b32.xlu0 %v3247, 24
      %v3328 = vpop.permute.xlu0 %3327
      %3329 = vrot.lane.b32.xlu0 %v3248, 24
      %v3330 = vpop.permute.xlu0 %3329
      %3331 = vrot.lane.b32.xlu0 %v3249, 24
      %v3332 = vpop.permute.xlu0 %3331
      %3333 = vrot.lane.b32.xlu0 %v3250, 24
      %v3334 = vpop.permute.xlu0 %3333
      %3335 = vrot.lane.b32.xlu0 %v3251, 24
      %v3336 = vpop.permute.xlu0 %3335
      %3337 = vrot.lane.b32.xlu0 %v3252, 24
      %v3338 = vpop.permute.xlu0 %3337
      %3339 = vrot.lane.b32.xlu0 %v3253, 24
      %v3340 = vpop.permute.xlu0 %3339
      %3341 = vrot.lane.b32.xlu0 %v3254, 24
      %v3342 = vpop.permute.xlu0 %3341
      %3343 = vrot.lane.b32.xlu0 %v3255, 24
      %v3344 = vpop.permute.xlu0 %3343
      %3345 = vrot.lane.b32.xlu0 %v3256, 24
      %v3346 = vpop.permute.xlu0 %3345
      %3347 = vrot.lane.b32.xlu0 %v3257, 24
      %v3348 = vpop.permute.xlu0 %3347
      %3349 = vrot.lane.b32.xlu0 %v3258, 24
      %v3350 = vpop.permute.xlu0 %3349
      %3351 = vrot.lane.b32.xlu0 %v3259, 24
      %v3352 = vpop.permute.xlu0 %3351
      %3353 = vrot.lane.b32.xlu0 %v3260, 24
      %v3354 = vpop.permute.xlu0 %3353
      %3355 = vrot.lane.b32.xlu0 %v3261, 24
      %v3356 = vpop.permute.xlu0 %3355
      %3357 = vrot.lane.b32.xlu0 %v3262, 24
      %v3358 = vpop.permute.xlu0 %3357
      %vm3391 = vcmask 224448
      %3392 = vst.msk [vmem:[#allocation3] sm:$0xf] %vm3391, %v3296
      %3393 = vst.msk [vmem:[#allocation3 + $0x4] sm:$0xf] %vm3391, %v3298
      %3394 = vst.msk [vmem:[#allocation3 + $0x8] sm:$0xf] %vm3391, %v3300
      %3395 = vst.msk [vmem:[#allocation3 + $0xc] sm:$0xf] %vm3391, %v3302
      %3396 = vst.msk [vmem:[#allocation3 + $0x10] sm:$0xf] %vm3391, %v3304
      %3397 = vst.msk [vmem:[#allocation3 + $0x14] sm:$0xf] %vm3391, %v3306
      %3398 = vst.msk [vmem:[#allocation3 + $0x18] sm:$0xf] %vm3391, %v3308
      %3399 = vst.msk [vmem:[#allocation3 + $0x1c] sm:$0xf] %vm3391, %v3310
      %3400 = vst.msk [vmem:[#allocation3 + $0x20] sm:$0xf] %vm3391, %v3312
      %3401 = vst.msk [vmem:[#allocation3 + $0x24] sm:$0xf] %vm3391, %v3314
      %3402 = vst.msk [vmem:[#allocation3 + $0x28] sm:$0xf] %vm3391, %v3316
      %3403 = vst.msk [vmem:[#allocation3 + $0x2c] sm:$0xf] %vm3391, %v3318
      %3404 = vst.msk [vmem:[#allocation3 + $0x30] sm:$0xf] %vm3391, %v3320
      %3405 = vst.msk [vmem:[#allocation3 + $0x34] sm:$0xf] %vm3391, %v3322
      %3406 = vst.msk [vmem:[#allocation3 + $0x38] sm:$0xf] %vm3391, %v3324
      %3407 = vst.msk [vmem:[#allocation3 + $0x3c] sm:$0xf] %vm3391, %v3326
      %3408 = vst.msk [vmem:[#allocation3 + $0x40] sm:$0xf] %vm3391, %v3328
      %3409 = vst.msk [vmem:[#allocation3 + $0x44] sm:$0xf] %vm3391, %v3330
      %3410 = vst.msk [vmem:[#allocation3 + $0x48] sm:$0xf] %vm3391, %v3332
      %3411 = vst.msk [vmem:[#allocation3 + $0x4c] sm:$0xf] %vm3391, %v3334
      %3412 = vst.msk [vmem:[#allocation3 + $0x50] sm:$0xf] %vm3391, %v3336
      %3413 = vst.msk [vmem:[#allocation3 + $0x54] sm:$0xf] %vm3391, %v3338
      %3414 = vst.msk [vmem:[#allocation3 + $0x58] sm:$0xf] %vm3391, %v3340
      %3415 = vst.msk [vmem:[#allocation3 + $0x5c] sm:$0xf] %vm3391, %v3342
      %3416 = vst.msk [vmem:[#allocation3 + $0x60] sm:$0xf] %vm3391, %v3344
      %3417 = vst.msk [vmem:[#allocation3 + $0x64] sm:$0xf] %vm3391, %v3346
      %3418 = vst.msk [vmem:[#allocation3 + $0x68] sm:$0xf] %vm3391, %v3348
      %3419 = vst.msk [vmem:[#allocation3 + $0x6c] sm:$0xf] %vm3391, %v3350
      %3420 = vst.msk [vmem:[#allocation3 + $0x70] sm:$0xf] %vm3391, %v3352
      %3421 = vst.msk [vmem:[#allocation3 + $0x74] sm:$0xf] %vm3391, %v3354
      %3422 = vst.msk [vmem:[#allocation3 + $0x78] sm:$0xf] %vm3391, %v3356
      %3423 = vst.msk [vmem:[#allocation3 + $0x7c] sm:$0xf] %vm3391, %v3358
      %v3424 = vld [vmem:[%s3230] sm:$0xf]
      %v3425 = vld [vmem:[%s3230 + $0x4] sm:$0xf]
      %v3426 = vld [vmem:[%s3230 + $0x8] sm:$0x1]
      %v3427 = vld [vmem:[%s3230 + $0xc] sm:$0xf]
      %v3428 = vld [vmem:[%s3230 + $0x10] sm:$0xf]
      %v3429 = vld [vmem:[%s3230 + $0x14] sm:$0x1]
      %v3430 = vld [vmem:[%s3230 + $0x18] sm:$0xf]
      %v3431 = vld [vmem:[%s3230 + $0x1c] sm:$0xf]
      %v3432 = vld [vmem:[%s3230 + $0x20] sm:$0x1]
      %v3433 = vld [vmem:[%s3230 + $0x24] sm:$0xf]
      %v3434 = vld [vmem:[%s3230 + $0x28] sm:$0xf]
      %v3435 = vld [vmem:[%s3230 + $0x2c] sm:$0x1]
      %v3436 = vld [vmem:[%s3230 + $0x30] sm:$0xf]
      %v3437 = vld [vmem:[%s3230 + $0x34] sm:$0xf]
      %v3438 = vld [vmem:[%s3230 + $0x38] sm:$0x1]
      %v3439 = vld [vmem:[%s3230 + $0x3c] sm:$0xf]
      %v3440 = vld [vmem:[%s3230 + $0x40] sm:$0xf]
      %v3441 = vld [vmem:[%s3230 + $0x44] sm:$0x1]
      %v3442 = vld [vmem:[%s3230 + $0x48] sm:$0xf]
      %v3443 = vld [vmem:[%s3230 + $0x4c] sm:$0xf]
      %v3444 = vld [vmem:[%s3230 + $0x50] sm:$0x1]
      %v3445 = vld [vmem:[%s3230 + $0x54] sm:$0xf]
      %v3446 = vld [vmem:[%s3230 + $0x58] sm:$0xf]
      %v3447 = vld [vmem:[%s3230 + $0x5c] sm:$0x1]
      %v3448 = vld [vmem:[%s3230 + $0x60] sm:$0xf]
      %v3449 = vld [vmem:[%s3230 + $0x64] sm:$0xf]
      %v3450 = vld [vmem:[%s3230 + $0x68] sm:$0x1]
      %v3451 = vld [vmem:[%s3230 + $0x6c] sm:$0xf]
      %v3452 = vld [vmem:[%s3230 + $0x70] sm:$0xf]
      %v3453 = vld [vmem:[%s3230 + $0x74] sm:$0x1]
      %v3454 = vld [vmem:[%s3230 + $0x78] sm:$0xf]
      %v3455 = vld [vmem:[%s3230 + $0x7c] sm:$0xf]
      %v3456 = vld [vmem:[%s3230 + $0x80] sm:$0x1]
      %v3457 = vld [vmem:[%s3230 + $0x84] sm:$0xf]
      %v3458 = vld [vmem:[%s3230 + $0x88] sm:$0xf]
      %v3459 = vld [vmem:[%s3230 + $0x8c] sm:$0x1]
      %v3460 = vld [vmem:[%s3230 + $0x90] sm:$0xf]
      %v3461 = vld [vmem:[%s3230 + $0x94] sm:$0xf]
      %v3462 = vld [vmem:[%s3230 + $0x98] sm:$0x1]
      %v3463 = vld [vmem:[%s3230 + $0x9c] sm:$0xf]
      %v3464 = vld [vmem:[%s3230 + $0xa0] sm:$0xf]
      %v3465 = vld [vmem:[%s3230 + $0xa4] sm:$0x1]
      %v3466 = vld [vmem:[%s3230 + $0xa8] sm:$0xf]
      %v3467 = vld [vmem:[%s3230 + $0xac] sm:$0xf]
      %v3468 = vld [vmem:[%s3230 + $0xb0] sm:$0x1]
      %v3469 = vld [vmem:[%s3230 + $0xb4] sm:$0xf]
      %v3470 = vld [vmem:[%s3230 + $0xb8] sm:$0xf]
      %v3471 = vld [vmem:[%s3230 + $0xbc] sm:$0x1]
      %v3473 = vshrl.u32 %v3424, 16
      %v3475 = vrot.slane %v3473, 4
      %v3476 = vshll.u32 %v3424, 16
      %v3478 = vrot.slane %v3476, 5
      %v3479 = vor.u32 %v3475, %v3478
      %v3480 = vrot.slane %v3479, 4
      %v3482 = vshll.u32 %v3425, 16
      %v3484 = vrot.slane %v3482, 5
      %v3485 = vsel %vm1285, %v3480, %v3484
      %v3486 = vshrl.u32 %v3425, 16
      %v3488 = vrot.slane %v3486, 4
      %v3489 = vor.u32 %v3488, %v3484
      %v3490 = vrot.slane %v3489, 4
      %v3492 = vshll.u32 %v3426, 16
      %v3494 = vrot.slane %v3492, 5
      %v3495 = vsel %vm1285, %v3490, %v3494
      %v3497 = vshrl.u32 %v3427, 16
      %v3499 = vrot.slane %v3497, 4
      %v3500 = vshll.u32 %v3427, 16
      %v3502 = vrot.slane %v3500, 5
      %v3503 = vor.u32 %v3499, %v3502
      %v3504 = vrot.slane %v3503, 4
      %v3506 = vshll.u32 %v3428, 16
      %v3508 = vrot.slane %v3506, 5
      %v3509 = vsel %vm1285, %v3504, %v3508
      %v3510 = vshrl.u32 %v3428, 16
      %v3512 = vrot.slane %v3510, 4
      %v3513 = vor.u32 %v3512, %v3508
      %v3514 = vrot.slane %v3513, 4
      %v3516 = vshll.u32 %v3429, 16
      %v3518 = vrot.slane %v3516, 5
      %v3519 = vsel %vm1285, %v3514, %v3518
      %v3521 = vshrl.u32 %v3430, 16
      %v3523 = vrot.slane %v3521, 4
      %v3524 = vshll.u32 %v3430, 16
      %v3526 = vrot.slane %v3524, 5
      %v3527 = vor.u32 %v3523, %v3526
      %v3528 = vrot.slane %v3527, 4
      %v3530 = vshll.u32 %v3431, 16
      %v3532 = vrot.slane %v3530, 5
      %v3533 = vsel %vm1285, %v3528, %v3532
      %v3534 = vshrl.u32 %v3431, 16
      %v3536 = vrot.slane %v3534, 4
      %v3537 = vor.u32 %v3536, %v3532
      %v3538 = vrot.slane %v3537, 4
      %v3540 = vshll.u32 %v3432, 16
      %v3542 = vrot.slane %v3540, 5
      %v3543 = vsel %vm1285, %v3538, %v3542
      %v3545 = vshrl.u32 %v3433, 16
      %v3547 = vrot.slane %v3545, 4
      %v3548 = vshll.u32 %v3433, 16
      %v3550 = vrot.slane %v3548, 5
      %v3551 = vor.u32 %v3547, %v3550
      %v3552 = vrot.slane %v3551, 4
      %v3554 = vshll.u32 %v3434, 16
      %v3556 = vrot.slane %v3554, 5
      %v3557 = vsel %vm1285, %v3552, %v3556
      %v3558 = vshrl.u32 %v3434, 16
      %v3560 = vrot.slane %v3558, 4
      %v3561 = vor.u32 %v3560, %v3556
      %v3562 = vrot.slane %v3561, 4
      %v3564 = vshll.u32 %v3435, 16
      %v3566 = vrot.slane %v3564, 5
      %v3567 = vsel %vm1285, %v3562, %v3566
      %v3569 = vshrl.u32 %v3436, 16
      %v3571 = vrot.slane %v3569, 4
      %v3572 = vshll.u32 %v3436, 16
      %v3574 = vrot.slane %v3572, 5
      %v3575 = vor.u32 %v3571, %v3574
      %v3576 = vrot.slane %v3575, 4
      %v3578 = vshll.u32 %v3437, 16
      %v3580 = vrot.slane %v3578, 5
      %v3581 = vsel %vm1285, %v3576, %v3580
      %v3582 = vshrl.u32 %v3437, 16
      %v3584 = vrot.slane %v3582, 4
      %v3585 = vor.u32 %v3584, %v3580
      %v3586 = vrot.slane %v3585, 4
      %v3588 = vshll.u32 %v3438, 16
      %v3590 = vrot.slane %v3588, 5
      %v3591 = vsel %vm1285, %v3586, %v3590
      %v3593 = vshrl.u32 %v3439, 16
      %v3595 = vrot.slane %v3593, 4
      %v3596 = vshll.u32 %v3439, 16
      %v3598 = vrot.slane %v3596, 5
      %v3599 = vor.u32 %v3595, %v3598
      %v3600 = vrot.slane %v3599, 4
      %v3602 = vshll.u32 %v3440, 16
      %v3604 = vrot.slane %v3602, 5
      %v3605 = vsel %vm1285, %v3600, %v3604
      %v3606 = vshrl.u32 %v3440, 16
      %v3608 = vrot.slane %v3606, 4
      %v3609 = vor.u32 %v3608, %v3604
      %v3610 = vrot.slane %v3609, 4
      %v3612 = vshll.u32 %v3441, 16
      %v3614 = vrot.slane %v3612, 5
      %v3615 = vsel %vm1285, %v3610, %v3614
      %v3617 = vshrl.u32 %v3442, 16
      %v3619 = vrot.slane %v3617, 4
      %v3620 = vshll.u32 %v3442, 16
      %v3622 = vrot.slane %v3620, 5
      %v3623 = vor.u32 %v3619, %v3622
      %v3624 = vrot.slane %v3623, 4
      %v3626 = vshll.u32 %v3443, 16
      %v3628 = vrot.slane %v3626, 5
      %v3629 = vsel %vm1285, %v3624, %v3628
      %v3630 = vshrl.u32 %v3443, 16
      %v3632 = vrot.slane %v3630, 4
      %v3633 = vor.u32 %v3632, %v3628
      %v3634 = vrot.slane %v3633, 4
      %v3636 = vshll.u32 %v3444, 16
      %v3638 = vrot.slane %v3636, 5
      %v3639 = vsel %vm1285, %v3634, %v3638
      %v3641 = vshrl.u32 %v3445, 16
      %v3643 = vrot.slane %v3641, 4
      %v3644 = vshll.u32 %v3445, 16
      %v3646 = vrot.slane %v3644, 5
      %v3647 = vor.u32 %v3643, %v3646
      %v3648 = vrot.slane %v3647, 4
      %v3650 = vshll.u32 %v3446, 16
      %v3652 = vrot.slane %v3650, 5
      %v3653 = vsel %vm1285, %v3648, %v3652
      %v3654 = vshrl.u32 %v3446, 16
      %v3656 = vrot.slane %v3654, 4
      %v3657 = vor.u32 %v3656, %v3652
      %v3658 = vrot.slane %v3657, 4
      %v3660 = vshll.u32 %v3447, 16
      %v3662 = vrot.slane %v3660, 5
      %v3663 = vsel %vm1285, %v3658, %v3662
      %v3665 = vshrl.u32 %v3448, 16
      %v3667 = vrot.slane %v3665, 4
      %v3668 = vshll.u32 %v3448, 16
      %v3670 = vrot.slane %v3668, 5
      %v3671 = vor.u32 %v3667, %v3670
      %v3672 = vrot.slane %v3671, 4
      %v3674 = vshll.u32 %v3449, 16
      %v3676 = vrot.slane %v3674, 5
      %v3677 = vsel %vm1285, %v3672, %v3676
      %v3678 = vshrl.u32 %v3449, 16
      %v3680 = vrot.slane %v3678, 4
      %v3681 = vor.u32 %v3680, %v3676
      %v3682 = vrot.slane %v3681, 4
      %v3684 = vshll.u32 %v3450, 16
      %v3686 = vrot.slane %v3684, 5
      %v3687 = vsel %vm1285, %v3682, %v3686
      %v3689 = vshrl.u32 %v3451, 16
      %v3691 = vrot.slane %v3689, 4
      %v3692 = vshll.u32 %v3451, 16
      %v3694 = vrot.slane %v3692, 5
      %v3695 = vor.u32 %v3691, %v3694
      %v3696 = vrot.slane %v3695, 4
      %v3698 = vshll.u32 %v3452, 16
      %v3700 = vrot.slane %v3698, 5
      %v3701 = vsel %vm1285, %v3696, %v3700
      %v3702 = vshrl.u32 %v3452, 16
      %v3704 = vrot.slane %v3702, 4
      %v3705 = vor.u32 %v3704, %v3700
      %v3706 = vrot.slane %v3705, 4
      %v3708 = vshll.u32 %v3453, 16
      %v3710 = vrot.slane %v3708, 5
      %v3711 = vsel %vm1285, %v3706, %v3710
      %v3713 = vshrl.u32 %v3454, 16
      %v3715 = vrot.slane %v3713, 4
      %v3716 = vshll.u32 %v3454, 16
      %v3718 = vrot.slane %v3716, 5
      %v3719 = vor.u32 %v3715, %v3718
      %v3720 = vrot.slane %v3719, 4
      %v3722 = vshll.u32 %v3455, 16
      %v3724 = vrot.slane %v3722, 5
      %v3725 = vsel %vm1285, %v3720, %v3724
      %v3726 = vshrl.u32 %v3455, 16
      %v3728 = vrot.slane %v3726, 4
      %v3729 = vor.u32 %v3728, %v3724
      %v3730 = vrot.slane %v3729, 4
      %v3732 = vshll.u32 %v3456, 16
      %v3734 = vrot.slane %v3732, 5
      %v3735 = vsel %vm1285, %v3730, %v3734
      %v3737 = vshrl.u32 %v3457, 16
      %v3739 = vrot.slane %v3737, 4
      %v3740 = vshll.u32 %v3457, 16
      %v3742 = vrot.slane %v3740, 5
      %v3743 = vor.u32 %v3739, %v3742
      %v3744 = vrot.slane %v3743, 4
      %v3746 = vshll.u32 %v3458, 16
      %v3748 = vrot.slane %v3746, 5
      %v3749 = vsel %vm1285, %v3744, %v3748
      %v3750 = vshrl.u32 %v3458, 16
      %v3752 = vrot.slane %v3750, 4
      %v3753 = vor.u32 %v3752, %v3748
      %v3754 = vrot.slane %v3753, 4
      %v3756 = vshll.u32 %v3459, 16
      %v3758 = vrot.slane %v3756, 5
      %v3759 = vsel %vm1285, %v3754, %v3758
      %v3761 = vshrl.u32 %v3460, 16
      %v3763 = vrot.slane %v3761, 4
      %v3764 = vshll.u32 %v3460, 16
      %v3766 = vrot.slane %v3764, 5
      %v3767 = vor.u32 %v3763, %v3766
      %v3768 = vrot.slane %v3767, 4
      %v3770 = vshll.u32 %v3461, 16
      %v3772 = vrot.slane %v3770, 5
      %v3773 = vsel %vm1285, %v3768, %v3772
      %v3774 = vshrl.u32 %v3461, 16
      %v3776 = vrot.slane %v3774, 4
      %v3777 = vor.u32 %v3776, %v3772
      %v3778 = vrot.slane %v3777, 4
      %v3780 = vshll.u32 %v3462, 16
      %v3782 = vrot.slane %v3780, 5
      %v3783 = vsel %vm1285, %v3778, %v3782
      %v3785 = vshrl.u32 %v3463, 16
      %v3787 = vrot.slane %v3785, 4
      %v3788 = vshll.u32 %v3463, 16
      %v3790 = vrot.slane %v3788, 5
      %v3791 = vor.u32 %v3787, %v3790
      %v3792 = vrot.slane %v3791, 4
      %v3794 = vshll.u32 %v3464, 16
      %v3796 = vrot.slane %v3794, 5
      %v3797 = vsel %vm1285, %v3792, %v3796
      %v3798 = vshrl.u32 %v3464, 16
      %v3800 = vrot.slane %v3798, 4
      %v3801 = vor.u32 %v3800, %v3796
      %v3802 = vrot.slane %v3801, 4
      %v3804 = vshll.u32 %v3465, 16
      %v3806 = vrot.slane %v3804, 5
      %v3807 = vsel %vm1285, %v3802, %v3806
      %v3809 = vshrl.u32 %v3466, 16
      %v3811 = vrot.slane %v3809, 4
      %v3812 = vshll.u32 %v3466, 16
      %v3814 = vrot.slane %v3812, 5
      %v3815 = vor.u32 %v3811, %v3814
      %v3816 = vrot.slane %v3815, 4
      %v3818 = vshll.u32 %v3467, 16
      %v3820 = vrot.slane %v3818, 5
      %v3821 = vsel %vm1285, %v3816, %v3820
      %v3822 = vshrl.u32 %v3467, 16
      %v3824 = vrot.slane %v3822, 4
      %v3825 = vor.u32 %v3824, %v3820
      %v3826 = vrot.slane %v3825, 4
      %v3828 = vshll.u32 %v3468, 16
      %v3830 = vrot.slane %v3828, 5
      %v3831 = vsel %vm1285, %v3826, %v3830
      %v3833 = vshrl.u32 %v3469, 16
      %v3835 = vrot.slane %v3833, 4
      %v3836 = vshll.u32 %v3469, 16
      %v3838 = vrot.slane %v3836, 5
      %v3839 = vor.u32 %v3835, %v3838
      %v3840 = vrot.slane %v3839, 4
      %v3842 = vshll.u32 %v3470, 16
      %v3844 = vrot.slane %v3842, 5
      %v3845 = vsel %vm1285, %v3840, %v3844
      %v3846 = vshrl.u32 %v3470, 16
      %v3848 = vrot.slane %v3846, 4
      %v3849 = vor.u32 %v3848, %v3844
      %v3850 = vrot.slane %v3849, 4
      %v3852 = vshll.u32 %v3471, 16
      %v3854 = vrot.slane %v3852, 5
      %v3855 = vsel %vm1285, %v3850, %v3854
      %3856 = vrot.lane.b32.xlu0 %v3485, 28
      %v3857 = vpop.permute.xlu0 %3856
      %3858 = vrot.lane.b32.xlu0 %v3495, 28
      %v3859 = vpop.permute.xlu0 %3858
      %3860 = vrot.lane.b32.xlu0 %v3509, 28
      %v3861 = vpop.permute.xlu0 %3860
      %3862 = vrot.lane.b32.xlu0 %v3519, 28
      %v3863 = vpop.permute.xlu0 %3862
      %3864 = vrot.lane.b32.xlu0 %v3533, 28
      %v3865 = vpop.permute.xlu0 %3864
      %3866 = vrot.lane.b32.xlu0 %v3543, 28
      %v3867 = vpop.permute.xlu0 %3866
      %3868 = vrot.lane.b32.xlu0 %v3557, 28
      %v3869 = vpop.permute.xlu0 %3868
      %3870 = vrot.lane.b32.xlu0 %v3567, 28
      %v3871 = vpop.permute.xlu0 %3870
      %3872 = vrot.lane.b32.xlu0 %v3581, 28
      %v3873 = vpop.permute.xlu0 %3872
      %3874 = vrot.lane.b32.xlu0 %v3591, 28
      %v3875 = vpop.permute.xlu0 %3874
      %3876 = vrot.lane.b32.xlu0 %v3605, 28
      %v3877 = vpop.permute.xlu0 %3876
      %3878 = vrot.lane.b32.xlu0 %v3615, 28
      %v3879 = vpop.permute.xlu0 %3878
      %3880 = vrot.lane.b32.xlu0 %v3629, 28
      %v3881 = vpop.permute.xlu0 %3880
      %3882 = vrot.lane.b32.xlu0 %v3639, 28
      %v3883 = vpop.permute.xlu0 %3882
      %3884 = vrot.lane.b32.xlu0 %v3653, 28
      %v3885 = vpop.permute.xlu0 %3884
      %3886 = vrot.lane.b32.xlu0 %v3663, 28
      %v3887 = vpop.permute.xlu0 %3886
      %3888 = vrot.lane.b32.xlu0 %v3677, 28
      %v3889 = vpop.permute.xlu0 %3888
      %3890 = vrot.lane.b32.xlu0 %v3687, 28
      %v3891 = vpop.permute.xlu0 %3890
      %3892 = vrot.lane.b32.xlu0 %v3701, 28
      %v3893 = vpop.permute.xlu0 %3892
      %3894 = vrot.lane.b32.xlu0 %v3711, 28
      %v3895 = vpop.permute.xlu0 %3894
      %3896 = vrot.lane.b32.xlu0 %v3725, 28
      %v3897 = vpop.permute.xlu0 %3896
      %3898 = vrot.lane.b32.xlu0 %v3735, 28
      %v3899 = vpop.permute.xlu0 %3898
      %3900 = vrot.lane.b32.xlu0 %v3749, 28
      %v3901 = vpop.permute.xlu0 %3900
      %3902 = vrot.lane.b32.xlu0 %v3759, 28
      %v3903 = vpop.permute.xlu0 %3902
      %3904 = vrot.lane.b32.xlu0 %v3773, 28
      %v3905 = vpop.permute.xlu0 %3904
      %3906 = vrot.lane.b32.xlu0 %v3783, 28
      %v3907 = vpop.permute.xlu0 %3906
      %3908 = vrot.lane.b32.xlu0 %v3797, 28
      %v3909 = vpop.permute.xlu0 %3908
      %3910 = vrot.lane.b32.xlu0 %v3807, 28
      %v3911 = vpop.permute.xlu0 %3910
      %3912 = vrot.lane.b32.xlu0 %v3821, 28
      %v3913 = vpop.permute.xlu0 %3912
      %3914 = vrot.lane.b32.xlu0 %v3831, 28
      %v3915 = vpop.permute.xlu0 %3914
      %3916 = vrot.lane.b32.xlu0 %v3845, 28
      %v3917 = vpop.permute.xlu0 %3916
      %3918 = vrot.lane.b32.xlu0 %v3855, 28
      %v3919 = vpop.permute.xlu0 %3918
      %vm3952 = vcmask 257248
      %3953 = vst.msk [vmem:[#allocation3] sm:$0xf] %vm3952, %v3857
      %3954 = vst.msk [vmem:[#allocation3 + $0x4] sm:$0xf] %vm3952, %v3859
      %3955 = vst.msk [vmem:[#allocation3 + $0x8] sm:$0xf] %vm3952, %v3861
      %3956 = vst.msk [vmem:[#allocation3 + $0xc] sm:$0xf] %vm3952, %v3863
      %3957 = vst.msk [vmem:[#allocation3 + $0x10] sm:$0xf] %vm3952, %v3865
      %3958 = vst.msk [vmem:[#allocation3 + $0x14] sm:$0xf] %vm3952, %v3867
      %3959 = vst.msk [vmem:[#allocation3 + $0x18] sm:$0xf] %vm3952, %v3869
      %3960 = vst.msk [vmem:[#allocation3 + $0x1c] sm:$0xf] %vm3952, %v3871
      %3961 = vst.msk [vmem:[#allocation3 + $0x20] sm:$0xf] %vm3952, %v3873
      %3962 = vst.msk [vmem:[#allocation3 + $0x24] sm:$0xf] %vm3952, %v3875
      %3963 = vst.msk [vmem:[#allocation3 + $0x28] sm:$0xf] %vm3952, %v3877
      %3964 = vst.msk [vmem:[#allocation3 + $0x2c] sm:$0xf] %vm3952, %v3879
      %3965 = vst.msk [vmem:[#allocation3 + $0x30] sm:$0xf] %vm3952, %v3881
      %3966 = vst.msk [vmem:[#allocation3 + $0x34] sm:$0xf] %vm3952, %v3883
      %3967 = vst.msk [vmem:[#allocation3 + $0x38] sm:$0xf] %vm3952, %v3885
      %3968 = vst.msk [vmem:[#allocation3 + $0x3c] sm:$0xf] %vm3952, %v3887
      %3969 = vst.msk [vmem:[#allocation3 + $0x40] sm:$0xf] %vm3952, %v3889
      %3970 = vst.msk [vmem:[#allocation3 + $0x44] sm:$0xf] %vm3952, %v3891
      %3971 = vst.msk [vmem:[#allocation3 + $0x48] sm:$0xf] %vm3952, %v3893
      %3972 = vst.msk [vmem:[#allocation3 + $0x4c] sm:$0xf] %vm3952, %v3895
      %3973 = vst.msk [vmem:[#allocation3 + $0x50] sm:$0xf] %vm3952, %v3897
      %3974 = vst.msk [vmem:[#allocation3 + $0x54] sm:$0xf] %vm3952, %v3899
      %3975 = vst.msk [vmem:[#allocation3 + $0x58] sm:$0xf] %vm3952, %v3901
      %3976 = vst.msk [vmem:[#allocation3 + $0x5c] sm:$0xf] %vm3952, %v3903
      %3977 = vst.msk [vmem:[#allocation3 + $0x60] sm:$0xf] %vm3952, %v3905
      %3978 = vst.msk [vmem:[#allocation3 + $0x64] sm:$0xf] %vm3952, %v3907
      %3979 = vst.msk [vmem:[#allocation3 + $0x68] sm:$0xf] %vm3952, %v3909
      %3980 = vst.msk [vmem:[#allocation3 + $0x6c] sm:$0xf] %vm3952, %v3911
      %3981 = vst.msk [vmem:[#allocation3 + $0x70] sm:$0xf] %vm3952, %v3913
      %3982 = vst.msk [vmem:[#allocation3 + $0x74] sm:$0xf] %vm3952, %v3915
      %3983 = vst.msk [vmem:[#allocation3 + $0x78] sm:$0xf] %vm3952, %v3917
      %3984 = vst.msk [vmem:[#allocation3 + $0x7c] sm:$0xf] %vm3952, %v3919
      %v3985 = vld [vmem:[%s3230] sm:$0xe]
      %v3986 = vld [vmem:[%s3230 + $0x4] sm:$0xf]
      %v3987 = vld [vmem:[%s3230 + $0x8] sm:$0x1]
      %v3988 = vld [vmem:[%s3230 + $0xc] sm:$0xe]
      %v3989 = vld [vmem:[%s3230 + $0x10] sm:$0xf]
      %v3990 = vld [vmem:[%s3230 + $0x14] sm:$0x1]
      %v3991 = vld [vmem:[%s3230 + $0x18] sm:$0xe]
      %v3992 = vld [vmem:[%s3230 + $0x1c] sm:$0xf]
      %v3993 = vld [vmem:[%s3230 + $0x20] sm:$0x1]
      %v3994 = vld [vmem:[%s3230 + $0x24] sm:$0xe]
      %v3995 = vld [vmem:[%s3230 + $0x28] sm:$0xf]
      %v3996 = vld [vmem:[%s3230 + $0x2c] sm:$0x1]
      %v3997 = vld [vmem:[%s3230 + $0x30] sm:$0xe]
      %v3998 = vld [vmem:[%s3230 + $0x34] sm:$0xf]
      %v3999 = vld [vmem:[%s3230 + $0x38] sm:$0x1]
      %v4000 = vld [vmem:[%s3230 + $0x3c] sm:$0xe]
      %v4001 = vld [vmem:[%s3230 + $0x40] sm:$0xf]
      %v4002 = vld [vmem:[%s3230 + $0x44] sm:$0x1]
      %v4003 = vld [vmem:[%s3230 + $0x48] sm:$0xe]
      %v4004 = vld [vmem:[%s3230 + $0x4c] sm:$0xf]
      %v4005 = vld [vmem:[%s3230 + $0x50] sm:$0x1]
      %v4006 = vld [vmem:[%s3230 + $0x54] sm:$0xe]
      %v4007 = vld [vmem:[%s3230 + $0x58] sm:$0xf]
      %v4008 = vld [vmem:[%s3230 + $0x5c] sm:$0x1]
      %v4009 = vld [vmem:[%s3230 + $0x60] sm:$0xe]
      %v4010 = vld [vmem:[%s3230 + $0x64] sm:$0xf]
      %v4011 = vld [vmem:[%s3230 + $0x68] sm:$0x1]
      %v4012 = vld [vmem:[%s3230 + $0x6c] sm:$0xe]
      %v4013 = vld [vmem:[%s3230 + $0x70] sm:$0xf]
      %v4014 = vld [vmem:[%s3230 + $0x74] sm:$0x1]
      %v4015 = vld [vmem:[%s3230 + $0x78] sm:$0xe]
      %v4016 = vld [vmem:[%s3230 + $0x7c] sm:$0xf]
      %v4017 = vld [vmem:[%s3230 + $0x80] sm:$0x1]
      %v4018 = vld [vmem:[%s3230 + $0x84] sm:$0xe]
      %v4019 = vld [vmem:[%s3230 + $0x88] sm:$0xf]
      %v4020 = vld [vmem:[%s3230 + $0x8c] sm:$0x1]
      %v4021 = vld [vmem:[%s3230 + $0x90] sm:$0xe]
      %v4022 = vld [vmem:[%s3230 + $0x94] sm:$0xf]
      %v4023 = vld [vmem:[%s3230 + $0x98] sm:$0x1]
      %v4024 = vld [vmem:[%s3230 + $0x9c] sm:$0xe]
      %v4025 = vld [vmem:[%s3230 + $0xa0] sm:$0xf]
      %v4026 = vld [vmem:[%s3230 + $0xa4] sm:$0x1]
      %v4027 = vld [vmem:[%s3230 + $0xa8] sm:$0xe]
      %v4028 = vld [vmem:[%s3230 + $0xac] sm:$0xf]
      %v4029 = vld [vmem:[%s3230 + $0xb0] sm:$0x1]
      %v4030 = vld [vmem:[%s3230 + $0xb4] sm:$0xe]
      %v4031 = vld [vmem:[%s3230 + $0xb8] sm:$0xf]
      %v4032 = vld [vmem:[%s3230 + $0xbc] sm:$0x1]
      %v4081 = vrot.slane %v3985, 5
      %v4082 = vrot.slane %v4081, 4
      %v4083 = vrot.slane %v3986, 5
      %v4084 = vsel %vm1897, %v4082, %v4083
      %v4085 = vrot.slane %v4083, 4
      %v4086 = vrot.slane %v3987, 5
      %v4087 = vsel %vm1897, %v4085, %v4086
      %v4088 = vrot.slane %v3988, 5
      %v4089 = vrot.slane %v4088, 4
      %v4090 = vrot.slane %v3989, 5
      %v4091 = vsel %vm1897, %v4089, %v4090
      %v4092 = vrot.slane %v4090, 4
      %v4093 = vrot.slane %v3990, 5
      %v4094 = vsel %vm1897, %v4092, %v4093
      %v4095 = vrot.slane %v3991, 5
      %v4096 = vrot.slane %v4095, 4
      %v4097 = vrot.slane %v3992, 5
      %v4098 = vsel %vm1897, %v4096, %v4097
      %v4099 = vrot.slane %v4097, 4
      %v4100 = vrot.slane %v3993, 5
      %v4101 = vsel %vm1897, %v4099, %v4100
      %v4102 = vrot.slane %v3994, 5
      %v4103 = vrot.slane %v4102, 4
      %v4104 = vrot.slane %v3995, 5
      %v4105 = vsel %vm1897, %v4103, %v4104
      %v4106 = vrot.slane %v4104, 4
      %v4107 = vrot.slane %v3996, 5
      %v4108 = vsel %vm1897, %v4106, %v4107
      %v4109 = vrot.slane %v3997, 5
      %v4110 = vrot.slane %v4109, 4
      %v4111 = vrot.slane %v3998, 5
      %v4112 = vsel %vm1897, %v4110, %v4111
      %v4113 = vrot.slane %v4111, 4
      %v4114 = vrot.slane %v3999, 5
      %v4115 = vsel %vm1897, %v4113, %v4114
      %v4116 = vrot.slane %v4000, 5
      %v4117 = vrot.slane %v4116, 4
      %v4118 = vrot.slane %v4001, 5
      %v4119 = vsel %vm1897, %v4117, %v4118
      %v4120 = vrot.slane %v4118, 4
      %v4121 = vrot.slane %v4002, 5
      %v4122 = vsel %vm1897, %v4120, %v4121
      %v4123 = vrot.slane %v4003, 5
      %v4124 = vrot.slane %v4123, 4
      %v4125 = vrot.slane %v4004, 5
      %v4126 = vsel %vm1897, %v4124, %v4125
      %v4127 = vrot.slane %v4125, 4
      %v4128 = vrot.slane %v4005, 5
      %v4129 = vsel %vm1897, %v4127, %v4128
      %v4130 = vrot.slane %v4006, 5
      %v4131 = vrot.slane %v4130, 4
      %v4132 = vrot.slane %v4007, 5
      %v4133 = vsel %vm1897, %v4131, %v4132
      %v4134 = vrot.slane %v4132, 4
      %v4135 = vrot.slane %v4008, 5
      %v4136 = vsel %vm1897, %v4134, %v4135
      %v4137 = vrot.slane %v4009, 5
      %v4138 = vrot.slane %v4137, 4
      %v4139 = vrot.slane %v4010, 5
      %v4140 = vsel %vm1897, %v4138, %v4139
      %v4141 = vrot.slane %v4139, 4
      %v4142 = vrot.slane %v4011, 5
      %v4143 = vsel %vm1897, %v4141, %v4142
      %v4144 = vrot.slane %v4012, 5
      %v4145 = vrot.slane %v4144, 4
      %v4146 = vrot.slane %v4013, 5
      %v4147 = vsel %vm1897, %v4145, %v4146
      %v4148 = vrot.slane %v4146, 4
      %v4149 = vrot.slane %v4014, 5
      %v4150 = vsel %vm1897, %v4148, %v4149
      %v4151 = vrot.slane %v4015, 5
      %v4152 = vrot.slane %v4151, 4
      %v4153 = vrot.slane %v4016, 5
      %v4154 = vsel %vm1897, %v4152, %v4153
      %v4155 = vrot.slane %v4153, 4
      %v4156 = vrot.slane %v4017, 5
      %v4157 = vsel %vm1897, %v4155, %v4156
      %v4158 = vrot.slane %v4018, 5
      %v4159 = vrot.slane %v4158, 4
      %v4160 = vrot.slane %v4019, 5
      %v4161 = vsel %vm1897, %v4159, %v4160
      %v4162 = vrot.slane %v4160, 4
      %v4163 = vrot.slane %v4020, 5
      %v4164 = vsel %vm1897, %v4162, %v4163
      %v4165 = vrot.slane %v4021, 5
      %v4166 = vrot.slane %v4165, 4
      %v4167 = vrot.slane %v4022, 5
      %v4168 = vsel %vm1897, %v4166, %v4167
      %v4169 = vrot.slane %v4167, 4
      %v4170 = vrot.slane %v4023, 5
      %v4171 = vsel %vm1897, %v4169, %v4170
      %v4172 = vrot.slane %v4024, 5
      %v4173 = vrot.slane %v4172, 4
      %v4174 = vrot.slane %v4025, 5
      %v4175 = vsel %vm1897, %v4173, %v4174
      %v4176 = vrot.slane %v4174, 4
      %v4177 = vrot.slane %v4026, 5
      %v4178 = vsel %vm1897, %v4176, %v4177
      %v4179 = vrot.slane %v4027, 5
      %v4180 = vrot.slane %v4179, 4
      %v4181 = vrot.slane %v4028, 5
      %v4182 = vsel %vm1897, %v4180, %v4181
      %v4183 = vrot.slane %v4181, 4
      %v4184 = vrot.slane %v4029, 5
      %v4185 = vsel %vm1897, %v4183, %v4184
      %v4186 = vrot.slane %v4030, 5
      %v4187 = vrot.slane %v4186, 4
      %v4188 = vrot.slane %v4031, 5
      %v4189 = vsel %vm1897, %v4187, %v4188
      %v4190 = vrot.slane %v4188, 4
      %v4191 = vrot.slane %v4032, 5
      %v4192 = vsel %vm1897, %v4190, %v4191
      %4193 = vrot.lane.b32.xlu0 %v4084, 32
      %v4194 = vpop.permute.xlu0 %4193
      %4195 = vrot.lane.b32.xlu0 %v4087, 32
      %v4196 = vpop.permute.xlu0 %4195
      %4197 = vrot.lane.b32.xlu0 %v4091, 32
      %v4198 = vpop.permute.xlu0 %4197
      %4199 = vrot.lane.b32.xlu0 %v4094, 32
      %v4200 = vpop.permute.xlu0 %4199
      %4201 = vrot.lane.b32.xlu0 %v4098, 32
      %v4202 = vpop.permute.xlu0 %4201
      %4203 = vrot.lane.b32.xlu0 %v4101, 32
      %v4204 = vpop.permute.xlu0 %4203
      %4205 = vrot.lane.b32.xlu0 %v4105, 32
      %v4206 = vpop.permute.xlu0 %4205
      %4207 = vrot.lane.b32.xlu0 %v4108, 32
      %v4208 = vpop.permute.xlu0 %4207
      %4209 = vrot.lane.b32.xlu0 %v4112, 32
      %v4210 = vpop.permute.xlu0 %4209
      %4211 = vrot.lane.b32.xlu0 %v4115, 32
      %v4212 = vpop.permute.xlu0 %4211
      %4213 = vrot.lane.b32.xlu0 %v4119, 32
      %v4214 = vpop.permute.xlu0 %4213
      %4215 = vrot.lane.b32.xlu0 %v4122, 32
      %v4216 = vpop.permute.xlu0 %4215
      %4217 = vrot.lane.b32.xlu0 %v4126, 32
      %v4218 = vpop.permute.xlu0 %4217
      %4219 = vrot.lane.b32.xlu0 %v4129, 32
      %v4220 = vpop.permute.xlu0 %4219
      %4221 = vrot.lane.b32.xlu0 %v4133, 32
      %v4222 = vpop.permute.xlu0 %4221
      %4223 = vrot.lane.b32.xlu0 %v4136, 32
      %v4224 = vpop.permute.xlu0 %4223
      %4225 = vrot.lane.b32.xlu0 %v4140, 32
      %v4226 = vpop.permute.xlu0 %4225
      %4227 = vrot.lane.b32.xlu0 %v4143, 32
      %v4228 = vpop.permute.xlu0 %4227
      %4229 = vrot.lane.b32.xlu0 %v4147, 32
      %v4230 = vpop.permute.xlu0 %4229
      %4231 = vrot.lane.b32.xlu0 %v4150, 32
      %v4232 = vpop.permute.xlu0 %4231
      %4233 = vrot.lane.b32.xlu0 %v4154, 32
      %v4234 = vpop.permute.xlu0 %4233
      %4235 = vrot.lane.b32.xlu0 %v4157, 32
      %v4236 = vpop.permute.xlu0 %4235
      %4237 = vrot.lane.b32.xlu0 %v4161, 32
      %v4238 = vpop.permute.xlu0 %4237
      %4239 = vrot.lane.b32.xlu0 %v4164, 32
      %v4240 = vpop.permute.xlu0 %4239
      %4241 = vrot.lane.b32.xlu0 %v4168, 32
      %v4242 = vpop.permute.xlu0 %4241
      %4243 = vrot.lane.b32.xlu0 %v4171, 32
      %v4244 = vpop.permute.xlu0 %4243
      %4245 = vrot.lane.b32.xlu0 %v4175, 32
      %v4246 = vpop.permute.xlu0 %4245
      %4247 = vrot.lane.b32.xlu0 %v4178, 32
      %v4248 = vpop.permute.xlu0 %4247
      %4249 = vrot.lane.b32.xlu0 %v4182, 32
      %v4250 = vpop.permute.xlu0 %4249
      %4251 = vrot.lane.b32.xlu0 %v4185, 32
      %v4252 = vpop.permute.xlu0 %4251
      %4253 = vrot.lane.b32.xlu0 %v4189, 32
      %v4254 = vpop.permute.xlu0 %4253
      %4255 = vrot.lane.b32.xlu0 %v4192, 32
      %v4256 = vpop.permute.xlu0 %4255
      %vm4289 = vcmask 290048
      %4290 = vst.msk [vmem:[#allocation3] sm:$0xf] %vm4289, %v4194
      %4291 = vst.msk [vmem:[#allocation3 + $0x4] sm:$0xf] %vm4289, %v4196
      %4292 = vst.msk [vmem:[#allocation3 + $0x8] sm:$0xf] %vm4289, %v4198
      %4293 = vst.msk [vmem:[#allocation3 + $0xc] sm:$0xf] %vm4289, %v4200
      %4294 = vst.msk [vmem:[#allocation3 + $0x10] sm:$0xf] %vm4289, %v4202
      %4295 = vst.msk [vmem:[#allocation3 + $0x14] sm:$0xf] %vm4289, %v4204
      %4296 = vst.msk [vmem:[#allocation3 + $0x18] sm:$0xf] %vm4289, %v4206
      %4297 = vst.msk [vmem:[#allocation3 + $0x1c] sm:$0xf] %vm4289, %v4208
      %4298 = vst.msk [vmem:[#allocation3 + $0x20] sm:$0xf] %vm4289, %v4210
      %4299 = vst.msk [vmem:[#allocation3 + $0x24] sm:$0xf] %vm4289, %v4212
      %4300 = vst.msk [vmem:[#allocation3 + $0x28] sm:$0xf] %vm4289, %v4214
      %4301 = vst.msk [vmem:[#allocation3 + $0x2c] sm:$0xf] %vm4289, %v4216
      %4302 = vst.msk [vmem:[#allocation3 + $0x30] sm:$0xf] %vm4289, %v4218
      %4303 = vst.msk [vmem:[#allocation3 + $0x34] sm:$0xf] %vm4289, %v4220
      %4304 = vst.msk [vmem:[#allocation3 + $0x38] sm:$0xf] %vm4289, %v4222
      %4305 = vst.msk [vmem:[#allocation3 + $0x3c] sm:$0xf] %vm4289, %v4224
      %4306 = vst.msk [vmem:[#allocation3 + $0x40] sm:$0xf] %vm4289, %v4226
      %4307 = vst.msk [vmem:[#allocation3 + $0x44] sm:$0xf] %vm4289, %v4228
      %4308 = vst.msk [vmem:[#allocation3 + $0x48] sm:$0xf] %vm4289, %v4230
      %4309 = vst.msk [vmem:[#allocation3 + $0x4c] sm:$0xf] %vm4289, %v4232
      %4310 = vst.msk [vmem:[#allocation3 + $0x50] sm:$0xf] %vm4289, %v4234
      %4311 = vst.msk [vmem:[#allocation3 + $0x54] sm:$0xf] %vm4289, %v4236
      %4312 = vst.msk [vmem:[#allocation3 + $0x58] sm:$0xf] %vm4289, %v4238
      %4313 = vst.msk [vmem:[#allocation3 + $0x5c] sm:$0xf] %vm4289, %v4240
      %4314 = vst.msk [vmem:[#allocation3 + $0x60] sm:$0xf] %vm4289, %v4242
      %4315 = vst.msk [vmem:[#allocation3 + $0x64] sm:$0xf] %vm4289, %v4244
      %4316 = vst.msk [vmem:[#allocation3 + $0x68] sm:$0xf] %vm4289, %v4246
      %4317 = vst.msk [vmem:[#allocation3 + $0x6c] sm:$0xf] %vm4289, %v4248
      %4318 = vst.msk [vmem:[#allocation3 + $0x70] sm:$0xf] %vm4289, %v4250
      %4319 = vst.msk [vmem:[#allocation3 + $0x74] sm:$0xf] %vm4289, %v4252
      %4320 = vst.msk [vmem:[#allocation3 + $0x78] sm:$0xf] %vm4289, %v4254
      %4321 = vst.msk [vmem:[#allocation3 + $0x7c] sm:$0xf] %vm4289, %v4256
      %v4322 = vld [vmem:[#allocation3] sm:$0xf]
      %v4323 = vld [vmem:[#allocation3 + $0x4] sm:$0xf]
      %v4324 = vld [vmem:[#allocation3 + $0x8] sm:$0xf]
      %v4325 = vld [vmem:[#allocation3 + $0xc] sm:$0xf]
      %v4326 = vld [vmem:[#allocation3 + $0x10] sm:$0xf]
      %v4327 = vld [vmem:[#allocation3 + $0x14] sm:$0xf]
      %v4328 = vld [vmem:[#allocation3 + $0x18] sm:$0xf]
      %v4329 = vld [vmem:[#allocation3 + $0x1c] sm:$0xf]
      %v4330 = vld [vmem:[#allocation3 + $0x20] sm:$0xf]
      %v4331 = vld [vmem:[#allocation3 + $0x24] sm:$0xf]
      %v4332 = vld [vmem:[#allocation3 + $0x28] sm:$0xf]
      %v4333 = vld [vmem:[#allocation3 + $0x2c] sm:$0xf]
      %v4334 = vld [vmem:[#allocation3 + $0x30] sm:$0xf]
      %v4335 = vld [vmem:[#allocation3 + $0x34] sm:$0xf]
      %v4336 = vld [vmem:[#allocation3 + $0x38] sm:$0xf]
      %v4337 = vld [vmem:[#allocation3 + $0x3c] sm:$0xf]
      %v4338 = vld [vmem:[#allocation3 + $0x40] sm:$0xf]
      %v4339 = vld [vmem:[#allocation3 + $0x44] sm:$0xf]
      %v4340 = vld [vmem:[#allocation3 + $0x48] sm:$0xf]
      %v4341 = vld [vmem:[#allocation3 + $0x4c] sm:$0xf]
      %v4342 = vld [vmem:[#allocation3 + $0x50] sm:$0xf]
      %v4343 = vld [vmem:[#allocation3 + $0x54] sm:$0xf]
      %v4344 = vld [vmem:[#allocation3 + $0x58] sm:$0xf]
      %v4345 = vld [vmem:[#allocation3 + $0x5c] sm:$0xf]
      %v4346 = vld [vmem:[#allocation3 + $0x60] sm:$0xf]
      %v4347 = vld [vmem:[#allocation3 + $0x64] sm:$0xf]
      %v4348 = vld [vmem:[#allocation3 + $0x68] sm:$0xf]
      %v4349 = vld [vmem:[#allocation3 + $0x6c] sm:$0xf]
      %v4350 = vld [vmem:[#allocation3 + $0x70] sm:$0xf]
      %v4351 = vld [vmem:[#allocation3 + $0x74] sm:$0xf]
      %v4352 = vld [vmem:[#allocation3 + $0x78] sm:$0xf]
      %v4353 = vld [vmem:[#allocation3 + $0x7c] sm:$0xf]
      %v4354 = vld [vmem:[%s5] sm:$0xf]
      %v4355 = vld [vmem:[%s5 + $0x4] sm:$0xf]
      %v4356 = vld [vmem:[%s5 + $0x8] sm:$0xf]
      %v4357 = vld [vmem:[%s5 + $0xc] sm:$0xf]
      %v4358 = vld [vmem:[%s5 + $0x10] sm:$0x3]
      %v4391 = vunpack.c.l.b16 %v4322
      %v4392 = vunpack.c.l.b16 %v4323
      %v4393 = vunpack.c.l.b16 %v4324
      %v4394 = vunpack.c.l.b16 %v4325
      %v4395 = vunpack.c.l.b16 %v4326
      %v4396 = vunpack.c.l.b16 %v4327
      %v4397 = vunpack.c.l.b16 %v4328
      %v4398 = vunpack.c.l.b16 %v4329
      %v4399 = vunpack.c.l.b16 %v4330
      %v4400 = vunpack.c.l.b16 %v4331
      %v4401 = vunpack.c.l.b16 %v4332
      %v4402 = vunpack.c.l.b16 %v4333
      %v4403 = vunpack.c.l.b16 %v4334
      %v4404 = vunpack.c.l.b16 %v4335
      %v4405 = vunpack.c.l.b16 %v4336
      %v4406 = vunpack.c.l.b16 %v4337
      %v4407 = vunpack.c.l.b16 %v4338
      %v4408 = vunpack.c.l.b16 %v4339
      %v4409 = vunpack.c.l.b16 %v4340
      %v4410 = vunpack.c.l.b16 %v4341
      %v4411 = vunpack.c.l.b16 %v4342
      %v4412 = vunpack.c.l.b16 %v4343
      %v4413 = vunpack.c.l.b16 %v4344
      %v4414 = vunpack.c.l.b16 %v4345
      %v4415 = vunpack.c.l.b16 %v4346
      %v4416 = vunpack.c.l.b16 %v4347
      %v4417 = vunpack.c.l.b16 %v4348
      %v4418 = vunpack.c.l.b16 %v4349
      %v4419 = vunpack.c.l.b16 %v4350
      %v4420 = vunpack.c.l.b16 %v4351
      %v4421 = vunpack.c.l.b16 %v4352
      %v4422 = vunpack.c.l.b16 %v4353
      %v4423 = vpack.c.b16 %v4392, %v4391
      %v4424 = vpack.c.b16 %v4394, %v4393
      %v4425 = vpack.c.b16 %v4396, %v4395
      %v4426 = vpack.c.b16 %v4398, %v4397
      %v4427 = vpack.c.b16 %v4400, %v4399
      %v4428 = vpack.c.b16 %v4402, %v4401
      %v4429 = vpack.c.b16 %v4404, %v4403
      %v4430 = vpack.c.b16 %v4406, %v4405
      %v4431 = vpack.c.b16 %v4408, %v4407
      %v4432 = vpack.c.b16 %v4410, %v4409
      %v4433 = vpack.c.b16 %v4412, %v4411
      %v4434 = vpack.c.b16 %v4414, %v4413
      %v4435 = vpack.c.b16 %v4416, %v4415
      %v4436 = vpack.c.b16 %v4418, %v4417
      %v4437 = vpack.c.b16 %v4420, %v4419
      %v4438 = vpack.c.b16 %v4422, %v4421
      %v4444 = vunpack.c.l.b16 %v4354
      %v4445 = vunpack.c.l.b16 %v4355
      %v4446 = vunpack.c.l.b16 %v4356
      %v4447 = vunpack.c.l.b16 %v4357
      %v4448 = vunpack.c.l.b16 %v4358
      %v4449 = vpack.c.b16 %v4445, %v4444
      %v4450 = vpack.c.b16 %v4447, %v4446
      %v4451 = vpack.c.b16 %v4448, %v4448
      %vm4454 = vcmask 293888
      %v4456 = vsel %vm4454, %v4423, 0
      %v4459 = vsel %vm4454, %v4424, 0
      %v4462 = vsel %vm4454, %v4425, 0
      %v4465 = vsel %vm4454, %v4426, 0
      %v4468 = vsel %vm4454, %v4427, 0
      %v4471 = vsel %vm4454, %v4428, 0
      %v4474 = vsel %vm4454, %v4429, 0
      %v4477 = vsel %vm4454, %v4430, 0
      %v4480 = vsel %vm4454, %v4431, 0
      %v4483 = vsel %vm4454, %v4432, 0
      %v4486 = vsel %vm4454, %v4433, 0
      %v4489 = vsel %vm4454, %v4434, 0
      %v4492 = vsel %vm4454, %v4435, 0
      %v4495 = vsel %vm4454, %v4436, 0
      %v4498 = vsel %vm4454, %v4437, 0
      %v4501 = vsel %vm4454, %v4438, 0
      %vm4503 = vcmask 1041408
      %v4505 = vsel %vm4503, %v4451, 0
      %4507 = vmatprep.subr.bf16.mxu0 0
      %4508 = vmatpush1.bf16.msra.mxu0 0
      %4509 = vmatprep.subr.bf16.mxu0 0
      %4510 = vmatpush1.bf16.msra.mxu0 0
      %4511 = vmatprep.subr.bf16.mxu0 0
      %4512 = vmatpush1.bf16.msra.mxu0 0
      %4513 = vmatprep.subr.bf16.mxu0 0
      %4514 = vmatpush1.bf16.msra.mxu0 0
      %4515 = vmatprep.subr.bf16.mxu0 0
      %4516 = vmatpush1.bf16.msra.mxu0 0
      %4517 = vmatprep.subr.bf16.mxu0 0
      %4518 = vmatpush1.bf16.msra.mxu0 %v4505
      %4519 = vmatprep.subr.bf16.mxu0 0
      %4520 = vmatpush1.bf16.msra.mxu0 %v4450
      %4521 = vmatprep.subr.bf16.mxu0 0
      %4522 = vmatpush1.bf16.msra.mxu0 %v4449
      %4523 = vmatprep.subr.bf16.mxu0 0
      %4524 = vmatpush2.bf16.msra.mxu0 0
      %4525 = vmatprep.subr.bf16.mxu0 0
      %4526 = vmatpush2.bf16.msra.mxu0 0
      %4527 = vmatprep.subr.bf16.mxu0 0
      %4528 = vmatpush2.bf16.msra.mxu0 0
      %4529 = vmatprep.subr.bf16.mxu0 0
      %4530 = vmatpush2.bf16.msra.mxu0 0
      %4531 = vmatprep.subr.bf16.mxu0 0
      %4532 = vmatpush2.bf16.msra.mxu0 0
      %4533 = vmatprep.subr.bf16.mxu0 0
      %4534 = vmatpush2.bf16.msra.mxu0 0
      %4535 = vmatprep.subr.bf16.mxu0 0
      %4536 = vmatpush2.bf16.msra.mxu0 0
      %4537 = vmatprep.subr.bf16.mxu0 0
      %4538 = vmatpush2.bf16.msra.mxu0 0
      %4539 = vmatprep.mubr.bf16.mxu0 0
      %4540 = vmatmul.mubr.bf16.gmra.mxu0 %v4456
      %v4541 = vpop.f32.mrf.mxu0
      %v4542 = vadd.f32 0.0, %v4541
      %v4543 = vpop.f32.mrf.mxu0
      %v4544 = vpop.f32.mrf.mxu0
      %v4545 = vadd.f32 0.0, %v4544
      %v4546 = vpop.f32.mrf.mxu0
      %4547 = vmatprep.mubr.bf16.mxu0 0
      %4548 = vmatmul.mubr.bf16.gmra.mxu0 %v4459
      %v4549 = vpop.f32.mrf.mxu0
      %v4550 = vadd.f32 0.0, %v4549
      %v4551 = vpop.f32.mrf.mxu0
      %v4552 = vpop.f32.mrf.mxu0
      %v4553 = vadd.f32 0.0, %v4552
      %v4554 = vpop.f32.mrf.mxu0
      %4555 = vmatprep.mubr.bf16.mxu0 0
      %4556 = vmatmul.mubr.bf16.gmra.mxu0 %v4462
      %v4557 = vpop.f32.mrf.mxu0
      %v4558 = vadd.f32 0.0, %v4557
      %v4559 = vpop.f32.mrf.mxu0
      %v4560 = vpop.f32.mrf.mxu0
      %v4561 = vadd.f32 0.0, %v4560
      %v4562 = vpop.f32.mrf.mxu0
      %4563 = vmatprep.mubr.bf16.mxu0 0
      %4564 = vmatmul.mubr.bf16.gmra.mxu0 %v4465
      %v4565 = vpop.f32.mrf.mxu0
      %v4566 = vadd.f32 0.0, %v4565
      %v4567 = vpop.f32.mrf.mxu0
      %v4568 = vpop.f32.mrf.mxu0
      %v4569 = vadd.f32 0.0, %v4568
      %v4570 = vpop.f32.mrf.mxu0
      %4571 = vmatprep.mubr.bf16.mxu0 0
      %4572 = vmatmul.mubr.bf16.gmra.mxu0 %v4468
      %v4573 = vpop.f32.mrf.mxu0
      %v4574 = vadd.f32 0.0, %v4573
      %v4575 = vpop.f32.mrf.mxu0
      %v4576 = vpop.f32.mrf.mxu0
      %v4577 = vadd.f32 0.0, %v4576
      %v4578 = vpop.f32.mrf.mxu0
      %4579 = vmatprep.mubr.bf16.mxu0 0
      %4580 = vmatmul.mubr.bf16.gmra.mxu0 %v4471
      %v4581 = vpop.f32.mrf.mxu0
      %v4582 = vadd.f32 0.0, %v4581
      %v4583 = vpop.f32.mrf.mxu0
      %v4584 = vpop.f32.mrf.mxu0
      %v4585 = vadd.f32 0.0, %v4584
      %v4586 = vpop.f32.mrf.mxu0
      %4587 = vmatprep.mubr.bf16.mxu0 0
      %4588 = vmatmul.mubr.bf16.gmra.mxu0 %v4474
      %v4589 = vpop.f32.mrf.mxu0
      %v4590 = vadd.f32 0.0, %v4589
      %v4591 = vpop.f32.mrf.mxu0
      %v4592 = vpop.f32.mrf.mxu0
      %v4593 = vadd.f32 0.0, %v4592
      %v4594 = vpop.f32.mrf.mxu0
      %4595 = vmatprep.mubr.bf16.mxu0 0
      %4596 = vmatmul.mubr.bf16.gmra.mxu0 %v4477
      %v4597 = vpop.f32.mrf.mxu0
      %v4598 = vadd.f32 0.0, %v4597
      %v4599 = vpop.f32.mrf.mxu0
      %v4600 = vpop.f32.mrf.mxu0
      %v4601 = vadd.f32 0.0, %v4600
      %v4602 = vpop.f32.mrf.mxu0
      %4603 = vmatprep.mubr.bf16.mxu0 0
      %4604 = vmatmul.mubr.bf16.gmra.mxu0 %v4480
      %v4605 = vpop.f32.mrf.mxu0
      %v4606 = vadd.f32 0.0, %v4605
      %v4607 = vpop.f32.mrf.mxu0
      %v4608 = vpop.f32.mrf.mxu0
      %v4609 = vadd.f32 0.0, %v4608
      %v4610 = vpop.f32.mrf.mxu0
      %4611 = vmatprep.mubr.bf16.mxu0 0
      %4612 = vmatmul.mubr.bf16.gmra.mxu0 %v4483
      %v4613 = vpop.f32.mrf.mxu0
      %v4614 = vadd.f32 0.0, %v4613
      %v4615 = vpop.f32.mrf.mxu0
      %v4616 = vpop.f32.mrf.mxu0
      %v4617 = vadd.f32 0.0, %v4616
      %v4618 = vpop.f32.mrf.mxu0
      %4619 = vmatprep.mubr.bf16.mxu0 0
      %4620 = vmatmul.mubr.bf16.gmra.mxu0 %v4486
      %v4621 = vpop.f32.mrf.mxu0
      %v4622 = vadd.f32 0.0, %v4621
      %v4623 = vpop.f32.mrf.mxu0
      %v4624 = vpop.f32.mrf.mxu0
      %v4625 = vadd.f32 0.0, %v4624
      %v4626 = vpop.f32.mrf.mxu0
      %4627 = vmatprep.mubr.bf16.mxu0 0
      %4628 = vmatmul.mubr.bf16.gmra.mxu0 %v4489
      %v4629 = vpop.f32.mrf.mxu0
      %v4630 = vadd.f32 0.0, %v4629
      %v4631 = vpop.f32.mrf.mxu0
      %v4632 = vpop.f32.mrf.mxu0
      %v4633 = vadd.f32 0.0, %v4632
      %v4634 = vpop.f32.mrf.mxu0
      %4635 = vmatprep.mubr.bf16.mxu0 0
      %4636 = vmatmul.mubr.bf16.gmra.mxu0 %v4492
      %v4637 = vpop.f32.mrf.mxu0
      %v4638 = vadd.f32 0.0, %v4637
      %v4639 = vpop.f32.mrf.mxu0
      %v4640 = vpop.f32.mrf.mxu0
      %v4641 = vadd.f32 0.0, %v4640
      %v4642 = vpop.f32.mrf.mxu0
      %4643 = vmatprep.mubr.bf16.mxu0 0
      %4644 = vmatmul.mubr.bf16.gmra.mxu0 %v4495
      %v4645 = vpop.f32.mrf.mxu0
      %v4646 = vadd.f32 0.0, %v4645
      %v4647 = vpop.f32.mrf.mxu0
      %v4648 = vpop.f32.mrf.mxu0
      %v4649 = vadd.f32 0.0, %v4648
      %v4650 = vpop.f32.mrf.mxu0
      %4651 = vmatprep.mubr.bf16.mxu0 0
      %4652 = vmatmul.mubr.bf16.gmra.mxu0 %v4498
      %v4653 = vpop.f32.mrf.mxu0
      %v4654 = vadd.f32 0.0, %v4653
      %v4655 = vpop.f32.mrf.mxu0
      %v4656 = vpop.f32.mrf.mxu0
      %v4657 = vadd.f32 0.0, %v4656
      %v4658 = vpop.f32.mrf.mxu0
      %4659 = vmatprep.mubr.bf16.mxu0 0
      %4660 = vmatmul.mubr.bf16.gmra.mxu0 %v4501
      %v4661 = vpop.f32.mrf.mxu0
      %v4662 = vadd.f32 0.0, %v4661
      %v4663 = vpop.f32.mrf.mxu0
      %v4664 = vpop.f32.mrf.mxu0
      %v4665 = vadd.f32 0.0, %v4664
      %v4666 = vpop.f32.mrf.mxu0
      %4667 = vdwg.mxu0
      %v4668 = vpack.c.bf16 %v4545, %v4542
      %v4669 = vpack.c.bf16 %v4553, %v4550
      %v4670 = vpack.c.bf16 %v4561, %v4558
      %v4671 = vpack.c.bf16 %v4569, %v4566
      %v4672 = vpack.c.bf16 %v4577, %v4574
      %v4673 = vpack.c.bf16 %v4585, %v4582
      %v4674 = vpack.c.bf16 %v4593, %v4590
      %v4675 = vpack.c.bf16 %v4601, %v4598
      %v4676 = vpack.c.bf16 %v4609, %v4606
      %v4677 = vpack.c.bf16 %v4617, %v4614
      %v4678 = vpack.c.bf16 %v4625, %v4622
      %v4679 = vpack.c.bf16 %v4633, %v4630
      %v4680 = vpack.c.bf16 %v4641, %v4638
      %v4681 = vpack.c.bf16 %v4649, %v4646
      %v4682 = vpack.c.bf16 %v4657, %v4654
      %v4683 = vpack.c.bf16 %v4665, %v4662
      %v4700 = vunpack.c.l.b16 %v4668
      %v4701 = vunpack.c.h.b16 %v4668
      %v4702 = vunpack.c.l.b16 %v4669
      %v4703 = vunpack.c.h.b16 %v4669
      %v4704 = vunpack.c.l.b16 %v4670
      %v4705 = vunpack.c.h.b16 %v4670
      %v4706 = vunpack.c.l.b16 %v4671
      %v4707 = vunpack.c.h.b16 %v4671
      %v4708 = vunpack.c.l.b16 %v4672
      %v4709 = vunpack.c.h.b16 %v4672
      %v4710 = vunpack.c.l.b16 %v4673
      %v4711 = vunpack.c.h.b16 %v4673
      %v4712 = vunpack.c.l.b16 %v4674
      %v4713 = vunpack.c.h.b16 %v4674
      %v4714 = vunpack.c.l.b16 %v4675
      %v4715 = vunpack.c.h.b16 %v4675
      %v4716 = vunpack.c.l.b16 %v4676
      %v4717 = vunpack.c.h.b16 %v4676
      %v4718 = vunpack.c.l.b16 %v4677
      %v4719 = vunpack.c.h.b16 %v4677
      %v4720 = vunpack.c.l.b16 %v4678
      %v4721 = vunpack.c.h.b16 %v4678
      %v4722 = vunpack.c.l.b16 %v4679
      %v4723 = vunpack.c.h.b16 %v4679
      %v4724 = vunpack.c.l.b16 %v4680
      %v4725 = vunpack.c.h.b16 %v4680
      %v4726 = vunpack.c.l.b16 %v4681
      %v4727 = vunpack.c.h.b16 %v4681
      %v4728 = vunpack.c.l.b16 %v4682
      %v4729 = vunpack.c.h.b16 %v4682
      %v4730 = vunpack.c.l.b16 %v4683
      %v4731 = vunpack.c.h.b16 %v4683
      %v4732 = vpack.c.b16 %v4700, %v4700
      %v4733 = vpack.c.b16 %v4701, %v4701
      %v4734 = vpack.c.b16 %v4702, %v4702
      %v4735 = vpack.c.b16 %v4703, %v4703
      %v4736 = vpack.c.b16 %v4704, %v4704
      %v4737 = vpack.c.b16 %v4705, %v4705
      %v4738 = vpack.c.b16 %v4706, %v4706
      %v4739 = vpack.c.b16 %v4707, %v4707
      %v4740 = vpack.c.b16 %v4708, %v4708
      %v4741 = vpack.c.b16 %v4709, %v4709
      %v4742 = vpack.c.b16 %v4710, %v4710
      %v4743 = vpack.c.b16 %v4711, %v4711
      %v4744 = vpack.c.b16 %v4712, %v4712
      %v4745 = vpack.c.b16 %v4713, %v4713
      %v4746 = vpack.c.b16 %v4714, %v4714
      %v4747 = vpack.c.b16 %v4715, %v4715
      %v4748 = vpack.c.b16 %v4716, %v4716
      %v4749 = vpack.c.b16 %v4717, %v4717
      %v4750 = vpack.c.b16 %v4718, %v4718
      %v4751 = vpack.c.b16 %v4719, %v4719
      %v4752 = vpack.c.b16 %v4720, %v4720
      %v4753 = vpack.c.b16 %v4721, %v4721
      %v4754 = vpack.c.b16 %v4722, %v4722
      %v4755 = vpack.c.b16 %v4723, %v4723
      %v4756 = vpack.c.b16 %v4724, %v4724
      %v4757 = vpack.c.b16 %v4725, %v4725
      %v4758 = vpack.c.b16 %v4726, %v4726
      %v4759 = vpack.c.b16 %v4727, %v4727
      %v4760 = vpack.c.b16 %v4728, %v4728
      %v4761 = vpack.c.b16 %v4729, %v4729
      %v4762 = vpack.c.b16 %v4730, %v4730
      %v4763 = vpack.c.b16 %v4731, %v4731
      %4796 = vst.msk [vmem:[%s452] sm:$0xf] %vm977, %v4732
      %4797 = vst.msk [vmem:[%s452 + $0x4] sm:$0xf] %vm977, %v4733
      %4798 = vst.msk [vmem:[%s452 + $0x8] sm:$0xf] %vm977, %v4734
      %4799 = vst.msk [vmem:[%s452 + $0xc] sm:$0xf] %vm977, %v4735
      %4800 = vst.msk [vmem:[%s452 + $0x10] sm:$0xf] %vm977, %v4736
      %4801 = vst.msk [vmem:[%s452 + $0x14] sm:$0xf] %vm977, %v4737
      %4802 = vst.msk [vmem:[%s452 + $0x18] sm:$0xf] %vm977, %v4738
      %4803 = vst.msk [vmem:[%s452 + $0x1c] sm:$0xf] %vm977, %v4739
      %4804 = vst.msk [vmem:[%s452 + $0x20] sm:$0xf] %vm977, %v4740
      %4805 = vst.msk [vmem:[%s452 + $0x24] sm:$0xf] %vm977, %v4741
      %4806 = vst.msk [vmem:[%s452 + $0x28] sm:$0xf] %vm977, %v4742
      %4807 = vst.msk [vmem:[%s452 + $0x2c] sm:$0xf] %vm977, %v4743
      %4808 = vst.msk [vmem:[%s452 + $0x30] sm:$0xf] %vm977, %v4744
      %4809 = vst.msk [vmem:[%s452 + $0x34] sm:$0xf] %vm977, %v4745
      %4810 = vst.msk [vmem:[%s452 + $0x38] sm:$0xf] %vm977, %v4746
      %4811 = vst.msk [vmem:[%s452 + $0x3c] sm:$0xf] %vm977, %v4747
      %4812 = vst.msk [vmem:[%s452 + $0x40] sm:$0xf] %vm977, %v4748
      %4813 = vst.msk [vmem:[%s452 + $0x44] sm:$0xf] %vm977, %v4749
      %4814 = vst.msk [vmem:[%s452 + $0x48] sm:$0xf] %vm977, %v4750
      %4815 = vst.msk [vmem:[%s452 + $0x4c] sm:$0xf] %vm977, %v4751
      %4816 = vst.msk [vmem:[%s452 + $0x50] sm:$0xf] %vm977, %v4752
      %4817 = vst.msk [vmem:[%s452 + $0x54] sm:$0xf] %vm977, %v4753
      %4818 = vst.msk [vmem:[%s452 + $0x58] sm:$0xf] %vm977, %v4754
      %4819 = vst.msk [vmem:[%s452 + $0x5c] sm:$0xf] %vm977, %v4755
      %4820 = vst.msk [vmem:[%s452 + $0x60] sm:$0xf] %vm977, %v4756
      %4821 = vst.msk [vmem:[%s452 + $0x64] sm:$0xf] %vm977, %v4757
      %4822 = vst.msk [vmem:[%s452 + $0x68] sm:$0xf] %vm977, %v4758
      %4823 = vst.msk [vmem:[%s452 + $0x6c] sm:$0xf] %vm977, %v4759
      %4824 = vst.msk [vmem:[%s452 + $0x70] sm:$0xf] %vm977, %v4760
      %4825 = vst.msk [vmem:[%s452 + $0x74] sm:$0xf] %vm977, %v4761
      %4826 = vst.msk [vmem:[%s452 + $0x78] sm:$0xf] %vm977, %v4762
      %4827 = vst.msk [vmem:[%s452 + $0x7c] sm:$0xf] %vm977, %v4763
      %vm4828 = vcmask 31744
      %v4829 = vsel %vm4828, %v4542, 0.0
      %v4830 = vsel %vm4828, %v4545, 0.0
      %v4831 = vadd.f32 %v4829, %v4830
      %v4832 = vsel %vm4828, %v4550, 0.0
      %v4833 = vadd.f32 %v4831, %v4832
      %v4834 = vsel %vm4828, %v4553, 0.0
      %v4835 = vadd.f32 %v4833, %v4834
      %v4836 = vsel %vm4828, %v4558, 0.0
      %v4837 = vadd.f32 %v4835, %v4836
      %v4838 = vsel %vm4828, %v4561, 0.0
      %v4839 = vadd.f32 %v4837, %v4838
      %v4840 = vsel %vm4828, %v4566, 0.0
      %v4841 = vadd.f32 %v4839, %v4840
      %v4842 = vsel %vm4828, %v4569, 0.0
      %v4843 = vadd.f32 %v4841, %v4842
      %v4844 = vsel %vm4828, %v4574, 0.0
      %v4845 = vadd.f32 %v4843, %v4844
      %v4846 = vsel %vm4828, %v4577, 0.0
      %v4847 = vadd.f32 %v4845, %v4846
      %v4848 = vsel %vm4828, %v4582, 0.0
      %v4849 = vadd.f32 %v4847, %v4848
      %v4850 = vsel %vm4828, %v4585, 0.0
      %v4851 = vadd.f32 %v4849, %v4850
      %v4852 = vsel %vm4828, %v4590, 0.0
      %v4853 = vadd.f32 %v4851, %v4852
      %v4854 = vsel %vm4828, %v4593, 0.0
      %v4855 = vadd.f32 %v4853, %v4854
      %v4856 = vsel %vm4828, %v4598, 0.0
      %v4857 = vadd.f32 %v4855, %v4856
      %v4858 = vsel %vm4828, %v4601, 0.0
      %v4859 = vadd.f32 %v4857, %v4858
      %v4860 = vsel %vm4828, %v4606, 0.0
      %v4861 = vadd.f32 %v4859, %v4860
      %v4862 = vsel %vm4828, %v4609, 0.0
      %v4863 = vadd.f32 %v4861, %v4862
      %v4864 = vsel %vm4828, %v4614, 0.0
      %v4865 = vadd.f32 %v4863, %v4864
      %v4866 = vsel %vm4828, %v4617, 0.0
      %v4867 = vadd.f32 %v4865, %v4866
      %v4868 = vsel %vm4828, %v4622, 0.0
      %v4869 = vadd.f32 %v4867, %v4868
      %v4870 = vsel %vm4828, %v4625, 0.0
      %v4871 = vadd.f32 %v4869, %v4870
      %v4872 = vsel %vm4828, %v4630, 0.0
      %v4873 = vadd.f32 %v4871, %v4872
      %v4874 = vsel %vm4828, %v4633, 0.0
      %v4875 = vadd.f32 %v4873, %v4874
      %v4876 = vsel %vm4828, %v4638, 0.0
      %v4877 = vadd.f32 %v4875, %v4876
      %v4878 = vsel %vm4828, %v4641, 0.0
      %v4879 = vadd.f32 %v4877, %v4878
      %v4880 = vsel %vm4828, %v4646, 0.0
      %v4881 = vadd.f32 %v4879, %v4880
      %v4882 = vsel %vm4828, %v4649, 0.0
      %v4883 = vadd.f32 %v4881, %v4882
      %v4884 = vsel %vm4828, %v4654, 0.0
      %v4885 = vadd.f32 %v4883, %v4884
      %v4886 = vsel %vm4828, %v4657, 0.0
      %v4887 = vadd.f32 %v4885, %v4886
      %v4888 = vsel %vm4828, %v4662, 0.0
      %v4889 = vadd.f32 %v4887, %v4888
      %v4890 = vsel %vm4828, %v4665, 0.0
      %v4891 = vadd.f32 %v4889, %v4890
      %v4892 = vrot.slane %v4891, 4
      %v4893 = vadd.f32 %v4891, %v4892
      %v4894 = vrot.slane %v4893, 2
      %v4895 = vadd.f32 %v4893, %v4894
      %v4896 = vrot.slane %v4895, 1
      %v4897 = vadd.f32 %v4895, %v4896
      %v4898 = vmul.f32 %v4897, 0.00390625
      %v4899 = vsub.f32 %v4542, %v4898
      %v4900 = vsub.f32 %v4545, %v4898
      %v4901 = vsub.f32 %v4550, %v4898
      %v4902 = vsub.f32 %v4553, %v4898
      %v4903 = vsub.f32 %v4558, %v4898
      %v4904 = vsub.f32 %v4561, %v4898
      %v4905 = vsub.f32 %v4566, %v4898
      %v4906 = vsub.f32 %v4569, %v4898
      %v4907 = vsub.f32 %v4574, %v4898
      %v4908 = vsub.f32 %v4577, %v4898
      %v4909 = vsub.f32 %v4582, %v4898
      %v4910 = vsub.f32 %v4585, %v4898
      %v4911 = vsub.f32 %v4590, %v4898
      %v4912 = vsub.f32 %v4593, %v4898
      %v4913 = vsub.f32 %v4598, %v4898
      %v4914 = vsub.f32 %v4601, %v4898
      %v4915 = vsub.f32 %v4606, %v4898
      %v4916 = vsub.f32 %v4609, %v4898
      %v4917 = vsub.f32 %v4614, %v4898
      %v4918 = vsub.f32 %v4617, %v4898
      %v4919 = vsub.f32 %v4622, %v4898
      %v4920 = vsub.f32 %v4625, %v4898
      %v4921 = vsub.f32 %v4630, %v4898
      %v4922 = vsub.f32 %v4633, %v4898
      %v4923 = vsub.f32 %v4638, %v4898
      %v4924 = vsub.f32 %v4641, %v4898
      %v4925 = vsub.f32 %v4646, %v4898
      %v4926 = vsub.f32 %v4649, %v4898
      %v4927 = vsub.f32 %v4654, %v4898
      %v4928 = vsub.f32 %v4657, %v4898
      %v4929 = vsub.f32 %v4662, %v4898
      %v4930 = vsub.f32 %v4665, %v4898
      %v4931 = vmul.f32 %v4899, %v4899
      %v4932 = vmul.f32 %v4900, %v4900
      %v4933 = vmul.f32 %v4901, %v4901
      %v4934 = vmul.f32 %v4902, %v4902
      %v4935 = vmul.f32 %v4903, %v4903
      %v4936 = vmul.f32 %v4904, %v4904
      %v4937 = vmul.f32 %v4905, %v4905
      %v4938 = vmul.f32 %v4906, %v4906
      %v4939 = vmul.f32 %v4907, %v4907
      %v4940 = vmul.f32 %v4908, %v4908
      %v4941 = vmul.f32 %v4909, %v4909
      %v4942 = vmul.f32 %v4910, %v4910
      %v4943 = vmul.f32 %v4911, %v4911
      %v4944 = vmul.f32 %v4912, %v4912
      %v4945 = vmul.f32 %v4913, %v4913
      %v4946 = vmul.f32 %v4914, %v4914
      %v4947 = vmul.f32 %v4915, %v4915
      %v4948 = vmul.f32 %v4916, %v4916
      %v4949 = vmul.f32 %v4917, %v4917
      %v4950 = vmul.f32 %v4918, %v4918
      %v4951 = vmul.f32 %v4919, %v4919
      %v4952 = vmul.f32 %v4920, %v4920
      %v4953 = vmul.f32 %v4921, %v4921
      %v4954 = vmul.f32 %v4922, %v4922
      %v4955 = vmul.f32 %v4923, %v4923
      %v4956 = vmul.f32 %v4924, %v4924
      %v4957 = vmul.f32 %v4925, %v4925
      %v4958 = vmul.f32 %v4926, %v4926
      %v4959 = vmul.f32 %v4927, %v4927
      %v4960 = vmul.f32 %v4928, %v4928
      %v4961 = vmul.f32 %v4929, %v4929
      %v4962 = vmul.f32 %v4930, %v4930
      %v4963 = vsel %vm4828, %v4931, 0.0
      %v4964 = vsel %vm4828, %v4932, 0.0
      %v4965 = vadd.f32 %v4963, %v4964
      %v4966 = vsel %vm4828, %v4933, 0.0
      %v4967 = vadd.f32 %v4965, %v4966
      %v4968 = vsel %vm4828, %v4934, 0.0
      %v4969 = vadd.f32 %v4967, %v4968
      %v4970 = vsel %vm4828, %v4935, 0.0
      %v4971 = vadd.f32 %v4969, %v4970
      %v4972 = vsel %vm4828, %v4936, 0.0
      %v4973 = vadd.f32 %v4971, %v4972
      %v4974 = vsel %vm4828, %v4937, 0.0
      %v4975 = vadd.f32 %v4973, %v4974
      %v4976 = vsel %vm4828, %v4938, 0.0
      %v4977 = vadd.f32 %v4975, %v4976
      %v4978 = vsel %vm4828, %v4939, 0.0
      %v4979 = vadd.f32 %v4977, %v4978
      %v4980 = vsel %vm4828, %v4940, 0.0
      %v4981 = vadd.f32 %v4979, %v4980
      %v4982 = vsel %vm4828, %v4941, 0.0
      %v4983 = vadd.f32 %v4981, %v4982
      %v4984 = vsel %vm4828, %v4942, 0.0
      %v4985 = vadd.f32 %v4983, %v4984
      %v4986 = vsel %vm4828, %v4943, 0.0
      %v4987 = vadd.f32 %v4985, %v4986
      %v4988 = vsel %vm4828, %v4944, 0.0
      %v4989 = vadd.f32 %v4987, %v4988
      %v4990 = vsel %vm4828, %v4945, 0.0
      %v4991 = vadd.f32 %v4989, %v4990
      %v4992 = vsel %vm4828, %v4946, 0.0
      %v4993 = vadd.f32 %v4991, %v4992
      %v4994 = vsel %vm4828, %v4947, 0.0
      %v4995 = vadd.f32 %v4993, %v4994
      %v4996 = vsel %vm4828, %v4948, 0.0
      %v4997 = vadd.f32 %v4995, %v4996
      %v4998 = vsel %vm4828, %v4949, 0.0
      %v4999 = vadd.f32 %v4997, %v4998
      %v5000 = vsel %vm4828, %v4950, 0.0
      %v5001 = vadd.f32 %v4999, %v5000
      %v5002 = vsel %vm4828, %v4951, 0.0
      %v5003 = vadd.f32 %v5001, %v5002
      %v5004 = vsel %vm4828, %v4952, 0.0
      %v5005 = vadd.f32 %v5003, %v5004
      %v5006 = vsel %vm4828, %v4953, 0.0
      %v5007 = vadd.f32 %v5005, %v5006
      %v5008 = vsel %vm4828, %v4954, 0.0
      %v5009 = vadd.f32 %v5007, %v5008
      %v5010 = vsel %vm4828, %v4955, 0.0
      %v5011 = vadd.f32 %v5009, %v5010
      %v5012 = vsel %vm4828, %v4956, 0.0
      %v5013 = vadd.f32 %v5011, %v5012
      %v5014 = vsel %vm4828, %v4957, 0.0
      %v5015 = vadd.f32 %v5013, %v5014
      %v5016 = vsel %vm4828, %v4958, 0.0
      %v5017 = vadd.f32 %v5015, %v5016
      %v5018 = vsel %vm4828, %v4959, 0.0
      %v5019 = vadd.f32 %v5017, %v5018
      %v5020 = vsel %vm4828, %v4960, 0.0
      %v5021 = vadd.f32 %v5019, %v5020
      %v5022 = vsel %vm4828, %v4961, 0.0
      %v5023 = vadd.f32 %v5021, %v5022
      %v5024 = vsel %vm4828, %v4962, 0.0
      %v5025 = vadd.f32 %v5023, %v5024
      %v5026 = vrot.slane %v5025, 4
      %v5027 = vadd.f32 %v5025, %v5026
      %v5028 = vrot.slane %v5027, 2
      %v5029 = vadd.f32 %v5027, %v5028
      %v5030 = vrot.slane %v5029, 1
      %v5031 = vadd.f32 %v5029, %v5030
      // Predicated region
      $region49: #{resblock_forward.3} parent=43 // pred_check
        %p5032 = pneg %p459
      $region50: #{resblock_forward.3} parent=43 // pred_check_branch
        %5034 = sbr.rel (%p5032) target = $region52
      $region51: #{resblock_forward.3} parent=43 // pred_region
        %vm5035 = vcmask 24576
        %5036 = vst.msk [vmem:[%s457] sm:$0x1] %vm5035, %v4898
        %5037 = vst.msk [vmem:[%s457 + $0x1] sm:$0x1] %vm5035, %v5031
      $region52: #{resblock_forward.3} parent=43 // pred_fallthru
        _
      // Predicated region
      $region53: #{resblock_forward.3} parent=43 // pred_check
        %p5038 = pneg %p1095
      $region54: #{resblock_forward.3} parent=43 // pred_check_branch
        %5040 = sbr.rel (%p5038) target = $region56
      $region55: #{resblock_forward.3} parent=43 // pred_region
        %v5041 = vld [vmem:[%s457] sm:$0x1]
        %v5042 = vld [vmem:[%s457 + $0x1] sm:$0x1]
        %s5043 = smul.u32 %s24, 256
        %s5044 = scvt.s32.f32 %s5043
        %s5045 = sadd.f32 %s5044, 256.0
        %v5046 = vsub.f32 %v4898, %v5041
        %v5047 = vstv %s5045
        %v5048 = vrcp.pop %v5047
        %s5049 = vtos %v5048
        %s5050 = smul.f32 256.0, %s5049
        %v5051 = vstv %s5050
        %v5052 = vmul.f32 %v5046, %v5051
        %v5053 = vadd.f32 %v5041, %v5052
        %vm5054 = vcmask 24576
        %5055 = vst.msk [vmem:[%s457] sm:$0x1] %vm5054, %v5053
        %v5056 = vadd.f32 %v5042, %v5031
        %v5057 = vmul.f32 %v5046, %v5046
        %s5058 = smul.f32 %s5044, 256.0
        %v5059 = vstv %s5045
        %v5060 = vrcp.pop %v5059
        %s5061 = vtos %v5060
        %s5062 = smul.f32 %s5058, %s5061
        %v5063 = vstv %s5062
        %v5064 = vmul.f32 %v5057, %v5063
        %v5065 = vadd.f32 %v5056, %v5064
        %5066 = vst.msk [vmem:[%s457 + $0x1] sm:$0x1] %vm5054, %v5065
      $region56: #{resblock_forward.3} parent=43 // pred_fallthru
        _
      %s5067 = smul.u32 16, %s24
      %p5068 = scmp.lt.s32.totalorder %s23, 1
      %s5069 = scalar_select %p5068, %s23, 1
      %p5070 = scmp.lt.s32.totalorder %s5067, 15
      %s5071 = scalar_select %p5070, %s5067, 15
      %s5072 = smul.addr %s5071, 2
      %s5073 = smul.addr %s5069, 32
      %s5074 = sadd.s32 %s5072, %s5073
      %s5075 = smul.addr %s5074, 4
      %s5076 = scalar_lea.vmem %s6, %s5075
      %p5077 = scmp.lt.s32.totalorder %s23, 1
      %s5078 = scalar_select %p5077, %s23, 1
      %s5079 = smul.addr %s5078, 2
      %s5080 = scalar_lea.vmem %s7, %s5079
      // Predicated region
      $region57: #{resblock_forward.3} parent=43 // pred_check
        %p5081 = pneg %p214
      $region58: #{resblock_forward.3} parent=43 // pred_check_branch
        %5083 = sbr.rel (%p5081) target = $region60
      $region59: #{resblock_forward.3} parent=43 // pred_region
        %s5084 = smul.u32 16, %s24
      $region60: #{resblock_forward.3} parent=43 // pred_fallthru
        _
      // Predicated region
      $region61: #{resblock_forward.3} parent=43 // pred_check
        %p5085 = pneg %p240
      $region62: #{resblock_forward.3} parent=43 // pred_check_branch
        %5087 = sbr.rel (%p5085) target = $region64
      $region63: #{resblock_forward.3} parent=43 // pred_region
        _
      $region64: #{resblock_forward.3} parent=43 // pred_fallthru
        _
    $region44: #{resblock_forward.3} parent=5 // pred_fallthru
      _
    %p5088 = scmp.le.s32.totalorder 2, %s14
    // Predicated region
    $region65: #{resblock_forward.3} parent=5 // pred_check
      %p5089 = pneg %p5088
    $region66: #{resblock_forward.3} parent=5 // pred_check_branch
      %5091 = sbr.rel (%p5089) target = $region68
    $region67: #{resblock_forward.3} parent=5 // pred_region
      %s5092 = ssub.s32 %s14, 2
      // Predicated region
      $region69: #{resblock_forward.3} parent=67 // pred_check
        %p5093 = pneg %p220
      $region70: #{resblock_forward.3} parent=67 // pred_check_branch
        %5095 = sbr.rel (%p5093) target = $region72
      $region71: #{resblock_forward.3} parent=67 // pred_region
        %s5096 = smul.u32 16, %s26
        %p5097 = scmp.lt.s32.totalorder %s25, 1
        %s5098 = scalar_select %p5097, %s25, 1
        %p5099 = scmp.lt.s32.totalorder %s5096, 15
        %s5100 = scalar_select %p5099, %s5096, 15
        %s5101 = smul.addr %s5100, 2
        %s5102 = smul.addr %s5098, 32
        %s5103 = sadd.s32 %s5101, %s5102
        %s5104 = smul.addr %s5103, 4
        %s5105 = scalar_lea.vmem %s6, %s5104
      $region72: #{resblock_forward.3} parent=67 // pred_fallthru
        _
      // Predicated region
      $region73: #{resblock_forward.3} parent=67 // pred_check
        %p5106 = pneg %p246
      $region74: #{resblock_forward.3} parent=67 // pred_check_branch
        %5108 = sbr.rel (%p5106) target = $region76
      $region75: #{resblock_forward.3} parent=67 // pred_region
        %p5109 = scmp.lt.s32.totalorder %s25, 1
        %s5110 = scalar_select %p5109, %s25, 1
        %s5111 = smul.addr %s5110, 2
        %s5112 = scalar_lea.vmem %s7, %s5111
      $region76: #{resblock_forward.3} parent=67 // pred_fallthru
        _
    $region68: #{resblock_forward.3} parent=5 // pred_fallthru
      _
  $region6: #{resblock_forward.3} parent=0 // loop_footer
    %s18 = sadd.s32 1, %s14
  $region7: #{resblock_forward.3} parent=0 // loop_footer_branch
    %13 = sbr.rel target = $region3
  $region8: #{resblock_forward.3} parent=0 // loop_exit
    _

</llo_original>
